<compile_context>
chip_gen: v6e
topology: v6e:2x2x1
jax: 0.10.0
libtpu: 0.0.40
codegen_flags: <defaults>
</compile_context>

<pallas_src>
import functools

import numpy as np
import jax
import jax.numpy as jnp
from jax.experimental import pallas as pl
from jax.experimental.pallas import tpu as pltpu

LEAKY_SLOPE = 0.05
ATT_DIM = 128          # MutualAttentionV2 hidden width (conv2d(128))
BN_EPS = 1e-5
THREE_NN_EPS = 1e-8
BIG = 1e30


def _leaky(x):
    # LeakyReLU(0.05): for 0 < slope < 1, max(x, slope*x) == leaky_relu(x)
    return jnp.maximum(x, LEAKY_SLOPE * x)


def _decoder_kernel(p_ref, x_ref, feat_ref,
                    wk1_ref, bk1_ref, wk2_ref, bk2_ref,
                    wp1_ref, bp1_ref, wp2_ref, bp2_ref,
                    wak_ref, bak_ref, wap_ref, bap_ref,
                    wb1_ref, bb1_ref, wb2_ref, bb2_ref,
                    out_ref, *, k_query, approx_recip):
    pt = p_ref[0]        # [3, TN]  test-point tile (channel-major)
    x = x_ref[0]         # [M, 3]   input point cloud
    feat = feat_ref[0]   # [C, M]   per-input features (channel-major, f32)
    m = x.shape[0]
    tn = pt.shape[1]

    def mm(w_ref, rhs):
        # MXU matmul; rhs cast to the weight dtype (bf16 on the fast path),
        # always accumulated in f32.
        w = w_ref[...]
        return jnp.dot(w, rhs.astype(w.dtype), preferred_element_type=jnp.float32)

    # ---- pairwise squared distances [M, TN], accumulated on the VPU ----
    d2 = None
    for d in range(3):
        diff = x[:, d:d + 1] - pt[d:d + 1, :]            # [M,1] - [1,TN] -> [M,TN]
        d2 = diff * diff if d2 is None else d2 + diff * diff

    # row index kept as f32 so the tie-break stays a plain f32 sublane-reduce
    row = jax.lax.broadcasted_iota(jnp.int32, (m, tn), 0).astype(jnp.float32)
    m_f = float(m)

    # ---- iterative arg-min neighbour selection + one-hot MXU gathers ----
    n_iter = max(k_query, 3)
    f_cols = []           # gathered neighbour features, each [C, TN] (f32)
    recip_sum = None      # [1, TN]
    vfeat_acc = None      # [C, TN]
    for k in range(n_iter):
        mn = jnp.min(d2, axis=0, keepdims=True)                          # [1, TN]
        first = jnp.min(jnp.where(d2 == mn, row, m_f),
                        axis=0, keepdims=True)                           # lowest-index tie-break
        is_sel = row == first                                            # reused twice
        onehot = jnp.where(is_sel, 1.0, 0.0)                             # f32 one-hot column
        f_k = jnp.dot(feat, onehot, preferred_element_type=jnp.float32)  # gather: [C, TN]
        if k < k_query:
            f_cols.append(f_k)
        if k < 3:
            # three_nn inverse-distance weights (normalisation hoisted below)
            recip = 1.0 / (jnp.sqrt(mn) + THREE_NN_EPS)                  # [1, TN]
            recip_sum = recip if k == 0 else recip_sum + recip
            vfeat_acc = recip * f_k if k == 0 else vfeat_acc + recip * f_k
        if k + 1 < n_iter:
            d2 = jnp.where(is_sel, BIG, d2)                              # knock out, in place

    vfeat_pts = vfeat_acc * (1.0 / recip_sum)                            # three_interpolate [C, TN]

    # ---- point path: point_mlp (2x conv1d C->C, BN folded, LeakyReLU) ----
    h_pt = _leaky(mm(wp1_ref, vfeat_pts) + bp1_ref[...])
    h_pt = _leaky(mm(wp2_ref, h_pt) + bp2_ref[...])
    g_pt = _leaky(mm(wap_ref, h_pt) + bap_ref[...])                      # conv_pt: [A, TN]

    # ---- knn path: one [C, K*TN] slab through knn_mlp + conv_knn ----
    f_slab = jnp.concatenate(f_cols, axis=1)                             # [C, K*TN]
    h = _leaky(mm(wk1_ref, f_slab) + bk1_ref[...])                       # [C, K*TN]
    h_knn = _leaky(mm(wk2_ref, h) + bk2_ref[...])                        # [C, K*TN]
    g_knn = _leaky(mm(wak_ref, h_knn) + bak_ref[...])                    # conv_knn: [A, K*TN]

    # ---- attention logits per neighbour (static lane slices at k*TN are free) ----
    inv_sqrt_a = 1.0 / float(np.sqrt(g_pt.shape[0]))
    logits = []
    for k in range(k_query):
        gk = g_knn[:, k * tn:(k + 1) * tn]                               # [A, TN]
        logits.append(jnp.sum(gk * g_pt, axis=0, keepdims=True) * inv_sqrt_a)

    # ---- softmax over the K neighbours + attention-weighted fusion ----
    m_att = logits[0]
    for k in range(1, k_query):
        m_att = jnp.maximum(m_att, logits[k])
    exps = [jnp.exp(l - m_att) for l in logits]
    denom = exps[0]
    for k in range(1, k_query):
        denom = denom + exps[k]
    if approx_recip:
        inv_denom = pl.reciprocal(denom, approx=True)   # EUP slot, free-ish
    else:
        inv_denom = 1.0 / denom
    fused = None
    for k in range(k_query):
        term = (exps[k] * inv_denom) * h_knn[:, k * tn:(k + 1) * tn]     # [C, TN]
        fused = term if fused is None else fused + term

    # ---- block_net: single 2C-contraction matmul on cat([knn, point]), then C->1 ----
    cat = jnp.concatenate([fused, h_pt], axis=0)                         # [2C, TN]
    hb = _leaky(mm(wb1_ref, cat) + bb1_ref[...])
    sdf = mm(wb2_ref, hb) + bb2_ref[...]                                 # [1, TN]
    out_ref[0] = sdf


def knn_pn_nopdiff_decoder(p, inputs, feat, params, k_query=8, tile_n=512,
                           use_bf16=True, feat_channel_major=False):
    """p: [B,N,3], inputs: [B,M,3], feat (feat_list[0]): [B,M,C] (or [B,C,M] if
    feat_channel_major=True) -> net_g: [B,1,N]."""
    B, N, _ = p.shape
    M = inputs.shape[1]
    if feat_channel_major:
        C = feat.shape[1]
        feat_cm = feat
    else:
        C = feat.shape[2]
        feat_cm = jnp.transpose(feat, (0, 2, 1))      # [B, C, M]
    assert k_query >= 1 and M >= max(k_query, 3), "need M >= max(K, 3) input points"

    kernel_params = list(params)
    if use_bf16:
        # weights (even slots) -> bf16 for the MXU; biases stay f32
        kernel_params = [w.astype(jnp.bfloat16) if i % 2 == 0 else w
                         for i, w in enumerate(kernel_params)]
    A = kernel_params[8].shape[0]                     # wak rows (attention width)

    # ---- lane-dense N tiling with host-side padding (uniform grid, no tail tile) ----
    tile_n = max(128, (int(tile_n) // 128) * 128)
    n_lane = ((N + 127) // 128) * 128
    tile_n = min(tile_n, n_lane)
    n_pad = ((N + tile_n - 1) // tile_n) * tile_n
    if n_pad != N:
        p = jnp.pad(p, ((0, 0), (0, n_pad - N), (0, 0)))
    p_cm = jnp.transpose(p, (0, 2, 1))                # [B, 3, n_pad]

    # ---- VMEM budget from the actual live footprint, capped to the chip ----
    fp32 = 4
    est = ((2 * M * tile_n) * fp32                                # d2 + row
           + (3 * C + A) * k_query * tile_n * fp32                # f/h/h_knn/g_knn slabs
           + (4 * C + 2 * A + 2 * k_query + 4) * tile_n * fp32    # point path + logit temps
           + 2 * fp32 * (4 * tile_n + 3 * M + C * M)              # double-buffered IO blocks
           + 2 * sum(int(w.size) * w.dtype.itemsize for w in kernel_params))
    try:
        phys = pltpu.get_tpu_info().vmem_capacity_bytes
    except Exception:
        phys = 128 * 1024 * 1024
    vmem_limit = int(min(max(32 * 1024 * 1024, 2 * est), int(0.75 * phys)))

    kernel = functools.partial(_decoder_kernel, k_query=k_query, approx_recip=use_bf16)

    in_specs = [
        pl.BlockSpec((1, 3, tile_n), lambda b, t: (b, 0, t)),     # p (per N-tile)
        pl.BlockSpec((1, M, 3), lambda b, t: (b, 0, 0)),          # inputs (per batch)
        pl.BlockSpec((1, C, M), lambda b, t: (b, 0, 0)),          # feat_pt (per batch)
    ] + [pl.BlockSpec(w.shape, lambda b, t: (0, 0)) for w in kernel_params]

    out = pl.pallas_call(
        kernel,
        out_shape=jax.ShapeDtypeStruct((B, 1, n_pad), jnp.float32),
        grid_spec=pltpu.PrefetchScalarGridSpec(
            num_scalar_prefetch=0,
            grid=(B, n_pad // tile_n),
            in_specs=in_specs,
            out_specs=pl.BlockSpec((1, 1, tile_n), lambda b, t: (b, 0, t)),
        ),
        compiler_params=pltpu.CompilerParams(
            dimension_semantics=("parallel", "parallel"),
            vmem_limit_bytes=vmem_limit,
        ),
    )(p_cm, inputs, feat_cm, *kernel_params)
    if n_pad != N:
        out = out[:, :, :N]
    return out                                        # [B, 1, N], lane-dense


# -------------------- parameter construction (host-side glue) --------------------
def _fold_bn(W, b, gamma, beta, mean, var):
    # eval-mode BatchNorm folded into a (Cout, Cin) conv weight + (Cout,) bias
    s = gamma / jnp.sqrt(var + BN_EPS)
    return W * s[:, None], (b - mean) * s + beta


def make_params(key, C, A=ATT_DIM):
    keys = iter(jax.random.split(key, 64))

    def conv(cin, cout, scale=0.25):
        W = scale * jax.random.normal(next(keys), (cout, cin), jnp.float32)
        b = 0.1 * jax.random.normal(next(keys), (cout,), jnp.float32)
        return W, b

    def bn_stats(cout):
        gamma = 1.0 + 0.1 * jax.random.normal(next(keys), (cout,), jnp.float32)
        beta = 0.1 * jax.random.normal(next(keys), (cout,), jnp.float32)
        mean = 0.1 * jax.random.normal(next(keys), (cout,), jnp.float32)
        var = 1.0 + 0.1 * jax.random.uniform(next(keys), (cout,), jnp.float32)
        return gamma, beta, mean, var

    def conv_bn(cin, cout):
        W, b = conv(cin, cout)
        W, b = _fold_bn(W, b, *bn_stats(cout))
        return W, b.reshape(cout, 1)

    wk1, bk1 = conv_bn(C, C)       # knn_mlp
    wk2, bk2 = conv_bn(C, C)
    wp1, bp1 = conv_bn(C, C)       # point_mlp
    wp2, bp2 = conv_bn(C, C)
    wak, bak = conv_bn(C, A)       # MutualAttentionV2.conv_knn
    wap, bap = conv_bn(C, A)       # MutualAttentionV2.conv_pt (conv_pdiff unused in forward)
    wb1, bb1 = conv_bn(2 * C, C)   # block_net layer 1
    wb2, b2 = conv(C, 1)           # block_net layer 2 (no BN, no activation)
    bb2 = b2.reshape(1, 1)
    return (wk1, bk1, wk2, bk2, wp1, bp1, wp2, bp2,
            wak, bak, wap, bap, wb1, bb1, wb2, bb2)


# -------------------- pure-JAX reference for validation --------------------
def reference_forward(p, inputs, feat, params, k_query, matmul_dtype=jnp.float32):
    (wk1, bk1, wk2, bk2, wp1, bp1, wp2, bp2,
     wak, bak, wap, bap, wb1, bb1, wb2, bb2) = params
    A = wak.shape[0]
    inv_sqrt_a = 1.0 / float(np.sqrt(A))
    n_sel = max(k_query, 3)

    d2 = jnp.sum((p[:, :, None, :] - inputs[:, None, :, :]) ** 2, axis=-1)   # [B,N,M]
    _, idx = jax.lax.top_k(-d2, n_sel)                                       # [B,N,n_sel]
    d2_sel = jnp.take_along_axis(d2, idx, axis=-1)
    f_nbr = jax.vmap(lambda f, i: f[i])(feat, idx)                           # [B,N,n_sel,C]

    # three_nn / three_interpolate over the 3 nearest neighbours (f32)
    recip = 1.0 / (jnp.sqrt(d2_sel[..., :3]) + THREE_NN_EPS)                 # [B,N,3]
    vfeat_pts = (jnp.sum(recip[..., None] * f_nbr[:, :, :3, :], axis=2)
                 * (1.0 / jnp.sum(recip, axis=-1, keepdims=True)))           # [B,N,C]

    def lin(x, W, b):          # x [..., Cin], W [Cout, Cin], b [Cout, 1]
        y = jnp.dot(x.astype(matmul_dtype), W.astype(matmul_dtype).T,
                    preferred_element_type=jnp.float32)
        return y + b[:, 0]

    h_pt = _leaky(lin(vfeat_pts, wp1, bp1))
    h_pt = _leaky(lin(h_pt, wp2, bp2))
    g_pt = _leaky(lin(h_pt, wap, bap))                                       # [B,N,A]

    f_knn = f_nbr[:, :, :k_query, :]                                         # [B,N,K,C]
    h_knn = _leaky(lin(f_knn, wk1, bk1))
    h_knn = _leaky(lin(h_knn, wk2, bk2))
    g_knn = _leaky(lin(h_knn, wak, bak))                                     # [B,N,K,A]

    logits = jnp.sum(g_knn * g_pt[:, :, None, :], axis=-1) * inv_sqrt_a      # [B,N,K]
    logits = logits - jnp.max(logits, axis=-1, keepdims=True)
    att = jnp.exp(logits)
    att = att * (1.0 / jnp.sum(att, axis=-1, keepdims=True))
    fused = jnp.sum(att[..., None] * h_knn, axis=2)                          # [B,N,C]

    cat = jnp.concatenate([fused, h_pt], axis=-1)                            # [B,N,2C]
    h = _leaky(lin(cat, wb1, bb1))
    sdf = lin(h, wb2, bb2)                                                   # [B,N,1]
    return jnp.transpose(sdf, (0, 2, 1))                                     # [B,1,N]


if __name__ == "__main__":
    # small shapes consistent with the module (c_dim/eh_dim act as channel width C,
    # K = cfg['model']['K']).  z [B,z_dim] and feat_g [B,F] are unused by the forward.
    B, N, M, C, K = 2, 256, 64, 32, 8
    key = jax.random.PRNGKey(0)
    kp, ki, kf, kparam = jax.random.split(key, 4)

    p = jax.random.normal(kp, (B, N, 3), jnp.float32)        # testing point set
    inputs = jax.random.normal(ki, (B, M, 3), jnp.float32)   # input point cloud
    feat = jax.random.normal(kf, (B, M, C), jnp.float32)     # feat_list[0]: [B,M,C]

    params = make_params(kparam, C)

    # ---- exact f32 path (tight tolerance vs. the f32 reference) ----
    out32 = knn_pn_nopdiff_decoder(p, inputs, feat, params, k_query=K,
                                   tile_n=512, use_bf16=False)
    out32 = jax.block_until_ready(out32)
    assert out32.shape == (B, 1, N), out32.shape
    ref32 = jax.block_until_ready(reference_forward(p, inputs, feat, params, K,
                                                    matmul_dtype=jnp.float32))
    np.testing.assert_allclose(np.asarray(out32), np.asarray(ref32), rtol=2e-3, atol=2e-3)

    # ---- bf16 MXU fast path (v5e/v6e/v7x), checked vs. a bf16-rounded reference ----
    outbf = knn_pn_nopdiff_decoder(p, inputs, feat, params, k_query=K,
                                   tile_n=512, use_bf16=True)
    outbf = jax.block_until_ready(outbf)
    assert outbf.shape == (B, 1, N), outbf.shape
    refbf = jax.block_until_ready(reference_forward(p, inputs, feat, params, K,
                                                    matmul_dtype=jnp.bfloat16))
    np.testing.assert_allclose(np.asarray(outbf), np.asarray(refbf), rtol=2e-2, atol=2e-2)

    print("KERNEL_OK")
</pallas_src>

<mosaic_0001>
module attributes {stable_mosaic.version = 11 : i64} {
  func.func @_decoder_kernel(%arg0: i32, %arg1: i32, %arg2: memref<1x3x256xf32, #tpu.memory_space<vmem>>, %arg3: memref<1x64x3xf32, #tpu.memory_space<vmem>>, %arg4: memref<1x32x64xf32, #tpu.memory_space<vmem>>, %arg5: memref<32x32xf32, #tpu.memory_space<vmem>>, %arg6: memref<32x1xf32, #tpu.memory_space<vmem>>, %arg7: memref<32x32xf32, #tpu.memory_space<vmem>>, %arg8: memref<32x1xf32, #tpu.memory_space<vmem>>, %arg9: memref<32x32xf32, #tpu.memory_space<vmem>>, %arg10: memref<32x1xf32, #tpu.memory_space<vmem>>, %arg11: memref<32x32xf32, #tpu.memory_space<vmem>>, %arg12: memref<32x1xf32, #tpu.memory_space<vmem>>, %arg13: memref<128x32xf32, #tpu.memory_space<vmem>>, %arg14: memref<128x1xf32, #tpu.memory_space<vmem>>, %arg15: memref<128x32xf32, #tpu.memory_space<vmem>>, %arg16: memref<128x1xf32, #tpu.memory_space<vmem>>, %arg17: memref<32x64xf32, #tpu.memory_space<vmem>>, %arg18: memref<32x1xf32, #tpu.memory_space<vmem>>, %arg19: memref<1x32xf32, #tpu.memory_space<vmem>>, %arg20: memref<1x1xf32, #tpu.memory_space<vmem>>, %arg21: memref<1x1x256xf32, #tpu.memory_space<vmem>>) attributes {dimension_semantics = [#tpu.dimension_semantics<parallel>, #tpu.dimension_semantics<parallel>], iteration_bounds = array<i64: 2, 1>, scalar_prefetch = 0 : i64, scratch_operands = 0 : i64, tpu.core_type = #tpu.core_type<tc>, window_params = [{transform_indices = @transform_0, window_bounds = array<i64: 1, 3, 256>}, {transform_indices = @transform_1, window_bounds = array<i64: 1, 64, 3>}, {transform_indices = @transform_2, window_bounds = array<i64: 1, 32, 64>}, {pipeline_mode = #tpu.pipeline_mode<synchronous>, transform_indices = @transform_3, window_bounds = array<i64: 32, 32>}, {pipeline_mode = #tpu.pipeline_mode<synchronous>, transform_indices = @transform_4, window_bounds = array<i64: 32, 1>}, {pipeline_mode = #tpu.pipeline_mode<synchronous>, transform_indices = @transform_5, window_bounds = array<i64: 32, 32>}, {pipeline_mode = #tpu.pipeline_mode<synchronous>, transform_indices = @transform_6, window_bounds = array<i64: 32, 1>}, {pipeline_mode = #tpu.pipeline_mode<synchronous>, transform_indices = @transform_7, window_bounds = array<i64: 32, 32>}, {pipeline_mode = #tpu.pipeline_mode<synchronous>, transform_indices = @transform_8, window_bounds = array<i64: 32, 1>}, {pipeline_mode = #tpu.pipeline_mode<synchronous>, transform_indices = @transform_9, window_bounds = array<i64: 32, 32>}, {pipeline_mode = #tpu.pipeline_mode<synchronous>, transform_indices = @transform_10, window_bounds = array<i64: 32, 1>}, {pipeline_mode = #tpu.pipeline_mode<synchronous>, transform_indices = @transform_11, window_bounds = array<i64: 128, 32>}, {pipeline_mode = #tpu.pipeline_mode<synchronous>, transform_indices = @transform_12, window_bounds = array<i64: 128, 1>}, {pipeline_mode = #tpu.pipeline_mode<synchronous>, transform_indices = @transform_13, window_bounds = array<i64: 128, 32>}, {pipeline_mode = #tpu.pipeline_mode<synchronous>, transform_indices = @transform_14, window_bounds = array<i64: 128, 1>}, {pipeline_mode = #tpu.pipeline_mode<synchronous>, transform_indices = @transform_15, window_bounds = array<i64: 32, 64>}, {pipeline_mode = #tpu.pipeline_mode<synchronous>, transform_indices = @transform_16, window_bounds = array<i64: 32, 1>}, {pipeline_mode = #tpu.pipeline_mode<synchronous>, transform_indices = @transform_17, window_bounds = array<i64: 1, 32>}, {pipeline_mode = #tpu.pipeline_mode<synchronous>, transform_indices = @transform_18, window_bounds = array<i64: 1, 1>}, {transform_indices = @transform_19, window_bounds = array<i64: 1, 1, 256>}]} {
    %c0 = arith.constant 0 : index
    %c0_0 = arith.constant 0 : index
    %c0_1 = arith.constant 0 : index
    %0 = vector.load %arg2[%c0, %c0_0, %c0_1] : memref<1x3x256xf32, #tpu.memory_space<vmem>>, vector<1x3x256xf32>
    %1 = vector.shape_cast %0 : vector<1x3x256xf32> to vector<3x256xf32>
    %c0_2 = arith.constant 0 : index
    %c0_3 = arith.constant 0 : index
    %c0_4 = arith.constant 0 : index
    %2 = vector.load %arg3[%c0_2, %c0_3, %c0_4] : memref<1x64x3xf32, #tpu.memory_space<vmem>>, vector<1x64x3xf32>
    %3 = vector.shape_cast %2 : vector<1x64x3xf32> to vector<64x3xf32>
    %c0_5 = arith.constant 0 : index
    %c0_6 = arith.constant 0 : index
    %c0_7 = arith.constant 0 : index
    %4 = vector.load %arg4[%c0_5, %c0_6, %c0_7] : memref<1x32x64xf32, #tpu.memory_space<vmem>>, vector<1x32x64xf32>
    %5 = vector.shape_cast %4 : vector<1x32x64xf32> to vector<32x64xf32>
    %6 = vector.extract_strided_slice %3 {offsets = [0, 0], sizes = [64, 1], strides = [1, 1]} : vector<64x3xf32> to vector<64x1xf32>
    %7 = vector.extract_strided_slice %1 {offsets = [0, 0], sizes = [1, 256], strides = [1, 1]} : vector<3x256xf32> to vector<1x256xf32>
    %8 = vector.broadcast %6 : vector<64x1xf32> to vector<64x256xf32>
    %9 = vector.broadcast %7 : vector<1x256xf32> to vector<64x256xf32>
    %10 = arith.subf %8, %9 : vector<64x256xf32>
    %11 = arith.mulf %10, %10 : vector<64x256xf32>
    %12 = vector.extract_strided_slice %3 {offsets = [0, 1], sizes = [64, 1], strides = [1, 1]} : vector<64x3xf32> to vector<64x1xf32>
    %13 = vector.extract_strided_slice %1 {offsets = [1, 0], sizes = [1, 256], strides = [1, 1]} : vector<3x256xf32> to vector<1x256xf32>
    %14 = vector.broadcast %12 : vector<64x1xf32> to vector<64x256xf32>
    %15 = vector.broadcast %13 : vector<1x256xf32> to vector<64x256xf32>
    %16 = arith.subf %14, %15 : vector<64x256xf32>
    %17 = arith.mulf %16, %16 : vector<64x256xf32>
    %18 = arith.addf %11, %17 : vector<64x256xf32>
    %19 = vector.extract_strided_slice %3 {offsets = [0, 2], sizes = [64, 1], strides = [1, 1]} : vector<64x3xf32> to vector<64x1xf32>
    %20 = vector.extract_strided_slice %1 {offsets = [2, 0], sizes = [1, 256], strides = [1, 1]} : vector<3x256xf32> to vector<1x256xf32>
    %21 = vector.broadcast %19 : vector<64x1xf32> to vector<64x256xf32>
    %22 = vector.broadcast %20 : vector<1x256xf32> to vector<64x256xf32>
    %23 = arith.subf %21, %22 : vector<64x256xf32>
    %24 = arith.mulf %23, %23 : vector<64x256xf32>
    %25 = arith.addf %18, %24 : vector<64x256xf32>
    %26 = tpu.iota {dimensions = array<i32: 0>} : vector<64x256xi32>
    %27 = arith.sitofp %26 : vector<64x256xi32> to vector<64x256xf32>
    %cst = arith.constant dense<0x7F800000> : vector<256xf32>
    %28 = vector.multi_reduction <minimumf>, %25, %cst [0] : vector<64x256xf32> to vector<256xf32>
    %29 = vector.shape_cast %28 : vector<256xf32> to vector<1x256xf32>
    %30 = vector.broadcast %29 : vector<1x256xf32> to vector<64x256xf32>
    %31 = arith.cmpf oeq, %25, %30 : vector<64x256xf32>
    %cst_8 = arith.constant 6.400000e+01 : f32
    %32 = vector.broadcast %cst_8 : f32 to vector<64x256xf32>
    %33 = arith.select %31, %27, %32 : vector<64x256xi1>, vector<64x256xf32>
    %cst_9 = arith.constant dense<0x7F800000> : vector<256xf32>
    %34 = vector.multi_reduction <minimumf>, %33, %cst_9 [0] : vector<64x256xf32> to vector<256xf32>
    %35 = vector.shape_cast %34 : vector<256xf32> to vector<1x256xf32>
    %36 = vector.broadcast %35 : vector<1x256xf32> to vector<64x256xf32>
    %37 = arith.cmpf oeq, %27, %36 : vector<64x256xf32>
    %cst_10 = arith.constant 1.000000e+00 : f32
    %cst_11 = arith.constant 0.000000e+00 : f32
    %38 = vector.broadcast %cst_10 : f32 to vector<64x256xf32>
    %39 = vector.broadcast %cst_11 : f32 to vector<64x256xf32>
    %40 = arith.select %37, %38, %39 : vector<64x256xi1>, vector<64x256xf32>
    %cst_12 = arith.constant dense<0.000000e+00> : vector<32x256xf32>
    %41 = tpu.matmul %5, %40, %cst_12 {dimension_numbers = #tpu.dot_dimension_numbers<[1], [0], [0], [1], [0, 0, 1, 1], [], []>} : vector<32x64xf32>, vector<64x256xf32>, vector<32x256xf32> -> vector<32x256xf32>
    %42 = math.sqrt %29 : vector<1x256xf32>
    %cst_13 = arith.constant 9.99999993E-9 : f32
    %43 = vector.broadcast %cst_13 : f32 to vector<1x256xf32>
    %44 = arith.addf %42, %43 : vector<1x256xf32>
    %cst_14 = arith.constant 1.000000e+00 : f32
    %45 = vector.broadcast %cst_14 : f32 to vector<1x256xf32>
    %46 = arith.divf %45, %44 : vector<1x256xf32>
    %47 = vector.broadcast %46 : vector<1x256xf32> to vector<32x256xf32>
    %48 = arith.mulf %47, %41 : vector<32x256xf32>
    %cst_15 = arith.constant 1.000000e+30 : f32
    %49 = vector.broadcast %cst_15 : f32 to vector<64x256xf32>
    %50 = arith.select %37, %49, %25 : vector<64x256xi1>, vector<64x256xf32>
    %cst_16 = arith.constant dense<0x7F800000> : vector<256xf32>
    %51 = vector.multi_reduction <minimumf>, %50, %cst_16 [0] : vector<64x256xf32> to vector<256xf32>
    %52 = vector.shape_cast %51 : vector<256xf32> to vector<1x256xf32>
    %53 = vector.broadcast %52 : vector<1x256xf32> to vector<64x256xf32>
    %54 = arith.cmpf oeq, %50, %53 : vector<64x256xf32>
    %cst_17 = arith.constant 6.400000e+01 : f32
    %55 = vector.broadcast %cst_17 : f32 to vector<64x256xf32>
    %56 = arith.select %54, %27, %55 : vector<64x256xi1>, vector<64x256xf32>
    %cst_18 = arith.constant dense<0x7F800000> : vector<256xf32>
    %57 = vector.multi_reduction <minimumf>, %56, %cst_18 [0] : vector<64x256xf32> to vector<256xf32>
    %58 = vector.shape_cast %57 : vector<256xf32> to vector<1x256xf32>
    %59 = vector.broadcast %58 : vector<1x256xf32> to vector<64x256xf32>
    %60 = arith.cmpf oeq, %27, %59 : vector<64x256xf32>
    %cst_19 = arith.constant 1.000000e+00 : f32
    %cst_20 = arith.constant 0.000000e+00 : f32
    %61 = vector.broadcast %cst_19 : f32 to vector<64x256xf32>
    %62 = vector.broadcast %cst_20 : f32 to vector<64x256xf32>
    %63 = arith.select %60, %61, %62 : vector<64x256xi1>, vector<64x256xf32>
    %cst_21 = arith.constant dense<0.000000e+00> : vector<32x256xf32>
    %64 = tpu.matmul %5, %63, %cst_21 {dimension_numbers = #tpu.dot_dimension_numbers<[1], [0], [0], [1], [0, 0, 1, 1], [], []>} : vector<32x64xf32>, vector<64x256xf32>, vector<32x256xf32> -> vector<32x256xf32>
    %65 = math.sqrt %52 : vector<1x256xf32>
    %cst_22 = arith.constant 9.99999993E-9 : f32
    %66 = vector.broadcast %cst_22 : f32 to vector<1x256xf32>
    %67 = arith.addf %65, %66 : vector<1x256xf32>
    %cst_23 = arith.constant 1.000000e+00 : f32
    %68 = vector.broadcast %cst_23 : f32 to vector<1x256xf32>
    %69 = arith.divf %68, %67 : vector<1x256xf32>
    %70 = arith.addf %46, %69 : vector<1x256xf32>
    %71 = vector.broadcast %69 : vector<1x256xf32> to vector<32x256xf32>
    %72 = arith.mulf %71, %64 : vector<32x256xf32>
    %73 = arith.addf %48, %72 : vector<32x256xf32>
    %cst_24 = arith.constant 1.000000e+30 : f32
    %74 = vector.broadcast %cst_24 : f32 to vector<64x256xf32>
    %75 = arith.select %60, %74, %50 : vector<64x256xi1>, vector<64x256xf32>
    %cst_25 = arith.constant dense<0x7F800000> : vector<256xf32>
    %76 = vector.multi_reduction <minimumf>, %75, %cst_25 [0] : vector<64x256xf32> to vector<256xf32>
    %77 = vector.shape_cast %76 : vector<256xf32> to vector<1x256xf32>
    %78 = vector.broadcast %77 : vector<1x256xf32> to vector<64x256xf32>
    %79 = arith.cmpf oeq, %75, %78 : vector<64x256xf32>
    %cst_26 = arith.constant 6.400000e+01 : f32
    %80 = vector.broadcast %cst_26 : f32 to vector<64x256xf32>
    %81 = arith.select %79, %27, %80 : vector<64x256xi1>, vector<64x256xf32>
    %cst_27 = arith.constant dense<0x7F800000> : vector<256xf32>
    %82 = vector.multi_reduction <minimumf>, %81, %cst_27 [0] : vector<64x256xf32> to vector<256xf32>
    %83 = vector.shape_cast %82 : vector<256xf32> to vector<1x256xf32>
    %84 = vector.broadcast %83 : vector<1x256xf32> to vector<64x256xf32>
    %85 = arith.cmpf oeq, %27, %84 : vector<64x256xf32>
    %cst_28 = arith.constant 1.000000e+00 : f32
    %cst_29 = arith.constant 0.000000e+00 : f32
    %86 = vector.broadcast %cst_28 : f32 to vector<64x256xf32>
    %87 = vector.broadcast %cst_29 : f32 to vector<64x256xf32>
    %88 = arith.select %85, %86, %87 : vector<64x256xi1>, vector<64x256xf32>
    %cst_30 = arith.constant dense<0.000000e+00> : vector<32x256xf32>
    %89 = tpu.matmul %5, %88, %cst_30 {dimension_numbers = #tpu.dot_dimension_numbers<[1], [0], [0], [1], [0, 0, 1, 1], [], []>} : vector<32x64xf32>, vector<64x256xf32>, vector<32x256xf32> -> vector<32x256xf32>
    %90 = math.sqrt %77 : vector<1x256xf32>
    %cst_31 = arith.constant 9.99999993E-9 : f32
    %91 = vector.broadcast %cst_31 : f32 to vector<1x256xf32>
    %92 = arith.addf %90, %91 : vector<1x256xf32>
    %cst_32 = arith.constant 1.000000e+00 : f32
    %93 = vector.broadcast %cst_32 : f32 to vector<1x256xf32>
    %94 = arith.divf %93, %92 : vector<1x256xf32>
    %95 = arith.addf %70, %94 : vector<1x256xf32>
    %96 = vector.broadcast %94 : vector<1x256xf32> to vector<32x256xf32>
    %97 = arith.mulf %96, %89 : vector<32x256xf32>
    %98 = arith.addf %73, %97 : vector<32x256xf32>
    %cst_33 = arith.constant 1.000000e+30 : f32
    %99 = vector.broadcast %cst_33 : f32 to vector<64x256xf32>
    %100 = arith.select %85, %99, %75 : vector<64x256xi1>, vector<64x256xf32>
    %cst_34 = arith.constant dense<0x7F800000> : vector<256xf32>
    %101 = vector.multi_reduction <minimumf>, %100, %cst_34 [0] : vector<64x256xf32> to vector<256xf32>
    %102 = vector.shape_cast %101 : vector<256xf32> to vector<1x256xf32>
    %103 = vector.broadcast %102 : vector<1x256xf32> to vector<64x256xf32>
    %104 = arith.cmpf oeq, %100, %103 : vector<64x256xf32>
    %cst_35 = arith.constant 6.400000e+01 : f32
    %105 = vector.broadcast %cst_35 : f32 to vector<64x256xf32>
    %106 = arith.select %104, %27, %105 : vector<64x256xi1>, vector<64x256xf32>
    %cst_36 = arith.constant dense<0x7F800000> : vector<256xf32>
    %107 = vector.multi_reduction <minimumf>, %106, %cst_36 [0] : vector<64x256xf32> to vector<256xf32>
    %108 = vector.shape_cast %107 : vector<256xf32> to vector<1x256xf32>
    %109 = vector.broadcast %108 : vector<1x256xf32> to vector<64x256xf32>
    %110 = arith.cmpf oeq, %27, %109 : vector<64x256xf32>
    %cst_37 = arith.constant 1.000000e+00 : f32
    %cst_38 = arith.constant 0.000000e+00 : f32
    %111 = vector.broadcast %cst_37 : f32 to vector<64x256xf32>
    %112 = vector.broadcast %cst_38 : f32 to vector<64x256xf32>
    %113 = arith.select %110, %111, %112 : vector<64x256xi1>, vector<64x256xf32>
    %cst_39 = arith.constant dense<0.000000e+00> : vector<32x256xf32>
    %114 = tpu.matmul %5, %113, %cst_39 {dimension_numbers = #tpu.dot_dimension_numbers<[1], [0], [0], [1], [0, 0, 1, 1], [], []>} : vector<32x64xf32>, vector<64x256xf32>, vector<32x256xf32> -> vector<32x256xf32>
    %cst_40 = arith.constant 1.000000e+30 : f32
    %115 = vector.broadcast %cst_40 : f32 to vector<64x256xf32>
    %116 = arith.select %110, %115, %100 : vector<64x256xi1>, vector<64x256xf32>
    %cst_41 = arith.constant dense<0x7F800000> : vector<256xf32>
    %117 = vector.multi_reduction <minimumf>, %116, %cst_41 [0] : vector<64x256xf32> to vector<256xf32>
    %118 = vector.shape_cast %117 : vector<256xf32> to vector<1x256xf32>
    %119 = vector.broadcast %118 : vector<1x256xf32> to vector<64x256xf32>
    %120 = arith.cmpf oeq, %116, %119 : vector<64x256xf32>
    %cst_42 = arith.constant 6.400000e+01 : f32
    %121 = vector.broadcast %cst_42 : f32 to vector<64x256xf32>
    %122 = arith.select %120, %27, %121 : vector<64x256xi1>, vector<64x256xf32>
    %cst_43 = arith.constant dense<0x7F800000> : vector<256xf32>
    %123 = vector.multi_reduction <minimumf>, %122, %cst_43 [0] : vector<64x256xf32> to vector<256xf32>
    %124 = vector.shape_cast %123 : vector<256xf32> to vector<1x256xf32>
    %125 = vector.broadcast %124 : vector<1x256xf32> to vector<64x256xf32>
    %126 = arith.cmpf oeq, %27, %125 : vector<64x256xf32>
    %cst_44 = arith.constant 1.000000e+00 : f32
    %cst_45 = arith.constant 0.000000e+00 : f32
    %127 = vector.broadcast %cst_44 : f32 to vector<64x256xf32>
    %128 = vector.broadcast %cst_45 : f32 to vector<64x256xf32>
    %129 = arith.select %126, %127, %128 : vector<64x256xi1>, vector<64x256xf32>
    %cst_46 = arith.constant dense<0.000000e+00> : vector<32x256xf32>
    %130 = tpu.matmul %5, %129, %cst_46 {dimension_numbers = #tpu.dot_dimension_numbers<[1], [0], [0], [1], [0, 0, 1, 1], [], []>} : vector<32x64xf32>, vector<64x256xf32>, vector<32x256xf32> -> vector<32x256xf32>
    %cst_47 = arith.constant 1.000000e+30 : f32
    %131 = vector.broadcast %cst_47 : f32 to vector<64x256xf32>
    %132 = arith.select %126, %131, %116 : vector<64x256xi1>, vector<64x256xf32>
    %cst_48 = arith.constant dense<0x7F800000> : vector<256xf32>
    %133 = vector.multi_reduction <minimumf>, %132, %cst_48 [0] : vector<64x256xf32> to vector<256xf32>
    %134 = vector.shape_cast %133 : vector<256xf32> to vector<1x256xf32>
    %135 = vector.broadcast %134 : vector<1x256xf32> to vector<64x256xf32>
    %136 = arith.cmpf oeq, %132, %135 : vector<64x256xf32>
    %cst_49 = arith.constant 6.400000e+01 : f32
    %137 = vector.broadcast %cst_49 : f32 to vector<64x256xf32>
    %138 = arith.select %136, %27, %137 : vector<64x256xi1>, vector<64x256xf32>
    %cst_50 = arith.constant dense<0x7F800000> : vector<256xf32>
    %139 = vector.multi_reduction <minimumf>, %138, %cst_50 [0] : vector<64x256xf32> to vector<256xf32>
    %140 = vector.shape_cast %139 : vector<256xf32> to vector<1x256xf32>
    %141 = vector.broadcast %140 : vector<1x256xf32> to vector<64x256xf32>
    %142 = arith.cmpf oeq, %27, %141 : vector<64x256xf32>
    %cst_51 = arith.constant 1.000000e+00 : f32
    %cst_52 = arith.constant 0.000000e+00 : f32
    %143 = vector.broadcast %cst_51 : f32 to vector<64x256xf32>
    %144 = vector.broadcast %cst_52 : f32 to vector<64x256xf32>
    %145 = arith.select %142, %143, %144 : vector<64x256xi1>, vector<64x256xf32>
    %cst_53 = arith.constant dense<0.000000e+00> : vector<32x256xf32>
    %146 = tpu.matmul %5, %145, %cst_53 {dimension_numbers = #tpu.dot_dimension_numbers<[1], [0], [0], [1], [0, 0, 1, 1], [], []>} : vector<32x64xf32>, vector<64x256xf32>, vector<32x256xf32> -> vector<32x256xf32>
    %cst_54 = arith.constant 1.000000e+30 : f32
    %147 = vector.broadcast %cst_54 : f32 to vector<64x256xf32>
    %148 = arith.select %142, %147, %132 : vector<64x256xi1>, vector<64x256xf32>
    %cst_55 = arith.constant dense<0x7F800000> : vector<256xf32>
    %149 = vector.multi_reduction <minimumf>, %148, %cst_55 [0] : vector<64x256xf32> to vector<256xf32>
    %150 = vector.shape_cast %149 : vector<256xf32> to vector<1x256xf32>
    %151 = vector.broadcast %150 : vector<1x256xf32> to vector<64x256xf32>
    %152 = arith.cmpf oeq, %148, %151 : vector<64x256xf32>
    %cst_56 = arith.constant 6.400000e+01 : f32
    %153 = vector.broadcast %cst_56 : f32 to vector<64x256xf32>
    %154 = arith.select %152, %27, %153 : vector<64x256xi1>, vector<64x256xf32>
    %cst_57 = arith.constant dense<0x7F800000> : vector<256xf32>
    %155 = vector.multi_reduction <minimumf>, %154, %cst_57 [0] : vector<64x256xf32> to vector<256xf32>
    %156 = vector.shape_cast %155 : vector<256xf32> to vector<1x256xf32>
    %157 = vector.broadcast %156 : vector<1x256xf32> to vector<64x256xf32>
    %158 = arith.cmpf oeq, %27, %157 : vector<64x256xf32>
    %cst_58 = arith.constant 1.000000e+00 : f32
    %cst_59 = arith.constant 0.000000e+00 : f32
    %159 = vector.broadcast %cst_58 : f32 to vector<64x256xf32>
    %160 = vector.broadcast %cst_59 : f32 to vector<64x256xf32>
    %161 = arith.select %158, %159, %160 : vector<64x256xi1>, vector<64x256xf32>
    %cst_60 = arith.constant dense<0.000000e+00> : vector<32x256xf32>
    %162 = tpu.matmul %5, %161, %cst_60 {dimension_numbers = #tpu.dot_dimension_numbers<[1], [0], [0], [1], [0, 0, 1, 1], [], []>} : vector<32x64xf32>, vector<64x256xf32>, vector<32x256xf32> -> vector<32x256xf32>
    %cst_61 = arith.constant 1.000000e+30 : f32
    %163 = vector.broadcast %cst_61 : f32 to vector<64x256xf32>
    %164 = arith.select %158, %163, %148 : vector<64x256xi1>, vector<64x256xf32>
    %cst_62 = arith.constant dense<0x7F800000> : vector<256xf32>
    %165 = vector.multi_reduction <minimumf>, %164, %cst_62 [0] : vector<64x256xf32> to vector<256xf32>
    %166 = vector.shape_cast %165 : vector<256xf32> to vector<1x256xf32>
    %167 = vector.broadcast %166 : vector<1x256xf32> to vector<64x256xf32>
    %168 = arith.cmpf oeq, %164, %167 : vector<64x256xf32>
    %cst_63 = arith.constant 6.400000e+01 : f32
    %169 = vector.broadcast %cst_63 : f32 to vector<64x256xf32>
    %170 = arith.select %168, %27, %169 : vector<64x256xi1>, vector<64x256xf32>
    %cst_64 = arith.constant dense<0x7F800000> : vector<256xf32>
    %171 = vector.multi_reduction <minimumf>, %170, %cst_64 [0] : vector<64x256xf32> to vector<256xf32>
    %172 = vector.shape_cast %171 : vector<256xf32> to vector<1x256xf32>
    %173 = vector.broadcast %172 : vector<1x256xf32> to vector<64x256xf32>
    %174 = arith.cmpf oeq, %27, %173 : vector<64x256xf32>
    %cst_65 = arith.constant 1.000000e+00 : f32
    %cst_66 = arith.constant 0.000000e+00 : f32
    %175 = vector.broadcast %cst_65 : f32 to vector<64x256xf32>
    %176 = vector.broadcast %cst_66 : f32 to vector<64x256xf32>
    %177 = arith.select %174, %175, %176 : vector<64x256xi1>, vector<64x256xf32>
    %cst_67 = arith.constant dense<0.000000e+00> : vector<32x256xf32>
    %178 = tpu.matmul %5, %177, %cst_67 {dimension_numbers = #tpu.dot_dimension_numbers<[1], [0], [0], [1], [0, 0, 1, 1], [], []>} : vector<32x64xf32>, vector<64x256xf32>, vector<32x256xf32> -> vector<32x256xf32>
    %cst_68 = arith.constant 1.000000e+00 : f32
    %179 = vector.broadcast %cst_68 : f32 to vector<1x256xf32>
    %180 = arith.divf %179, %95 : vector<1x256xf32>
    %181 = vector.broadcast %180 : vector<1x256xf32> to vector<32x256xf32>
    %182 = arith.mulf %98, %181 : vector<32x256xf32>
    %c0_69 = arith.constant 0 : index
    %c0_70 = arith.constant 0 : index
    %183 = vector.load %arg9[%c0_69, %c0_70] : memref<32x32xf32, #tpu.memory_space<vmem>>, vector<32x32xf32>
    %cst_71 = arith.constant dense<0.000000e+00> : vector<32x256xf32>
    %184 = tpu.matmul %183, %182, %cst_71 {dimension_numbers = #tpu.dot_dimension_numbers<[1], [0], [0], [1], [0, 0, 1, 1], [], []>} : vector<32x32xf32>, vector<32x256xf32>, vector<32x256xf32> -> vector<32x256xf32>
    %c0_72 = arith.constant 0 : index
    %c0_73 = arith.constant 0 : index
    %185 = vector.load %arg10[%c0_72, %c0_73] : memref<32x1xf32, #tpu.memory_space<vmem>>, vector<32x1xf32>
    %186 = vector.broadcast %185 : vector<32x1xf32> to vector<32x256xf32>
    %187 = arith.addf %184, %186 : vector<32x256xf32>
    %cst_74 = arith.constant 5.000000e-02 : f32
    %188 = vector.broadcast %cst_74 : f32 to vector<32x256xf32>
    %189 = arith.mulf %188, %187 : vector<32x256xf32>
    %190 = arith.maximumf %187, %189 : vector<32x256xf32>
    %c0_75 = arith.constant 0 : index
    %c0_76 = arith.constant 0 : index
    %191 = vector.load %arg11[%c0_75, %c0_76] : memref<32x32xf32, #tpu.memory_space<vmem>>, vector<32x32xf32>
    %cst_77 = arith.constant dense<0.000000e+00> : vector<32x256xf32>
    %192 = tpu.matmul %191, %190, %cst_77 {dimension_numbers = #tpu.dot_dimension_numbers<[1], [0], [0], [1], [0, 0, 1, 1], [], []>} : vector<32x32xf32>, vector<32x256xf32>, vector<32x256xf32> -> vector<32x256xf32>
    %c0_78 = arith.constant 0 : index
    %c0_79 = arith.constant 0 : index
    %193 = vector.load %arg12[%c0_78, %c0_79] : memref<32x1xf32, #tpu.memory_space<vmem>>, vector<32x1xf32>
    %194 = vector.broadcast %193 : vector<32x1xf32> to vector<32x256xf32>
    %195 = arith.addf %192, %194 : vector<32x256xf32>
    %cst_80 = arith.constant 5.000000e-02 : f32
    %196 = vector.broadcast %cst_80 : f32 to vector<32x256xf32>
    %197 = arith.mulf %196, %195 : vector<32x256xf32>
    %198 = arith.maximumf %195, %197 : vector<32x256xf32>
    %c0_81 = arith.constant 0 : index
    %c0_82 = arith.constant 0 : index
    %199 = vector.load %arg15[%c0_81, %c0_82] : memref<128x32xf32, #tpu.memory_space<vmem>>, vector<128x32xf32>
    %cst_83 = arith.constant dense<0.000000e+00> : vector<128x256xf32>
    %200 = tpu.matmul %199, %198, %cst_83 {dimension_numbers = #tpu.dot_dimension_numbers<[1], [0], [0], [1], [0, 0, 1, 1], [], []>} : vector<128x32xf32>, vector<32x256xf32>, vector<128x256xf32> -> vector<128x256xf32>
    %c0_84 = arith.constant 0 : index
    %c0_85 = arith.constant 0 : index
    %201 = vector.load %arg16[%c0_84, %c0_85] : memref<128x1xf32, #tpu.memory_space<vmem>>, vector<128x1xf32>
    %202 = vector.broadcast %201 : vector<128x1xf32> to vector<128x256xf32>
    %203 = arith.addf %200, %202 : vector<128x256xf32>
    %cst_86 = arith.constant 5.000000e-02 : f32
    %204 = vector.broadcast %cst_86 : f32 to vector<128x256xf32>
    %205 = arith.mulf %204, %203 : vector<128x256xf32>
    %206 = arith.maximumf %203, %205 : vector<128x256xf32>
    %207 = tpu.concatenate %41, %64, %89, %114, %130, %146, %162, %178 in 1 : vector<32x256xf32>, vector<32x256xf32>, vector<32x256xf32>, vector<32x256xf32>, vector<32x256xf32>, vector<32x256xf32>, vector<32x256xf32>, vector<32x256xf32> -> vector<32x2048xf32>
    %c0_87 = arith.constant 0 : index
    %c0_88 = arith.constant 0 : index
    %208 = vector.load %arg5[%c0_87, %c0_88] : memref<32x32xf32, #tpu.memory_space<vmem>>, vector<32x32xf32>
    %cst_89 = arith.constant dense<0.000000e+00> : vector<32x2048xf32>
    %209 = tpu.matmul %208, %207, %cst_89 {dimension_numbers = #tpu.dot_dimension_numbers<[1], [0], [0], [1], [0, 0, 1, 1], [], []>} : vector<32x32xf32>, vector<32x2048xf32>, vector<32x2048xf32> -> vector<32x2048xf32>
    %c0_90 = arith.constant 0 : index
    %c0_91 = arith.constant 0 : index
    %210 = vector.load %arg6[%c0_90, %c0_91] : memref<32x1xf32, #tpu.memory_space<vmem>>, vector<32x1xf32>
    %211 = vector.broadcast %210 : vector<32x1xf32> to vector<32x2048xf32>
    %212 = arith.addf %209, %211 : vector<32x2048xf32>
    %cst_92 = arith.constant 5.000000e-02 : f32
    %213 = vector.broadcast %cst_92 : f32 to vector<32x2048xf32>
    %214 = arith.mulf %213, %212 : vector<32x2048xf32>
    %215 = arith.maximumf %212, %214 : vector<32x2048xf32>
    %c0_93 = arith.constant 0 : index
    %c0_94 = arith.constant 0 : index
    %216 = vector.load %arg7[%c0_93, %c0_94] : memref<32x32xf32, #tpu.memory_space<vmem>>, vector<32x32xf32>
    %cst_95 = arith.constant dense<0.000000e+00> : vector<32x2048xf32>
    %217 = tpu.matmul %216, %215, %cst_95 {dimension_numbers = #tpu.dot_dimension_numbers<[1], [0], [0], [1], [0, 0, 1, 1], [], []>} : vector<32x32xf32>, vector<32x2048xf32>, vector<32x2048xf32> -> vector<32x2048xf32>
    %c0_96 = arith.constant 0 : index
    %c0_97 = arith.constant 0 : index
    %218 = vector.load %arg8[%c0_96, %c0_97] : memref<32x1xf32, #tpu.memory_space<vmem>>, vector<32x1xf32>
    %219 = vector.broadcast %218 : vector<32x1xf32> to vector<32x2048xf32>
    %220 = arith.addf %217, %219 : vector<32x2048xf32>
    %cst_98 = arith.constant 5.000000e-02 : f32
    %221 = vector.broadcast %cst_98 : f32 to vector<32x2048xf32>
    %222 = arith.mulf %221, %220 : vector<32x2048xf32>
    %223 = arith.maximumf %220, %222 : vector<32x2048xf32>
    %c0_99 = arith.constant 0 : index
    %c0_100 = arith.constant 0 : index
    %224 = vector.load %arg13[%c0_99, %c0_100] : memref<128x32xf32, #tpu.memory_space<vmem>>, vector<128x32xf32>
    %cst_101 = arith.constant dense<0.000000e+00> : vector<128x2048xf32>
    %225 = tpu.matmul %224, %223, %cst_101 {dimension_numbers = #tpu.dot_dimension_numbers<[1], [0], [0], [1], [0, 0, 1, 1], [], []>} : vector<128x32xf32>, vector<32x2048xf32>, vector<128x2048xf32> -> vector<128x2048xf32>
    %c0_102 = arith.constant 0 : index
    %c0_103 = arith.constant 0 : index
    %226 = vector.load %arg14[%c0_102, %c0_103] : memref<128x1xf32, #tpu.memory_space<vmem>>, vector<128x1xf32>
    %227 = vector.broadcast %226 : vector<128x1xf32> to vector<128x2048xf32>
    %228 = arith.addf %225, %227 : vector<128x2048xf32>
    %cst_104 = arith.constant 5.000000e-02 : f32
    %229 = vector.broadcast %cst_104 : f32 to vector<128x2048xf32>
    %230 = arith.mulf %229, %228 : vector<128x2048xf32>
    %231 = arith.maximumf %228, %230 : vector<128x2048xf32>
    %232 = vector.extract_strided_slice %231 {offsets = [0, 0], sizes = [128, 256], strides = [1, 1]} : vector<128x2048xf32> to vector<128x256xf32>
    %233 = arith.mulf %232, %206 : vector<128x256xf32>
    %cst_105 = arith.constant dense<0.000000e+00> : vector<256xf32>
    %234 = vector.multi_reduction <add>, %233, %cst_105 [0] : vector<128x256xf32> to vector<256xf32>
    %235 = vector.shape_cast %234 : vector<256xf32> to vector<1x256xf32>
    %cst_106 = arith.constant 0.0883883461 : f32
    %236 = vector.broadcast %cst_106 : f32 to vector<1x256xf32>
    %237 = arith.mulf %235, %236 : vector<1x256xf32>
    %238 = vector.extract_strided_slice %231 {offsets = [0, 256], sizes = [128, 256], strides = [1, 1]} : vector<128x2048xf32> to vector<128x256xf32>
    %239 = arith.mulf %238, %206 : vector<128x256xf32>
    %cst_107 = arith.constant dense<0.000000e+00> : vector<256xf32>
    %240 = vector.multi_reduction <add>, %239, %cst_107 [0] : vector<128x256xf32> to vector<256xf32>
    %241 = vector.shape_cast %240 : vector<256xf32> to vector<1x256xf32>
    %cst_108 = arith.constant 0.0883883461 : f32
    %242 = vector.broadcast %cst_108 : f32 to vector<1x256xf32>
    %243 = arith.mulf %241, %242 : vector<1x256xf32>
    %244 = vector.extract_strided_slice %231 {offsets = [0, 512], sizes = [128, 256], strides = [1, 1]} : vector<128x2048xf32> to vector<128x256xf32>
    %245 = arith.mulf %244, %206 : vector<128x256xf32>
    %cst_109 = arith.constant dense<0.000000e+00> : vector<256xf32>
    %246 = vector.multi_reduction <add>, %245, %cst_109 [0] : vector<128x256xf32> to vector<256xf32>
    %247 = vector.shape_cast %246 : vector<256xf32> to vector<1x256xf32>
    %cst_110 = arith.constant 0.0883883461 : f32
    %248 = vector.broadcast %cst_110 : f32 to vector<1x256xf32>
    %249 = arith.mulf %247, %248 : vector<1x256xf32>
    %250 = vector.extract_strided_slice %231 {offsets = [0, 768], sizes = [128, 256], strides = [1, 1]} : vector<128x2048xf32> to vector<128x256xf32>
    %251 = arith.mulf %250, %206 : vector<128x256xf32>
    %cst_111 = arith.constant dense<0.000000e+00> : vector<256xf32>
    %252 = vector.multi_reduction <add>, %251, %cst_111 [0] : vector<128x256xf32> to vector<256xf32>
    %253 = vector.shape_cast %252 : vector<256xf32> to vector<1x256xf32>
    %cst_112 = arith.constant 0.0883883461 : f32
    %254 = vector.broadcast %cst_112 : f32 to vector<1x256xf32>
    %255 = arith.mulf %253, %254 : vector<1x256xf32>
    %256 = vector.extract_strided_slice %231 {offsets = [0, 1024], sizes = [128, 256], strides = [1, 1]} : vector<128x2048xf32> to vector<128x256xf32>
    %257 = arith.mulf %256, %206 : vector<128x256xf32>
    %cst_113 = arith.constant dense<0.000000e+00> : vector<256xf32>
    %258 = vector.multi_reduction <add>, %257, %cst_113 [0] : vector<128x256xf32> to vector<256xf32>
    %259 = vector.shape_cast %258 : vector<256xf32> to vector<1x256xf32>
    %cst_114 = arith.constant 0.0883883461 : f32
    %260 = vector.broadcast %cst_114 : f32 to vector<1x256xf32>
    %261 = arith.mulf %259, %260 : vector<1x256xf32>
    %262 = vector.extract_strided_slice %231 {offsets = [0, 1280], sizes = [128, 256], strides = [1, 1]} : vector<128x2048xf32> to vector<128x256xf32>
    %263 = arith.mulf %262, %206 : vector<128x256xf32>
    %cst_115 = arith.constant dense<0.000000e+00> : vector<256xf32>
    %264 = vector.multi_reduction <add>, %263, %cst_115 [0] : vector<128x256xf32> to vector<256xf32>
    %265 = vector.shape_cast %264 : vector<256xf32> to vector<1x256xf32>
    %cst_116 = arith.constant 0.0883883461 : f32
    %266 = vector.broadcast %cst_116 : f32 to vector<1x256xf32>
    %267 = arith.mulf %265, %266 : vector<1x256xf32>
    %268 = vector.extract_strided_slice %231 {offsets = [0, 1536], sizes = [128, 256], strides = [1, 1]} : vector<128x2048xf32> to vector<128x256xf32>
    %269 = arith.mulf %268, %206 : vector<128x256xf32>
    %cst_117 = arith.constant dense<0.000000e+00> : vector<256xf32>
    %270 = vector.multi_reduction <add>, %269, %cst_117 [0] : vector<128x256xf32> to vector<256xf32>
    %271 = vector.shape_cast %270 : vector<256xf32> to vector<1x256xf32>
    %cst_118 = arith.constant 0.0883883461 : f32
    %272 = vector.broadcast %cst_118 : f32 to vector<1x256xf32>
    %273 = arith.mulf %271, %272 : vector<1x256xf32>
    %274 = vector.extract_strided_slice %231 {offsets = [0, 1792], sizes = [128, 256], strides = [1, 1]} : vector<128x2048xf32> to vector<128x256xf32>
    %275 = arith.mulf %274, %206 : vector<128x256xf32>
    %cst_119 = arith.constant dense<0.000000e+00> : vector<256xf32>
    %276 = vector.multi_reduction <add>, %275, %cst_119 [0] : vector<128x256xf32> to vector<256xf32>
    %277 = vector.shape_cast %276 : vector<256xf32> to vector<1x256xf32>
    %cst_120 = arith.constant 0.0883883461 : f32
    %278 = vector.broadcast %cst_120 : f32 to vector<1x256xf32>
    %279 = arith.mulf %277, %278 : vector<1x256xf32>
    %280 = arith.maximumf %237, %243 : vector<1x256xf32>
    %281 = arith.maximumf %280, %249 : vector<1x256xf32>
    %282 = arith.maximumf %281, %255 : vector<1x256xf32>
    %283 = arith.maximumf %282, %261 : vector<1x256xf32>
    %284 = arith.maximumf %283, %267 : vector<1x256xf32>
    %285 = arith.maximumf %284, %273 : vector<1x256xf32>
    %286 = arith.maximumf %285, %279 : vector<1x256xf32>
    %287 = arith.subf %237, %286 : vector<1x256xf32>
    %288 = math.exp %287 : vector<1x256xf32>
    %289 = arith.subf %243, %286 : vector<1x256xf32>
    %290 = math.exp %289 : vector<1x256xf32>
    %291 = arith.subf %249, %286 : vector<1x256xf32>
    %292 = math.exp %291 : vector<1x256xf32>
    %293 = arith.subf %255, %286 : vector<1x256xf32>
    %294 = math.exp %293 : vector<1x256xf32>
    %295 = arith.subf %261, %286 : vector<1x256xf32>
    %296 = math.exp %295 : vector<1x256xf32>
    %297 = arith.subf %267, %286 : vector<1x256xf32>
    %298 = math.exp %297 : vector<1x256xf32>
    %299 = arith.subf %273, %286 : vector<1x256xf32>
    %300 = math.exp %299 : vector<1x256xf32>
    %301 = arith.subf %279, %286 : vector<1x256xf32>
    %302 = math.exp %301 : vector<1x256xf32>
    %303 = arith.addf %288, %290 : vector<1x256xf32>
    %304 = arith.addf %303, %292 : vector<1x256xf32>
    %305 = arith.addf %304, %294 : vector<1x256xf32>
    %306 = arith.addf %305, %296 : vector<1x256xf32>
    %307 = arith.addf %306, %298 : vector<1x256xf32>
    %308 = arith.addf %307, %300 : vector<1x256xf32>
    %309 = arith.addf %308, %302 : vector<1x256xf32>
    %cst_121 = arith.constant 1.000000e+00 : f32
    %310 = vector.broadcast %cst_121 : f32 to vector<1x256xf32>
    %311 = arith.divf %310, %309 : vector<1x256xf32>
    %312 = arith.mulf %288, %311 : vector<1x256xf32>
    %313 = vector.extract_strided_slice %223 {offsets = [0, 0], sizes = [32, 256], strides = [1, 1]} : vector<32x2048xf32> to vector<32x256xf32>
    %314 = vector.broadcast %312 : vector<1x256xf32> to vector<32x256xf32>
    %315 = arith.mulf %314, %313 : vector<32x256xf32>
    %316 = arith.mulf %290, %311 : vector<1x256xf32>
    %317 = vector.extract_strided_slice %223 {offsets = [0, 256], sizes = [32, 256], strides = [1, 1]} : vector<32x2048xf32> to vector<32x256xf32>
    %318 = vector.broadcast %316 : vector<1x256xf32> to vector<32x256xf32>
    %319 = arith.mulf %318, %317 : vector<32x256xf32>
    %320 = arith.addf %315, %319 : vector<32x256xf32>
    %321 = arith.mulf %292, %311 : vector<1x256xf32>
    %322 = vector.extract_strided_slice %223 {offsets = [0, 512], sizes = [32, 256], strides = [1, 1]} : vector<32x2048xf32> to vector<32x256xf32>
    %323 = vector.broadcast %321 : vector<1x256xf32> to vector<32x256xf32>
    %324 = arith.mulf %323, %322 : vector<32x256xf32>
    %325 = arith.addf %320, %324 : vector<32x256xf32>
    %326 = arith.mulf %294, %311 : vector<1x256xf32>
    %327 = vector.extract_strided_slice %223 {offsets = [0, 768], sizes = [32, 256], strides = [1, 1]} : vector<32x2048xf32> to vector<32x256xf32>
    %328 = vector.broadcast %326 : vector<1x256xf32> to vector<32x256xf32>
    %329 = arith.mulf %328, %327 : vector<32x256xf32>
    %330 = arith.addf %325, %329 : vector<32x256xf32>
    %331 = arith.mulf %296, %311 : vector<1x256xf32>
    %332 = vector.extract_strided_slice %223 {offsets = [0, 1024], sizes = [32, 256], strides = [1, 1]} : vector<32x2048xf32> to vector<32x256xf32>
    %333 = vector.broadcast %331 : vector<1x256xf32> to vector<32x256xf32>
    %334 = arith.mulf %333, %332 : vector<32x256xf32>
    %335 = arith.addf %330, %334 : vector<32x256xf32>
    %336 = arith.mulf %298, %311 : vector<1x256xf32>
    %337 = vector.extract_strided_slice %223 {offsets = [0, 1280], sizes = [32, 256], strides = [1, 1]} : vector<32x2048xf32> to vector<32x256xf32>
    %338 = vector.broadcast %336 : vector<1x256xf32> to vector<32x256xf32>
    %339 = arith.mulf %338, %337 : vector<32x256xf32>
    %340 = arith.addf %335, %339 : vector<32x256xf32>
    %341 = arith.mulf %300, %311 : vector<1x256xf32>
    %342 = vector.extract_strided_slice %223 {offsets = [0, 1536], sizes = [32, 256], strides = [1, 1]} : vector<32x2048xf32> to vector<32x256xf32>
    %343 = vector.broadcast %341 : vector<1x256xf32> to vector<32x256xf32>
    %344 = arith.mulf %343, %342 : vector<32x256xf32>
    %345 = arith.addf %340, %344 : vector<32x256xf32>
    %346 = arith.mulf %302, %311 : vector<1x256xf32>
    %347 = vector.extract_strided_slice %223 {offsets = [0, 1792], sizes = [32, 256], strides = [1, 1]} : vector<32x2048xf32> to vector<32x256xf32>
    %348 = vector.broadcast %346 : vector<1x256xf32> to vector<32x256xf32>
    %349 = arith.mulf %348, %347 : vector<32x256xf32>
    %350 = arith.addf %345, %349 : vector<32x256xf32>
    %351 = tpu.concatenate %350, %198 in 0 : vector<32x256xf32>, vector<32x256xf32> -> vector<64x256xf32>
    %c0_122 = arith.constant 0 : index
    %c0_123 = arith.constant 0 : index
    %352 = vector.load %arg17[%c0_122, %c0_123] : memref<32x64xf32, #tpu.memory_space<vmem>>, vector<32x64xf32>
    %cst_124 = arith.constant dense<0.000000e+00> : vector<32x256xf32>
    %353 = tpu.matmul %352, %351, %cst_124 {dimension_numbers = #tpu.dot_dimension_numbers<[1], [0], [0], [1], [0, 0, 1, 1], [], []>} : vector<32x64xf32>, vector<64x256xf32>, vector<32x256xf32> -> vector<32x256xf32>
    %c0_125 = arith.constant 0 : index
    %c0_126 = arith.constant 0 : index
    %354 = vector.load %arg18[%c0_125, %c0_126] : memref<32x1xf32, #tpu.memory_space<vmem>>, vector<32x1xf32>
    %355 = vector.broadcast %354 : vector<32x1xf32> to vector<32x256xf32>
    %356 = arith.addf %353, %355 : vector<32x256xf32>
    %cst_127 = arith.constant 5.000000e-02 : f32
    %357 = vector.broadcast %cst_127 : f32 to vector<32x256xf32>
    %358 = arith.mulf %357, %356 : vector<32x256xf32>
    %359 = arith.maximumf %356, %358 : vector<32x256xf32>
    %c0_128 = arith.constant 0 : index
    %c0_129 = arith.constant 0 : index
    %360 = vector.load %arg19[%c0_128, %c0_129] : memref<1x32xf32, #tpu.memory_space<vmem>>, vector<1x32xf32>
    %cst_130 = arith.constant dense<0.000000e+00> : vector<1x256xf32>
    %361 = tpu.matmul %360, %359, %cst_130 {dimension_numbers = #tpu.dot_dimension_numbers<[1], [0], [0], [1], [0, 0, 1, 1], [], []>} : vector<1x32xf32>, vector<32x256xf32>, vector<1x256xf32> -> vector<1x256xf32>
    %c0_131 = arith.constant 0 : index
    %c0_132 = arith.constant 0 : index
    %362 = vector.load %arg20[%c0_131, %c0_132] : memref<1x1xf32, #tpu.memory_space<vmem>>, vector<1x1xf32>
    %363 = vector.broadcast %362 : vector<1x1xf32> to vector<1x256xf32>
    %364 = arith.addf %361, %363 : vector<1x256xf32>
    %c0_133 = arith.constant 0 : index
    %c0_134 = arith.constant 0 : index
    %c0_135 = arith.constant 0 : index
    %365 = vector.load %arg21[%c0_133, %c0_134, %c0_135] : memref<1x1x256xf32, #tpu.memory_space<vmem>>, vector<1x1x256xf32>
    %366 = vector.shape_cast %365 : vector<1x1x256xf32> to vector<1x256xf32>
    %367 = vector.shape_cast %364 : vector<1x256xf32> to vector<1x1x256xf32>
    tpu.vector_store %arg21[%c0_133, %c0_134, %c0_135], %367 {strides = array<i32>} : memref<1x1x256xf32, #tpu.memory_space<vmem>>, vector<1x1x256xf32>,
    return
  }
  func.func @transform_0(%arg0: i32, %arg1: i32) -> (i32, i32, i32) {
    %c0_i32 = arith.constant 0 : i32
    %c0_i32_0 = arith.constant 0 : i32
    return %arg0, %c0_i32, %arg1 : i32, i32, i32
  }
  func.func @transform_1(%arg0: i32, %arg1: i32) -> (i32, i32, i32) {
    %c0_i32 = arith.constant 0 : i32
    %c0_i32_0 = arith.constant 0 : i32
    %c0_i32_1 = arith.constant 0 : i32
    return %arg0, %c0_i32, %c0_i32_0 : i32, i32, i32
  }
  func.func @transform_2(%arg0: i32, %arg1: i32) -> (i32, i32, i32) {
    %c0_i32 = arith.constant 0 : i32
    %c0_i32_0 = arith.constant 0 : i32
    %c0_i32_1 = arith.constant 0 : i32
    return %arg0, %c0_i32, %c0_i32_0 : i32, i32, i32
  }
  func.func @transform_3(%arg0: i32, %arg1: i32) -> (i32, i32) {
    %c0_i32 = arith.constant 0 : i32
    %c0_i32_0 = arith.constant 0 : i32
    %c0_i32_1 = arith.constant 0 : i32
    return %c0_i32, %c0_i32_0 : i32, i32
  }
  func.func @transform_4(%arg0: i32, %arg1: i32) -> (i32, i32) {
    %c0_i32 = arith.constant 0 : i32
    %c0_i32_0 = arith.constant 0 : i32
    %c0_i32_1 = arith.constant 0 : i32
    return %c0_i32, %c0_i32_0 : i32, i32
  }
  func.func @transform_5(%arg0: i32, %arg1: i32) -> (i32, i32) {
    %c0_i32 = arith.constant 0 : i32
    %c0_i32_0 = arith.constant 0 : i32
    %c0_i32_1 = arith.constant 0 : i32
    return %c0_i32, %c0_i32_0 : i32, i32
  }
  func.func @transform_6(%arg0: i32, %arg1: i32) -> (i32, i32) {
    %c0_i32 = arith.constant 0 : i32
    %c0_i32_0 = arith.constant 0 : i32
    %c0_i32_1 = arith.constant 0 : i32
    return %c0_i32, %c0_i32_0 : i32, i32
  }
  func.func @transform_7(%arg0: i32, %arg1: i32) -> (i32, i32) {
    %c0_i32 = arith.constant 0 : i32
    %c0_i32_0 = arith.constant 0 : i32
    %c0_i32_1 = arith.constant 0 : i32
    return %c0_i32, %c0_i32_0 : i32, i32
  }
  func.func @transform_8(%arg0: i32, %arg1: i32) -> (i32, i32) {
    %c0_i32 = arith.constant 0 : i32
    %c0_i32_0 = arith.constant 0 : i32
    %c0_i32_1 = arith.constant 0 : i32
    return %c0_i32, %c0_i32_0 : i32, i32
  }
  func.func @transform_9(%arg0: i32, %arg1: i32) -> (i32, i32) {
    %c0_i32 = arith.constant 0 : i32
    %c0_i32_0 = arith.constant 0 : i32
    %c0_i32_1 = arith.constant 0 : i32
    return %c0_i32, %c0_i32_0 : i32, i32
  }
  func.func @transform_10(%arg0: i32, %arg1: i32) -> (i32, i32) {
    %c0_i32 = arith.constant 0 : i32
    %c0_i32_0 = arith.constant 0 : i32
    %c0_i32_1 = arith.constant 0 : i32
    return %c0_i32, %c0_i32_0 : i32, i32
  }
  func.func @transform_11(%arg0: i32, %arg1: i32) -> (i32, i32) {
    %c0_i32 = arith.constant 0 : i32
    %c0_i32_0 = arith.constant 0 : i32
    %c0_i32_1 = arith.constant 0 : i32
    return %c0_i32, %c0_i32_0 : i32, i32
  }
  func.func @transform_12(%arg0: i32, %arg1: i32) -> (i32, i32) {
    %c0_i32 = arith.constant 0 : i32
    %c0_i32_0 = arith.constant 0 : i32
    %c0_i32_1 = arith.constant 0 : i32
    return %c0_i32, %c0_i32_0 : i32, i32
  }
  func.func @transform_13(%arg0: i32, %arg1: i32) -> (i32, i32) {
    %c0_i32 = arith.constant 0 : i32
    %c0_i32_0 = arith.constant 0 : i32
    %c0_i32_1 = arith.constant 0 : i32
    return %c0_i32, %c0_i32_0 : i32, i32
  }
  func.func @transform_14(%arg0: i32, %arg1: i32) -> (i32, i32) {
    %c0_i32 = arith.constant 0 : i32
    %c0_i32_0 = arith.constant 0 : i32
    %c0_i32_1 = arith.constant 0 : i32
    return %c0_i32, %c0_i32_0 : i32, i32
  }
  func.func @transform_15(%arg0: i32, %arg1: i32) -> (i32, i32) {
    %c0_i32 = arith.constant 0 : i32
    %c0_i32_0 = arith.constant 0 : i32
    %c0_i32_1 = arith.constant 0 : i32
    return %c0_i32, %c0_i32_0 : i32, i32
  }
  func.func @transform_16(%arg0: i32, %arg1: i32) -> (i32, i32) {
    %c0_i32 = arith.constant 0 : i32
    %c0_i32_0 = arith.constant 0 : i32
    %c0_i32_1 = arith.constant 0 : i32
    return %c0_i32, %c0_i32_0 : i32, i32
  }
  func.func @transform_17(%arg0: i32, %arg1: i32) -> (i32, i32) {
    %c0_i32 = arith.constant 0 : i32
    %c0_i32_0 = arith.constant 0 : i32
    %c0_i32_1 = arith.constant 0 : i32
    return %c0_i32, %c0_i32_0 : i32, i32
  }
  func.func @transform_18(%arg0: i32, %arg1: i32) -> (i32, i32) {
    %c0_i32 = arith.constant 0 : i32
    %c0_i32_0 = arith.constant 0 : i32
    %c0_i32_1 = arith.constant 0 : i32
    return %c0_i32, %c0_i32_0 : i32, i32
  }
  func.func @transform_19(%arg0: i32, %arg1: i32) -> (i32, i32, i32) {
    %c0_i32 = arith.constant 0 : i32
    %c0_i32_0 = arith.constant 0 : i32
    return %arg0, %c0_i32, %arg1 : i32, i32, i32
  }
}

</mosaic_0001>

<llo_original>
// kernel: tpu_custom_call.1
$region0: #{tpu_custom_call.1}
  #allocation0 [shape = 'u32[]', space=smem, size = 0x4, offset = 0x4, fixed_abs, tag = 'smem constant byte address 0x4 - core index']
  #allocation1 [shape = 'u32[144,128]{1,0:T(1,128)}', space=vmem, size = 0x12000, scoped, tag = 'internal scratch']
  #allocation2 [shape = 'f32[1,1]{1,0:T(1,128)S(1)}', space=vmem, size = 0x200, scoped, tag = 'scoped memory for tpu_custom_call.1']
  %s0 = inlined_call_operand.vmem [shape: f32[2,3,256], index: 0, kind: input, shape index: {}]
  %s1 = inlined_call_operand.vmem [shape: f32[2,64,3], index: 1, kind: input, shape index: {}]
  %s2 = inlined_call_operand.vmem [shape: f32[2,32,64], index: 2, kind: input, shape index: {}]
  %s3 = inlined_call_operand.vmem [shape: f32[32,32], index: 3, kind: input, shape index: {}]
  %s4 = inlined_call_operand.vmem [shape: f32[32,1], index: 4, kind: input, shape index: {}]
  %s5 = inlined_call_operand.vmem [shape: f32[32,32], index: 5, kind: input, shape index: {}]
  %s6 = inlined_call_operand.vmem [shape: f32[32,1], index: 6, kind: input, shape index: {}]
  %s7 = inlined_call_operand.vmem [shape: f32[32,32], index: 7, kind: input, shape index: {}]
  %s8 = inlined_call_operand.vmem [shape: f32[32,1], index: 8, kind: input, shape index: {}]
  %s9 = inlined_call_operand.vmem [shape: f32[32,32], index: 9, kind: input, shape index: {}]
  %s10 = inlined_call_operand.vmem [shape: f32[32,1], index: 10, kind: input, shape index: {}]
  %s11 = inlined_call_operand.vmem [shape: f32[128,32], index: 11, kind: input, shape index: {}]
  %s12 = inlined_call_operand.vmem [shape: f32[128,1], index: 12, kind: input, shape index: {}]
  %s13 = inlined_call_operand.vmem [shape: f32[128,32], index: 13, kind: input, shape index: {}]
  %s14 = inlined_call_operand.vmem [shape: f32[128,1], index: 14, kind: input, shape index: {}]
  %s15 = inlined_call_operand.vmem [shape: f32[32,64], index: 15, kind: input, shape index: {}]
  %s16 = inlined_call_operand.vmem [shape: f32[32,1], index: 16, kind: input, shape index: {}]
  %s17 = inlined_call_operand.vmem [shape: f32[1,32], index: 17, kind: input, shape index: {}]
  %s18 = inlined_call_operand.<no memory space> [shape: f32[1,1], index: 18, kind: input, shape index: {}]
  %s19 = inlined_call_operand.hbm [shape: f32[2,1,256], index: 19, kind: output, shape index: {}]
  %s20 = sld [smem:[#allocation0]]
  $region109: #{tpu_custom_call.1} parent=0
    _
  %s22 = ssub.s32 1, %s20
  %s23 = scalar_select 0, %s22, %s20
  %v24 = vstv %s18
  %25 = vst [vmem:[#allocation2] sm:$0x1] %v24
  $region1: #{tpu_custom_call.1} parent=0
    #allocation3 [shape = 'u8[2048]{0}', space=vmem, size = 0x800, scoped, tag = 'output window, operand 0']
    #allocation4 [shape = 's32[2]{0}', space=sflag, size = 0x8, scoped, tag = 'scoped memory for tpu_custom_call.1']
    %26 = vsyncpa [#allocation4], 0
    %s27 = scalar_lea.sflag [#allocation4], 1
    %28 = vsyncpa %s27, 0
    loop: start=0, step=1, limit=4
    $region2: #{tpu_custom_call.1} parent=1 // loop_pre_header
      _
    $region3: #{tpu_custom_call.1} parent=1 // loop_header
      %s30 = sphi 0, %s34
      %p31 = scmp.ge.s32.totalorder %s30, 4
      %s37 = sphi 0, %s49
      %s38 = sphi 0, %s45
      %s39 = sphi 0, %s37
      %s40 = sphi 0, %s38
      %s41 = sphi 0, %s39
      %s42 = sphi 0, %s40
      %s54 = sphi 0, %s56
      %s57 = sphi 0, %s54
      %s58 = sphi 0, %s57
      %s74 = sphi 0, %s58
      %s80 = sphi 0, %s82
      %s83 = sphi 0, %s80
      %s84 = sphi 0, %s83
      %s100 = sphi 0, %s84
      %s106 = sphi 0, %s108
      %s109 = sphi 0, %s106
      %s110 = sphi 0, %s109
      %s126 = sphi 0, %s110
      %s130 = sphi 0, %s130
      %s132 = sphi 0, %s130
      %s133 = sphi 0, %s132
      %s147 = sphi 0, %s133
      %s151 = sphi 0, %s151
      %s153 = sphi 0, %s151
      %s154 = sphi 0, %s153
      %s168 = sphi 0, %s154
      %s172 = sphi 0, %s172
      %s174 = sphi 0, %s172
      %s175 = sphi 0, %s174
      %s189 = sphi 0, %s175
      %s193 = sphi 0, %s193
      %s195 = sphi 0, %s193
      %s196 = sphi 0, %s195
      %s210 = sphi 0, %s196
      %s214 = sphi 0, %s214
      %s216 = sphi 0, %s214
      %s217 = sphi 0, %s216
      %s231 = sphi 0, %s217
      %s235 = sphi 0, %s235
      %s237 = sphi 0, %s235
      %s238 = sphi 0, %s237
      %s252 = sphi 0, %s238
      %s256 = sphi 0, %s256
      %s258 = sphi 0, %s256
      %s259 = sphi 0, %s258
      %s273 = sphi 0, %s259
      %s277 = sphi 0, %s277
      %s279 = sphi 0, %s277
      %s280 = sphi 0, %s279
      %s294 = sphi 0, %s280
      %s298 = sphi 0, %s298
      %s300 = sphi 0, %s298
      %s301 = sphi 0, %s300
      %s315 = sphi 0, %s301
      %s319 = sphi 0, %s319
      %s321 = sphi 0, %s319
      %s322 = sphi 0, %s321
      %s336 = sphi 0, %s322
      %s340 = sphi 0, %s340
      %s342 = sphi 0, %s340
      %s343 = sphi 0, %s342
      %s357 = sphi 0, %s343
      %s361 = sphi 0, %s361
      %s363 = sphi 0, %s361
      %s364 = sphi 0, %s363
      %s378 = sphi 0, %s364
      %s382 = sphi 0, %s382
      %s384 = sphi 0, %s382
      %s385 = sphi 0, %s384
      %s399 = sphi 0, %s385
      %s403 = sphi 0, %s403
      %s405 = sphi 0, %s403
      %s406 = sphi 0, %s405
      %s420 = sphi 0, %s406
      %s424 = sphi 0, %s424
      %s426 = sphi 0, %s424
      %s427 = sphi 0, %s426
      %s441 = sphi 0, %s427
      %s445 = sphi 0, %s445
      %s447 = sphi 0, %s445
      %s448 = sphi 0, %s447
      %s462 = sphi 0, %s448
      %s470 = sphi 0, %s472
      %s473 = sphi 0, %s470
      %s474 = sphi 0, %s473
      %s490 = sphi 0, %s474
    $region4: #{tpu_custom_call.1} parent=1 // loop_header_branch
      %33 = sbr.rel (%p31) target = $region8
    $region5: #{tpu_custom_call.1} parent=1 // loop_body
      %s35 = ssub.s32 %s30, 1
      %s36 = ssub.s32 %s30, 2
      %s43 = sadd.s32 1, %s38
      %p44 = scmp.ge.s32.totalorder %s43, 1
      %s45 = scalar_select %p44, 0, %s43
      %s46 = sadd.s32 1, %s37
      %s47 = scalar_select %p44, %s46, %s37
      %p48 = scmp.ge.s32.totalorder %s47, 2
      %s49 = scalar_select %p48, 0, %s47
      %s50 = ssub.s32 %s37, %s49
      %s51 = ssub.s32 %s38, %s45
      %s52 = sor.u32 %s50, %s51
      %p53 = scmp.eq.s32.totalorder %s52, 0
      %s55 = sadd.s32 %s54, 1
      %s56 = scalar_select %p53, %s54, %s55
      %p59 = pneg %p53
      %p60 = scmp.eq.s32.totalorder %s30, 1
      %p61 = por %p59, %p60
      %p62 = scmp.ne.s32.totalorder %s54, %s57
      %p63 = scmp.eq.s32.totalorder %s30, 0
      %p64 = por %p62, %p63
      %p65 = scmp.ne.s32.totalorder %s54, %s57
      %p66 = scmp.eq.s32.totalorder %s35, 1
      %p67 = por %p65, %p66
      %p68 = scmp.ne.s32.totalorder %s57, %s58
      %p69 = scmp.eq.s32.totalorder %s35, 0
      %p70 = por %p68, %p69
      %p71 = scmp.ne.s32.totalorder %s57, %s58
      %p72 = scmp.eq.s32.totalorder %s36, 1
      %p73 = por %p71, %p72
      %p75 = scmp.ne.s32.totalorder %s58, %s74
      %p76 = scmp.eq.s32.totalorder %s36, 0
      %p77 = por %p75, %p76
      %s78 = ssub.s32 %s37, %s49
      %p79 = scmp.eq.s32.totalorder %s78, 0
      %s81 = sadd.s32 %s80, 1
      %s82 = scalar_select %p79, %s80, %s81
      %p85 = pneg %p79
      %p86 = scmp.eq.s32.totalorder %s30, 1
      %p87 = por %p85, %p86
      %p88 = scmp.ne.s32.totalorder %s80, %s83
      %p89 = scmp.eq.s32.totalorder %s30, 0
      %p90 = por %p88, %p89
      %p91 = scmp.ne.s32.totalorder %s80, %s83
      %p92 = scmp.eq.s32.totalorder %s35, 1
      %p93 = por %p91, %p92
      %p94 = scmp.ne.s32.totalorder %s83, %s84
      %p95 = scmp.eq.s32.totalorder %s35, 0
      %p96 = por %p94, %p95
      %p97 = scmp.ne.s32.totalorder %s83, %s84
      %p98 = scmp.eq.s32.totalorder %s36, 1
      %p99 = por %p97, %p98
      %p101 = scmp.ne.s32.totalorder %s84, %s100
      %p102 = scmp.eq.s32.totalorder %s36, 0
      %p103 = por %p101, %p102
      %s104 = ssub.s32 %s37, %s49
      %p105 = scmp.eq.s32.totalorder %s104, 0
      %s107 = sadd.s32 %s106, 1
      %s108 = scalar_select %p105, %s106, %s107
      %p111 = pneg %p105
      %p112 = scmp.eq.s32.totalorder %s30, 1
      %p113 = por %p111, %p112
      %p114 = scmp.ne.s32.totalorder %s106, %s109
      %p115 = scmp.eq.s32.totalorder %s30, 0
      %p116 = por %p114, %p115
      %p117 = scmp.ne.s32.totalorder %s106, %s109
      %p118 = scmp.eq.s32.totalorder %s35, 1
      %p119 = por %p117, %p118
      %p120 = scmp.ne.s32.totalorder %s109, %s110
      %p121 = scmp.eq.s32.totalorder %s35, 0
      %p122 = por %p120, %p121
      %p123 = scmp.ne.s32.totalorder %s109, %s110
      %p124 = scmp.eq.s32.totalorder %s36, 1
      %p125 = por %p123, %p124
      %p127 = scmp.ne.s32.totalorder %s110, %s126
      %p128 = scmp.eq.s32.totalorder %s36, 0
      %p129 = por %p127, %p128
      %s131 = sadd.s32 %s130, 1
      %p134 = scmp.eq.s32.totalorder %s30, 1
      %p135 = scmp.ne.s32.totalorder %s130, %s132
      %p136 = scmp.eq.s32.totalorder %s30, 0
      %p137 = por %p135, %p136
      %p138 = scmp.ne.s32.totalorder %s130, %s132
      %p139 = scmp.eq.s32.totalorder %s35, 1
      %p140 = por %p138, %p139
      %p141 = scmp.ne.s32.totalorder %s132, %s133
      %p142 = scmp.eq.s32.totalorder %s35, 0
      %p143 = por %p141, %p142
      %p144 = scmp.ne.s32.totalorder %s132, %s133
      %p145 = scmp.eq.s32.totalorder %s36, 1
      %p146 = por %p144, %p145
      %p148 = scmp.ne.s32.totalorder %s133, %s147
      %p149 = scmp.eq.s32.totalorder %s36, 0
      %p150 = por %p148, %p149
      %s152 = sadd.s32 %s151, 1
      %p155 = scmp.eq.s32.totalorder %s30, 1
      %p156 = scmp.ne.s32.totalorder %s151, %s153
      %p157 = scmp.eq.s32.totalorder %s30, 0
      %p158 = por %p156, %p157
      %p159 = scmp.ne.s32.totalorder %s151, %s153
      %p160 = scmp.eq.s32.totalorder %s35, 1
      %p161 = por %p159, %p160
      %p162 = scmp.ne.s32.totalorder %s153, %s154
      %p163 = scmp.eq.s32.totalorder %s35, 0
      %p164 = por %p162, %p163
      %p165 = scmp.ne.s32.totalorder %s153, %s154
      %p166 = scmp.eq.s32.totalorder %s36, 1
      %p167 = por %p165, %p166
      %p169 = scmp.ne.s32.totalorder %s154, %s168
      %p170 = scmp.eq.s32.totalorder %s36, 0
      %p171 = por %p169, %p170
      %s173 = sadd.s32 %s172, 1
      %p176 = scmp.eq.s32.totalorder %s30, 1
      %p177 = scmp.ne.s32.totalorder %s172, %s174
      %p178 = scmp.eq.s32.totalorder %s30, 0
      %p179 = por %p177, %p178
      %p180 = scmp.ne.s32.totalorder %s172, %s174
      %p181 = scmp.eq.s32.totalorder %s35, 1
      %p182 = por %p180, %p181
      %p183 = scmp.ne.s32.totalorder %s174, %s175
      %p184 = scmp.eq.s32.totalorder %s35, 0
      %p185 = por %p183, %p184
      %p186 = scmp.ne.s32.totalorder %s174, %s175
      %p187 = scmp.eq.s32.totalorder %s36, 1
      %p188 = por %p186, %p187
      %p190 = scmp.ne.s32.totalorder %s175, %s189
      %p191 = scmp.eq.s32.totalorder %s36, 0
      %p192 = por %p190, %p191
      %s194 = sadd.s32 %s193, 1
      %p197 = scmp.eq.s32.totalorder %s30, 1
      %p198 = scmp.ne.s32.totalorder %s193, %s195
      %p199 = scmp.eq.s32.totalorder %s30, 0
      %p200 = por %p198, %p199
      %p201 = scmp.ne.s32.totalorder %s193, %s195
      %p202 = scmp.eq.s32.totalorder %s35, 1
      %p203 = por %p201, %p202
      %p204 = scmp.ne.s32.totalorder %s195, %s196
      %p205 = scmp.eq.s32.totalorder %s35, 0
      %p206 = por %p204, %p205
      %p207 = scmp.ne.s32.totalorder %s195, %s196
      %p208 = scmp.eq.s32.totalorder %s36, 1
      %p209 = por %p207, %p208
      %p211 = scmp.ne.s32.totalorder %s196, %s210
      %p212 = scmp.eq.s32.totalorder %s36, 0
      %p213 = por %p211, %p212
      %s215 = sadd.s32 %s214, 1
      %p218 = scmp.eq.s32.totalorder %s30, 1
      %p219 = scmp.ne.s32.totalorder %s214, %s216
      %p220 = scmp.eq.s32.totalorder %s30, 0
      %p221 = por %p219, %p220
      %p222 = scmp.ne.s32.totalorder %s214, %s216
      %p223 = scmp.eq.s32.totalorder %s35, 1
      %p224 = por %p222, %p223
      %p225 = scmp.ne.s32.totalorder %s216, %s217
      %p226 = scmp.eq.s32.totalorder %s35, 0
      %p227 = por %p225, %p226
      %p228 = scmp.ne.s32.totalorder %s216, %s217
      %p229 = scmp.eq.s32.totalorder %s36, 1
      %p230 = por %p228, %p229
      %p232 = scmp.ne.s32.totalorder %s217, %s231
      %p233 = scmp.eq.s32.totalorder %s36, 0
      %p234 = por %p232, %p233
      %s236 = sadd.s32 %s235, 1
      %p239 = scmp.eq.s32.totalorder %s30, 1
      %p240 = scmp.ne.s32.totalorder %s235, %s237
      %p241 = scmp.eq.s32.totalorder %s30, 0
      %p242 = por %p240, %p241
      %p243 = scmp.ne.s32.totalorder %s235, %s237
      %p244 = scmp.eq.s32.totalorder %s35, 1
      %p245 = por %p243, %p244
      %p246 = scmp.ne.s32.totalorder %s237, %s238
      %p247 = scmp.eq.s32.totalorder %s35, 0
      %p248 = por %p246, %p247
      %p249 = scmp.ne.s32.totalorder %s237, %s238
      %p250 = scmp.eq.s32.totalorder %s36, 1
      %p251 = por %p249, %p250
      %p253 = scmp.ne.s32.totalorder %s238, %s252
      %p254 = scmp.eq.s32.totalorder %s36, 0
      %p255 = por %p253, %p254
      %s257 = sadd.s32 %s256, 1
      %p260 = scmp.eq.s32.totalorder %s30, 1
      %p261 = scmp.ne.s32.totalorder %s256, %s258
      %p262 = scmp.eq.s32.totalorder %s30, 0
      %p263 = por %p261, %p262
      %p264 = scmp.ne.s32.totalorder %s256, %s258
      %p265 = scmp.eq.s32.totalorder %s35, 1
      %p266 = por %p264, %p265
      %p267 = scmp.ne.s32.totalorder %s258, %s259
      %p268 = scmp.eq.s32.totalorder %s35, 0
      %p269 = por %p267, %p268
      %p270 = scmp.ne.s32.totalorder %s258, %s259
      %p271 = scmp.eq.s32.totalorder %s36, 1
      %p272 = por %p270, %p271
      %p274 = scmp.ne.s32.totalorder %s259, %s273
      %p275 = scmp.eq.s32.totalorder %s36, 0
      %p276 = por %p274, %p275
      %s278 = sadd.s32 %s277, 1
      %p281 = scmp.eq.s32.totalorder %s30, 1
      %p282 = scmp.ne.s32.totalorder %s277, %s279
      %p283 = scmp.eq.s32.totalorder %s30, 0
      %p284 = por %p282, %p283
      %p285 = scmp.ne.s32.totalorder %s277, %s279
      %p286 = scmp.eq.s32.totalorder %s35, 1
      %p287 = por %p285, %p286
      %p288 = scmp.ne.s32.totalorder %s279, %s280
      %p289 = scmp.eq.s32.totalorder %s35, 0
      %p290 = por %p288, %p289
      %p291 = scmp.ne.s32.totalorder %s279, %s280
      %p292 = scmp.eq.s32.totalorder %s36, 1
      %p293 = por %p291, %p292
      %p295 = scmp.ne.s32.totalorder %s280, %s294
      %p296 = scmp.eq.s32.totalorder %s36, 0
      %p297 = por %p295, %p296
      %s299 = sadd.s32 %s298, 1
      %p302 = scmp.eq.s32.totalorder %s30, 1
      %p303 = scmp.ne.s32.totalorder %s298, %s300
      %p304 = scmp.eq.s32.totalorder %s30, 0
      %p305 = por %p303, %p304
      %p306 = scmp.ne.s32.totalorder %s298, %s300
      %p307 = scmp.eq.s32.totalorder %s35, 1
      %p308 = por %p306, %p307
      %p309 = scmp.ne.s32.totalorder %s300, %s301
      %p310 = scmp.eq.s32.totalorder %s35, 0
      %p311 = por %p309, %p310
      %p312 = scmp.ne.s32.totalorder %s300, %s301
      %p313 = scmp.eq.s32.totalorder %s36, 1
      %p314 = por %p312, %p313
      %p316 = scmp.ne.s32.totalorder %s301, %s315
      %p317 = scmp.eq.s32.totalorder %s36, 0
      %p318 = por %p316, %p317
      %s320 = sadd.s32 %s319, 1
      %p323 = scmp.eq.s32.totalorder %s30, 1
      %p324 = scmp.ne.s32.totalorder %s319, %s321
      %p325 = scmp.eq.s32.totalorder %s30, 0
      %p326 = por %p324, %p325
      %p327 = scmp.ne.s32.totalorder %s319, %s321
      %p328 = scmp.eq.s32.totalorder %s35, 1
      %p329 = por %p327, %p328
      %p330 = scmp.ne.s32.totalorder %s321, %s322
      %p331 = scmp.eq.s32.totalorder %s35, 0
      %p332 = por %p330, %p331
      %p333 = scmp.ne.s32.totalorder %s321, %s322
      %p334 = scmp.eq.s32.totalorder %s36, 1
      %p335 = por %p333, %p334
      %p337 = scmp.ne.s32.totalorder %s322, %s336
      %p338 = scmp.eq.s32.totalorder %s36, 0
      %p339 = por %p337, %p338
      %s341 = sadd.s32 %s340, 1
      %p344 = scmp.eq.s32.totalorder %s30, 1
      %p345 = scmp.ne.s32.totalorder %s340, %s342
      %p346 = scmp.eq.s32.totalorder %s30, 0
      %p347 = por %p345, %p346
      %p348 = scmp.ne.s32.totalorder %s340, %s342
      %p349 = scmp.eq.s32.totalorder %s35, 1
      %p350 = por %p348, %p349
      %p351 = scmp.ne.s32.totalorder %s342, %s343
      %p352 = scmp.eq.s32.totalorder %s35, 0
      %p353 = por %p351, %p352
      %p354 = scmp.ne.s32.totalorder %s342, %s343
      %p355 = scmp.eq.s32.totalorder %s36, 1
      %p356 = por %p354, %p355
      %p358 = scmp.ne.s32.totalorder %s343, %s357
      %p359 = scmp.eq.s32.totalorder %s36, 0
      %p360 = por %p358, %p359
      %s362 = sadd.s32 %s361, 1
      %p365 = scmp.eq.s32.totalorder %s30, 1
      %p366 = scmp.ne.s32.totalorder %s361, %s363
      %p367 = scmp.eq.s32.totalorder %s30, 0
      %p368 = por %p366, %p367
      %p369 = scmp.ne.s32.totalorder %s361, %s363
      %p370 = scmp.eq.s32.totalorder %s35, 1
      %p371 = por %p369, %p370
      %p372 = scmp.ne.s32.totalorder %s363, %s364
      %p373 = scmp.eq.s32.totalorder %s35, 0
      %p374 = por %p372, %p373
      %p375 = scmp.ne.s32.totalorder %s363, %s364
      %p376 = scmp.eq.s32.totalorder %s36, 1
      %p377 = por %p375, %p376
      %p379 = scmp.ne.s32.totalorder %s364, %s378
      %p380 = scmp.eq.s32.totalorder %s36, 0
      %p381 = por %p379, %p380
      %s383 = sadd.s32 %s382, 1
      %p386 = scmp.eq.s32.totalorder %s30, 1
      %p387 = scmp.ne.s32.totalorder %s382, %s384
      %p388 = scmp.eq.s32.totalorder %s30, 0
      %p389 = por %p387, %p388
      %p390 = scmp.ne.s32.totalorder %s382, %s384
      %p391 = scmp.eq.s32.totalorder %s35, 1
      %p392 = por %p390, %p391
      %p393 = scmp.ne.s32.totalorder %s384, %s385
      %p394 = scmp.eq.s32.totalorder %s35, 0
      %p395 = por %p393, %p394
      %p396 = scmp.ne.s32.totalorder %s384, %s385
      %p397 = scmp.eq.s32.totalorder %s36, 1
      %p398 = por %p396, %p397
      %p400 = scmp.ne.s32.totalorder %s385, %s399
      %p401 = scmp.eq.s32.totalorder %s36, 0
      %p402 = por %p400, %p401
      %s404 = sadd.s32 %s403, 1
      %p407 = scmp.eq.s32.totalorder %s30, 1
      %p408 = scmp.ne.s32.totalorder %s403, %s405
      %p409 = scmp.eq.s32.totalorder %s30, 0
      %p410 = por %p408, %p409
      %p411 = scmp.ne.s32.totalorder %s403, %s405
      %p412 = scmp.eq.s32.totalorder %s35, 1
      %p413 = por %p411, %p412
      %p414 = scmp.ne.s32.totalorder %s405, %s406
      %p415 = scmp.eq.s32.totalorder %s35, 0
      %p416 = por %p414, %p415
      %p417 = scmp.ne.s32.totalorder %s405, %s406
      %p418 = scmp.eq.s32.totalorder %s36, 1
      %p419 = por %p417, %p418
      %p421 = scmp.ne.s32.totalorder %s406, %s420
      %p422 = scmp.eq.s32.totalorder %s36, 0
      %p423 = por %p421, %p422
      %s425 = sadd.s32 %s424, 1
      %p428 = scmp.eq.s32.totalorder %s30, 1
      %p429 = scmp.ne.s32.totalorder %s424, %s426
      %p430 = scmp.eq.s32.totalorder %s30, 0
      %p431 = por %p429, %p430
      %p432 = scmp.ne.s32.totalorder %s424, %s426
      %p433 = scmp.eq.s32.totalorder %s35, 1
      %p434 = por %p432, %p433
      %p435 = scmp.ne.s32.totalorder %s426, %s427
      %p436 = scmp.eq.s32.totalorder %s35, 0
      %p437 = por %p435, %p436
      %p438 = scmp.ne.s32.totalorder %s426, %s427
      %p439 = scmp.eq.s32.totalorder %s36, 1
      %p440 = por %p438, %p439
      %p442 = scmp.ne.s32.totalorder %s427, %s441
      %p443 = scmp.eq.s32.totalorder %s36, 0
      %p444 = por %p442, %p443
      %s446 = sadd.s32 %s445, 1
      %p449 = scmp.eq.s32.totalorder %s30, 1
      %p450 = scmp.ne.s32.totalorder %s445, %s447
      %p451 = scmp.eq.s32.totalorder %s30, 0
      %p452 = por %p450, %p451
      %p453 = scmp.ne.s32.totalorder %s445, %s447
      %p454 = scmp.eq.s32.totalorder %s35, 1
      %p455 = por %p453, %p454
      %p456 = scmp.ne.s32.totalorder %s447, %s448
      %p457 = scmp.eq.s32.totalorder %s35, 0
      %p458 = por %p456, %p457
      %p459 = scmp.ne.s32.totalorder %s447, %s448
      %p460 = scmp.eq.s32.totalorder %s36, 1
      %p461 = por %p459, %p460
      %p463 = scmp.ne.s32.totalorder %s448, %s462
      %p464 = scmp.eq.s32.totalorder %s36, 0
      %p465 = por %p463, %p464
      %s466 = ssub.s32 %s37, %s49
      %s467 = ssub.s32 %s38, %s45
      %s468 = sor.u32 %s466, %s467
      %p469 = scmp.eq.s32.totalorder %s468, 0
      %s471 = sadd.s32 %s470, 1
      %s472 = scalar_select %p469, %s470, %s471
      %p475 = pneg %p469
      %p476 = scmp.eq.s32.totalorder %s30, 1
      %p477 = por %p475, %p476
      %p478 = scmp.ne.s32.totalorder %s470, %s473
      %p479 = scmp.eq.s32.totalorder %s30, 0
      %p480 = por %p478, %p479
      %p481 = scmp.ne.s32.totalorder %s470, %s473
      %p482 = scmp.eq.s32.totalorder %s35, 1
      %p483 = por %p481, %p482
      %p484 = scmp.ne.s32.totalorder %s473, %s474
      %p485 = scmp.eq.s32.totalorder %s35, 0
      %p486 = por %p484, %p485
      %p487 = scmp.ne.s32.totalorder %s473, %s474
      %p488 = scmp.eq.s32.totalorder %s36, 1
      %p489 = por %p487, %p488
      %p491 = scmp.ne.s32.totalorder %s474, %s490
      %p492 = scmp.eq.s32.totalorder %s36, 0
      %p493 = por %p491, %p492
      %p494 = scmp.le.s32.totalorder 1, %s30
      %p495 = scmp.lt.s32.totalorder %s30, 3
      %p496 = pnand %p494, %p495
      %p497 = pneg %p496
      // Predicated region
      $region9: #{tpu_custom_call.1} parent=5 // pred_check
        _
      $region10: #{tpu_custom_call.1} parent=5 // pred_check_branch
        %499 = sbr.rel (%p496) target = $region12
      $region11: #{tpu_custom_call.1} parent=5 // pred_region
        %s500 = ssub.s32 %s30, 1
        // Predicated region
        $region13: #{tpu_custom_call.1} parent=11 // pred_check
          %p501 = pneg %p143
        $region14: #{tpu_custom_call.1} parent=11 // pred_check_branch
          %503 = sbr.rel (%p501) target = $region16
        $region15: #{tpu_custom_call.1} parent=11 // pred_region
          _
        $region16: #{tpu_custom_call.1} parent=11 // pred_fallthru
          _
        // Predicated region
        $region17: #{tpu_custom_call.1} parent=11 // pred_check
          %p504 = pneg %p164
        $region18: #{tpu_custom_call.1} parent=11 // pred_check_branch
          %506 = sbr.rel (%p504) target = $region20
        $region19: #{tpu_custom_call.1} parent=11 // pred_region
          _
        $region20: #{tpu_custom_call.1} parent=11 // pred_fallthru
          _
        // Predicated region
        $region21: #{tpu_custom_call.1} parent=11 // pred_check
          %p507 = pneg %p185
        $region22: #{tpu_custom_call.1} parent=11 // pred_check_branch
          %509 = sbr.rel (%p507) target = $region24
        $region23: #{tpu_custom_call.1} parent=11 // pred_region
          _
        $region24: #{tpu_custom_call.1} parent=11 // pred_fallthru
          _
        // Predicated region
        $region25: #{tpu_custom_call.1} parent=11 // pred_check
          %p510 = pneg %p206
        $region26: #{tpu_custom_call.1} parent=11 // pred_check_branch
          %512 = sbr.rel (%p510) target = $region28
        $region27: #{tpu_custom_call.1} parent=11 // pred_region
          _
        $region28: #{tpu_custom_call.1} parent=11 // pred_fallthru
          _
        // Predicated region
        $region29: #{tpu_custom_call.1} parent=11 // pred_check
          %p513 = pneg %p227
        $region30: #{tpu_custom_call.1} parent=11 // pred_check_branch
          %515 = sbr.rel (%p513) target = $region32
        $region31: #{tpu_custom_call.1} parent=11 // pred_region
          _
        $region32: #{tpu_custom_call.1} parent=11 // pred_fallthru
          _
        // Predicated region
        $region33: #{tpu_custom_call.1} parent=11 // pred_check
          %p516 = pneg %p248
        $region34: #{tpu_custom_call.1} parent=11 // pred_check_branch
          %518 = sbr.rel (%p516) target = $region36
        $region35: #{tpu_custom_call.1} parent=11 // pred_region
          _
        $region36: #{tpu_custom_call.1} parent=11 // pred_fallthru
          _
        // Predicated region
        $region37: #{tpu_custom_call.1} parent=11 // pred_check
          %p519 = pneg %p269
        $region38: #{tpu_custom_call.1} parent=11 // pred_check_branch
          %521 = sbr.rel (%p519) target = $region40
        $region39: #{tpu_custom_call.1} parent=11 // pred_region
          _
        $region40: #{tpu_custom_call.1} parent=11 // pred_fallthru
          _
        // Predicated region
        $region41: #{tpu_custom_call.1} parent=11 // pred_check
          %p522 = pneg %p290
        $region42: #{tpu_custom_call.1} parent=11 // pred_check_branch
          %524 = sbr.rel (%p522) target = $region44
        $region43: #{tpu_custom_call.1} parent=11 // pred_region
          _
        $region44: #{tpu_custom_call.1} parent=11 // pred_fallthru
          _
        // Predicated region
        $region45: #{tpu_custom_call.1} parent=11 // pred_check
          %p525 = pneg %p311
        $region46: #{tpu_custom_call.1} parent=11 // pred_check_branch
          %527 = sbr.rel (%p525) target = $region48
        $region47: #{tpu_custom_call.1} parent=11 // pred_region
          _
        $region48: #{tpu_custom_call.1} parent=11 // pred_fallthru
          _
        // Predicated region
        $region49: #{tpu_custom_call.1} parent=11 // pred_check
          %p528 = pneg %p332
        $region50: #{tpu_custom_call.1} parent=11 // pred_check_branch
          %530 = sbr.rel (%p528) target = $region52
        $region51: #{tpu_custom_call.1} parent=11 // pred_region
          _
        $region52: #{tpu_custom_call.1} parent=11 // pred_fallthru
          _
        // Predicated region
        $region53: #{tpu_custom_call.1} parent=11 // pred_check
          %p531 = pneg %p353
        $region54: #{tpu_custom_call.1} parent=11 // pred_check_branch
          %533 = sbr.rel (%p531) target = $region56
        $region55: #{tpu_custom_call.1} parent=11 // pred_region
          _
        $region56: #{tpu_custom_call.1} parent=11 // pred_fallthru
          _
        // Predicated region
        $region57: #{tpu_custom_call.1} parent=11 // pred_check
          %p534 = pneg %p374
        $region58: #{tpu_custom_call.1} parent=11 // pred_check_branch
          %536 = sbr.rel (%p534) target = $region60
        $region59: #{tpu_custom_call.1} parent=11 // pred_region
          _
        $region60: #{tpu_custom_call.1} parent=11 // pred_fallthru
          _
        // Predicated region
        $region61: #{tpu_custom_call.1} parent=11 // pred_check
          %p537 = pneg %p395
        $region62: #{tpu_custom_call.1} parent=11 // pred_check_branch
          %539 = sbr.rel (%p537) target = $region64
        $region63: #{tpu_custom_call.1} parent=11 // pred_region
          _
        $region64: #{tpu_custom_call.1} parent=11 // pred_fallthru
          _
        // Predicated region
        $region65: #{tpu_custom_call.1} parent=11 // pred_check
          %p540 = pneg %p416
        $region66: #{tpu_custom_call.1} parent=11 // pred_check_branch
          %542 = sbr.rel (%p540) target = $region68
        $region67: #{tpu_custom_call.1} parent=11 // pred_region
          _
        $region68: #{tpu_custom_call.1} parent=11 // pred_fallthru
          _
        // Predicated region
        $region69: #{tpu_custom_call.1} parent=11 // pred_check
          %p543 = pneg %p437
        $region70: #{tpu_custom_call.1} parent=11 // pred_check_branch
          %545 = sbr.rel (%p543) target = $region72
        $region71: #{tpu_custom_call.1} parent=11 // pred_region
          _
        $region72: #{tpu_custom_call.1} parent=11 // pred_fallthru
          _
        // Predicated region
        $region73: #{tpu_custom_call.1} parent=11 // pred_check
          %p546 = pneg %p458
        $region74: #{tpu_custom_call.1} parent=11 // pred_check_branch
          %548 = sbr.rel (%p546) target = $region76
        $region75: #{tpu_custom_call.1} parent=11 // pred_region
          _
        $region76: #{tpu_custom_call.1} parent=11 // pred_fallthru
          _
      $region12: #{tpu_custom_call.1} parent=5 // pred_fallthru
        _
      %p549 = scmp.lt.s32.totalorder %s30, 2
      // Predicated region
      $region77: #{tpu_custom_call.1} parent=5 // pred_check
        %p550 = pneg %p549
      $region78: #{tpu_custom_call.1} parent=5 // pred_check_branch
        %552 = sbr.rel (%p550) target = $region80
      $region79: #{tpu_custom_call.1} parent=5 // pred_region
        // Predicated region
        $region81: #{tpu_custom_call.1} parent=79 // pred_check
          %p553 = pneg %p64
        $region82: #{tpu_custom_call.1} parent=79 // pred_check_branch
          %555 = sbr.rel (%p553) target = $region84
        $region83: #{tpu_custom_call.1} parent=79 // pred_region
          %s556 = smul.u32 2, %s38
          %p557 = scmp.lt.s32.totalorder %s37, 1
          %s558 = scalar_select %p557, %s37, 1
          %p559 = scmp.lt.s32.totalorder %s556, 1
          %s560 = scalar_select %p559, %s556, 1
          %s561 = smul.addr %s558, 2
          %s562 = sadd.s32 %s560, %s561
          %s563 = smul.addr %s562, 4
          %s564 = scalar_lea.vmem %s0, %s563
          %s565 = smul.u32 2, %s38
        $region84: #{tpu_custom_call.1} parent=79 // pred_fallthru
          _
        // Predicated region
        $region85: #{tpu_custom_call.1} parent=79 // pred_check
          %p566 = pneg %p90
        $region86: #{tpu_custom_call.1} parent=79 // pred_check_branch
          %568 = sbr.rel (%p566) target = $region88
        $region87: #{tpu_custom_call.1} parent=79 // pred_region
          %p569 = scmp.lt.s32.totalorder %s37, 1
          %s570 = scalar_select %p569, %s37, 1
          %s571 = smul.addr %s570, 8
          %s572 = smul.addr %s571, 8
          %s573 = scalar_lea.vmem %s1, %s572
        $region88: #{tpu_custom_call.1} parent=79 // pred_fallthru
          _
        // Predicated region
        $region89: #{tpu_custom_call.1} parent=79 // pred_check
          %p574 = pneg %p116
        $region90: #{tpu_custom_call.1} parent=79 // pred_check_branch
          %576 = sbr.rel (%p574) target = $region92
        $region91: #{tpu_custom_call.1} parent=79 // pred_region
          %p577 = scmp.lt.s32.totalorder %s37, 1
          %s578 = scalar_select %p577, %s37, 1
          %s579 = smul.addr %s578, 4
          %s580 = smul.addr %s579, 8
          %s581 = scalar_lea.vmem %s2, %s580
        $region92: #{tpu_custom_call.1} parent=79 // pred_fallthru
          _
      $region80: #{tpu_custom_call.1} parent=5 // pred_fallthru
        _
      %p582 = scmp.le.s32.totalorder 1, %s30
      %p583 = scmp.lt.s32.totalorder %s30, 3
      %p584 = pnand %p582, %p583
      %p585 = pneg %p584
      // Predicated region
      $region93: #{tpu_custom_call.1} parent=5 // pred_check
        _
      $region94: #{tpu_custom_call.1} parent=5 // pred_check_branch
        %587 = sbr.rel (%p584) target = $region96
      $region95: #{tpu_custom_call.1} parent=5 // pred_region
        %s588 = ssub.s32 %s30, 1
        %s589 = smul.u32 2, %s40
        %p590 = scmp.lt.s32.totalorder %s39, 1
        %s591 = scalar_select %p590, %s39, 1
        %p592 = scmp.lt.s32.totalorder %s589, 1
        %s593 = scalar_select %p592, %s589, 1
        %s594 = smul.addr %s591, 2
        %s595 = sadd.s32 %s593, %s594
        %s596 = smul.addr %s595, 4
        %s597 = scalar_lea.vmem %s0, %s596
        %p598 = pneg %p70
        %p599 = pneg %p67
        %p600 = scmp.lt.s32.totalorder %s39, 1
        %s601 = scalar_select %p600, %s39, 1
        %s602 = smul.addr %s601, 8
        %s603 = smul.addr %s602, 8
        %s604 = scalar_lea.vmem %s1, %s603
        %p605 = pneg %p96
        %p606 = pneg %p93
        %p607 = scmp.lt.s32.totalorder %s39, 1
        %s608 = scalar_select %p607, %s39, 1
        %s609 = smul.addr %s608, 4
        %s610 = smul.addr %s609, 8
        %s611 = scalar_lea.vmem %s2, %s610
        %p612 = pneg %p122
        %p613 = pneg %p119
        %p614 = pneg %p143
        %p615 = pneg %p140
        %p616 = pneg %p164
        %p617 = pneg %p161
        %p618 = pneg %p185
        %p619 = pneg %p182
        %p620 = pneg %p206
        %p621 = pneg %p203
        %p622 = pneg %p227
        %p623 = pneg %p224
        %p624 = pneg %p248
        %p625 = pneg %p245
        %p626 = pneg %p269
        %p627 = pneg %p266
        %p628 = pneg %p290
        %p629 = pneg %p287
        %p630 = pneg %p311
        %p631 = pneg %p308
        %p632 = pneg %p332
        %p633 = pneg %p329
        %p634 = pneg %p353
        %p635 = pneg %p350
        %p636 = pneg %p374
        %p637 = pneg %p371
        %p638 = pneg %p395
        %p639 = pneg %p392
        %p640 = pneg %p416
        %p641 = pneg %p413
        %p642 = pneg %p437
        %p643 = pneg %p434
        %p644 = pneg %p458
        %p645 = pneg %p455
        %p646 = pneg %p486
        %p647 = pneg %p483
        %s648 = sand.u32 %s473, 1
        %s649 = scalar_lea.sflag [#allocation4], %s648
        %s650 = sand.u32 %s473, 1
        %s651 = smul.addr %s650, 2
        %s652 = scalar_lea.vmem [#allocation3], %s651
        %s653 = smul.u32 2, %s40
        %p654 = scmp.lt.s32.totalorder %s39, 1
        %s655 = scalar_select %p654, %s39, 1
        %p656 = scmp.lt.s32.totalorder %s653, 1
        %s657 = scalar_select %p656, %s653, 1
        %s658 = smul.addr %s655, 2
        %s659 = sadd.s32 %s657, %s658
        %s660 = smul.addr %s659, 4
        %s661 = scalar_lea.vmem %s0, %s660
        %s662 = smul.u32 2, %s40
        %p663 = scmp.lt.s32.totalorder %s39, 1
        %s664 = scalar_select %p663, %s39, 1
        %s665 = smul.addr %s664, 8
        %s666 = smul.addr %s665, 8
        %s667 = scalar_lea.vmem %s1, %s666
        %p668 = scmp.lt.s32.totalorder %s39, 1
        %s669 = scalar_select %p668, %s39, 1
        %s670 = smul.addr %s669, 4
        %s671 = smul.addr %s670, 8
        %s672 = scalar_lea.vmem %s2, %s671
        %s673 = smul.u32 2, %s40
        %v674 = vld [vmem:[%s661] sm:$0x77]
        %v675 = vld [vmem:[%s667] sm:$0xff]
        %v676 = vld [vmem:[%s667 + $0x8] sm:$0xff]
        %v677 = vld [vmem:[%s667 + $0x10] sm:$0xff]
        %v678 = vld [vmem:[%s667 + $0x18] sm:$0xff]
        %v679 = vld [vmem:[%s667 + $0x20] sm:$0xff]
        %v680 = vld [vmem:[%s667 + $0x28] sm:$0xff]
        %v681 = vld [vmem:[%s667 + $0x30] sm:$0xff]
        %v682 = vld [vmem:[%s667 + $0x38] sm:$0xff]
        %v683 = vld [vmem:[%s672] sm:$0xff]
        %v684 = vld [vmem:[%s672 + $0x8] sm:$0xff]
        %v685 = vld [vmem:[%s672 + $0x10] sm:$0xff]
        %v686 = vld [vmem:[%s672 + $0x18] sm:$0xff]
        %688 = vset.pattern.permute.xlu0 0
        %689 = vperm.xlu0 %688, %v675
        %v690 = vpop.permute.xlu0 %689
        %693 = vset.pattern.permute.xlu0 0
        %694 = vperm.xlu0 %693, %v676
        %v695 = vpop.permute.xlu0 %694
        %698 = vset.pattern.permute.xlu0 0
        %699 = vperm.xlu0 %698, %v677
        %v700 = vpop.permute.xlu0 %699
        %703 = vset.pattern.permute.xlu0 0
        %704 = vperm.xlu0 %703, %v678
        %v705 = vpop.permute.xlu0 %704
        %708 = vset.pattern.permute.xlu0 0
        %709 = vperm.xlu0 %708, %v679
        %v710 = vpop.permute.xlu0 %709
        %713 = vset.pattern.permute.xlu0 0
        %714 = vperm.xlu0 %713, %v680
        %v715 = vpop.permute.xlu0 %714
        %718 = vset.pattern.permute.xlu0 0
        %719 = vperm.xlu0 %718, %v681
        %v720 = vpop.permute.xlu0 %719
        %723 = vset.pattern.permute.xlu0 0
        %724 = vperm.xlu0 %723, %v682
        %v725 = vpop.permute.xlu0 %724
        %v728 = vlaneseq
        %v729 = vshrl.u32 %v728, 7
        %v730 = vsub.s32 0, %v729
        %v731 = vrot.slane %v674, %v730
        %v732 = vlaneseq
        %v733 = vshrl.u32 %v732, 7
        %v734 = vsub.s32 4, %v733
        %v735 = vrot.slane %v674, %v734
        %v738 = vlaneseq
        %v739 = vshrl.u32 %v738, 7
        %v740 = vsub.s32 0, %v739
        %v741 = vrot.slane %v731, %v740
        %v742 = vlaneseq
        %v743 = vshrl.u32 %v742, 7
        %v744 = vsub.s32 0, %v743
        %v745 = vrot.slane %v735, %v744
        %v746 = vsub.f32 %v690, %v741
        %v747 = vsub.f32 %v690, %v745
        %v748 = vsub.f32 %v695, %v741
        %v749 = vsub.f32 %v695, %v745
        %v750 = vsub.f32 %v700, %v741
        %v751 = vsub.f32 %v700, %v745
        %v752 = vsub.f32 %v705, %v741
        %v753 = vsub.f32 %v705, %v745
        %v754 = vsub.f32 %v710, %v741
        %v755 = vsub.f32 %v710, %v745
        %v756 = vsub.f32 %v715, %v741
        %v757 = vsub.f32 %v715, %v745
        %v758 = vsub.f32 %v720, %v741
        %v759 = vsub.f32 %v720, %v745
        %v760 = vsub.f32 %v725, %v741
        %v761 = vsub.f32 %v725, %v745
        %v762 = vmul.f32 %v746, %v746
        %v763 = vmul.f32 %v747, %v747
        %v764 = vmul.f32 %v748, %v748
        %v765 = vmul.f32 %v749, %v749
        %v766 = vmul.f32 %v750, %v750
        %v767 = vmul.f32 %v751, %v751
        %v768 = vmul.f32 %v752, %v752
        %v769 = vmul.f32 %v753, %v753
        %v770 = vmul.f32 %v754, %v754
        %v771 = vmul.f32 %v755, %v755
        %v772 = vmul.f32 %v756, %v756
        %v773 = vmul.f32 %v757, %v757
        %v774 = vmul.f32 %v758, %v758
        %v775 = vmul.f32 %v759, %v759
        %v776 = vmul.f32 %v760, %v760
        %v777 = vmul.f32 %v761, %v761
        %778 = vset.pattern.permute.xlu0 1
        %779 = vperm.xlu0 %778, %v675
        %v780 = vpop.permute.xlu0 %779
        %782 = vset.pattern.permute.xlu0 1
        %783 = vperm.xlu0 %782, %v676
        %v784 = vpop.permute.xlu0 %783
        %786 = vset.pattern.permute.xlu0 1
        %787 = vperm.xlu0 %786, %v677
        %v788 = vpop.permute.xlu0 %787
        %790 = vset.pattern.permute.xlu0 1
        %791 = vperm.xlu0 %790, %v678
        %v792 = vpop.permute.xlu0 %791
        %794 = vset.pattern.permute.xlu0 1
        %795 = vperm.xlu0 %794, %v679
        %v796 = vpop.permute.xlu0 %795
        %798 = vset.pattern.permute.xlu0 1
        %799 = vperm.xlu0 %798, %v680
        %v800 = vpop.permute.xlu0 %799
        %802 = vset.pattern.permute.xlu0 1
        %803 = vperm.xlu0 %802, %v681
        %v804 = vpop.permute.xlu0 %803
        %806 = vset.pattern.permute.xlu0 1
        %807 = vperm.xlu0 %806, %v682
        %v808 = vpop.permute.xlu0 %807
        %v810 = vlaneseq
        %v811 = vshrl.u32 %v810, 7
        %v812 = vsub.s32 1, %v811
        %v813 = vrot.slane %v674, %v812
        %v814 = vlaneseq
        %v815 = vshrl.u32 %v814, 7
        %v816 = vsub.s32 5, %v815
        %v817 = vrot.slane %v674, %v816
        %v820 = vlaneseq
        %v821 = vshrl.u32 %v820, 7
        %v822 = vsub.s32 1, %v821
        %v823 = vrot.slane %v813, %v822
        %v824 = vlaneseq
        %v825 = vshrl.u32 %v824, 7
        %v826 = vsub.s32 1, %v825
        %v827 = vrot.slane %v817, %v826
        %v828 = vsub.f32 %v780, %v823
        %v829 = vsub.f32 %v780, %v827
        %v830 = vsub.f32 %v784, %v823
        %v831 = vsub.f32 %v784, %v827
        %v832 = vsub.f32 %v788, %v823
        %v833 = vsub.f32 %v788, %v827
        %v834 = vsub.f32 %v792, %v823
        %v835 = vsub.f32 %v792, %v827
        %v836 = vsub.f32 %v796, %v823
        %v837 = vsub.f32 %v796, %v827
        %v838 = vsub.f32 %v800, %v823
        %v839 = vsub.f32 %v800, %v827
        %v840 = vsub.f32 %v804, %v823
        %v841 = vsub.f32 %v804, %v827
        %v842 = vsub.f32 %v808, %v823
        %v843 = vsub.f32 %v808, %v827
        %v844 = vmul.f32 %v828, %v828
        %v845 = vmul.f32 %v829, %v829
        %v846 = vmul.f32 %v830, %v830
        %v847 = vmul.f32 %v831, %v831
        %v848 = vmul.f32 %v832, %v832
        %v849 = vmul.f32 %v833, %v833
        %v850 = vmul.f32 %v834, %v834
        %v851 = vmul.f32 %v835, %v835
        %v852 = vmul.f32 %v836, %v836
        %v853 = vmul.f32 %v837, %v837
        %v854 = vmul.f32 %v838, %v838
        %v855 = vmul.f32 %v839, %v839
        %v856 = vmul.f32 %v840, %v840
        %v857 = vmul.f32 %v841, %v841
        %v858 = vmul.f32 %v842, %v842
        %v859 = vmul.f32 %v843, %v843
        %v860 = vadd.f32 %v762, %v844
        %v861 = vadd.f32 %v763, %v845
        %v862 = vadd.f32 %v764, %v846
        %v863 = vadd.f32 %v765, %v847
        %v864 = vadd.f32 %v766, %v848
        %v865 = vadd.f32 %v767, %v849
        %v866 = vadd.f32 %v768, %v850
        %v867 = vadd.f32 %v769, %v851
        %v868 = vadd.f32 %v770, %v852
        %v869 = vadd.f32 %v771, %v853
        %v870 = vadd.f32 %v772, %v854
        %v871 = vadd.f32 %v773, %v855
        %v872 = vadd.f32 %v774, %v856
        %v873 = vadd.f32 %v775, %v857
        %v874 = vadd.f32 %v776, %v858
        %v875 = vadd.f32 %v777, %v859
        %876 = vset.pattern.permute.xlu0 2
        %877 = vperm.xlu0 %876, %v675
        %v878 = vpop.permute.xlu0 %877
        %880 = vset.pattern.permute.xlu0 2
        %881 = vperm.xlu0 %880, %v676
        %v882 = vpop.permute.xlu0 %881
        %884 = vset.pattern.permute.xlu0 2
        %885 = vperm.xlu0 %884, %v677
        %v886 = vpop.permute.xlu0 %885
        %888 = vset.pattern.permute.xlu0 2
        %889 = vperm.xlu0 %888, %v678
        %v890 = vpop.permute.xlu0 %889
        %892 = vset.pattern.permute.xlu0 2
        %893 = vperm.xlu0 %892, %v679
        %v894 = vpop.permute.xlu0 %893
        %896 = vset.pattern.permute.xlu0 2
        %897 = vperm.xlu0 %896, %v680
        %v898 = vpop.permute.xlu0 %897
        %900 = vset.pattern.permute.xlu0 2
        %901 = vperm.xlu0 %900, %v681
        %v902 = vpop.permute.xlu0 %901
        %904 = vset.pattern.permute.xlu0 2
        %905 = vperm.xlu0 %904, %v682
        %v906 = vpop.permute.xlu0 %905
        %v908 = vlaneseq
        %v909 = vshrl.u32 %v908, 7
        %v910 = vsub.s32 2, %v909
        %v911 = vrot.slane %v674, %v910
        %v912 = vlaneseq
        %v913 = vshrl.u32 %v912, 7
        %v914 = vsub.s32 6, %v913
        %v915 = vrot.slane %v674, %v914
        %v918 = vlaneseq
        %v919 = vshrl.u32 %v918, 7
        %v920 = vsub.s32 2, %v919
        %v921 = vrot.slane %v911, %v920
        %v922 = vlaneseq
        %v923 = vshrl.u32 %v922, 7
        %v924 = vsub.s32 2, %v923
        %v925 = vrot.slane %v915, %v924
        %v926 = vsub.f32 %v878, %v921
        %v927 = vsub.f32 %v878, %v925
        %v928 = vsub.f32 %v882, %v921
        %v929 = vsub.f32 %v882, %v925
        %v930 = vsub.f32 %v886, %v921
        %v931 = vsub.f32 %v886, %v925
        %v932 = vsub.f32 %v890, %v921
        %v933 = vsub.f32 %v890, %v925
        %v934 = vsub.f32 %v894, %v921
        %v935 = vsub.f32 %v894, %v925
        %v936 = vsub.f32 %v898, %v921
        %v937 = vsub.f32 %v898, %v925
        %v938 = vsub.f32 %v902, %v921
        %v939 = vsub.f32 %v902, %v925
        %v940 = vsub.f32 %v906, %v921
        %v941 = vsub.f32 %v906, %v925
        %v942 = vmul.f32 %v926, %v926
        %v943 = vmul.f32 %v927, %v927
        %v944 = vmul.f32 %v928, %v928
        %v945 = vmul.f32 %v929, %v929
        %v946 = vmul.f32 %v930, %v930
        %v947 = vmul.f32 %v931, %v931
        %v948 = vmul.f32 %v932, %v932
        %v949 = vmul.f32 %v933, %v933
        %v950 = vmul.f32 %v934, %v934
        %v951 = vmul.f32 %v935, %v935
        %v952 = vmul.f32 %v936, %v936
        %v953 = vmul.f32 %v937, %v937
        %v954 = vmul.f32 %v938, %v938
        %v955 = vmul.f32 %v939, %v939
        %v956 = vmul.f32 %v940, %v940
        %v957 = vmul.f32 %v941, %v941
        %v958 = vadd.f32 %v860, %v942
        %v959 = vadd.f32 %v861, %v943
        %v960 = vadd.f32 %v862, %v944
        %v961 = vadd.f32 %v863, %v945
        %v962 = vadd.f32 %v864, %v946
        %v963 = vadd.f32 %v865, %v947
        %v964 = vadd.f32 %v866, %v948
        %v965 = vadd.f32 %v867, %v949
        %v966 = vadd.f32 %v868, %v950
        %v967 = vadd.f32 %v869, %v951
        %v968 = vadd.f32 %v870, %v952
        %v969 = vadd.f32 %v871, %v953
        %v970 = vadd.f32 %v872, %v954
        %v971 = vadd.f32 %v873, %v955
        %v972 = vadd.f32 %v874, %v956
        %v973 = vadd.f32 %v875, %v957
        %v974 = vlaneseq
        %v975 = vshrl.u32 %v974, 7
        %v976 = vadd.s32 %v975, 8
        %v977 = vadd.s32 %v975, 16
        %v978 = vadd.s32 %v975, 24
        %v979 = vadd.s32 %v975, 32
        %v980 = vadd.s32 %v975, 40
        %v981 = vadd.s32 %v975, 48
        %v982 = vadd.s32 %v975, 56
        %v983 = vcvt.s32.f32 %v975
        %v984 = vcvt.s32.f32 %v976
        %v985 = vcvt.s32.f32 %v977
        %v986 = vcvt.s32.f32 %v978
        %v987 = vcvt.s32.f32 %v979
        %v988 = vcvt.s32.f32 %v980
        %v989 = vcvt.s32.f32 %v981
        %v990 = vcvt.s32.f32 %v982
        %v991 = vmin.f32 %v958, %v962
        %v992 = vmin.f32 %v960, %v964
        %v993 = vmin.f32 %v991, %v966
        %v994 = vmin.f32 %v992, %v968
        %v995 = vmin.f32 %v993, %v970
        %v996 = vmin.f32 %v994, %v972
        %v997 = vmin.f32 %v995, %v996
        %v998 = vrot.slane %v997, 4
        %v999 = vmin.f32 %v997, %v998
        %v1000 = vrot.slane %v999, 2
        %v1001 = vmin.f32 %v999, %v1000
        %v1002 = vrot.slane %v1001, 1
        %v1003 = vmin.f32 %v1001, %v1002
        %v1004 = vmin.f32 %v959, %v963
        %v1005 = vmin.f32 %v961, %v965
        %v1006 = vmin.f32 %v1004, %v967
        %v1007 = vmin.f32 %v1005, %v969
        %v1008 = vmin.f32 %v1006, %v971
        %v1009 = vmin.f32 %v1007, %v973
        %v1010 = vmin.f32 %v1008, %v1009
        %v1011 = vrot.slane %v1010, 4
        %v1012 = vmin.f32 %v1010, %v1011
        %v1013 = vrot.slane %v1012, 2
        %v1014 = vmin.f32 %v1012, %v1013
        %v1015 = vrot.slane %v1014, 1
        %v1016 = vmin.f32 %v1014, %v1015
        %vm1017 = vcmp.eq.f32.partialorder %v958, %v1003
        %vm1018 = vcmp.eq.f32.partialorder %v959, %v1016
        %vm1019 = vcmp.eq.f32.partialorder %v960, %v1003
        %vm1020 = vcmp.eq.f32.partialorder %v961, %v1016
        %vm1021 = vcmp.eq.f32.partialorder %v962, %v1003
        %vm1022 = vcmp.eq.f32.partialorder %v963, %v1016
        %vm1023 = vcmp.eq.f32.partialorder %v964, %v1003
        %vm1024 = vcmp.eq.f32.partialorder %v965, %v1016
        %vm1025 = vcmp.eq.f32.partialorder %v966, %v1003
        %vm1026 = vcmp.eq.f32.partialorder %v967, %v1016
        %vm1027 = vcmp.eq.f32.partialorder %v968, %v1003
        %vm1028 = vcmp.eq.f32.partialorder %v969, %v1016
        %vm1029 = vcmp.eq.f32.partialorder %v970, %v1003
        %vm1030 = vcmp.eq.f32.partialorder %v971, %v1016
        %vm1031 = vcmp.eq.f32.partialorder %v972, %v1003
        %vm1032 = vcmp.eq.f32.partialorder %v973, %v1016
        %v1033 = vsel %vm1017, %v983, 64.0
        %v1034 = vsel %vm1018, %v983, 64.0
        %v1035 = vsel %vm1019, %v984, 64.0
        %v1036 = vsel %vm1020, %v984, 64.0
        %v1037 = vsel %vm1021, %v985, 64.0
        %v1038 = vsel %vm1022, %v985, 64.0
        %v1039 = vsel %vm1023, %v986, 64.0
        %v1040 = vsel %vm1024, %v986, 64.0
        %v1041 = vsel %vm1025, %v987, 64.0
        %v1042 = vsel %vm1026, %v987, 64.0
        %v1043 = vsel %vm1027, %v988, 64.0
        %v1044 = vsel %vm1028, %v988, 64.0
        %v1045 = vsel %vm1029, %v989, 64.0
        %v1046 = vsel %vm1030, %v989, 64.0
        %v1047 = vsel %vm1031, %v990, 64.0
        %v1048 = vsel %vm1032, %v990, 64.0
        %v1049 = vmin.f32 %v1033, %v1037
        %v1050 = vmin.f32 %v1035, %v1039
        %v1051 = vmin.f32 %v1049, %v1041
        %v1052 = vmin.f32 %v1050, %v1043
        %v1053 = vmin.f32 %v1051, %v1045
        %v1054 = vmin.f32 %v1052, %v1047
        %v1055 = vmin.f32 %v1053, %v1054
        %v1056 = vrot.slane %v1055, 4
        %v1057 = vmin.f32 %v1055, %v1056
        %v1058 = vrot.slane %v1057, 2
        %v1059 = vmin.f32 %v1057, %v1058
        %v1060 = vrot.slane %v1059, 1
        %v1061 = vmin.f32 %v1059, %v1060
        %v1062 = vmin.f32 %v1034, %v1038
        %v1063 = vmin.f32 %v1036, %v1040
        %v1064 = vmin.f32 %v1062, %v1042
        %v1065 = vmin.f32 %v1063, %v1044
        %v1066 = vmin.f32 %v1064, %v1046
        %v1067 = vmin.f32 %v1065, %v1048
        %v1068 = vmin.f32 %v1066, %v1067
        %v1069 = vrot.slane %v1068, 4
        %v1070 = vmin.f32 %v1068, %v1069
        %v1071 = vrot.slane %v1070, 2
        %v1072 = vmin.f32 %v1070, %v1071
        %v1073 = vrot.slane %v1072, 1
        %v1074 = vmin.f32 %v1072, %v1073
        %vm1075 = vcmp.eq.f32.partialorder %v983, %v1061
        %vm1076 = vcmp.eq.f32.partialorder %v983, %v1074
        %vm1077 = vcmp.eq.f32.partialorder %v984, %v1061
        %vm1078 = vcmp.eq.f32.partialorder %v984, %v1074
        %vm1079 = vcmp.eq.f32.partialorder %v985, %v1061
        %vm1080 = vcmp.eq.f32.partialorder %v985, %v1074
        %vm1081 = vcmp.eq.f32.partialorder %v986, %v1061
        %vm1082 = vcmp.eq.f32.partialorder %v986, %v1074
        %vm1083 = vcmp.eq.f32.partialorder %v987, %v1061
        %vm1084 = vcmp.eq.f32.partialorder %v987, %v1074
        %vm1085 = vcmp.eq.f32.partialorder %v988, %v1061
        %vm1086 = vcmp.eq.f32.partialorder %v988, %v1074
        %vm1087 = vcmp.eq.f32.partialorder %v989, %v1061
        %vm1088 = vcmp.eq.f32.partialorder %v989, %v1074
        %vm1089 = vcmp.eq.f32.partialorder %v990, %v1061
        %vm1090 = vcmp.eq.f32.partialorder %v990, %v1074
        %v1091 = vsel %vm1075, 1.0, 0.0
        %v1092 = vsel %vm1076, 1.0, 0.0
        %v1093 = vsel %vm1077, 1.0, 0.0
        %v1094 = vsel %vm1078, 1.0, 0.0
        %v1095 = vsel %vm1079, 1.0, 0.0
        %v1096 = vsel %vm1080, 1.0, 0.0
        %v1097 = vsel %vm1081, 1.0, 0.0
        %v1098 = vsel %vm1082, 1.0, 0.0
        %v1099 = vsel %vm1083, 1.0, 0.0
        %v1100 = vsel %vm1084, 1.0, 0.0
        %v1101 = vsel %vm1085, 1.0, 0.0
        %v1102 = vsel %vm1086, 1.0, 0.0
        %v1103 = vsel %vm1087, 1.0, 0.0
        %v1104 = vsel %vm1088, 1.0, 0.0
        %v1105 = vsel %vm1089, 1.0, 0.0
        %v1106 = vsel %vm1090, 1.0, 0.0
        %vm1107 = vcmask 523264
        %v1109 = vsel %vm1107, %v683, 0
        %v1112 = vsel %vm1107, %v684, 0
        %v1115 = vsel %vm1107, %v685, 0
        %v1118 = vsel %vm1107, %v686, 0
        %1120 = vmatprep.subr.mxu0 0.0
        %1121 = vmatpush1.msra.mxu0 0.0
        %1122 = vmatprep.subr.mxu0 0.0
        %1123 = vmatpush1.msra.mxu0 0.0
        %1124 = vmatprep.subr.mxu0 0.0
        %1125 = vmatpush1.msra.mxu0 0.0
        %1126 = vmatprep.subr.mxu0 0.0
        %1127 = vmatpush1.msra.mxu0 0.0
        %1128 = vmatprep.subr.mxu0 0.0
        %1129 = vmatpush1.msra.mxu0 0.0
        %1130 = vmatprep.subr.mxu0 0.0
        %1131 = vmatpush1.msra.mxu0 0.0
        %1132 = vmatprep.subr.mxu0 0.0
        %1133 = vmatpush1.msra.mxu0 0.0
        %1134 = vmatprep.subr.mxu0 0.0
        %1135 = vmatpush1.msra.mxu0 0.0
        %1136 = vmatprep.subr.mxu0 %v1106
        %1137 = vmatpush1.msra.mxu0 %v1105
        %1138 = vmatprep.subr.mxu0 %v1104
        %1139 = vmatpush1.msra.mxu0 %v1103
        %1140 = vmatprep.subr.mxu0 %v1102
        %1141 = vmatpush1.msra.mxu0 %v1101
        %1142 = vmatprep.subr.mxu0 %v1100
        %1143 = vmatpush1.msra.mxu0 %v1099
        %1144 = vmatprep.subr.mxu0 %v1098
        %1145 = vmatpush1.msra.mxu0 %v1097
        %1146 = vmatprep.subr.mxu0 %v1096
        %1147 = vmatpush1.msra.mxu0 %v1095
        %1148 = vmatprep.subr.mxu0 %v1094
        %1149 = vmatpush1.msra.mxu0 %v1093
        %1150 = vmatprep.subr.mxu0 %v1092
        %1151 = vmatpush1.msra.mxu0 %v1091
        %1152 = vmatprep.subr.mxu0 0.0
        %1153 = vmatpush2.msra.mxu0 0.0
        %1154 = vmatprep.subr.mxu0 0.0
        %1155 = vmatpush2.msra.mxu0 0.0
        %1156 = vmatprep.subr.mxu0 0.0
        %1157 = vmatpush2.msra.mxu0 0.0
        %1158 = vmatprep.subr.mxu0 0.0
        %1159 = vmatpush2.msra.mxu0 0.0
        %1160 = vmatprep.subr.mxu0 0.0
        %1161 = vmatpush2.msra.mxu0 0.0
        %1162 = vmatprep.subr.mxu0 0.0
        %1163 = vmatpush2.msra.mxu0 0.0
        %1164 = vmatprep.subr.mxu0 0.0
        %1165 = vmatpush2.msra.mxu0 0.0
        %1166 = vmatprep.subr.mxu0 0.0
        %1167 = vmatpush2.msra.mxu0 0.0
        %1168 = vmatprep.subr.mxu0 0.0
        %1169 = vmatpush2.msra.mxu0 0.0
        %1170 = vmatprep.subr.mxu0 0.0
        %1171 = vmatpush2.msra.mxu0 0.0
        %1172 = vmatprep.subr.mxu0 0.0
        %1173 = vmatpush2.msra.mxu0 0.0
        %1174 = vmatprep.subr.mxu0 0.0
        %1175 = vmatpush2.msra.mxu0 0.0
        %1176 = vmatprep.subr.mxu0 0.0
        %1177 = vmatpush2.msra.mxu0 0.0
        %1178 = vmatprep.subr.mxu0 0.0
        %1179 = vmatpush2.msra.mxu0 0.0
        %1180 = vmatprep.subr.mxu0 0.0
        %1181 = vmatpush2.msra.mxu0 0.0
        %1182 = vmatprep.subr.mxu0 0.0
        %1183 = vmatpush2.msra.mxu0 0.0
        %1184 = vmatprep.mubr.f32.mxu0 0.0
        %1185 = vmatmul.mubr.f32.gmra.mxu0 %v1109
        %v1186 = vpop.f32.mrf.mxu0
        %v1187 = vadd.f32 0.0, %v1186
        %v1188 = vpop.f32.mrf.mxu0
        %v1189 = vadd.f32 0.0, %v1188
        %1190 = vmatprep.mubr.f32.mxu0 0.0
        %1191 = vmatmul.mubr.f32.gmra.mxu0 %v1112
        %v1192 = vpop.f32.mrf.mxu0
        %v1193 = vadd.f32 0.0, %v1192
        %v1194 = vpop.f32.mrf.mxu0
        %v1195 = vadd.f32 0.0, %v1194
        %1196 = vmatprep.mubr.f32.mxu0 0.0
        %1197 = vmatmul.mubr.f32.gmra.mxu0 %v1115
        %v1198 = vpop.f32.mrf.mxu0
        %v1199 = vadd.f32 0.0, %v1198
        %v1200 = vpop.f32.mrf.mxu0
        %v1201 = vadd.f32 0.0, %v1200
        %1202 = vmatprep.mubr.f32.mxu0 0.0
        %1203 = vmatmul.mubr.f32.gmra.mxu0 %v1118
        %v1204 = vpop.f32.mrf.mxu0
        %v1205 = vadd.f32 0.0, %v1204
        %v1206 = vpop.f32.mrf.mxu0
        %v1207 = vadd.f32 0.0, %v1206
        %1208 = vdwg.mxu0
        %v1209 = vrsqrt.pop %v1003
        %v1210 = vmul.f32 %v1003, %v1209
        %vm1211 = vcmp.eq.f32.partialorder %v1003, inf
        %v1212 = vsel %vm1211, %v1003, %v1210
        %vm1213 = vcmp.eq.f32.partialorder %v1003, 0.0
        %v1214 = vand.u32 %v1003, 2147483648
        %v1215 = vsel %vm1213, %v1214, %v1212
        %v1216 = vrsqrt.pop %v1016
        %v1217 = vmul.f32 %v1016, %v1216
        %vm1218 = vcmp.eq.f32.partialorder %v1016, inf
        %v1219 = vsel %vm1218, %v1016, %v1217
        %vm1220 = vcmp.eq.f32.partialorder %v1016, 0.0
        %v1221 = vand.u32 %v1016, 2147483648
        %v1222 = vsel %vm1220, %v1221, %v1219
        %v1223 = vadd.f32 %v1215, 1e-08
        %v1224 = vadd.f32 %v1222, 1e-08
        %v1225 = vrcp.pop %v1223
        %v1226 = vmul.f32 1.0, %v1225
        %v1227 = vrcp.pop %v1224
        %v1228 = vmul.f32 1.0, %v1227
        %v1229 = vmul.f32 %v1226, %v1187
        %v1230 = vmul.f32 %v1228, %v1189
        %v1231 = vmul.f32 %v1226, %v1193
        %v1232 = vmul.f32 %v1228, %v1195
        %v1233 = vmul.f32 %v1226, %v1199
        %v1234 = vmul.f32 %v1228, %v1201
        %v1235 = vmul.f32 %v1226, %v1205
        %v1236 = vmul.f32 %v1228, %v1207
        %v1237 = vsel %vm1075, 1e+30, %v958
        %v1238 = vsel %vm1076, 1e+30, %v959
        %v1239 = vsel %vm1077, 1e+30, %v960
        %v1240 = vsel %vm1078, 1e+30, %v961
        %v1241 = vsel %vm1079, 1e+30, %v962
        %v1242 = vsel %vm1080, 1e+30, %v963
        %v1243 = vsel %vm1081, 1e+30, %v964
        %v1244 = vsel %vm1082, 1e+30, %v965
        %v1245 = vsel %vm1083, 1e+30, %v966
        %v1246 = vsel %vm1084, 1e+30, %v967
        %v1247 = vsel %vm1085, 1e+30, %v968
        %v1248 = vsel %vm1086, 1e+30, %v969
        %v1249 = vsel %vm1087, 1e+30, %v970
        %v1250 = vsel %vm1088, 1e+30, %v971
        %v1251 = vsel %vm1089, 1e+30, %v972
        %v1252 = vsel %vm1090, 1e+30, %v973
        %v1253 = vmin.f32 %v1237, %v1241
        %v1254 = vmin.f32 %v1239, %v1243
        %v1255 = vmin.f32 %v1253, %v1245
        %v1256 = vmin.f32 %v1254, %v1247
        %v1257 = vmin.f32 %v1255, %v1249
        %v1258 = vmin.f32 %v1256, %v1251
        %v1259 = vmin.f32 %v1257, %v1258
        %v1260 = vrot.slane %v1259, 4
        %v1261 = vmin.f32 %v1259, %v1260
        %v1262 = vrot.slane %v1261, 2
        %v1263 = vmin.f32 %v1261, %v1262
        %v1264 = vrot.slane %v1263, 1
        %v1265 = vmin.f32 %v1263, %v1264
        %v1266 = vmin.f32 %v1238, %v1242
        %v1267 = vmin.f32 %v1240, %v1244
        %v1268 = vmin.f32 %v1266, %v1246
        %v1269 = vmin.f32 %v1267, %v1248
        %v1270 = vmin.f32 %v1268, %v1250
        %v1271 = vmin.f32 %v1269, %v1252
        %v1272 = vmin.f32 %v1270, %v1271
        %v1273 = vrot.slane %v1272, 4
        %v1274 = vmin.f32 %v1272, %v1273
        %v1275 = vrot.slane %v1274, 2
        %v1276 = vmin.f32 %v1274, %v1275
        %v1277 = vrot.slane %v1276, 1
        %v1278 = vmin.f32 %v1276, %v1277
        %vm1279 = vcmp.eq.f32.partialorder %v1237, %v1265
        %vm1280 = vcmp.eq.f32.partialorder %v1238, %v1278
        %vm1281 = vcmp.eq.f32.partialorder %v1239, %v1265
        %vm1282 = vcmp.eq.f32.partialorder %v1240, %v1278
        %vm1283 = vcmp.eq.f32.partialorder %v1241, %v1265
        %vm1284 = vcmp.eq.f32.partialorder %v1242, %v1278
        %vm1285 = vcmp.eq.f32.partialorder %v1243, %v1265
        %vm1286 = vcmp.eq.f32.partialorder %v1244, %v1278
        %vm1287 = vcmp.eq.f32.partialorder %v1245, %v1265
        %vm1288 = vcmp.eq.f32.partialorder %v1246, %v1278
        %vm1289 = vcmp.eq.f32.partialorder %v1247, %v1265
        %vm1290 = vcmp.eq.f32.partialorder %v1248, %v1278
        %vm1291 = vcmp.eq.f32.partialorder %v1249, %v1265
        %vm1292 = vcmp.eq.f32.partialorder %v1250, %v1278
        %vm1293 = vcmp.eq.f32.partialorder %v1251, %v1265
        %vm1294 = vcmp.eq.f32.partialorder %v1252, %v1278
        %v1295 = vsel %vm1279, %v983, 64.0
        %v1296 = vsel %vm1280, %v983, 64.0
        %v1297 = vsel %vm1281, %v984, 64.0
        %v1298 = vsel %vm1282, %v984, 64.0
        %v1299 = vsel %vm1283, %v985, 64.0
        %v1300 = vsel %vm1284, %v985, 64.0
        %v1301 = vsel %vm1285, %v986, 64.0
        %v1302 = vsel %vm1286, %v986, 64.0
        %v1303 = vsel %vm1287, %v987, 64.0
        %v1304 = vsel %vm1288, %v987, 64.0
        %v1305 = vsel %vm1289, %v988, 64.0
        %v1306 = vsel %vm1290, %v988, 64.0
        %v1307 = vsel %vm1291, %v989, 64.0
        %v1308 = vsel %vm1292, %v989, 64.0
        %v1309 = vsel %vm1293, %v990, 64.0
        %v1310 = vsel %vm1294, %v990, 64.0
        %v1311 = vmin.f32 %v1295, %v1299
        %v1312 = vmin.f32 %v1297, %v1301
        %v1313 = vmin.f32 %v1311, %v1303
        %v1314 = vmin.f32 %v1312, %v1305
        %v1315 = vmin.f32 %v1313, %v1307
        %v1316 = vmin.f32 %v1314, %v1309
        %v1317 = vmin.f32 %v1315, %v1316
        %v1318 = vrot.slane %v1317, 4
        %v1319 = vmin.f32 %v1317, %v1318
        %v1320 = vrot.slane %v1319, 2
        %v1321 = vmin.f32 %v1319, %v1320
        %v1322 = vrot.slane %v1321, 1
        %v1323 = vmin.f32 %v1321, %v1322
        %v1324 = vmin.f32 %v1296, %v1300
        %v1325 = vmin.f32 %v1298, %v1302
        %v1326 = vmin.f32 %v1324, %v1304
        %v1327 = vmin.f32 %v1325, %v1306
        %v1328 = vmin.f32 %v1326, %v1308
        %v1329 = vmin.f32 %v1327, %v1310
        %v1330 = vmin.f32 %v1328, %v1329
        %v1331 = vrot.slane %v1330, 4
        %v1332 = vmin.f32 %v1330, %v1331
        %v1333 = vrot.slane %v1332, 2
        %v1334 = vmin.f32 %v1332, %v1333
        %v1335 = vrot.slane %v1334, 1
        %v1336 = vmin.f32 %v1334, %v1335
        %vm1337 = vcmp.eq.f32.partialorder %v983, %v1323
        %vm1338 = vcmp.eq.f32.partialorder %v983, %v1336
        %vm1339 = vcmp.eq.f32.partialorder %v984, %v1323
        %vm1340 = vcmp.eq.f32.partialorder %v984, %v1336
        %vm1341 = vcmp.eq.f32.partialorder %v985, %v1323
        %vm1342 = vcmp.eq.f32.partialorder %v985, %v1336
        %vm1343 = vcmp.eq.f32.partialorder %v986, %v1323
        %vm1344 = vcmp.eq.f32.partialorder %v986, %v1336
        %vm1345 = vcmp.eq.f32.partialorder %v987, %v1323
        %vm1346 = vcmp.eq.f32.partialorder %v987, %v1336
        %vm1347 = vcmp.eq.f32.partialorder %v988, %v1323
        %vm1348 = vcmp.eq.f32.partialorder %v988, %v1336
        %vm1349 = vcmp.eq.f32.partialorder %v989, %v1323
        %vm1350 = vcmp.eq.f32.partialorder %v989, %v1336
        %vm1351 = vcmp.eq.f32.partialorder %v990, %v1323
        %vm1352 = vcmp.eq.f32.partialorder %v990, %v1336
        %v1353 = vsel %vm1337, 1.0, 0.0
        %v1354 = vsel %vm1338, 1.0, 0.0
        %v1355 = vsel %vm1339, 1.0, 0.0
        %v1356 = vsel %vm1340, 1.0, 0.0
        %v1357 = vsel %vm1341, 1.0, 0.0
        %v1358 = vsel %vm1342, 1.0, 0.0
        %v1359 = vsel %vm1343, 1.0, 0.0
        %v1360 = vsel %vm1344, 1.0, 0.0
        %v1361 = vsel %vm1345, 1.0, 0.0
        %v1362 = vsel %vm1346, 1.0, 0.0
        %v1363 = vsel %vm1347, 1.0, 0.0
        %v1364 = vsel %vm1348, 1.0, 0.0
        %v1365 = vsel %vm1349, 1.0, 0.0
        %v1366 = vsel %vm1350, 1.0, 0.0
        %v1367 = vsel %vm1351, 1.0, 0.0
        %v1368 = vsel %vm1352, 1.0, 0.0
        %1369 = vmatprep.subr.mxu0 0.0
        %1370 = vmatpush1.msra.mxu0 0.0
        %1371 = vmatprep.subr.mxu0 0.0
        %1372 = vmatpush1.msra.mxu0 0.0
        %1373 = vmatprep.subr.mxu0 0.0
        %1374 = vmatpush1.msra.mxu0 0.0
        %1375 = vmatprep.subr.mxu0 0.0
        %1376 = vmatpush1.msra.mxu0 0.0
        %1377 = vmatprep.subr.mxu0 0.0
        %1378 = vmatpush1.msra.mxu0 0.0
        %1379 = vmatprep.subr.mxu0 0.0
        %1380 = vmatpush1.msra.mxu0 0.0
        %1381 = vmatprep.subr.mxu0 0.0
        %1382 = vmatpush1.msra.mxu0 0.0
        %1383 = vmatprep.subr.mxu0 0.0
        %1384 = vmatpush1.msra.mxu0 0.0
        %1385 = vmatprep.subr.mxu0 %v1368
        %1386 = vmatpush1.msra.mxu0 %v1367
        %1387 = vmatprep.subr.mxu0 %v1366
        %1388 = vmatpush1.msra.mxu0 %v1365
        %1389 = vmatprep.subr.mxu0 %v1364
        %1390 = vmatpush1.msra.mxu0 %v1363
        %1391 = vmatprep.subr.mxu0 %v1362
        %1392 = vmatpush1.msra.mxu0 %v1361
        %1393 = vmatprep.subr.mxu0 %v1360
        %1394 = vmatpush1.msra.mxu0 %v1359
        %1395 = vmatprep.subr.mxu0 %v1358
        %1396 = vmatpush1.msra.mxu0 %v1357
        %1397 = vmatprep.subr.mxu0 %v1356
        %1398 = vmatpush1.msra.mxu0 %v1355
        %1399 = vmatprep.subr.mxu0 %v1354
        %1400 = vmatpush1.msra.mxu0 %v1353
        %1401 = vmatprep.subr.mxu0 0.0
        %1402 = vmatpush2.msra.mxu0 0.0
        %1403 = vmatprep.subr.mxu0 0.0
        %1404 = vmatpush2.msra.mxu0 0.0
        %1405 = vmatprep.subr.mxu0 0.0
        %1406 = vmatpush2.msra.mxu0 0.0
        %1407 = vmatprep.subr.mxu0 0.0
        %1408 = vmatpush2.msra.mxu0 0.0
        %1409 = vmatprep.subr.mxu0 0.0
        %1410 = vmatpush2.msra.mxu0 0.0
        %1411 = vmatprep.subr.mxu0 0.0
        %1412 = vmatpush2.msra.mxu0 0.0
        %1413 = vmatprep.subr.mxu0 0.0
        %1414 = vmatpush2.msra.mxu0 0.0
        %1415 = vmatprep.subr.mxu0 0.0
        %1416 = vmatpush2.msra.mxu0 0.0
        %1417 = vmatprep.subr.mxu0 0.0
        %1418 = vmatpush2.msra.mxu0 0.0
        %1419 = vmatprep.subr.mxu0 0.0
        %1420 = vmatpush2.msra.mxu0 0.0
        %1421 = vmatprep.subr.mxu0 0.0
        %1422 = vmatpush2.msra.mxu0 0.0
        %1423 = vmatprep.subr.mxu0 0.0
        %1424 = vmatpush2.msra.mxu0 0.0
        %1425 = vmatprep.subr.mxu0 0.0
        %1426 = vmatpush2.msra.mxu0 0.0
        %1427 = vmatprep.subr.mxu0 0.0
        %1428 = vmatpush2.msra.mxu0 0.0
        %1429 = vmatprep.subr.mxu0 0.0
        %1430 = vmatpush2.msra.mxu0 0.0
        %1431 = vmatprep.subr.mxu0 0.0
        %1432 = vmatpush2.msra.mxu0 0.0
        %1433 = vmatprep.mubr.f32.mxu0 0.0
        %1434 = vmatmul.mubr.f32.gmra.mxu0 %v1109
        %v1435 = vpop.f32.mrf.mxu0
        %v1436 = vadd.f32 0.0, %v1435
        %v1437 = vpop.f32.mrf.mxu0
        %v1438 = vadd.f32 0.0, %v1437
        %1439 = vmatprep.mubr.f32.mxu0 0.0
        %1440 = vmatmul.mubr.f32.gmra.mxu0 %v1112
        %v1441 = vpop.f32.mrf.mxu0
        %v1442 = vadd.f32 0.0, %v1441
        %v1443 = vpop.f32.mrf.mxu0
        %v1444 = vadd.f32 0.0, %v1443
        %1445 = vmatprep.mubr.f32.mxu0 0.0
        %1446 = vmatmul.mubr.f32.gmra.mxu0 %v1115
        %v1447 = vpop.f32.mrf.mxu0
        %v1448 = vadd.f32 0.0, %v1447
        %v1449 = vpop.f32.mrf.mxu0
        %v1450 = vadd.f32 0.0, %v1449
        %1451 = vmatprep.mubr.f32.mxu0 0.0
        %1452 = vmatmul.mubr.f32.gmra.mxu0 %v1118
        %v1453 = vpop.f32.mrf.mxu0
        %v1454 = vadd.f32 0.0, %v1453
        %v1455 = vpop.f32.mrf.mxu0
        %v1456 = vadd.f32 0.0, %v1455
        %1457 = vdwg.mxu0
        %v1458 = vrsqrt.pop %v1265
        %v1459 = vmul.f32 %v1265, %v1458
        %vm1460 = vcmp.eq.f32.partialorder %v1265, inf
        %v1461 = vsel %vm1460, %v1265, %v1459
        %vm1462 = vcmp.eq.f32.partialorder %v1265, 0.0
        %v1463 = vand.u32 %v1265, 2147483648
        %v1464 = vsel %vm1462, %v1463, %v1461
        %v1465 = vrsqrt.pop %v1278
        %v1466 = vmul.f32 %v1278, %v1465
        %vm1467 = vcmp.eq.f32.partialorder %v1278, inf
        %v1468 = vsel %vm1467, %v1278, %v1466
        %vm1469 = vcmp.eq.f32.partialorder %v1278, 0.0
        %v1470 = vand.u32 %v1278, 2147483648
        %v1471 = vsel %vm1469, %v1470, %v1468
        %v1472 = vadd.f32 %v1464, 1e-08
        %v1473 = vadd.f32 %v1471, 1e-08
        %v1474 = vrcp.pop %v1472
        %v1475 = vmul.f32 1.0, %v1474
        %v1476 = vrcp.pop %v1473
        %v1477 = vmul.f32 1.0, %v1476
        %v1478 = vadd.f32 %v1226, %v1475
        %v1479 = vadd.f32 %v1228, %v1477
        %v1480 = vmul.f32 %v1475, %v1436
        %v1481 = vmul.f32 %v1477, %v1438
        %v1482 = vmul.f32 %v1475, %v1442
        %v1483 = vmul.f32 %v1477, %v1444
        %v1484 = vmul.f32 %v1475, %v1448
        %v1485 = vmul.f32 %v1477, %v1450
        %v1486 = vmul.f32 %v1475, %v1454
        %v1487 = vmul.f32 %v1477, %v1456
        %v1488 = vadd.f32 %v1229, %v1480
        %v1489 = vadd.f32 %v1230, %v1481
        %v1490 = vadd.f32 %v1231, %v1482
        %v1491 = vadd.f32 %v1232, %v1483
        %v1492 = vadd.f32 %v1233, %v1484
        %v1493 = vadd.f32 %v1234, %v1485
        %v1494 = vadd.f32 %v1235, %v1486
        %v1495 = vadd.f32 %v1236, %v1487
        %v1496 = vsel %vm1337, 1e+30, %v1237
        %v1497 = vsel %vm1338, 1e+30, %v1238
        %v1498 = vsel %vm1339, 1e+30, %v1239
        %v1499 = vsel %vm1340, 1e+30, %v1240
        %v1500 = vsel %vm1341, 1e+30, %v1241
        %v1501 = vsel %vm1342, 1e+30, %v1242
        %v1502 = vsel %vm1343, 1e+30, %v1243
        %v1503 = vsel %vm1344, 1e+30, %v1244
        %v1504 = vsel %vm1345, 1e+30, %v1245
        %v1505 = vsel %vm1346, 1e+30, %v1246
        %v1506 = vsel %vm1347, 1e+30, %v1247
        %v1507 = vsel %vm1348, 1e+30, %v1248
        %v1508 = vsel %vm1349, 1e+30, %v1249
        %v1509 = vsel %vm1350, 1e+30, %v1250
        %v1510 = vsel %vm1351, 1e+30, %v1251
        %v1511 = vsel %vm1352, 1e+30, %v1252
        %v1512 = vmin.f32 %v1496, %v1500
        %v1513 = vmin.f32 %v1498, %v1502
        %v1514 = vmin.f32 %v1512, %v1504
        %v1515 = vmin.f32 %v1513, %v1506
        %v1516 = vmin.f32 %v1514, %v1508
        %v1517 = vmin.f32 %v1515, %v1510
        %v1518 = vmin.f32 %v1516, %v1517
        %v1519 = vrot.slane %v1518, 4
        %v1520 = vmin.f32 %v1518, %v1519
        %v1521 = vrot.slane %v1520, 2
        %v1522 = vmin.f32 %v1520, %v1521
        %v1523 = vrot.slane %v1522, 1
        %v1524 = vmin.f32 %v1522, %v1523
        %v1525 = vmin.f32 %v1497, %v1501
        %v1526 = vmin.f32 %v1499, %v1503
        %v1527 = vmin.f32 %v1525, %v1505
        %v1528 = vmin.f32 %v1526, %v1507
        %v1529 = vmin.f32 %v1527, %v1509
        %v1530 = vmin.f32 %v1528, %v1511
        %v1531 = vmin.f32 %v1529, %v1530
        %v1532 = vrot.slane %v1531, 4
        %v1533 = vmin.f32 %v1531, %v1532
        %v1534 = vrot.slane %v1533, 2
        %v1535 = vmin.f32 %v1533, %v1534
        %v1536 = vrot.slane %v1535, 1
        %v1537 = vmin.f32 %v1535, %v1536
        %vm1538 = vcmp.eq.f32.partialorder %v1496, %v1524
        %vm1539 = vcmp.eq.f32.partialorder %v1497, %v1537
        %vm1540 = vcmp.eq.f32.partialorder %v1498, %v1524
        %vm1541 = vcmp.eq.f32.partialorder %v1499, %v1537
        %vm1542 = vcmp.eq.f32.partialorder %v1500, %v1524
        %vm1543 = vcmp.eq.f32.partialorder %v1501, %v1537
        %vm1544 = vcmp.eq.f32.partialorder %v1502, %v1524
        %vm1545 = vcmp.eq.f32.partialorder %v1503, %v1537
        %vm1546 = vcmp.eq.f32.partialorder %v1504, %v1524
        %vm1547 = vcmp.eq.f32.partialorder %v1505, %v1537
        %vm1548 = vcmp.eq.f32.partialorder %v1506, %v1524
        %vm1549 = vcmp.eq.f32.partialorder %v1507, %v1537
        %vm1550 = vcmp.eq.f32.partialorder %v1508, %v1524
        %vm1551 = vcmp.eq.f32.partialorder %v1509, %v1537
        %vm1552 = vcmp.eq.f32.partialorder %v1510, %v1524
        %vm1553 = vcmp.eq.f32.partialorder %v1511, %v1537
        %v1554 = vsel %vm1538, %v983, 64.0
        %v1555 = vsel %vm1539, %v983, 64.0
        %v1556 = vsel %vm1540, %v984, 64.0
        %v1557 = vsel %vm1541, %v984, 64.0
        %v1558 = vsel %vm1542, %v985, 64.0
        %v1559 = vsel %vm1543, %v985, 64.0
        %v1560 = vsel %vm1544, %v986, 64.0
        %v1561 = vsel %vm1545, %v986, 64.0
        %v1562 = vsel %vm1546, %v987, 64.0
        %v1563 = vsel %vm1547, %v987, 64.0
        %v1564 = vsel %vm1548, %v988, 64.0
        %v1565 = vsel %vm1549, %v988, 64.0
        %v1566 = vsel %vm1550, %v989, 64.0
        %v1567 = vsel %vm1551, %v989, 64.0
        %v1568 = vsel %vm1552, %v990, 64.0
        %v1569 = vsel %vm1553, %v990, 64.0
        %v1570 = vmin.f32 %v1554, %v1558
        %v1571 = vmin.f32 %v1556, %v1560
        %v1572 = vmin.f32 %v1570, %v1562
        %v1573 = vmin.f32 %v1571, %v1564
        %v1574 = vmin.f32 %v1572, %v1566
        %v1575 = vmin.f32 %v1573, %v1568
        %v1576 = vmin.f32 %v1574, %v1575
        %v1577 = vrot.slane %v1576, 4
        %v1578 = vmin.f32 %v1576, %v1577
        %v1579 = vrot.slane %v1578, 2
        %v1580 = vmin.f32 %v1578, %v1579
        %v1581 = vrot.slane %v1580, 1
        %v1582 = vmin.f32 %v1580, %v1581
        %v1583 = vmin.f32 %v1555, %v1559
        %v1584 = vmin.f32 %v1557, %v1561
        %v1585 = vmin.f32 %v1583, %v1563
        %v1586 = vmin.f32 %v1584, %v1565
        %v1587 = vmin.f32 %v1585, %v1567
        %v1588 = vmin.f32 %v1586, %v1569
        %v1589 = vmin.f32 %v1587, %v1588
        %v1590 = vrot.slane %v1589, 4
        %v1591 = vmin.f32 %v1589, %v1590
        %v1592 = vrot.slane %v1591, 2
        %v1593 = vmin.f32 %v1591, %v1592
        %v1594 = vrot.slane %v1593, 1
        %v1595 = vmin.f32 %v1593, %v1594
        %vm1596 = vcmp.eq.f32.partialorder %v983, %v1582
        %vm1597 = vcmp.eq.f32.partialorder %v983, %v1595
        %vm1598 = vcmp.eq.f32.partialorder %v984, %v1582
        %vm1599 = vcmp.eq.f32.partialorder %v984, %v1595
        %vm1600 = vcmp.eq.f32.partialorder %v985, %v1582
        %vm1601 = vcmp.eq.f32.partialorder %v985, %v1595
        %vm1602 = vcmp.eq.f32.partialorder %v986, %v1582
        %vm1603 = vcmp.eq.f32.partialorder %v986, %v1595
        %vm1604 = vcmp.eq.f32.partialorder %v987, %v1582
        %vm1605 = vcmp.eq.f32.partialorder %v987, %v1595
        %vm1606 = vcmp.eq.f32.partialorder %v988, %v1582
        %vm1607 = vcmp.eq.f32.partialorder %v988, %v1595
        %vm1608 = vcmp.eq.f32.partialorder %v989, %v1582
        %vm1609 = vcmp.eq.f32.partialorder %v989, %v1595
        %vm1610 = vcmp.eq.f32.partialorder %v990, %v1582
        %vm1611 = vcmp.eq.f32.partialorder %v990, %v1595
        %v1612 = vsel %vm1596, 1.0, 0.0
        %v1613 = vsel %vm1597, 1.0, 0.0
        %v1614 = vsel %vm1598, 1.0, 0.0
        %v1615 = vsel %vm1599, 1.0, 0.0
        %v1616 = vsel %vm1600, 1.0, 0.0
        %v1617 = vsel %vm1601, 1.0, 0.0
        %v1618 = vsel %vm1602, 1.0, 0.0
        %v1619 = vsel %vm1603, 1.0, 0.0
        %v1620 = vsel %vm1604, 1.0, 0.0
        %v1621 = vsel %vm1605, 1.0, 0.0
        %v1622 = vsel %vm1606, 1.0, 0.0
        %v1623 = vsel %vm1607, 1.0, 0.0
        %v1624 = vsel %vm1608, 1.0, 0.0
        %v1625 = vsel %vm1609, 1.0, 0.0
        %v1626 = vsel %vm1610, 1.0, 0.0
        %v1627 = vsel %vm1611, 1.0, 0.0
        %1628 = vmatprep.subr.mxu0 0.0
        %1629 = vmatpush1.msra.mxu0 0.0
        %1630 = vmatprep.subr.mxu0 0.0
        %1631 = vmatpush1.msra.mxu0 0.0
        %1632 = vmatprep.subr.mxu0 0.0
        %1633 = vmatpush1.msra.mxu0 0.0
        %1634 = vmatprep.subr.mxu0 0.0
        %1635 = vmatpush1.msra.mxu0 0.0
        %1636 = vmatprep.subr.mxu0 0.0
        %1637 = vmatpush1.msra.mxu0 0.0
        %1638 = vmatprep.subr.mxu0 0.0
        %1639 = vmatpush1.msra.mxu0 0.0
        %1640 = vmatprep.subr.mxu0 0.0
        %1641 = vmatpush1.msra.mxu0 0.0
        %1642 = vmatprep.subr.mxu0 0.0
        %1643 = vmatpush1.msra.mxu0 0.0
        %1644 = vmatprep.subr.mxu0 %v1627
        %1645 = vmatpush1.msra.mxu0 %v1626
        %1646 = vmatprep.subr.mxu0 %v1625
        %1647 = vmatpush1.msra.mxu0 %v1624
        %1648 = vmatprep.subr.mxu0 %v1623
        %1649 = vmatpush1.msra.mxu0 %v1622
        %1650 = vmatprep.subr.mxu0 %v1621
        %1651 = vmatpush1.msra.mxu0 %v1620
        %1652 = vmatprep.subr.mxu0 %v1619
        %1653 = vmatpush1.msra.mxu0 %v1618
        %1654 = vmatprep.subr.mxu0 %v1617
        %1655 = vmatpush1.msra.mxu0 %v1616
        %1656 = vmatprep.subr.mxu0 %v1615
        %1657 = vmatpush1.msra.mxu0 %v1614
        %1658 = vmatprep.subr.mxu0 %v1613
        %1659 = vmatpush1.msra.mxu0 %v1612
        %1660 = vmatprep.subr.mxu0 0.0
        %1661 = vmatpush2.msra.mxu0 0.0
        %1662 = vmatprep.subr.mxu0 0.0
        %1663 = vmatpush2.msra.mxu0 0.0
        %1664 = vmatprep.subr.mxu0 0.0
        %1665 = vmatpush2.msra.mxu0 0.0
        %1666 = vmatprep.subr.mxu0 0.0
        %1667 = vmatpush2.msra.mxu0 0.0
        %1668 = vmatprep.subr.mxu0 0.0
        %1669 = vmatpush2.msra.mxu0 0.0
        %1670 = vmatprep.subr.mxu0 0.0
        %1671 = vmatpush2.msra.mxu0 0.0
        %1672 = vmatprep.subr.mxu0 0.0
        %1673 = vmatpush2.msra.mxu0 0.0
        %1674 = vmatprep.subr.mxu0 0.0
        %1675 = vmatpush2.msra.mxu0 0.0
        %1676 = vmatprep.subr.mxu0 0.0
        %1677 = vmatpush2.msra.mxu0 0.0
        %1678 = vmatprep.subr.mxu0 0.0
        %1679 = vmatpush2.msra.mxu0 0.0
        %1680 = vmatprep.subr.mxu0 0.0
        %1681 = vmatpush2.msra.mxu0 0.0
        %1682 = vmatprep.subr.mxu0 0.0
        %1683 = vmatpush2.msra.mxu0 0.0
        %1684 = vmatprep.subr.mxu0 0.0
        %1685 = vmatpush2.msra.mxu0 0.0
        %1686 = vmatprep.subr.mxu0 0.0
        %1687 = vmatpush2.msra.mxu0 0.0
        %1688 = vmatprep.subr.mxu0 0.0
        %1689 = vmatpush2.msra.mxu0 0.0
        %1690 = vmatprep.subr.mxu0 0.0
        %1691 = vmatpush2.msra.mxu0 0.0
        %1692 = vmatprep.mubr.f32.mxu0 0.0
        %1693 = vmatmul.mubr.f32.gmra.mxu0 %v1109
        %v1694 = vpop.f32.mrf.mxu0
        %v1695 = vadd.f32 0.0, %v1694
        %v1696 = vpop.f32.mrf.mxu0
        %v1697 = vadd.f32 0.0, %v1696
        %1698 = vmatprep.mubr.f32.mxu0 0.0
        %1699 = vmatmul.mubr.f32.gmra.mxu0 %v1112
        %v1700 = vpop.f32.mrf.mxu0
        %v1701 = vadd.f32 0.0, %v1700
        %v1702 = vpop.f32.mrf.mxu0
        %v1703 = vadd.f32 0.0, %v1702
        %1704 = vmatprep.mubr.f32.mxu0 0.0
        %1705 = vmatmul.mubr.f32.gmra.mxu0 %v1115
        %v1706 = vpop.f32.mrf.mxu0
        %v1707 = vadd.f32 0.0, %v1706
        %v1708 = vpop.f32.mrf.mxu0
        %v1709 = vadd.f32 0.0, %v1708
        %1710 = vmatprep.mubr.f32.mxu0 0.0
        %1711 = vmatmul.mubr.f32.gmra.mxu0 %v1118
        %v1712 = vpop.f32.mrf.mxu0
        %v1713 = vadd.f32 0.0, %v1712
        %v1714 = vpop.f32.mrf.mxu0
        %v1715 = vadd.f32 0.0, %v1714
        %1716 = vdwg.mxu0
        %v1717 = vrsqrt.pop %v1524
        %v1718 = vmul.f32 %v1524, %v1717
        %vm1719 = vcmp.eq.f32.partialorder %v1524, inf
        %v1720 = vsel %vm1719, %v1524, %v1718
        %vm1721 = vcmp.eq.f32.partialorder %v1524, 0.0
        %v1722 = vand.u32 %v1524, 2147483648
        %v1723 = vsel %vm1721, %v1722, %v1720
        %v1724 = vrsqrt.pop %v1537
        %v1725 = vmul.f32 %v1537, %v1724
        %vm1726 = vcmp.eq.f32.partialorder %v1537, inf
        %v1727 = vsel %vm1726, %v1537, %v1725
        %vm1728 = vcmp.eq.f32.partialorder %v1537, 0.0
        %v1729 = vand.u32 %v1537, 2147483648
        %v1730 = vsel %vm1728, %v1729, %v1727
        %v1731 = vadd.f32 %v1723, 1e-08
        %v1732 = vadd.f32 %v1730, 1e-08
        %v1733 = vrcp.pop %v1731
        %v1734 = vmul.f32 1.0, %v1733
        %v1735 = vrcp.pop %v1732
        %v1736 = vmul.f32 1.0, %v1735
        %v1737 = vadd.f32 %v1478, %v1734
        %v1738 = vadd.f32 %v1479, %v1736
        %v1739 = vmul.f32 %v1734, %v1695
        %v1740 = vmul.f32 %v1736, %v1697
        %v1741 = vmul.f32 %v1734, %v1701
        %v1742 = vmul.f32 %v1736, %v1703
        %v1743 = vmul.f32 %v1734, %v1707
        %v1744 = vmul.f32 %v1736, %v1709
        %v1745 = vmul.f32 %v1734, %v1713
        %v1746 = vmul.f32 %v1736, %v1715
        %v1747 = vadd.f32 %v1488, %v1739
        %v1748 = vadd.f32 %v1489, %v1740
        %v1749 = vadd.f32 %v1490, %v1741
        %v1750 = vadd.f32 %v1491, %v1742
        %v1751 = vadd.f32 %v1492, %v1743
        %v1752 = vadd.f32 %v1493, %v1744
        %v1753 = vadd.f32 %v1494, %v1745
        %v1754 = vadd.f32 %v1495, %v1746
        %v1755 = vsel %vm1596, 1e+30, %v1496
        %v1756 = vsel %vm1597, 1e+30, %v1497
        %v1757 = vsel %vm1598, 1e+30, %v1498
        %v1758 = vsel %vm1599, 1e+30, %v1499
        %v1759 = vsel %vm1600, 1e+30, %v1500
        %v1760 = vsel %vm1601, 1e+30, %v1501
        %v1761 = vsel %vm1602, 1e+30, %v1502
        %v1762 = vsel %vm1603, 1e+30, %v1503
        %v1763 = vsel %vm1604, 1e+30, %v1504
        %v1764 = vsel %vm1605, 1e+30, %v1505
        %v1765 = vsel %vm1606, 1e+30, %v1506
        %v1766 = vsel %vm1607, 1e+30, %v1507
        %v1767 = vsel %vm1608, 1e+30, %v1508
        %v1768 = vsel %vm1609, 1e+30, %v1509
        %v1769 = vsel %vm1610, 1e+30, %v1510
        %v1770 = vsel %vm1611, 1e+30, %v1511
        %v1771 = vmin.f32 %v1755, %v1759
        %v1772 = vmin.f32 %v1757, %v1761
        %v1773 = vmin.f32 %v1771, %v1763
        %v1774 = vmin.f32 %v1772, %v1765
        %v1775 = vmin.f32 %v1773, %v1767
        %v1776 = vmin.f32 %v1774, %v1769
        %v1777 = vmin.f32 %v1775, %v1776
        %v1778 = vrot.slane %v1777, 4
        %v1779 = vmin.f32 %v1777, %v1778
        %v1780 = vrot.slane %v1779, 2
        %v1781 = vmin.f32 %v1779, %v1780
        %v1782 = vrot.slane %v1781, 1
        %v1783 = vmin.f32 %v1781, %v1782
        %v1784 = vmin.f32 %v1756, %v1760
        %v1785 = vmin.f32 %v1758, %v1762
        %v1786 = vmin.f32 %v1784, %v1764
        %v1787 = vmin.f32 %v1785, %v1766
        %v1788 = vmin.f32 %v1786, %v1768
        %v1789 = vmin.f32 %v1787, %v1770
        %v1790 = vmin.f32 %v1788, %v1789
        %v1791 = vrot.slane %v1790, 4
        %v1792 = vmin.f32 %v1790, %v1791
        %v1793 = vrot.slane %v1792, 2
        %v1794 = vmin.f32 %v1792, %v1793
        %v1795 = vrot.slane %v1794, 1
        %v1796 = vmin.f32 %v1794, %v1795
        %vm1797 = vcmp.eq.f32.partialorder %v1755, %v1783
        %vm1798 = vcmp.eq.f32.partialorder %v1756, %v1796
        %vm1799 = vcmp.eq.f32.partialorder %v1757, %v1783
        %vm1800 = vcmp.eq.f32.partialorder %v1758, %v1796
        %vm1801 = vcmp.eq.f32.partialorder %v1759, %v1783
        %vm1802 = vcmp.eq.f32.partialorder %v1760, %v1796
        %vm1803 = vcmp.eq.f32.partialorder %v1761, %v1783
        %vm1804 = vcmp.eq.f32.partialorder %v1762, %v1796
        %vm1805 = vcmp.eq.f32.partialorder %v1763, %v1783
        %vm1806 = vcmp.eq.f32.partialorder %v1764, %v1796
        %vm1807 = vcmp.eq.f32.partialorder %v1765, %v1783
        %vm1808 = vcmp.eq.f32.partialorder %v1766, %v1796
        %vm1809 = vcmp.eq.f32.partialorder %v1767, %v1783
        %vm1810 = vcmp.eq.f32.partialorder %v1768, %v1796
        %vm1811 = vcmp.eq.f32.partialorder %v1769, %v1783
        %vm1812 = vcmp.eq.f32.partialorder %v1770, %v1796
        %v1813 = vsel %vm1797, %v983, 64.0
        %v1814 = vsel %vm1798, %v983, 64.0
        %v1815 = vsel %vm1799, %v984, 64.0
        %v1816 = vsel %vm1800, %v984, 64.0
        %v1817 = vsel %vm1801, %v985, 64.0
        %v1818 = vsel %vm1802, %v985, 64.0
        %v1819 = vsel %vm1803, %v986, 64.0
        %v1820 = vsel %vm1804, %v986, 64.0
        %v1821 = vsel %vm1805, %v987, 64.0
        %v1822 = vsel %vm1806, %v987, 64.0
        %v1823 = vsel %vm1807, %v988, 64.0
        %v1824 = vsel %vm1808, %v988, 64.0
        %v1825 = vsel %vm1809, %v989, 64.0
        %v1826 = vsel %vm1810, %v989, 64.0
        %v1827 = vsel %vm1811, %v990, 64.0
        %v1828 = vsel %vm1812, %v990, 64.0
        %v1829 = vmin.f32 %v1813, %v1817
        %v1830 = vmin.f32 %v1815, %v1819
        %v1831 = vmin.f32 %v1829, %v1821
        %v1832 = vmin.f32 %v1830, %v1823
        %v1833 = vmin.f32 %v1831, %v1825
        %v1834 = vmin.f32 %v1832, %v1827
        %v1835 = vmin.f32 %v1833, %v1834
        %v1836 = vrot.slane %v1835, 4
        %v1837 = vmin.f32 %v1835, %v1836
        %v1838 = vrot.slane %v1837, 2
        %v1839 = vmin.f32 %v1837, %v1838
        %v1840 = vrot.slane %v1839, 1
        %v1841 = vmin.f32 %v1839, %v1840
        %v1842 = vmin.f32 %v1814, %v1818
        %v1843 = vmin.f32 %v1816, %v1820
        %v1844 = vmin.f32 %v1842, %v1822
        %v1845 = vmin.f32 %v1843, %v1824
        %v1846 = vmin.f32 %v1844, %v1826
        %v1847 = vmin.f32 %v1845, %v1828
        %v1848 = vmin.f32 %v1846, %v1847
        %v1849 = vrot.slane %v1848, 4
        %v1850 = vmin.f32 %v1848, %v1849
        %v1851 = vrot.slane %v1850, 2
        %v1852 = vmin.f32 %v1850, %v1851
        %v1853 = vrot.slane %v1852, 1
        %v1854 = vmin.f32 %v1852, %v1853
        %vm1855 = vcmp.eq.f32.partialorder %v983, %v1841
        %vm1856 = vcmp.eq.f32.partialorder %v983, %v1854
        %vm1857 = vcmp.eq.f32.partialorder %v984, %v1841
        %vm1858 = vcmp.eq.f32.partialorder %v984, %v1854
        %vm1859 = vcmp.eq.f32.partialorder %v985, %v1841
        %vm1860 = vcmp.eq.f32.partialorder %v985, %v1854
        %vm1861 = vcmp.eq.f32.partialorder %v986, %v1841
        %vm1862 = vcmp.eq.f32.partialorder %v986, %v1854
        %vm1863 = vcmp.eq.f32.partialorder %v987, %v1841
        %vm1864 = vcmp.eq.f32.partialorder %v987, %v1854
        %vm1865 = vcmp.eq.f32.partialorder %v988, %v1841
        %vm1866 = vcmp.eq.f32.partialorder %v988, %v1854
        %vm1867 = vcmp.eq.f32.partialorder %v989, %v1841
        %vm1868 = vcmp.eq.f32.partialorder %v989, %v1854
        %vm1869 = vcmp.eq.f32.partialorder %v990, %v1841
        %vm1870 = vcmp.eq.f32.partialorder %v990, %v1854
        %v1871 = vsel %vm1855, 1.0, 0.0
        %v1872 = vsel %vm1856, 1.0, 0.0
        %v1873 = vsel %vm1857, 1.0, 0.0
        %v1874 = vsel %vm1858, 1.0, 0.0
        %v1875 = vsel %vm1859, 1.0, 0.0
        %v1876 = vsel %vm1860, 1.0, 0.0
        %v1877 = vsel %vm1861, 1.0, 0.0
        %v1878 = vsel %vm1862, 1.0, 0.0
        %v1879 = vsel %vm1863, 1.0, 0.0
        %v1880 = vsel %vm1864, 1.0, 0.0
        %v1881 = vsel %vm1865, 1.0, 0.0
        %v1882 = vsel %vm1866, 1.0, 0.0
        %v1883 = vsel %vm1867, 1.0, 0.0
        %v1884 = vsel %vm1868, 1.0, 0.0
        %v1885 = vsel %vm1869, 1.0, 0.0
        %v1886 = vsel %vm1870, 1.0, 0.0
        %1887 = vmatprep.subr.mxu0 0.0
        %1888 = vmatpush1.msra.mxu0 0.0
        %1889 = vmatprep.subr.mxu0 0.0
        %1890 = vmatpush1.msra.mxu0 0.0
        %1891 = vmatprep.subr.mxu0 0.0
        %1892 = vmatpush1.msra.mxu0 0.0
        %1893 = vmatprep.subr.mxu0 0.0
        %1894 = vmatpush1.msra.mxu0 0.0
        %1895 = vmatprep.subr.mxu0 0.0
        %1896 = vmatpush1.msra.mxu0 0.0
        %1897 = vmatprep.subr.mxu0 0.0
        %1898 = vmatpush1.msra.mxu0 0.0
        %1899 = vmatprep.subr.mxu0 0.0
        %1900 = vmatpush1.msra.mxu0 0.0
        %1901 = vmatprep.subr.mxu0 0.0
        %1902 = vmatpush1.msra.mxu0 0.0
        %1903 = vmatprep.subr.mxu0 %v1886
        %1904 = vmatpush1.msra.mxu0 %v1885
        %1905 = vmatprep.subr.mxu0 %v1884
        %1906 = vmatpush1.msra.mxu0 %v1883
        %1907 = vmatprep.subr.mxu0 %v1882
        %1908 = vmatpush1.msra.mxu0 %v1881
        %1909 = vmatprep.subr.mxu0 %v1880
        %1910 = vmatpush1.msra.mxu0 %v1879
        %1911 = vmatprep.subr.mxu0 %v1878
        %1912 = vmatpush1.msra.mxu0 %v1877
        %1913 = vmatprep.subr.mxu0 %v1876
        %1914 = vmatpush1.msra.mxu0 %v1875
        %1915 = vmatprep.subr.mxu0 %v1874
        %1916 = vmatpush1.msra.mxu0 %v1873
        %1917 = vmatprep.subr.mxu0 %v1872
        %1918 = vmatpush1.msra.mxu0 %v1871
        %1919 = vmatprep.subr.mxu0 0.0
        %1920 = vmatpush2.msra.mxu0 0.0
        %1921 = vmatprep.subr.mxu0 0.0
        %1922 = vmatpush2.msra.mxu0 0.0
        %1923 = vmatprep.subr.mxu0 0.0
        %1924 = vmatpush2.msra.mxu0 0.0
        %1925 = vmatprep.subr.mxu0 0.0
        %1926 = vmatpush2.msra.mxu0 0.0
        %1927 = vmatprep.subr.mxu0 0.0
        %1928 = vmatpush2.msra.mxu0 0.0
        %1929 = vmatprep.subr.mxu0 0.0
        %1930 = vmatpush2.msra.mxu0 0.0
        %1931 = vmatprep.subr.mxu0 0.0
        %1932 = vmatpush2.msra.mxu0 0.0
        %1933 = vmatprep.subr.mxu0 0.0
        %1934 = vmatpush2.msra.mxu0 0.0
        %1935 = vmatprep.subr.mxu0 0.0
        %1936 = vmatpush2.msra.mxu0 0.0
        %1937 = vmatprep.subr.mxu0 0.0
        %1938 = vmatpush2.msra.mxu0 0.0
        %1939 = vmatprep.subr.mxu0 0.0
        %1940 = vmatpush2.msra.mxu0 0.0
        %1941 = vmatprep.subr.mxu0 0.0
        %1942 = vmatpush2.msra.mxu0 0.0
        %1943 = vmatprep.subr.mxu0 0.0
        %1944 = vmatpush2.msra.mxu0 0.0
        %1945 = vmatprep.subr.mxu0 0.0
        %1946 = vmatpush2.msra.mxu0 0.0
        %1947 = vmatprep.subr.mxu0 0.0
        %1948 = vmatpush2.msra.mxu0 0.0
        %1949 = vmatprep.subr.mxu0 0.0
        %1950 = vmatpush2.msra.mxu0 0.0
        %1951 = vmatprep.mubr.f32.mxu0 0.0
        %1952 = vmatmul.mubr.f32.gmra.mxu0 %v1109
        %v1953 = vpop.f32.mrf.mxu0
        %v1954 = vadd.f32 0.0, %v1953
        %v1955 = vpop.f32.mrf.mxu0
        %v1956 = vadd.f32 0.0, %v1955
        %1957 = vmatprep.mubr.f32.mxu0 0.0
        %1958 = vmatmul.mubr.f32.gmra.mxu0 %v1112
        %v1959 = vpop.f32.mrf.mxu0
        %v1960 = vadd.f32 0.0, %v1959
        %v1961 = vpop.f32.mrf.mxu0
        %v1962 = vadd.f32 0.0, %v1961
        %1963 = vmatprep.mubr.f32.mxu0 0.0
        %1964 = vmatmul.mubr.f32.gmra.mxu0 %v1115
        %v1965 = vpop.f32.mrf.mxu0
        %v1966 = vadd.f32 0.0, %v1965
        %v1967 = vpop.f32.mrf.mxu0
        %v1968 = vadd.f32 0.0, %v1967
        %1969 = vmatprep.mubr.f32.mxu0 0.0
        %1970 = vmatmul.mubr.f32.gmra.mxu0 %v1118
        %v1971 = vpop.f32.mrf.mxu0
        %v1972 = vadd.f32 0.0, %v1971
        %v1973 = vpop.f32.mrf.mxu0
        %v1974 = vadd.f32 0.0, %v1973
        %1975 = vdwg.mxu0
        %v1976 = vsel %vm1855, 1e+30, %v1755
        %v1977 = vsel %vm1856, 1e+30, %v1756
        %v1978 = vsel %vm1857, 1e+30, %v1757
        %v1979 = vsel %vm1858, 1e+30, %v1758
        %v1980 = vsel %vm1859, 1e+30, %v1759
        %v1981 = vsel %vm1860, 1e+30, %v1760
        %v1982 = vsel %vm1861, 1e+30, %v1761
        %v1983 = vsel %vm1862, 1e+30, %v1762
        %v1984 = vsel %vm1863, 1e+30, %v1763
        %v1985 = vsel %vm1864, 1e+30, %v1764
        %v1986 = vsel %vm1865, 1e+30, %v1765
        %v1987 = vsel %vm1866, 1e+30, %v1766
        %v1988 = vsel %vm1867, 1e+30, %v1767
        %v1989 = vsel %vm1868, 1e+30, %v1768
        %v1990 = vsel %vm1869, 1e+30, %v1769
        %v1991 = vsel %vm1870, 1e+30, %v1770
        %v1992 = vmin.f32 %v1976, %v1980
        %v1993 = vmin.f32 %v1978, %v1982
        %v1994 = vmin.f32 %v1992, %v1984
        %v1995 = vmin.f32 %v1993, %v1986
        %v1996 = vmin.f32 %v1994, %v1988
        %v1997 = vmin.f32 %v1995, %v1990
        %v1998 = vmin.f32 %v1996, %v1997
        %v1999 = vrot.slane %v1998, 4
        %v2000 = vmin.f32 %v1998, %v1999
        %v2001 = vrot.slane %v2000, 2
        %v2002 = vmin.f32 %v2000, %v2001
        %v2003 = vrot.slane %v2002, 1
        %v2004 = vmin.f32 %v2002, %v2003
        %v2005 = vmin.f32 %v1977, %v1981
        %v2006 = vmin.f32 %v1979, %v1983
        %v2007 = vmin.f32 %v2005, %v1985
        %v2008 = vmin.f32 %v2006, %v1987
        %v2009 = vmin.f32 %v2007, %v1989
        %v2010 = vmin.f32 %v2008, %v1991
        %v2011 = vmin.f32 %v2009, %v2010
        %v2012 = vrot.slane %v2011, 4
        %v2013 = vmin.f32 %v2011, %v2012
        %v2014 = vrot.slane %v2013, 2
        %v2015 = vmin.f32 %v2013, %v2014
        %v2016 = vrot.slane %v2015, 1
        %v2017 = vmin.f32 %v2015, %v2016
        %vm2018 = vcmp.eq.f32.partialorder %v1976, %v2004
        %vm2019 = vcmp.eq.f32.partialorder %v1977, %v2017
        %vm2020 = vcmp.eq.f32.partialorder %v1978, %v2004
        %vm2021 = vcmp.eq.f32.partialorder %v1979, %v2017
        %vm2022 = vcmp.eq.f32.partialorder %v1980, %v2004
        %vm2023 = vcmp.eq.f32.partialorder %v1981, %v2017
        %vm2024 = vcmp.eq.f32.partialorder %v1982, %v2004
        %vm2025 = vcmp.eq.f32.partialorder %v1983, %v2017
        %vm2026 = vcmp.eq.f32.partialorder %v1984, %v2004
        %vm2027 = vcmp.eq.f32.partialorder %v1985, %v2017
        %vm2028 = vcmp.eq.f32.partialorder %v1986, %v2004
        %vm2029 = vcmp.eq.f32.partialorder %v1987, %v2017
        %vm2030 = vcmp.eq.f32.partialorder %v1988, %v2004
        %vm2031 = vcmp.eq.f32.partialorder %v1989, %v2017
        %vm2032 = vcmp.eq.f32.partialorder %v1990, %v2004
        %vm2033 = vcmp.eq.f32.partialorder %v1991, %v2017
        %v2034 = vsel %vm2018, %v983, 64.0
        %v2035 = vsel %vm2019, %v983, 64.0
        %v2036 = vsel %vm2020, %v984, 64.0
        %v2037 = vsel %vm2021, %v984, 64.0
        %v2038 = vsel %vm2022, %v985, 64.0
        %v2039 = vsel %vm2023, %v985, 64.0
        %v2040 = vsel %vm2024, %v986, 64.0
        %v2041 = vsel %vm2025, %v986, 64.0
        %v2042 = vsel %vm2026, %v987, 64.0
        %v2043 = vsel %vm2027, %v987, 64.0
        %v2044 = vsel %vm2028, %v988, 64.0
        %v2045 = vsel %vm2029, %v988, 64.0
        %v2046 = vsel %vm2030, %v989, 64.0
        %v2047 = vsel %vm2031, %v989, 64.0
        %v2048 = vsel %vm2032, %v990, 64.0
        %v2049 = vsel %vm2033, %v990, 64.0
        %v2050 = vmin.f32 %v2034, %v2038
        %v2051 = vmin.f32 %v2036, %v2040
        %v2052 = vmin.f32 %v2050, %v2042
        %v2053 = vmin.f32 %v2051, %v2044
        %v2054 = vmin.f32 %v2052, %v2046
        %v2055 = vmin.f32 %v2053, %v2048
        %v2056 = vmin.f32 %v2054, %v2055
        %v2057 = vrot.slane %v2056, 4
        %v2058 = vmin.f32 %v2056, %v2057
        %v2059 = vrot.slane %v2058, 2
        %v2060 = vmin.f32 %v2058, %v2059
        %v2061 = vrot.slane %v2060, 1
        %v2062 = vmin.f32 %v2060, %v2061
        %v2063 = vmin.f32 %v2035, %v2039
        %v2064 = vmin.f32 %v2037, %v2041
        %v2065 = vmin.f32 %v2063, %v2043
        %v2066 = vmin.f32 %v2064, %v2045
        %v2067 = vmin.f32 %v2065, %v2047
        %v2068 = vmin.f32 %v2066, %v2049
        %v2069 = vmin.f32 %v2067, %v2068
        %v2070 = vrot.slane %v2069, 4
        %v2071 = vmin.f32 %v2069, %v2070
        %v2072 = vrot.slane %v2071, 2
        %v2073 = vmin.f32 %v2071, %v2072
        %v2074 = vrot.slane %v2073, 1
        %v2075 = vmin.f32 %v2073, %v2074
        %vm2076 = vcmp.eq.f32.partialorder %v983, %v2062
        %vm2077 = vcmp.eq.f32.partialorder %v983, %v2075
        %vm2078 = vcmp.eq.f32.partialorder %v984, %v2062
        %vm2079 = vcmp.eq.f32.partialorder %v984, %v2075
        %vm2080 = vcmp.eq.f32.partialorder %v985, %v2062
        %vm2081 = vcmp.eq.f32.partialorder %v985, %v2075
        %vm2082 = vcmp.eq.f32.partialorder %v986, %v2062
        %vm2083 = vcmp.eq.f32.partialorder %v986, %v2075
        %vm2084 = vcmp.eq.f32.partialorder %v987, %v2062
        %vm2085 = vcmp.eq.f32.partialorder %v987, %v2075
        %vm2086 = vcmp.eq.f32.partialorder %v988, %v2062
        %vm2087 = vcmp.eq.f32.partialorder %v988, %v2075
        %vm2088 = vcmp.eq.f32.partialorder %v989, %v2062
        %vm2089 = vcmp.eq.f32.partialorder %v989, %v2075
        %vm2090 = vcmp.eq.f32.partialorder %v990, %v2062
        %vm2091 = vcmp.eq.f32.partialorder %v990, %v2075
        %v2092 = vsel %vm2076, 1.0, 0.0
        %v2093 = vsel %vm2077, 1.0, 0.0
        %v2094 = vsel %vm2078, 1.0, 0.0
        %v2095 = vsel %vm2079, 1.0, 0.0
        %v2096 = vsel %vm2080, 1.0, 0.0
        %v2097 = vsel %vm2081, 1.0, 0.0
        %v2098 = vsel %vm2082, 1.0, 0.0
        %v2099 = vsel %vm2083, 1.0, 0.0
        %v2100 = vsel %vm2084, 1.0, 0.0
        %v2101 = vsel %vm2085, 1.0, 0.0
        %v2102 = vsel %vm2086, 1.0, 0.0
        %v2103 = vsel %vm2087, 1.0, 0.0
        %v2104 = vsel %vm2088, 1.0, 0.0
        %v2105 = vsel %vm2089, 1.0, 0.0
        %v2106 = vsel %vm2090, 1.0, 0.0
        %v2107 = vsel %vm2091, 1.0, 0.0
        %2108 = vmatprep.subr.mxu0 0.0
        %2109 = vmatpush1.msra.mxu0 0.0
        %2110 = vmatprep.subr.mxu0 0.0
        %2111 = vmatpush1.msra.mxu0 0.0
        %2112 = vmatprep.subr.mxu0 0.0
        %2113 = vmatpush1.msra.mxu0 0.0
        %2114 = vmatprep.subr.mxu0 0.0
        %2115 = vmatpush1.msra.mxu0 0.0
        %2116 = vmatprep.subr.mxu0 0.0
        %2117 = vmatpush1.msra.mxu0 0.0
        %2118 = vmatprep.subr.mxu0 0.0
        %2119 = vmatpush1.msra.mxu0 0.0
        %2120 = vmatprep.subr.mxu0 0.0
        %2121 = vmatpush1.msra.mxu0 0.0
        %2122 = vmatprep.subr.mxu0 0.0
        %2123 = vmatpush1.msra.mxu0 0.0
        %2124 = vmatprep.subr.mxu0 %v2107
        %2125 = vmatpush1.msra.mxu0 %v2106
        %2126 = vmatprep.subr.mxu0 %v2105
        %2127 = vmatpush1.msra.mxu0 %v2104
        %2128 = vmatprep.subr.mxu0 %v2103
        %2129 = vmatpush1.msra.mxu0 %v2102
        %2130 = vmatprep.subr.mxu0 %v2101
        %2131 = vmatpush1.msra.mxu0 %v2100
        %2132 = vmatprep.subr.mxu0 %v2099
        %2133 = vmatpush1.msra.mxu0 %v2098
        %2134 = vmatprep.subr.mxu0 %v2097
        %2135 = vmatpush1.msra.mxu0 %v2096
        %2136 = vmatprep.subr.mxu0 %v2095
        %2137 = vmatpush1.msra.mxu0 %v2094
        %2138 = vmatprep.subr.mxu0 %v2093
        %2139 = vmatpush1.msra.mxu0 %v2092
        %2140 = vmatprep.subr.mxu0 0.0
        %2141 = vmatpush2.msra.mxu0 0.0
        %2142 = vmatprep.subr.mxu0 0.0
        %2143 = vmatpush2.msra.mxu0 0.0
        %2144 = vmatprep.subr.mxu0 0.0
        %2145 = vmatpush2.msra.mxu0 0.0
        %2146 = vmatprep.subr.mxu0 0.0
        %2147 = vmatpush2.msra.mxu0 0.0
        %2148 = vmatprep.subr.mxu0 0.0
        %2149 = vmatpush2.msra.mxu0 0.0
        %2150 = vmatprep.subr.mxu0 0.0
        %2151 = vmatpush2.msra.mxu0 0.0
        %2152 = vmatprep.subr.mxu0 0.0
        %2153 = vmatpush2.msra.mxu0 0.0
        %2154 = vmatprep.subr.mxu0 0.0
        %2155 = vmatpush2.msra.mxu0 0.0
        %2156 = vmatprep.subr.mxu0 0.0
        %2157 = vmatpush2.msra.mxu0 0.0
        %2158 = vmatprep.subr.mxu0 0.0
        %2159 = vmatpush2.msra.mxu0 0.0
        %2160 = vmatprep.subr.mxu0 0.0
        %2161 = vmatpush2.msra.mxu0 0.0
        %2162 = vmatprep.subr.mxu0 0.0
        %2163 = vmatpush2.msra.mxu0 0.0
        %2164 = vmatprep.subr.mxu0 0.0
        %2165 = vmatpush2.msra.mxu0 0.0
        %2166 = vmatprep.subr.mxu0 0.0
        %2167 = vmatpush2.msra.mxu0 0.0
        %2168 = vmatprep.subr.mxu0 0.0
        %2169 = vmatpush2.msra.mxu0 0.0
        %2170 = vmatprep.subr.mxu0 0.0
        %2171 = vmatpush2.msra.mxu0 0.0
        %2172 = vmatprep.mubr.f32.mxu0 0.0
        %2173 = vmatmul.mubr.f32.gmra.mxu0 %v1109
        %v2174 = vpop.f32.mrf.mxu0
        %v2175 = vadd.f32 0.0, %v2174
        %v2176 = vpop.f32.mrf.mxu0
        %v2177 = vadd.f32 0.0, %v2176
        %2178 = vmatprep.mubr.f32.mxu0 0.0
        %2179 = vmatmul.mubr.f32.gmra.mxu0 %v1112
        %v2180 = vpop.f32.mrf.mxu0
        %v2181 = vadd.f32 0.0, %v2180
        %v2182 = vpop.f32.mrf.mxu0
        %v2183 = vadd.f32 0.0, %v2182
        %2184 = vmatprep.mubr.f32.mxu0 0.0
        %2185 = vmatmul.mubr.f32.gmra.mxu0 %v1115
        %v2186 = vpop.f32.mrf.mxu0
        %v2187 = vadd.f32 0.0, %v2186
        %v2188 = vpop.f32.mrf.mxu0
        %v2189 = vadd.f32 0.0, %v2188
        %2190 = vmatprep.mubr.f32.mxu0 0.0
        %2191 = vmatmul.mubr.f32.gmra.mxu0 %v1118
        %v2192 = vpop.f32.mrf.mxu0
        %v2193 = vadd.f32 0.0, %v2192
        %v2194 = vpop.f32.mrf.mxu0
        %v2195 = vadd.f32 0.0, %v2194
        %2196 = vdwg.mxu0
        %v2197 = vsel %vm2076, 1e+30, %v1976
        %v2198 = vsel %vm2077, 1e+30, %v1977
        %v2199 = vsel %vm2078, 1e+30, %v1978
        %v2200 = vsel %vm2079, 1e+30, %v1979
        %v2201 = vsel %vm2080, 1e+30, %v1980
        %v2202 = vsel %vm2081, 1e+30, %v1981
        %v2203 = vsel %vm2082, 1e+30, %v1982
        %v2204 = vsel %vm2083, 1e+30, %v1983
        %v2205 = vsel %vm2084, 1e+30, %v1984
        %v2206 = vsel %vm2085, 1e+30, %v1985
        %v2207 = vsel %vm2086, 1e+30, %v1986
        %v2208 = vsel %vm2087, 1e+30, %v1987
        %v2209 = vsel %vm2088, 1e+30, %v1988
        %v2210 = vsel %vm2089, 1e+30, %v1989
        %v2211 = vsel %vm2090, 1e+30, %v1990
        %v2212 = vsel %vm2091, 1e+30, %v1991
        %v2213 = vmin.f32 %v2197, %v2201
        %v2214 = vmin.f32 %v2199, %v2203
        %v2215 = vmin.f32 %v2213, %v2205
        %v2216 = vmin.f32 %v2214, %v2207
        %v2217 = vmin.f32 %v2215, %v2209
        %v2218 = vmin.f32 %v2216, %v2211
        %v2219 = vmin.f32 %v2217, %v2218
        %v2220 = vrot.slane %v2219, 4
        %v2221 = vmin.f32 %v2219, %v2220
        %v2222 = vrot.slane %v2221, 2
        %v2223 = vmin.f32 %v2221, %v2222
        %v2224 = vrot.slane %v2223, 1
        %v2225 = vmin.f32 %v2223, %v2224
        %v2226 = vmin.f32 %v2198, %v2202
        %v2227 = vmin.f32 %v2200, %v2204
        %v2228 = vmin.f32 %v2226, %v2206
        %v2229 = vmin.f32 %v2227, %v2208
        %v2230 = vmin.f32 %v2228, %v2210
        %v2231 = vmin.f32 %v2229, %v2212
        %v2232 = vmin.f32 %v2230, %v2231
        %v2233 = vrot.slane %v2232, 4
        %v2234 = vmin.f32 %v2232, %v2233
        %v2235 = vrot.slane %v2234, 2
        %v2236 = vmin.f32 %v2234, %v2235
        %v2237 = vrot.slane %v2236, 1
        %v2238 = vmin.f32 %v2236, %v2237
        %vm2239 = vcmp.eq.f32.partialorder %v2197, %v2225
        %vm2240 = vcmp.eq.f32.partialorder %v2198, %v2238
        %vm2241 = vcmp.eq.f32.partialorder %v2199, %v2225
        %vm2242 = vcmp.eq.f32.partialorder %v2200, %v2238
        %vm2243 = vcmp.eq.f32.partialorder %v2201, %v2225
        %vm2244 = vcmp.eq.f32.partialorder %v2202, %v2238
        %vm2245 = vcmp.eq.f32.partialorder %v2203, %v2225
        %vm2246 = vcmp.eq.f32.partialorder %v2204, %v2238
        %vm2247 = vcmp.eq.f32.partialorder %v2205, %v2225
        %vm2248 = vcmp.eq.f32.partialorder %v2206, %v2238
        %vm2249 = vcmp.eq.f32.partialorder %v2207, %v2225
        %vm2250 = vcmp.eq.f32.partialorder %v2208, %v2238
        %vm2251 = vcmp.eq.f32.partialorder %v2209, %v2225
        %vm2252 = vcmp.eq.f32.partialorder %v2210, %v2238
        %vm2253 = vcmp.eq.f32.partialorder %v2211, %v2225
        %vm2254 = vcmp.eq.f32.partialorder %v2212, %v2238
        %v2255 = vsel %vm2239, %v983, 64.0
        %v2256 = vsel %vm2240, %v983, 64.0
        %v2257 = vsel %vm2241, %v984, 64.0
        %v2258 = vsel %vm2242, %v984, 64.0
        %v2259 = vsel %vm2243, %v985, 64.0
        %v2260 = vsel %vm2244, %v985, 64.0
        %v2261 = vsel %vm2245, %v986, 64.0
        %v2262 = vsel %vm2246, %v986, 64.0
        %v2263 = vsel %vm2247, %v987, 64.0
        %v2264 = vsel %vm2248, %v987, 64.0
        %v2265 = vsel %vm2249, %v988, 64.0
        %v2266 = vsel %vm2250, %v988, 64.0
        %v2267 = vsel %vm2251, %v989, 64.0
        %v2268 = vsel %vm2252, %v989, 64.0
        %v2269 = vsel %vm2253, %v990, 64.0
        %v2270 = vsel %vm2254, %v990, 64.0
        %v2271 = vmin.f32 %v2255, %v2259
        %v2272 = vmin.f32 %v2257, %v2261
        %v2273 = vmin.f32 %v2271, %v2263
        %v2274 = vmin.f32 %v2272, %v2265
        %v2275 = vmin.f32 %v2273, %v2267
        %v2276 = vmin.f32 %v2274, %v2269
        %v2277 = vmin.f32 %v2275, %v2276
        %v2278 = vrot.slane %v2277, 4
        %v2279 = vmin.f32 %v2277, %v2278
        %v2280 = vrot.slane %v2279, 2
        %v2281 = vmin.f32 %v2279, %v2280
        %v2282 = vrot.slane %v2281, 1
        %v2283 = vmin.f32 %v2281, %v2282
        %v2284 = vmin.f32 %v2256, %v2260
        %v2285 = vmin.f32 %v2258, %v2262
        %v2286 = vmin.f32 %v2284, %v2264
        %v2287 = vmin.f32 %v2285, %v2266
        %v2288 = vmin.f32 %v2286, %v2268
        %v2289 = vmin.f32 %v2287, %v2270
        %v2290 = vmin.f32 %v2288, %v2289
        %v2291 = vrot.slane %v2290, 4
        %v2292 = vmin.f32 %v2290, %v2291
        %v2293 = vrot.slane %v2292, 2
        %v2294 = vmin.f32 %v2292, %v2293
        %v2295 = vrot.slane %v2294, 1
        %v2296 = vmin.f32 %v2294, %v2295
        %vm2297 = vcmp.eq.f32.partialorder %v983, %v2283
        %vm2298 = vcmp.eq.f32.partialorder %v983, %v2296
        %vm2299 = vcmp.eq.f32.partialorder %v984, %v2283
        %vm2300 = vcmp.eq.f32.partialorder %v984, %v2296
        %vm2301 = vcmp.eq.f32.partialorder %v985, %v2283
        %vm2302 = vcmp.eq.f32.partialorder %v985, %v2296
        %vm2303 = vcmp.eq.f32.partialorder %v986, %v2283
        %vm2304 = vcmp.eq.f32.partialorder %v986, %v2296
        %vm2305 = vcmp.eq.f32.partialorder %v987, %v2283
        %vm2306 = vcmp.eq.f32.partialorder %v987, %v2296
        %vm2307 = vcmp.eq.f32.partialorder %v988, %v2283
        %vm2308 = vcmp.eq.f32.partialorder %v988, %v2296
        %vm2309 = vcmp.eq.f32.partialorder %v989, %v2283
        %vm2310 = vcmp.eq.f32.partialorder %v989, %v2296
        %vm2311 = vcmp.eq.f32.partialorder %v990, %v2283
        %vm2312 = vcmp.eq.f32.partialorder %v990, %v2296
        %v2313 = vsel %vm2297, 1.0, 0.0
        %v2314 = vsel %vm2298, 1.0, 0.0
        %v2315 = vsel %vm2299, 1.0, 0.0
        %v2316 = vsel %vm2300, 1.0, 0.0
        %v2317 = vsel %vm2301, 1.0, 0.0
        %v2318 = vsel %vm2302, 1.0, 0.0
        %v2319 = vsel %vm2303, 1.0, 0.0
        %v2320 = vsel %vm2304, 1.0, 0.0
        %v2321 = vsel %vm2305, 1.0, 0.0
        %v2322 = vsel %vm2306, 1.0, 0.0
        %v2323 = vsel %vm2307, 1.0, 0.0
        %v2324 = vsel %vm2308, 1.0, 0.0
        %v2325 = vsel %vm2309, 1.0, 0.0
        %v2326 = vsel %vm2310, 1.0, 0.0
        %v2327 = vsel %vm2311, 1.0, 0.0
        %v2328 = vsel %vm2312, 1.0, 0.0
        %2329 = vmatprep.subr.mxu0 0.0
        %2330 = vmatpush1.msra.mxu0 0.0
        %2331 = vmatprep.subr.mxu0 0.0
        %2332 = vmatpush1.msra.mxu0 0.0
        %2333 = vmatprep.subr.mxu0 0.0
        %2334 = vmatpush1.msra.mxu0 0.0
        %2335 = vmatprep.subr.mxu0 0.0
        %2336 = vmatpush1.msra.mxu0 0.0
        %2337 = vmatprep.subr.mxu0 0.0
        %2338 = vmatpush1.msra.mxu0 0.0
        %2339 = vmatprep.subr.mxu0 0.0
        %2340 = vmatpush1.msra.mxu0 0.0
        %2341 = vmatprep.subr.mxu0 0.0
        %2342 = vmatpush1.msra.mxu0 0.0
        %2343 = vmatprep.subr.mxu0 0.0
        %2344 = vmatpush1.msra.mxu0 0.0
        %2345 = vmatprep.subr.mxu0 %v2328
        %2346 = vmatpush1.msra.mxu0 %v2327
        %2347 = vmatprep.subr.mxu0 %v2326
        %2348 = vmatpush1.msra.mxu0 %v2325
        %2349 = vmatprep.subr.mxu0 %v2324
        %2350 = vmatpush1.msra.mxu0 %v2323
        %2351 = vmatprep.subr.mxu0 %v2322
        %2352 = vmatpush1.msra.mxu0 %v2321
        %2353 = vmatprep.subr.mxu0 %v2320
        %2354 = vmatpush1.msra.mxu0 %v2319
        %2355 = vmatprep.subr.mxu0 %v2318
        %2356 = vmatpush1.msra.mxu0 %v2317
        %2357 = vmatprep.subr.mxu0 %v2316
        %2358 = vmatpush1.msra.mxu0 %v2315
        %2359 = vmatprep.subr.mxu0 %v2314
        %2360 = vmatpush1.msra.mxu0 %v2313
        %2361 = vmatprep.subr.mxu0 0.0
        %2362 = vmatpush2.msra.mxu0 0.0
        %2363 = vmatprep.subr.mxu0 0.0
        %2364 = vmatpush2.msra.mxu0 0.0
        %2365 = vmatprep.subr.mxu0 0.0
        %2366 = vmatpush2.msra.mxu0 0.0
        %2367 = vmatprep.subr.mxu0 0.0
        %2368 = vmatpush2.msra.mxu0 0.0
        %2369 = vmatprep.subr.mxu0 0.0
        %2370 = vmatpush2.msra.mxu0 0.0
        %2371 = vmatprep.subr.mxu0 0.0
        %2372 = vmatpush2.msra.mxu0 0.0
        %2373 = vmatprep.subr.mxu0 0.0
        %2374 = vmatpush2.msra.mxu0 0.0
        %2375 = vmatprep.subr.mxu0 0.0
        %2376 = vmatpush2.msra.mxu0 0.0
        %2377 = vmatprep.subr.mxu0 0.0
        %2378 = vmatpush2.msra.mxu0 0.0
        %2379 = vmatprep.subr.mxu0 0.0
        %2380 = vmatpush2.msra.mxu0 0.0
        %2381 = vmatprep.subr.mxu0 0.0
        %2382 = vmatpush2.msra.mxu0 0.0
        %2383 = vmatprep.subr.mxu0 0.0
        %2384 = vmatpush2.msra.mxu0 0.0
        %2385 = vmatprep.subr.mxu0 0.0
        %2386 = vmatpush2.msra.mxu0 0.0
        %2387 = vmatprep.subr.mxu0 0.0
        %2388 = vmatpush2.msra.mxu0 0.0
        %2389 = vmatprep.subr.mxu0 0.0
        %2390 = vmatpush2.msra.mxu0 0.0
        %2391 = vmatprep.subr.mxu0 0.0
        %2392 = vmatpush2.msra.mxu0 0.0
        %2393 = vmatprep.mubr.f32.mxu0 0.0
        %2394 = vmatmul.mubr.f32.gmra.mxu0 %v1109
        %v2395 = vpop.f32.mrf.mxu0
        %v2396 = vadd.f32 0.0, %v2395
        %v2397 = vpop.f32.mrf.mxu0
        %v2398 = vadd.f32 0.0, %v2397
        %2399 = vmatprep.mubr.f32.mxu0 0.0
        %2400 = vmatmul.mubr.f32.gmra.mxu0 %v1112
        %v2401 = vpop.f32.mrf.mxu0
        %v2402 = vadd.f32 0.0, %v2401
        %v2403 = vpop.f32.mrf.mxu0
        %v2404 = vadd.f32 0.0, %v2403
        %2405 = vmatprep.mubr.f32.mxu0 0.0
        %2406 = vmatmul.mubr.f32.gmra.mxu0 %v1115
        %v2407 = vpop.f32.mrf.mxu0
        %v2408 = vadd.f32 0.0, %v2407
        %v2409 = vpop.f32.mrf.mxu0
        %v2410 = vadd.f32 0.0, %v2409
        %2411 = vmatprep.mubr.f32.mxu0 0.0
        %2412 = vmatmul.mubr.f32.gmra.mxu0 %v1118
        %v2413 = vpop.f32.mrf.mxu0
        %v2414 = vadd.f32 0.0, %v2413
        %v2415 = vpop.f32.mrf.mxu0
        %v2416 = vadd.f32 0.0, %v2415
        %2417 = vdwg.mxu0
        %v2418 = vsel %vm2297, 1e+30, %v2197
        %v2419 = vsel %vm2298, 1e+30, %v2198
        %v2420 = vsel %vm2299, 1e+30, %v2199
        %v2421 = vsel %vm2300, 1e+30, %v2200
        %v2422 = vsel %vm2301, 1e+30, %v2201
        %v2423 = vsel %vm2302, 1e+30, %v2202
        %v2424 = vsel %vm2303, 1e+30, %v2203
        %v2425 = vsel %vm2304, 1e+30, %v2204
        %v2426 = vsel %vm2305, 1e+30, %v2205
        %v2427 = vsel %vm2306, 1e+30, %v2206
        %v2428 = vsel %vm2307, 1e+30, %v2207
        %v2429 = vsel %vm2308, 1e+30, %v2208
        %v2430 = vsel %vm2309, 1e+30, %v2209
        %v2431 = vsel %vm2310, 1e+30, %v2210
        %v2432 = vsel %vm2311, 1e+30, %v2211
        %v2433 = vsel %vm2312, 1e+30, %v2212
        %v2434 = vmin.f32 %v2418, %v2422
        %v2435 = vmin.f32 %v2420, %v2424
        %v2436 = vmin.f32 %v2434, %v2426
        %v2437 = vmin.f32 %v2435, %v2428
        %v2438 = vmin.f32 %v2436, %v2430
        %v2439 = vmin.f32 %v2437, %v2432
        %v2440 = vmin.f32 %v2438, %v2439
        %v2441 = vrot.slane %v2440, 4
        %v2442 = vmin.f32 %v2440, %v2441
        %v2443 = vrot.slane %v2442, 2
        %v2444 = vmin.f32 %v2442, %v2443
        %v2445 = vrot.slane %v2444, 1
        %v2446 = vmin.f32 %v2444, %v2445
        %v2447 = vmin.f32 %v2419, %v2423
        %v2448 = vmin.f32 %v2421, %v2425
        %v2449 = vmin.f32 %v2447, %v2427
        %v2450 = vmin.f32 %v2448, %v2429
        %v2451 = vmin.f32 %v2449, %v2431
        %v2452 = vmin.f32 %v2450, %v2433
        %v2453 = vmin.f32 %v2451, %v2452
        %v2454 = vrot.slane %v2453, 4
        %v2455 = vmin.f32 %v2453, %v2454
        %v2456 = vrot.slane %v2455, 2
        %v2457 = vmin.f32 %v2455, %v2456
        %v2458 = vrot.slane %v2457, 1
        %v2459 = vmin.f32 %v2457, %v2458
        %vm2460 = vcmp.eq.f32.partialorder %v2418, %v2446
        %vm2461 = vcmp.eq.f32.partialorder %v2419, %v2459
        %vm2462 = vcmp.eq.f32.partialorder %v2420, %v2446
        %vm2463 = vcmp.eq.f32.partialorder %v2421, %v2459
        %vm2464 = vcmp.eq.f32.partialorder %v2422, %v2446
        %vm2465 = vcmp.eq.f32.partialorder %v2423, %v2459
        %vm2466 = vcmp.eq.f32.partialorder %v2424, %v2446
        %vm2467 = vcmp.eq.f32.partialorder %v2425, %v2459
        %vm2468 = vcmp.eq.f32.partialorder %v2426, %v2446
        %vm2469 = vcmp.eq.f32.partialorder %v2427, %v2459
        %vm2470 = vcmp.eq.f32.partialorder %v2428, %v2446
        %vm2471 = vcmp.eq.f32.partialorder %v2429, %v2459
        %vm2472 = vcmp.eq.f32.partialorder %v2430, %v2446
        %vm2473 = vcmp.eq.f32.partialorder %v2431, %v2459
        %vm2474 = vcmp.eq.f32.partialorder %v2432, %v2446
        %vm2475 = vcmp.eq.f32.partialorder %v2433, %v2459
        %v2476 = vsel %vm2460, %v983, 64.0
        %v2477 = vsel %vm2461, %v983, 64.0
        %v2478 = vsel %vm2462, %v984, 64.0
        %v2479 = vsel %vm2463, %v984, 64.0
        %v2480 = vsel %vm2464, %v985, 64.0
        %v2481 = vsel %vm2465, %v985, 64.0
        %v2482 = vsel %vm2466, %v986, 64.0
        %v2483 = vsel %vm2467, %v986, 64.0
        %v2484 = vsel %vm2468, %v987, 64.0
        %v2485 = vsel %vm2469, %v987, 64.0
        %v2486 = vsel %vm2470, %v988, 64.0
        %v2487 = vsel %vm2471, %v988, 64.0
        %v2488 = vsel %vm2472, %v989, 64.0
        %v2489 = vsel %vm2473, %v989, 64.0
        %v2490 = vsel %vm2474, %v990, 64.0
        %v2491 = vsel %vm2475, %v990, 64.0
        %v2492 = vmin.f32 %v2476, %v2480
        %v2493 = vmin.f32 %v2478, %v2482
        %v2494 = vmin.f32 %v2492, %v2484
        %v2495 = vmin.f32 %v2493, %v2486
        %v2496 = vmin.f32 %v2494, %v2488
        %v2497 = vmin.f32 %v2495, %v2490
        %v2498 = vmin.f32 %v2496, %v2497
        %v2499 = vrot.slane %v2498, 4
        %v2500 = vmin.f32 %v2498, %v2499
        %v2501 = vrot.slane %v2500, 2
        %v2502 = vmin.f32 %v2500, %v2501
        %v2503 = vrot.slane %v2502, 1
        %v2504 = vmin.f32 %v2502, %v2503
        %v2505 = vmin.f32 %v2477, %v2481
        %v2506 = vmin.f32 %v2479, %v2483
        %v2507 = vmin.f32 %v2505, %v2485
        %v2508 = vmin.f32 %v2506, %v2487
        %v2509 = vmin.f32 %v2507, %v2489
        %v2510 = vmin.f32 %v2508, %v2491
        %v2511 = vmin.f32 %v2509, %v2510
        %v2512 = vrot.slane %v2511, 4
        %v2513 = vmin.f32 %v2511, %v2512
        %v2514 = vrot.slane %v2513, 2
        %v2515 = vmin.f32 %v2513, %v2514
        %v2516 = vrot.slane %v2515, 1
        %v2517 = vmin.f32 %v2515, %v2516
        %vm2518 = vcmp.eq.f32.partialorder %v983, %v2504
        %vm2519 = vcmp.eq.f32.partialorder %v983, %v2517
        %vm2520 = vcmp.eq.f32.partialorder %v984, %v2504
        %vm2521 = vcmp.eq.f32.partialorder %v984, %v2517
        %vm2522 = vcmp.eq.f32.partialorder %v985, %v2504
        %vm2523 = vcmp.eq.f32.partialorder %v985, %v2517
        %vm2524 = vcmp.eq.f32.partialorder %v986, %v2504
        %vm2525 = vcmp.eq.f32.partialorder %v986, %v2517
        %vm2526 = vcmp.eq.f32.partialorder %v987, %v2504
        %vm2527 = vcmp.eq.f32.partialorder %v987, %v2517
        %vm2528 = vcmp.eq.f32.partialorder %v988, %v2504
        %vm2529 = vcmp.eq.f32.partialorder %v988, %v2517
        %vm2530 = vcmp.eq.f32.partialorder %v989, %v2504
        %vm2531 = vcmp.eq.f32.partialorder %v989, %v2517
        %vm2532 = vcmp.eq.f32.partialorder %v990, %v2504
        %vm2533 = vcmp.eq.f32.partialorder %v990, %v2517
        %v2534 = vsel %vm2518, 1.0, 0.0
        %v2535 = vsel %vm2519, 1.0, 0.0
        %v2536 = vsel %vm2520, 1.0, 0.0
        %v2537 = vsel %vm2521, 1.0, 0.0
        %v2538 = vsel %vm2522, 1.0, 0.0
        %v2539 = vsel %vm2523, 1.0, 0.0
        %v2540 = vsel %vm2524, 1.0, 0.0
        %v2541 = vsel %vm2525, 1.0, 0.0
        %v2542 = vsel %vm2526, 1.0, 0.0
        %v2543 = vsel %vm2527, 1.0, 0.0
        %v2544 = vsel %vm2528, 1.0, 0.0
        %v2545 = vsel %vm2529, 1.0, 0.0
        %v2546 = vsel %vm2530, 1.0, 0.0
        %v2547 = vsel %vm2531, 1.0, 0.0
        %v2548 = vsel %vm2532, 1.0, 0.0
        %v2549 = vsel %vm2533, 1.0, 0.0
        %2550 = vmatprep.subr.mxu0 0.0
        %2551 = vmatpush1.msra.mxu0 0.0
        %2552 = vmatprep.subr.mxu0 0.0
        %2553 = vmatpush1.msra.mxu0 0.0
        %2554 = vmatprep.subr.mxu0 0.0
        %2555 = vmatpush1.msra.mxu0 0.0
        %2556 = vmatprep.subr.mxu0 0.0
        %2557 = vmatpush1.msra.mxu0 0.0
        %2558 = vmatprep.subr.mxu0 0.0
        %2559 = vmatpush1.msra.mxu0 0.0
        %2560 = vmatprep.subr.mxu0 0.0
        %2561 = vmatpush1.msra.mxu0 0.0
        %2562 = vmatprep.subr.mxu0 0.0
        %2563 = vmatpush1.msra.mxu0 0.0
        %2564 = vmatprep.subr.mxu0 0.0
        %2565 = vmatpush1.msra.mxu0 0.0
        %2566 = vmatprep.subr.mxu0 %v2549
        %2567 = vmatpush1.msra.mxu0 %v2548
        %2568 = vmatprep.subr.mxu0 %v2547
        %2569 = vmatpush1.msra.mxu0 %v2546
        %2570 = vmatprep.subr.mxu0 %v2545
        %2571 = vmatpush1.msra.mxu0 %v2544
        %2572 = vmatprep.subr.mxu0 %v2543
        %2573 = vmatpush1.msra.mxu0 %v2542
        %2574 = vmatprep.subr.mxu0 %v2541
        %2575 = vmatpush1.msra.mxu0 %v2540
        %2576 = vmatprep.subr.mxu0 %v2539
        %2577 = vmatpush1.msra.mxu0 %v2538
        %2578 = vmatprep.subr.mxu0 %v2537
        %2579 = vmatpush1.msra.mxu0 %v2536
        %2580 = vmatprep.subr.mxu0 %v2535
        %2581 = vmatpush1.msra.mxu0 %v2534
        %2582 = vmatprep.subr.mxu0 0.0
        %2583 = vmatpush2.msra.mxu0 0.0
        %2584 = vmatprep.subr.mxu0 0.0
        %2585 = vmatpush2.msra.mxu0 0.0
        %2586 = vmatprep.subr.mxu0 0.0
        %2587 = vmatpush2.msra.mxu0 0.0
        %2588 = vmatprep.subr.mxu0 0.0
        %2589 = vmatpush2.msra.mxu0 0.0
        %2590 = vmatprep.subr.mxu0 0.0
        %2591 = vmatpush2.msra.mxu0 0.0
        %2592 = vmatprep.subr.mxu0 0.0
        %2593 = vmatpush2.msra.mxu0 0.0
        %2594 = vmatprep.subr.mxu0 0.0
        %2595 = vmatpush2.msra.mxu0 0.0
        %2596 = vmatprep.subr.mxu0 0.0
        %2597 = vmatpush2.msra.mxu0 0.0
        %2598 = vmatprep.subr.mxu0 0.0
        %2599 = vmatpush2.msra.mxu0 0.0
        %2600 = vmatprep.subr.mxu0 0.0
        %2601 = vmatpush2.msra.mxu0 0.0
        %2602 = vmatprep.subr.mxu0 0.0
        %2603 = vmatpush2.msra.mxu0 0.0
        %2604 = vmatprep.subr.mxu0 0.0
        %2605 = vmatpush2.msra.mxu0 0.0
        %2606 = vmatprep.subr.mxu0 0.0
        %2607 = vmatpush2.msra.mxu0 0.0
        %2608 = vmatprep.subr.mxu0 0.0
        %2609 = vmatpush2.msra.mxu0 0.0
        %2610 = vmatprep.subr.mxu0 0.0
        %2611 = vmatpush2.msra.mxu0 0.0
        %2612 = vmatprep.subr.mxu0 0.0
        %2613 = vmatpush2.msra.mxu0 0.0
        %2614 = vmatprep.mubr.f32.mxu0 0.0
        %2615 = vmatmul.mubr.f32.gmra.mxu0 %v1109
        %v2616 = vpop.f32.mrf.mxu0
        %v2617 = vadd.f32 0.0, %v2616
        %v2618 = vpop.f32.mrf.mxu0
        %v2619 = vadd.f32 0.0, %v2618
        %2620 = vmatprep.mubr.f32.mxu0 0.0
        %2621 = vmatmul.mubr.f32.gmra.mxu0 %v1112
        %v2622 = vpop.f32.mrf.mxu0
        %v2623 = vadd.f32 0.0, %v2622
        %v2624 = vpop.f32.mrf.mxu0
        %v2625 = vadd.f32 0.0, %v2624
        %2626 = vmatprep.mubr.f32.mxu0 0.0
        %2627 = vmatmul.mubr.f32.gmra.mxu0 %v1115
        %v2628 = vpop.f32.mrf.mxu0
        %v2629 = vadd.f32 0.0, %v2628
        %v2630 = vpop.f32.mrf.mxu0
        %v2631 = vadd.f32 0.0, %v2630
        %2632 = vmatprep.mubr.f32.mxu0 0.0
        %2633 = vmatmul.mubr.f32.gmra.mxu0 %v1118
        %v2634 = vpop.f32.mrf.mxu0
        %v2635 = vadd.f32 0.0, %v2634
        %v2636 = vpop.f32.mrf.mxu0
        %v2637 = vadd.f32 0.0, %v2636
        %2638 = vdwg.mxu0
        %v2639 = vsel %vm2518, 1e+30, %v2418
        %v2640 = vsel %vm2519, 1e+30, %v2419
        %v2641 = vsel %vm2520, 1e+30, %v2420
        %v2642 = vsel %vm2521, 1e+30, %v2421
        %v2643 = vsel %vm2522, 1e+30, %v2422
        %v2644 = vsel %vm2523, 1e+30, %v2423
        %v2645 = vsel %vm2524, 1e+30, %v2424
        %v2646 = vsel %vm2525, 1e+30, %v2425
        %v2647 = vsel %vm2526, 1e+30, %v2426
        %v2648 = vsel %vm2527, 1e+30, %v2427
        %v2649 = vsel %vm2528, 1e+30, %v2428
        %v2650 = vsel %vm2529, 1e+30, %v2429
        %v2651 = vsel %vm2530, 1e+30, %v2430
        %v2652 = vsel %vm2531, 1e+30, %v2431
        %v2653 = vsel %vm2532, 1e+30, %v2432
        %v2654 = vsel %vm2533, 1e+30, %v2433
        %v2655 = vmin.f32 %v2639, %v2643
        %v2656 = vmin.f32 %v2641, %v2645
        %v2657 = vmin.f32 %v2655, %v2647
        %v2658 = vmin.f32 %v2656, %v2649
        %v2659 = vmin.f32 %v2657, %v2651
        %v2660 = vmin.f32 %v2658, %v2653
        %v2661 = vmin.f32 %v2659, %v2660
        %v2662 = vrot.slane %v2661, 4
        %v2663 = vmin.f32 %v2661, %v2662
        %v2664 = vrot.slane %v2663, 2
        %v2665 = vmin.f32 %v2663, %v2664
        %v2666 = vrot.slane %v2665, 1
        %v2667 = vmin.f32 %v2665, %v2666
        %v2668 = vmin.f32 %v2640, %v2644
        %v2669 = vmin.f32 %v2642, %v2646
        %v2670 = vmin.f32 %v2668, %v2648
        %v2671 = vmin.f32 %v2669, %v2650
        %v2672 = vmin.f32 %v2670, %v2652
        %v2673 = vmin.f32 %v2671, %v2654
        %v2674 = vmin.f32 %v2672, %v2673
        %v2675 = vrot.slane %v2674, 4
        %v2676 = vmin.f32 %v2674, %v2675
        %v2677 = vrot.slane %v2676, 2
        %v2678 = vmin.f32 %v2676, %v2677
        %v2679 = vrot.slane %v2678, 1
        %v2680 = vmin.f32 %v2678, %v2679
        %vm2681 = vcmp.eq.f32.partialorder %v2639, %v2667
        %vm2682 = vcmp.eq.f32.partialorder %v2640, %v2680
        %vm2683 = vcmp.eq.f32.partialorder %v2641, %v2667
        %vm2684 = vcmp.eq.f32.partialorder %v2642, %v2680
        %vm2685 = vcmp.eq.f32.partialorder %v2643, %v2667
        %vm2686 = vcmp.eq.f32.partialorder %v2644, %v2680
        %vm2687 = vcmp.eq.f32.partialorder %v2645, %v2667
        %vm2688 = vcmp.eq.f32.partialorder %v2646, %v2680
        %vm2689 = vcmp.eq.f32.partialorder %v2647, %v2667
        %vm2690 = vcmp.eq.f32.partialorder %v2648, %v2680
        %vm2691 = vcmp.eq.f32.partialorder %v2649, %v2667
        %vm2692 = vcmp.eq.f32.partialorder %v2650, %v2680
        %vm2693 = vcmp.eq.f32.partialorder %v2651, %v2667
        %vm2694 = vcmp.eq.f32.partialorder %v2652, %v2680
        %vm2695 = vcmp.eq.f32.partialorder %v2653, %v2667
        %vm2696 = vcmp.eq.f32.partialorder %v2654, %v2680
        %v2697 = vsel %vm2681, %v983, 64.0
        %v2698 = vsel %vm2682, %v983, 64.0
        %v2699 = vsel %vm2683, %v984, 64.0
        %v2700 = vsel %vm2684, %v984, 64.0
        %v2701 = vsel %vm2685, %v985, 64.0
        %v2702 = vsel %vm2686, %v985, 64.0
        %v2703 = vsel %vm2687, %v986, 64.0
        %v2704 = vsel %vm2688, %v986, 64.0
        %v2705 = vsel %vm2689, %v987, 64.0
        %v2706 = vsel %vm2690, %v987, 64.0
        %v2707 = vsel %vm2691, %v988, 64.0
        %v2708 = vsel %vm2692, %v988, 64.0
        %v2709 = vsel %vm2693, %v989, 64.0
        %v2710 = vsel %vm2694, %v989, 64.0
        %v2711 = vsel %vm2695, %v990, 64.0
        %v2712 = vsel %vm2696, %v990, 64.0
        %v2713 = vmin.f32 %v2697, %v2701
        %v2714 = vmin.f32 %v2699, %v2703
        %v2715 = vmin.f32 %v2713, %v2705
        %v2716 = vmin.f32 %v2714, %v2707
        %v2717 = vmin.f32 %v2715, %v2709
        %v2718 = vmin.f32 %v2716, %v2711
        %v2719 = vmin.f32 %v2717, %v2718
        %v2720 = vrot.slane %v2719, 4
        %v2721 = vmin.f32 %v2719, %v2720
        %v2722 = vrot.slane %v2721, 2
        %v2723 = vmin.f32 %v2721, %v2722
        %v2724 = vrot.slane %v2723, 1
        %v2725 = vmin.f32 %v2723, %v2724
        %v2726 = vmin.f32 %v2698, %v2702
        %v2727 = vmin.f32 %v2700, %v2704
        %v2728 = vmin.f32 %v2726, %v2706
        %v2729 = vmin.f32 %v2727, %v2708
        %v2730 = vmin.f32 %v2728, %v2710
        %v2731 = vmin.f32 %v2729, %v2712
        %v2732 = vmin.f32 %v2730, %v2731
        %v2733 = vrot.slane %v2732, 4
        %v2734 = vmin.f32 %v2732, %v2733
        %v2735 = vrot.slane %v2734, 2
        %v2736 = vmin.f32 %v2734, %v2735
        %v2737 = vrot.slane %v2736, 1
        %v2738 = vmin.f32 %v2736, %v2737
        %vm2739 = vcmp.eq.f32.partialorder %v983, %v2725
        %vm2740 = vcmp.eq.f32.partialorder %v983, %v2738
        %vm2741 = vcmp.eq.f32.partialorder %v984, %v2725
        %vm2742 = vcmp.eq.f32.partialorder %v984, %v2738
        %vm2743 = vcmp.eq.f32.partialorder %v985, %v2725
        %vm2744 = vcmp.eq.f32.partialorder %v985, %v2738
        %vm2745 = vcmp.eq.f32.partialorder %v986, %v2725
        %vm2746 = vcmp.eq.f32.partialorder %v986, %v2738
        %vm2747 = vcmp.eq.f32.partialorder %v987, %v2725
        %vm2748 = vcmp.eq.f32.partialorder %v987, %v2738
        %vm2749 = vcmp.eq.f32.partialorder %v988, %v2725
        %vm2750 = vcmp.eq.f32.partialorder %v988, %v2738
        %vm2751 = vcmp.eq.f32.partialorder %v989, %v2725
        %vm2752 = vcmp.eq.f32.partialorder %v989, %v2738
        %vm2753 = vcmp.eq.f32.partialorder %v990, %v2725
        %vm2754 = vcmp.eq.f32.partialorder %v990, %v2738
        %v2755 = vsel %vm2739, 1.0, 0.0
        %v2756 = vsel %vm2740, 1.0, 0.0
        %v2757 = vsel %vm2741, 1.0, 0.0
        %v2758 = vsel %vm2742, 1.0, 0.0
        %v2759 = vsel %vm2743, 1.0, 0.0
        %v2760 = vsel %vm2744, 1.0, 0.0
        %v2761 = vsel %vm2745, 1.0, 0.0
        %v2762 = vsel %vm2746, 1.0, 0.0
        %v2763 = vsel %vm2747, 1.0, 0.0
        %v2764 = vsel %vm2748, 1.0, 0.0
        %v2765 = vsel %vm2749, 1.0, 0.0
        %v2766 = vsel %vm2750, 1.0, 0.0
        %v2767 = vsel %vm2751, 1.0, 0.0
        %v2768 = vsel %vm2752, 1.0, 0.0
        %v2769 = vsel %vm2753, 1.0, 0.0
        %v2770 = vsel %vm2754, 1.0, 0.0
        %2771 = vmatprep.subr.mxu0 0.0
        %2772 = vmatpush1.msra.mxu0 0.0
        %2773 = vmatprep.subr.mxu0 0.0
        %2774 = vmatpush1.msra.mxu0 0.0
        %2775 = vmatprep.subr.mxu0 0.0
        %2776 = vmatpush1.msra.mxu0 0.0
        %2777 = vmatprep.subr.mxu0 0.0
        %2778 = vmatpush1.msra.mxu0 0.0
        %2779 = vmatprep.subr.mxu0 0.0
        %2780 = vmatpush1.msra.mxu0 0.0
        %2781 = vmatprep.subr.mxu0 0.0
        %2782 = vmatpush1.msra.mxu0 0.0
        %2783 = vmatprep.subr.mxu0 0.0
        %2784 = vmatpush1.msra.mxu0 0.0
        %2785 = vmatprep.subr.mxu0 0.0
        %2786 = vmatpush1.msra.mxu0 0.0
        %2787 = vmatprep.subr.mxu0 %v2770
        %2788 = vmatpush1.msra.mxu0 %v2769
        %2789 = vmatprep.subr.mxu0 %v2768
        %2790 = vmatpush1.msra.mxu0 %v2767
        %2791 = vmatprep.subr.mxu0 %v2766
        %2792 = vmatpush1.msra.mxu0 %v2765
        %2793 = vmatprep.subr.mxu0 %v2764
        %2794 = vmatpush1.msra.mxu0 %v2763
        %2795 = vmatprep.subr.mxu0 %v2762
        %2796 = vmatpush1.msra.mxu0 %v2761
        %2797 = vmatprep.subr.mxu0 %v2760
        %2798 = vmatpush1.msra.mxu0 %v2759
        %2799 = vmatprep.subr.mxu0 %v2758
        %2800 = vmatpush1.msra.mxu0 %v2757
        %2801 = vmatprep.subr.mxu0 %v2756
        %2802 = vmatpush1.msra.mxu0 %v2755
        %2803 = vmatprep.subr.mxu0 0.0
        %2804 = vmatpush2.msra.mxu0 0.0
        %2805 = vmatprep.subr.mxu0 0.0
        %2806 = vmatpush2.msra.mxu0 0.0
        %2807 = vmatprep.subr.mxu0 0.0
        %2808 = vmatpush2.msra.mxu0 0.0
        %2809 = vmatprep.subr.mxu0 0.0
        %2810 = vmatpush2.msra.mxu0 0.0
        %2811 = vmatprep.subr.mxu0 0.0
        %2812 = vmatpush2.msra.mxu0 0.0
        %2813 = vmatprep.subr.mxu0 0.0
        %2814 = vmatpush2.msra.mxu0 0.0
        %2815 = vmatprep.subr.mxu0 0.0
        %2816 = vmatpush2.msra.mxu0 0.0
        %2817 = vmatprep.subr.mxu0 0.0
        %2818 = vmatpush2.msra.mxu0 0.0
        %2819 = vmatprep.subr.mxu0 0.0
        %2820 = vmatpush2.msra.mxu0 0.0
        %2821 = vmatprep.subr.mxu0 0.0
        %2822 = vmatpush2.msra.mxu0 0.0
        %2823 = vmatprep.subr.mxu0 0.0
        %2824 = vmatpush2.msra.mxu0 0.0
        %2825 = vmatprep.subr.mxu0 0.0
        %2826 = vmatpush2.msra.mxu0 0.0
        %2827 = vmatprep.subr.mxu0 0.0
        %2828 = vmatpush2.msra.mxu0 0.0
        %2829 = vmatprep.subr.mxu0 0.0
        %2830 = vmatpush2.msra.mxu0 0.0
        %2831 = vmatprep.subr.mxu0 0.0
        %2832 = vmatpush2.msra.mxu0 0.0
        %2833 = vmatprep.subr.mxu0 0.0
        %2834 = vmatpush2.msra.mxu0 0.0
        %2835 = vmatprep.mubr.f32.mxu0 0.0
        %2836 = vmatmul.mubr.f32.gmra.mxu0 %v1109
        %v2837 = vpop.f32.mrf.mxu0
        %v2838 = vadd.f32 0.0, %v2837
        %v2839 = vpop.f32.mrf.mxu0
        %v2840 = vadd.f32 0.0, %v2839
        %2841 = vmatprep.mubr.f32.mxu0 0.0
        %2842 = vmatmul.mubr.f32.gmra.mxu0 %v1112
        %v2843 = vpop.f32.mrf.mxu0
        %v2844 = vadd.f32 0.0, %v2843
        %v2845 = vpop.f32.mrf.mxu0
        %v2846 = vadd.f32 0.0, %v2845
        %2847 = vmatprep.mubr.f32.mxu0 0.0
        %2848 = vmatmul.mubr.f32.gmra.mxu0 %v1115
        %v2849 = vpop.f32.mrf.mxu0
        %v2850 = vadd.f32 0.0, %v2849
        %v2851 = vpop.f32.mrf.mxu0
        %v2852 = vadd.f32 0.0, %v2851
        %2853 = vmatprep.mubr.f32.mxu0 0.0
        %2854 = vmatmul.mubr.f32.gmra.mxu0 %v1118
        %v2855 = vpop.f32.mrf.mxu0
        %v2856 = vadd.f32 0.0, %v2855
        %v2857 = vpop.f32.mrf.mxu0
        %v2858 = vadd.f32 0.0, %v2857
        %2859 = vdwg.mxu0
        %v2860 = vrcp.pop %v1737
        %v2861 = vmul.f32 1.0, %v2860
        %v2862 = vrcp.pop %v1738
        %v2863 = vmul.f32 1.0, %v2862
        %v2864 = vmul.f32 %v1747, %v2861
        %v2865 = vmul.f32 %v1748, %v2863
        %v2866 = vmul.f32 %v1749, %v2861
        %v2867 = vmul.f32 %v1750, %v2863
        %v2868 = vmul.f32 %v1751, %v2861
        %v2869 = vmul.f32 %v1752, %v2863
        %v2870 = vmul.f32 %v1753, %v2861
        %v2871 = vmul.f32 %v1754, %v2863
        %v2872 = vld [vmem:[%s7] sm:$0xff]
        %v2873 = vld [vmem:[%s7 + $0x8] sm:$0xff]
        %v2874 = vld [vmem:[%s7 + $0x10] sm:$0xff]
        %v2875 = vld [vmem:[%s7 + $0x18] sm:$0xff]
        %v2876 = vld [vmem:[%s8] sm:$0xff]
        %v2877 = vld [vmem:[%s8 + $0x8] sm:$0xff]
        %v2878 = vld [vmem:[%s8 + $0x10] sm:$0xff]
        %v2879 = vld [vmem:[%s8 + $0x18] sm:$0xff]
        %2881 = vset.pattern.permute.xlu0 0
        %2882 = vperm.xlu0 %2881, %v2876
        %v2883 = vpop.permute.xlu0 %2882
        %2886 = vset.pattern.permute.xlu0 0
        %2887 = vperm.xlu0 %2886, %v2877
        %v2888 = vpop.permute.xlu0 %2887
        %2891 = vset.pattern.permute.xlu0 0
        %2892 = vperm.xlu0 %2891, %v2878
        %v2893 = vpop.permute.xlu0 %2892
        %2896 = vset.pattern.permute.xlu0 0
        %2897 = vperm.xlu0 %2896, %v2879
        %v2898 = vpop.permute.xlu0 %2897
        %vm2900 = vcmask 261120
        %v2902 = vsel %vm2900, %v2872, 0
        %v2905 = vsel %vm2900, %v2873, 0
        %v2908 = vsel %vm2900, %v2874, 0
        %v2911 = vsel %vm2900, %v2875, 0
        %2913 = vmatprep.subr.mxu0 0.0
        %2914 = vmatpush1.msra.mxu0 0.0
        %2915 = vmatprep.subr.mxu0 0.0
        %2916 = vmatpush1.msra.mxu0 0.0
        %2917 = vmatprep.subr.mxu0 0.0
        %2918 = vmatpush1.msra.mxu0 0.0
        %2919 = vmatprep.subr.mxu0 0.0
        %2920 = vmatpush1.msra.mxu0 0.0
        %2921 = vmatprep.subr.mxu0 0.0
        %2922 = vmatpush1.msra.mxu0 0.0
        %2923 = vmatprep.subr.mxu0 0.0
        %2924 = vmatpush1.msra.mxu0 0.0
        %2925 = vmatprep.subr.mxu0 0.0
        %2926 = vmatpush1.msra.mxu0 0.0
        %2927 = vmatprep.subr.mxu0 0.0
        %2928 = vmatpush1.msra.mxu0 0.0
        %2929 = vmatprep.subr.mxu0 0.0
        %2930 = vmatpush1.msra.mxu0 0.0
        %2931 = vmatprep.subr.mxu0 0.0
        %2932 = vmatpush1.msra.mxu0 0.0
        %2933 = vmatprep.subr.mxu0 0.0
        %2934 = vmatpush1.msra.mxu0 0.0
        %2935 = vmatprep.subr.mxu0 0.0
        %2936 = vmatpush1.msra.mxu0 0.0
        %2937 = vmatprep.subr.mxu0 %v2871
        %2938 = vmatpush1.msra.mxu0 %v2870
        %2939 = vmatprep.subr.mxu0 %v2869
        %2940 = vmatpush1.msra.mxu0 %v2868
        %2941 = vmatprep.subr.mxu0 %v2867
        %2942 = vmatpush1.msra.mxu0 %v2866
        %2943 = vmatprep.subr.mxu0 %v2865
        %2944 = vmatpush1.msra.mxu0 %v2864
        %2945 = vmatprep.subr.mxu0 0.0
        %2946 = vmatpush2.msra.mxu0 0.0
        %2947 = vmatprep.subr.mxu0 0.0
        %2948 = vmatpush2.msra.mxu0 0.0
        %2949 = vmatprep.subr.mxu0 0.0
        %2950 = vmatpush2.msra.mxu0 0.0
        %2951 = vmatprep.subr.mxu0 0.0
        %2952 = vmatpush2.msra.mxu0 0.0
        %2953 = vmatprep.subr.mxu0 0.0
        %2954 = vmatpush2.msra.mxu0 0.0
        %2955 = vmatprep.subr.mxu0 0.0
        %2956 = vmatpush2.msra.mxu0 0.0
        %2957 = vmatprep.subr.mxu0 0.0
        %2958 = vmatpush2.msra.mxu0 0.0
        %2959 = vmatprep.subr.mxu0 0.0
        %2960 = vmatpush2.msra.mxu0 0.0
        %2961 = vmatprep.subr.mxu0 0.0
        %2962 = vmatpush2.msra.mxu0 0.0
        %2963 = vmatprep.subr.mxu0 0.0
        %2964 = vmatpush2.msra.mxu0 0.0
        %2965 = vmatprep.subr.mxu0 0.0
        %2966 = vmatpush2.msra.mxu0 0.0
        %2967 = vmatprep.subr.mxu0 0.0
        %2968 = vmatpush2.msra.mxu0 0.0
        %2969 = vmatprep.subr.mxu0 0.0
        %2970 = vmatpush2.msra.mxu0 0.0
        %2971 = vmatprep.subr.mxu0 0.0
        %2972 = vmatpush2.msra.mxu0 0.0
        %2973 = vmatprep.subr.mxu0 0.0
        %2974 = vmatpush2.msra.mxu0 0.0
        %2975 = vmatprep.subr.mxu0 0.0
        %2976 = vmatpush2.msra.mxu0 0.0
        %2977 = vmatprep.mubr.f32.mxu0 0.0
        %2978 = vmatmul.mubr.f32.gmra.mxu0 %v2902
        %v2979 = vpop.f32.mrf.mxu0
        %v2980 = vadd.f32 %v2883, %v2979
        %v2981 = vpop.f32.mrf.mxu0
        %v2982 = vadd.f32 %v2883, %v2981
        %2983 = vmatprep.mubr.f32.mxu0 0.0
        %2984 = vmatmul.mubr.f32.gmra.mxu0 %v2905
        %v2985 = vpop.f32.mrf.mxu0
        %v2986 = vadd.f32 %v2888, %v2985
        %v2987 = vpop.f32.mrf.mxu0
        %v2988 = vadd.f32 %v2888, %v2987
        %2989 = vmatprep.mubr.f32.mxu0 0.0
        %2990 = vmatmul.mubr.f32.gmra.mxu0 %v2908
        %v2991 = vpop.f32.mrf.mxu0
        %v2992 = vadd.f32 %v2893, %v2991
        %v2993 = vpop.f32.mrf.mxu0
        %v2994 = vadd.f32 %v2893, %v2993
        %2995 = vmatprep.mubr.f32.mxu0 0.0
        %2996 = vmatmul.mubr.f32.gmra.mxu0 %v2911
        %v2997 = vpop.f32.mrf.mxu0
        %v2998 = vadd.f32 %v2898, %v2997
        %v2999 = vpop.f32.mrf.mxu0
        %v3000 = vadd.f32 %v2898, %v2999
        %3001 = vdwg.mxu0
        %v3002 = vmul.f32 %v2980, 0.05
        %v3003 = vmul.f32 %v2982, 0.05
        %v3004 = vmul.f32 %v2986, 0.05
        %v3005 = vmul.f32 %v2988, 0.05
        %v3006 = vmul.f32 %v2992, 0.05
        %v3007 = vmul.f32 %v2994, 0.05
        %v3008 = vmul.f32 %v2998, 0.05
        %v3009 = vmul.f32 %v3000, 0.05
        %v3010 = vmax.f32 %v2980, %v3002
        %v3011 = vmax.f32 %v2982, %v3003
        %v3012 = vmax.f32 %v2986, %v3004
        %v3013 = vmax.f32 %v2988, %v3005
        %v3014 = vmax.f32 %v2992, %v3006
        %v3015 = vmax.f32 %v2994, %v3007
        %v3016 = vmax.f32 %v2998, %v3008
        %v3017 = vmax.f32 %v3000, %v3009
        %v3018 = vld [vmem:[%s9] sm:$0xff]
        %v3019 = vld [vmem:[%s9 + $0x8] sm:$0xff]
        %v3020 = vld [vmem:[%s9 + $0x10] sm:$0xff]
        %v3021 = vld [vmem:[%s9 + $0x18] sm:$0xff]
        %v3022 = vld [vmem:[%s10] sm:$0xff]
        %v3023 = vld [vmem:[%s10 + $0x8] sm:$0xff]
        %v3024 = vld [vmem:[%s10 + $0x10] sm:$0xff]
        %v3025 = vld [vmem:[%s10 + $0x18] sm:$0xff]
        %3027 = vset.pattern.permute.xlu0 0
        %3028 = vperm.xlu0 %3027, %v3022
        %v3029 = vpop.permute.xlu0 %3028
        %3032 = vset.pattern.permute.xlu0 0
        %3033 = vperm.xlu0 %3032, %v3023
        %v3034 = vpop.permute.xlu0 %3033
        %3037 = vset.pattern.permute.xlu0 0
        %3038 = vperm.xlu0 %3037, %v3024
        %v3039 = vpop.permute.xlu0 %3038
        %3042 = vset.pattern.permute.xlu0 0
        %3043 = vperm.xlu0 %3042, %v3025
        %v3044 = vpop.permute.xlu0 %3043
        %v3047 = vsel %vm2900, %v3018, 0
        %v3050 = vsel %vm2900, %v3019, 0
        %v3053 = vsel %vm2900, %v3020, 0
        %v3056 = vsel %vm2900, %v3021, 0
        %3058 = vmatprep.subr.mxu0 0.0
        %3059 = vmatpush1.msra.mxu0 0.0
        %3060 = vmatprep.subr.mxu0 0.0
        %3061 = vmatpush1.msra.mxu0 0.0
        %3062 = vmatprep.subr.mxu0 0.0
        %3063 = vmatpush1.msra.mxu0 0.0
        %3064 = vmatprep.subr.mxu0 0.0
        %3065 = vmatpush1.msra.mxu0 0.0
        %3066 = vmatprep.subr.mxu0 0.0
        %3067 = vmatpush1.msra.mxu0 0.0
        %3068 = vmatprep.subr.mxu0 0.0
        %3069 = vmatpush1.msra.mxu0 0.0
        %3070 = vmatprep.subr.mxu0 0.0
        %3071 = vmatpush1.msra.mxu0 0.0
        %3072 = vmatprep.subr.mxu0 0.0
        %3073 = vmatpush1.msra.mxu0 0.0
        %3074 = vmatprep.subr.mxu0 0.0
        %3075 = vmatpush1.msra.mxu0 0.0
        %3076 = vmatprep.subr.mxu0 0.0
        %3077 = vmatpush1.msra.mxu0 0.0
        %3078 = vmatprep.subr.mxu0 0.0
        %3079 = vmatpush1.msra.mxu0 0.0
        %3080 = vmatprep.subr.mxu0 0.0
        %3081 = vmatpush1.msra.mxu0 0.0
        %3082 = vmatprep.subr.mxu0 %v3017
        %3083 = vmatpush1.msra.mxu0 %v3016
        %3084 = vmatprep.subr.mxu0 %v3015
        %3085 = vmatpush1.msra.mxu0 %v3014
        %3086 = vmatprep.subr.mxu0 %v3013
        %3087 = vmatpush1.msra.mxu0 %v3012
        %3088 = vmatprep.subr.mxu0 %v3011
        %3089 = vmatpush1.msra.mxu0 %v3010
        %3090 = vmatprep.subr.mxu0 0.0
        %3091 = vmatpush2.msra.mxu0 0.0
        %3092 = vmatprep.subr.mxu0 0.0
        %3093 = vmatpush2.msra.mxu0 0.0
        %3094 = vmatprep.subr.mxu0 0.0
        %3095 = vmatpush2.msra.mxu0 0.0
        %3096 = vmatprep.subr.mxu0 0.0
        %3097 = vmatpush2.msra.mxu0 0.0
        %3098 = vmatprep.subr.mxu0 0.0
        %3099 = vmatpush2.msra.mxu0 0.0
        %3100 = vmatprep.subr.mxu0 0.0
        %3101 = vmatpush2.msra.mxu0 0.0
        %3102 = vmatprep.subr.mxu0 0.0
        %3103 = vmatpush2.msra.mxu0 0.0
        %3104 = vmatprep.subr.mxu0 0.0
        %3105 = vmatpush2.msra.mxu0 0.0
        %3106 = vmatprep.subr.mxu0 0.0
        %3107 = vmatpush2.msra.mxu0 0.0
        %3108 = vmatprep.subr.mxu0 0.0
        %3109 = vmatpush2.msra.mxu0 0.0
        %3110 = vmatprep.subr.mxu0 0.0
        %3111 = vmatpush2.msra.mxu0 0.0
        %3112 = vmatprep.subr.mxu0 0.0
        %3113 = vmatpush2.msra.mxu0 0.0
        %3114 = vmatprep.subr.mxu0 0.0
        %3115 = vmatpush2.msra.mxu0 0.0
        %3116 = vmatprep.subr.mxu0 0.0
        %3117 = vmatpush2.msra.mxu0 0.0
        %3118 = vmatprep.subr.mxu0 0.0
        %3119 = vmatpush2.msra.mxu0 0.0
        %3120 = vmatprep.subr.mxu0 0.0
        %3121 = vmatpush2.msra.mxu0 0.0
        %3122 = vmatprep.mubr.f32.mxu0 0.0
        %3123 = vmatmul.mubr.f32.gmra.mxu0 %v3047
        %v3124 = vpop.f32.mrf.mxu0
        %v3125 = vadd.f32 %v3029, %v3124
        %v3126 = vpop.f32.mrf.mxu0
        %v3127 = vadd.f32 %v3029, %v3126
        %3128 = vmatprep.mubr.f32.mxu0 0.0
        %3129 = vmatmul.mubr.f32.gmra.mxu0 %v3050
        %v3130 = vpop.f32.mrf.mxu0
        %v3131 = vadd.f32 %v3034, %v3130
        %v3132 = vpop.f32.mrf.mxu0
        %v3133 = vadd.f32 %v3034, %v3132
        %3134 = vmatprep.mubr.f32.mxu0 0.0
        %3135 = vmatmul.mubr.f32.gmra.mxu0 %v3053
        %v3136 = vpop.f32.mrf.mxu0
        %v3137 = vadd.f32 %v3039, %v3136
        %v3138 = vpop.f32.mrf.mxu0
        %v3139 = vadd.f32 %v3039, %v3138
        %3140 = vmatprep.mubr.f32.mxu0 0.0
        %3141 = vmatmul.mubr.f32.gmra.mxu0 %v3056
        %v3142 = vpop.f32.mrf.mxu0
        %v3143 = vadd.f32 %v3044, %v3142
        %v3144 = vpop.f32.mrf.mxu0
        %v3145 = vadd.f32 %v3044, %v3144
        %3146 = vdwg.mxu0
        %v3147 = vmul.f32 %v3125, 0.05
        %v3148 = vmul.f32 %v3127, 0.05
        %v3149 = vmul.f32 %v3131, 0.05
        %v3150 = vmul.f32 %v3133, 0.05
        %v3151 = vmul.f32 %v3137, 0.05
        %v3152 = vmul.f32 %v3139, 0.05
        %v3153 = vmul.f32 %v3143, 0.05
        %v3154 = vmul.f32 %v3145, 0.05
        %v3155 = vmax.f32 %v3125, %v3147
        %v3156 = vmax.f32 %v3127, %v3148
        %v3157 = vmax.f32 %v3131, %v3149
        %v3158 = vmax.f32 %v3133, %v3150
        %v3159 = vmax.f32 %v3137, %v3151
        %v3160 = vmax.f32 %v3139, %v3152
        %v3161 = vmax.f32 %v3143, %v3153
        %v3162 = vmax.f32 %v3145, %v3154
        %v3163 = vld [vmem:[%s13] sm:$0xff]
        %v3164 = vld [vmem:[%s13 + $0x8] sm:$0xff]
        %v3165 = vld [vmem:[%s13 + $0x10] sm:$0xff]
        %v3166 = vld [vmem:[%s13 + $0x18] sm:$0xff]
        %v3167 = vld [vmem:[%s13 + $0x20] sm:$0xff]
        %v3168 = vld [vmem:[%s13 + $0x28] sm:$0xff]
        %v3169 = vld [vmem:[%s13 + $0x30] sm:$0xff]
        %v3170 = vld [vmem:[%s13 + $0x38] sm:$0xff]
        %v3171 = vld [vmem:[%s13 + $0x40] sm:$0xff]
        %v3172 = vld [vmem:[%s13 + $0x48] sm:$0xff]
        %v3173 = vld [vmem:[%s13 + $0x50] sm:$0xff]
        %v3174 = vld [vmem:[%s13 + $0x58] sm:$0xff]
        %v3175 = vld [vmem:[%s13 + $0x60] sm:$0xff]
        %v3176 = vld [vmem:[%s13 + $0x68] sm:$0xff]
        %v3177 = vld [vmem:[%s13 + $0x70] sm:$0xff]
        %v3178 = vld [vmem:[%s13 + $0x78] sm:$0xff]
        %v3179 = vld [vmem:[%s14] sm:$0xff]
        %v3180 = vld [vmem:[%s14 + $0x8] sm:$0xff]
        %v3181 = vld [vmem:[%s14 + $0x10] sm:$0xff]
        %v3182 = vld [vmem:[%s14 + $0x18] sm:$0xff]
        %v3183 = vld [vmem:[%s14 + $0x20] sm:$0xff]
        %v3184 = vld [vmem:[%s14 + $0x28] sm:$0xff]
        %v3185 = vld [vmem:[%s14 + $0x30] sm:$0xff]
        %v3186 = vld [vmem:[%s14 + $0x38] sm:$0xff]
        %v3187 = vld [vmem:[%s14 + $0x40] sm:$0xff]
        %v3188 = vld [vmem:[%s14 + $0x48] sm:$0xff]
        %v3189 = vld [vmem:[%s14 + $0x50] sm:$0xff]
        %v3190 = vld [vmem:[%s14 + $0x58] sm:$0xff]
        %v3191 = vld [vmem:[%s14 + $0x60] sm:$0xff]
        %v3192 = vld [vmem:[%s14 + $0x68] sm:$0xff]
        %v3193 = vld [vmem:[%s14 + $0x70] sm:$0xff]
        %v3194 = vld [vmem:[%s14 + $0x78] sm:$0xff]
        %3196 = vset.pattern.permute.xlu0 0
        %3197 = vperm.xlu0 %3196, %v3179
        %v3198 = vpop.permute.xlu0 %3197
        %3201 = vset.pattern.permute.xlu0 0
        %3202 = vperm.xlu0 %3201, %v3180
        %v3203 = vpop.permute.xlu0 %3202
        %3206 = vset.pattern.permute.xlu0 0
        %3207 = vperm.xlu0 %3206, %v3181
        %v3208 = vpop.permute.xlu0 %3207
        %3211 = vset.pattern.permute.xlu0 0
        %3212 = vperm.xlu0 %3211, %v3182
        %v3213 = vpop.permute.xlu0 %3212
        %3216 = vset.pattern.permute.xlu0 0
        %3217 = vperm.xlu0 %3216, %v3183
        %v3218 = vpop.permute.xlu0 %3217
        %3221 = vset.pattern.permute.xlu0 0
        %3222 = vperm.xlu0 %3221, %v3184
        %v3223 = vpop.permute.xlu0 %3222
        %3226 = vset.pattern.permute.xlu0 0
        %3227 = vperm.xlu0 %3226, %v3185
        %v3228 = vpop.permute.xlu0 %3227
        %3231 = vset.pattern.permute.xlu0 0
        %3232 = vperm.xlu0 %3231, %v3186
        %v3233 = vpop.permute.xlu0 %3232
        %3236 = vset.pattern.permute.xlu0 0
        %3237 = vperm.xlu0 %3236, %v3187
        %v3238 = vpop.permute.xlu0 %3237
        %3241 = vset.pattern.permute.xlu0 0
        %3242 = vperm.xlu0 %3241, %v3188
        %v3243 = vpop.permute.xlu0 %3242
        %3246 = vset.pattern.permute.xlu0 0
        %3247 = vperm.xlu0 %3246, %v3189
        %v3248 = vpop.permute.xlu0 %3247
        %3251 = vset.pattern.permute.xlu0 0
        %3252 = vperm.xlu0 %3251, %v3190
        %v3253 = vpop.permute.xlu0 %3252
        %3256 = vset.pattern.permute.xlu0 0
        %3257 = vperm.xlu0 %3256, %v3191
        %v3258 = vpop.permute.xlu0 %3257
        %3261 = vset.pattern.permute.xlu0 0
        %3262 = vperm.xlu0 %3261, %v3192
        %v3263 = vpop.permute.xlu0 %3262
        %3266 = vset.pattern.permute.xlu0 0
        %3267 = vperm.xlu0 %3266, %v3193
        %v3268 = vpop.permute.xlu0 %3267
        %3271 = vset.pattern.permute.xlu0 0
        %3272 = vperm.xlu0 %3271, %v3194
        %v3273 = vpop.permute.xlu0 %3272
        %v3276 = vsel %vm2900, %v3163, 0
        %v3279 = vsel %vm2900, %v3164, 0
        %v3282 = vsel %vm2900, %v3165, 0
        %v3285 = vsel %vm2900, %v3166, 0
        %v3288 = vsel %vm2900, %v3167, 0
        %v3291 = vsel %vm2900, %v3168, 0
        %v3294 = vsel %vm2900, %v3169, 0
        %v3297 = vsel %vm2900, %v3170, 0
        %v3300 = vsel %vm2900, %v3171, 0
        %v3303 = vsel %vm2900, %v3172, 0
        %v3306 = vsel %vm2900, %v3173, 0
        %v3309 = vsel %vm2900, %v3174, 0
        %v3312 = vsel %vm2900, %v3175, 0
        %v3315 = vsel %vm2900, %v3176, 0
        %v3318 = vsel %vm2900, %v3177, 0
        %v3321 = vsel %vm2900, %v3178, 0
        %3323 = vmatprep.subr.mxu0 0.0
        %3324 = vmatpush1.msra.mxu0 0.0
        %3325 = vmatprep.subr.mxu0 0.0
        %3326 = vmatpush1.msra.mxu0 0.0
        %3327 = vmatprep.subr.mxu0 0.0
        %3328 = vmatpush1.msra.mxu0 0.0
        %3329 = vmatprep.subr.mxu0 0.0
        %3330 = vmatpush1.msra.mxu0 0.0
        %3331 = vmatprep.subr.mxu0 0.0
        %3332 = vmatpush1.msra.mxu0 0.0
        %3333 = vmatprep.subr.mxu0 0.0
        %3334 = vmatpush1.msra.mxu0 0.0
        %3335 = vmatprep.subr.mxu0 0.0
        %3336 = vmatpush1.msra.mxu0 0.0
        %3337 = vmatprep.subr.mxu0 0.0
        %3338 = vmatpush1.msra.mxu0 0.0
        %3339 = vmatprep.subr.mxu0 0.0
        %3340 = vmatpush1.msra.mxu0 0.0
        %3341 = vmatprep.subr.mxu0 0.0
        %3342 = vmatpush1.msra.mxu0 0.0
        %3343 = vmatprep.subr.mxu0 0.0
        %3344 = vmatpush1.msra.mxu0 0.0
        %3345 = vmatprep.subr.mxu0 0.0
        %3346 = vmatpush1.msra.mxu0 0.0
        %3347 = vmatprep.subr.mxu0 %v3162
        %3348 = vmatpush1.msra.mxu0 %v3161
        %3349 = vmatprep.subr.mxu0 %v3160
        %3350 = vmatpush1.msra.mxu0 %v3159
        %3351 = vmatprep.subr.mxu0 %v3158
        %3352 = vmatpush1.msra.mxu0 %v3157
        %3353 = vmatprep.subr.mxu0 %v3156
        %3354 = vmatpush1.msra.mxu0 %v3155
        %3355 = vmatprep.subr.mxu0 0.0
        %3356 = vmatpush2.msra.mxu0 0.0
        %3357 = vmatprep.subr.mxu0 0.0
        %3358 = vmatpush2.msra.mxu0 0.0
        %3359 = vmatprep.subr.mxu0 0.0
        %3360 = vmatpush2.msra.mxu0 0.0
        %3361 = vmatprep.subr.mxu0 0.0
        %3362 = vmatpush2.msra.mxu0 0.0
        %3363 = vmatprep.subr.mxu0 0.0
        %3364 = vmatpush2.msra.mxu0 0.0
        %3365 = vmatprep.subr.mxu0 0.0
        %3366 = vmatpush2.msra.mxu0 0.0
        %3367 = vmatprep.subr.mxu0 0.0
        %3368 = vmatpush2.msra.mxu0 0.0
        %3369 = vmatprep.subr.mxu0 0.0
        %3370 = vmatpush2.msra.mxu0 0.0
        %3371 = vmatprep.subr.mxu0 0.0
        %3372 = vmatpush2.msra.mxu0 0.0
        %3373 = vmatprep.subr.mxu0 0.0
        %3374 = vmatpush2.msra.mxu0 0.0
        %3375 = vmatprep.subr.mxu0 0.0
        %3376 = vmatpush2.msra.mxu0 0.0
        %3377 = vmatprep.subr.mxu0 0.0
        %3378 = vmatpush2.msra.mxu0 0.0
        %3379 = vmatprep.subr.mxu0 0.0
        %3380 = vmatpush2.msra.mxu0 0.0
        %3381 = vmatprep.subr.mxu0 0.0
        %3382 = vmatpush2.msra.mxu0 0.0
        %3383 = vmatprep.subr.mxu0 0.0
        %3384 = vmatpush2.msra.mxu0 0.0
        %3385 = vmatprep.subr.mxu0 0.0
        %3386 = vmatpush2.msra.mxu0 0.0
        %3387 = vmatprep.mubr.f32.mxu0 0.0
        %3388 = vmatmul.mubr.f32.gmra.mxu0 %v3276
        %v3389 = vpop.f32.mrf.mxu0
        %v3390 = vadd.f32 %v3198, %v3389
        %v3391 = vpop.f32.mrf.mxu0
        %v3392 = vadd.f32 %v3198, %v3391
        %3393 = vmatprep.mubr.f32.mxu0 0.0
        %3394 = vmatmul.mubr.f32.gmra.mxu0 %v3279
        %v3395 = vpop.f32.mrf.mxu0
        %v3396 = vadd.f32 %v3203, %v3395
        %v3397 = vpop.f32.mrf.mxu0
        %v3398 = vadd.f32 %v3203, %v3397
        %3399 = vmatprep.mubr.f32.mxu0 0.0
        %3400 = vmatmul.mubr.f32.gmra.mxu0 %v3282
        %v3401 = vpop.f32.mrf.mxu0
        %v3402 = vadd.f32 %v3208, %v3401
        %v3403 = vpop.f32.mrf.mxu0
        %v3404 = vadd.f32 %v3208, %v3403
        %3405 = vmatprep.mubr.f32.mxu0 0.0
        %3406 = vmatmul.mubr.f32.gmra.mxu0 %v3285
        %v3407 = vpop.f32.mrf.mxu0
        %v3408 = vadd.f32 %v3213, %v3407
        %v3409 = vpop.f32.mrf.mxu0
        %v3410 = vadd.f32 %v3213, %v3409
        %3411 = vmatprep.mubr.f32.mxu0 0.0
        %3412 = vmatmul.mubr.f32.gmra.mxu0 %v3288
        %v3413 = vpop.f32.mrf.mxu0
        %v3414 = vadd.f32 %v3218, %v3413
        %v3415 = vpop.f32.mrf.mxu0
        %v3416 = vadd.f32 %v3218, %v3415
        %3417 = vmatprep.mubr.f32.mxu0 0.0
        %3418 = vmatmul.mubr.f32.gmra.mxu0 %v3291
        %v3419 = vpop.f32.mrf.mxu0
        %v3420 = vadd.f32 %v3223, %v3419
        %v3421 = vpop.f32.mrf.mxu0
        %v3422 = vadd.f32 %v3223, %v3421
        %3423 = vmatprep.mubr.f32.mxu0 0.0
        %3424 = vmatmul.mubr.f32.gmra.mxu0 %v3294
        %v3425 = vpop.f32.mrf.mxu0
        %v3426 = vadd.f32 %v3228, %v3425
        %v3427 = vpop.f32.mrf.mxu0
        %v3428 = vadd.f32 %v3228, %v3427
        %3429 = vmatprep.mubr.f32.mxu0 0.0
        %3430 = vmatmul.mubr.f32.gmra.mxu0 %v3297
        %v3431 = vpop.f32.mrf.mxu0
        %v3432 = vadd.f32 %v3233, %v3431
        %v3433 = vpop.f32.mrf.mxu0
        %v3434 = vadd.f32 %v3233, %v3433
        %3435 = vmatprep.mubr.f32.mxu0 0.0
        %3436 = vmatmul.mubr.f32.gmra.mxu0 %v3300
        %v3437 = vpop.f32.mrf.mxu0
        %v3438 = vadd.f32 %v3238, %v3437
        %v3439 = vpop.f32.mrf.mxu0
        %v3440 = vadd.f32 %v3238, %v3439
        %3441 = vmatprep.mubr.f32.mxu0 0.0
        %3442 = vmatmul.mubr.f32.gmra.mxu0 %v3303
        %v3443 = vpop.f32.mrf.mxu0
        %v3444 = vadd.f32 %v3243, %v3443
        %v3445 = vpop.f32.mrf.mxu0
        %v3446 = vadd.f32 %v3243, %v3445
        %3447 = vmatprep.mubr.f32.mxu0 0.0
        %3448 = vmatmul.mubr.f32.gmra.mxu0 %v3306
        %v3449 = vpop.f32.mrf.mxu0
        %v3450 = vadd.f32 %v3248, %v3449
        %v3451 = vpop.f32.mrf.mxu0
        %v3452 = vadd.f32 %v3248, %v3451
        %3453 = vmatprep.mubr.f32.mxu0 0.0
        %3454 = vmatmul.mubr.f32.gmra.mxu0 %v3309
        %v3455 = vpop.f32.mrf.mxu0
        %v3456 = vadd.f32 %v3253, %v3455
        %v3457 = vpop.f32.mrf.mxu0
        %v3458 = vadd.f32 %v3253, %v3457
        %3459 = vmatprep.mubr.f32.mxu0 0.0
        %3460 = vmatmul.mubr.f32.gmra.mxu0 %v3312
        %v3461 = vpop.f32.mrf.mxu0
        %v3462 = vadd.f32 %v3258, %v3461
        %v3463 = vpop.f32.mrf.mxu0
        %v3464 = vadd.f32 %v3258, %v3463
        %3465 = vmatprep.mubr.f32.mxu0 0.0
        %3466 = vmatmul.mubr.f32.gmra.mxu0 %v3315
        %v3467 = vpop.f32.mrf.mxu0
        %v3468 = vadd.f32 %v3263, %v3467
        %v3469 = vpop.f32.mrf.mxu0
        %v3470 = vadd.f32 %v3263, %v3469
        %3471 = vmatprep.mubr.f32.mxu0 0.0
        %3472 = vmatmul.mubr.f32.gmra.mxu0 %v3318
        %v3473 = vpop.f32.mrf.mxu0
        %v3474 = vadd.f32 %v3268, %v3473
        %v3475 = vpop.f32.mrf.mxu0
        %v3476 = vadd.f32 %v3268, %v3475
        %3477 = vmatprep.mubr.f32.mxu0 0.0
        %3478 = vmatmul.mubr.f32.gmra.mxu0 %v3321
        %v3479 = vpop.f32.mrf.mxu0
        %v3480 = vadd.f32 %v3273, %v3479
        %v3481 = vpop.f32.mrf.mxu0
        %v3482 = vadd.f32 %v3273, %v3481
        %3483 = vdwg.mxu0
        %v3484 = vmul.f32 %v3390, 0.05
        %v3485 = vmul.f32 %v3392, 0.05
        %v3486 = vmul.f32 %v3396, 0.05
        %v3487 = vmul.f32 %v3398, 0.05
        %v3488 = vmul.f32 %v3402, 0.05
        %v3489 = vmul.f32 %v3404, 0.05
        %v3490 = vmul.f32 %v3408, 0.05
        %v3491 = vmul.f32 %v3410, 0.05
        %v3492 = vmul.f32 %v3414, 0.05
        %v3493 = vmul.f32 %v3416, 0.05
        %v3494 = vmul.f32 %v3420, 0.05
        %v3495 = vmul.f32 %v3422, 0.05
        %v3496 = vmul.f32 %v3426, 0.05
        %v3497 = vmul.f32 %v3428, 0.05
        %v3498 = vmul.f32 %v3432, 0.05
        %v3499 = vmul.f32 %v3434, 0.05
        %v3500 = vmul.f32 %v3438, 0.05
        %v3501 = vmul.f32 %v3440, 0.05
        %v3502 = vmul.f32 %v3444, 0.05
        %v3503 = vmul.f32 %v3446, 0.05
        %v3504 = vmul.f32 %v3450, 0.05
        %v3505 = vmul.f32 %v3452, 0.05
        %v3506 = vmul.f32 %v3456, 0.05
        %v3507 = vmul.f32 %v3458, 0.05
        %v3508 = vmul.f32 %v3462, 0.05
        %v3509 = vmul.f32 %v3464, 0.05
        %v3510 = vmul.f32 %v3468, 0.05
        %v3511 = vmul.f32 %v3470, 0.05
        %v3512 = vmul.f32 %v3474, 0.05
        %v3513 = vmul.f32 %v3476, 0.05
        %v3514 = vmul.f32 %v3480, 0.05
        %v3515 = vmul.f32 %v3482, 0.05
        %v3516 = vmax.f32 %v3390, %v3484
        %v3517 = vmax.f32 %v3392, %v3485
        %v3518 = vmax.f32 %v3396, %v3486
        %v3519 = vmax.f32 %v3398, %v3487
        %v3520 = vmax.f32 %v3402, %v3488
        %v3521 = vmax.f32 %v3404, %v3489
        %v3522 = vmax.f32 %v3408, %v3490
        %v3523 = vmax.f32 %v3410, %v3491
        %v3524 = vmax.f32 %v3414, %v3492
        %v3525 = vmax.f32 %v3416, %v3493
        %v3526 = vmax.f32 %v3420, %v3494
        %v3527 = vmax.f32 %v3422, %v3495
        %v3528 = vmax.f32 %v3426, %v3496
        %v3529 = vmax.f32 %v3428, %v3497
        %v3530 = vmax.f32 %v3432, %v3498
        %v3531 = vmax.f32 %v3434, %v3499
        %v3532 = vmax.f32 %v3438, %v3500
        %v3533 = vmax.f32 %v3440, %v3501
        %v3534 = vmax.f32 %v3444, %v3502
        %v3535 = vmax.f32 %v3446, %v3503
        %v3536 = vmax.f32 %v3450, %v3504
        %v3537 = vmax.f32 %v3452, %v3505
        %v3538 = vmax.f32 %v3456, %v3506
        %v3539 = vmax.f32 %v3458, %v3507
        %v3540 = vmax.f32 %v3462, %v3508
        %v3541 = vmax.f32 %v3464, %v3509
        %v3542 = vmax.f32 %v3468, %v3510
        %v3543 = vmax.f32 %v3470, %v3511
        %v3544 = vmax.f32 %v3474, %v3512
        %v3545 = vmax.f32 %v3476, %v3513
        %v3546 = vmax.f32 %v3480, %v3514
        %v3547 = vmax.f32 %v3482, %v3515
        %v3548 = vld [vmem:[%s3] sm:$0xff]
        %v3549 = vld [vmem:[%s3 + $0x8] sm:$0xff]
        %v3550 = vld [vmem:[%s3 + $0x10] sm:$0xff]
        %v3551 = vld [vmem:[%s3 + $0x18] sm:$0xff]
        %v3552 = vld [vmem:[%s4] sm:$0xff]
        %v3553 = vld [vmem:[%s4 + $0x8] sm:$0xff]
        %v3554 = vld [vmem:[%s4 + $0x10] sm:$0xff]
        %v3555 = vld [vmem:[%s4 + $0x18] sm:$0xff]
        %3557 = vset.pattern.permute.xlu0 0
        %3558 = vperm.xlu0 %3557, %v3552
        %v3559 = vpop.permute.xlu0 %3558
        %3562 = vset.pattern.permute.xlu0 0
        %3563 = vperm.xlu0 %3562, %v3553
        %v3564 = vpop.permute.xlu0 %3563
        %3567 = vset.pattern.permute.xlu0 0
        %3568 = vperm.xlu0 %3567, %v3554
        %v3569 = vpop.permute.xlu0 %3568
        %3572 = vset.pattern.permute.xlu0 0
        %3573 = vperm.xlu0 %3572, %v3555
        %v3574 = vpop.permute.xlu0 %3573
        %v3577 = vsel %vm2900, %v3548, 0
        %v3580 = vsel %vm2900, %v3549, 0
        %v3583 = vsel %vm2900, %v3550, 0
        %v3586 = vsel %vm2900, %v3551, 0
        %3588 = vmatprep.subr.mxu0 0.0
        %3589 = vmatpush1.msra.mxu0 0.0
        %3590 = vmatprep.subr.mxu0 0.0
        %3591 = vmatpush1.msra.mxu0 0.0
        %3592 = vmatprep.subr.mxu0 0.0
        %3593 = vmatpush1.msra.mxu0 0.0
        %3594 = vmatprep.subr.mxu0 0.0
        %3595 = vmatpush1.msra.mxu0 0.0
        %3596 = vmatprep.subr.mxu0 0.0
        %3597 = vmatpush1.msra.mxu0 0.0
        %3598 = vmatprep.subr.mxu0 0.0
        %3599 = vmatpush1.msra.mxu0 0.0
        %3600 = vmatprep.subr.mxu0 0.0
        %3601 = vmatpush1.msra.mxu0 0.0
        %3602 = vmatprep.subr.mxu0 0.0
        %3603 = vmatpush1.msra.mxu0 0.0
        %3604 = vmatprep.subr.mxu0 0.0
        %3605 = vmatpush1.msra.mxu0 0.0
        %3606 = vmatprep.subr.mxu0 0.0
        %3607 = vmatpush1.msra.mxu0 0.0
        %3608 = vmatprep.subr.mxu0 0.0
        %3609 = vmatpush1.msra.mxu0 0.0
        %3610 = vmatprep.subr.mxu0 0.0
        %3611 = vmatpush1.msra.mxu0 0.0
        %3612 = vmatprep.subr.mxu0 %v1207
        %3613 = vmatpush1.msra.mxu0 %v1205
        %3614 = vmatprep.subr.mxu0 %v1201
        %3615 = vmatpush1.msra.mxu0 %v1199
        %3616 = vmatprep.subr.mxu0 %v1195
        %3617 = vmatpush1.msra.mxu0 %v1193
        %3618 = vmatprep.subr.mxu0 %v1189
        %3619 = vmatpush1.msra.mxu0 %v1187
        %3620 = vmatprep.subr.mxu0 0.0
        %3621 = vmatpush2.msra.mxu0 0.0
        %3622 = vmatprep.subr.mxu0 0.0
        %3623 = vmatpush2.msra.mxu0 0.0
        %3624 = vmatprep.subr.mxu0 0.0
        %3625 = vmatpush2.msra.mxu0 0.0
        %3626 = vmatprep.subr.mxu0 0.0
        %3627 = vmatpush2.msra.mxu0 0.0
        %3628 = vmatprep.subr.mxu0 0.0
        %3629 = vmatpush2.msra.mxu0 0.0
        %3630 = vmatprep.subr.mxu0 0.0
        %3631 = vmatpush2.msra.mxu0 0.0
        %3632 = vmatprep.subr.mxu0 0.0
        %3633 = vmatpush2.msra.mxu0 0.0
        %3634 = vmatprep.subr.mxu0 0.0
        %3635 = vmatpush2.msra.mxu0 0.0
        %3636 = vmatprep.subr.mxu0 0.0
        %3637 = vmatpush2.msra.mxu0 0.0
        %3638 = vmatprep.subr.mxu0 0.0
        %3639 = vmatpush2.msra.mxu0 0.0
        %3640 = vmatprep.subr.mxu0 0.0
        %3641 = vmatpush2.msra.mxu0 0.0
        %3642 = vmatprep.subr.mxu0 0.0
        %3643 = vmatpush2.msra.mxu0 0.0
        %3644 = vmatprep.subr.mxu0 0.0
        %3645 = vmatpush2.msra.mxu0 0.0
        %3646 = vmatprep.subr.mxu0 0.0
        %3647 = vmatpush2.msra.mxu0 0.0
        %3648 = vmatprep.subr.mxu0 0.0
        %3649 = vmatpush2.msra.mxu0 0.0
        %3650 = vmatprep.subr.mxu0 0.0
        %3651 = vmatpush2.msra.mxu0 0.0
        %3652 = vmatprep.mubr.f32.mxu0 0.0
        %3653 = vmatmul.mubr.f32.gmra.mxu0 %v3577
        %v3654 = vpop.f32.mrf.mxu0
        %v3655 = vadd.f32 %v3559, %v3654
        %v3656 = vpop.f32.mrf.mxu0
        %v3657 = vadd.f32 %v3559, %v3656
        %3658 = vmatprep.mubr.f32.mxu0 0.0
        %3659 = vmatmul.mubr.f32.gmra.mxu0 %v3580
        %v3660 = vpop.f32.mrf.mxu0
        %v3661 = vadd.f32 %v3564, %v3660
        %v3662 = vpop.f32.mrf.mxu0
        %v3663 = vadd.f32 %v3564, %v3662
        %3664 = vmatprep.mubr.f32.mxu0 0.0
        %3665 = vmatmul.mubr.f32.gmra.mxu0 %v3583
        %v3666 = vpop.f32.mrf.mxu0
        %v3667 = vadd.f32 %v3569, %v3666
        %v3668 = vpop.f32.mrf.mxu0
        %v3669 = vadd.f32 %v3569, %v3668
        %3670 = vmatprep.mubr.f32.mxu0 0.0
        %3671 = vmatmul.mubr.f32.gmra.mxu0 %v3586
        %v3672 = vpop.f32.mrf.mxu0
        %v3673 = vadd.f32 %v3574, %v3672
        %v3674 = vpop.f32.mrf.mxu0
        %v3675 = vadd.f32 %v3574, %v3674
        %3676 = vdwg.mxu0
        %3677 = vmatprep.subr.mxu0 0.0
        %3678 = vmatpush1.msra.mxu0 0.0
        %3679 = vmatprep.subr.mxu0 0.0
        %3680 = vmatpush1.msra.mxu0 0.0
        %3681 = vmatprep.subr.mxu0 0.0
        %3682 = vmatpush1.msra.mxu0 0.0
        %3683 = vmatprep.subr.mxu0 0.0
        %3684 = vmatpush1.msra.mxu0 0.0
        %3685 = vmatprep.subr.mxu0 0.0
        %3686 = vmatpush1.msra.mxu0 0.0
        %3687 = vmatprep.subr.mxu0 0.0
        %3688 = vmatpush1.msra.mxu0 0.0
        %3689 = vmatprep.subr.mxu0 0.0
        %3690 = vmatpush1.msra.mxu0 0.0
        %3691 = vmatprep.subr.mxu0 0.0
        %3692 = vmatpush1.msra.mxu0 0.0
        %3693 = vmatprep.subr.mxu0 0.0
        %3694 = vmatpush1.msra.mxu0 0.0
        %3695 = vmatprep.subr.mxu0 0.0
        %3696 = vmatpush1.msra.mxu0 0.0
        %3697 = vmatprep.subr.mxu0 0.0
        %3698 = vmatpush1.msra.mxu0 0.0
        %3699 = vmatprep.subr.mxu0 0.0
        %3700 = vmatpush1.msra.mxu0 0.0
        %3701 = vmatprep.subr.mxu0 %v1456
        %3702 = vmatpush1.msra.mxu0 %v1454
        %3703 = vmatprep.subr.mxu0 %v1450
        %3704 = vmatpush1.msra.mxu0 %v1448
        %3705 = vmatprep.subr.mxu0 %v1444
        %3706 = vmatpush1.msra.mxu0 %v1442
        %3707 = vmatprep.subr.mxu0 %v1438
        %3708 = vmatpush1.msra.mxu0 %v1436
        %3709 = vmatprep.subr.mxu0 0.0
        %3710 = vmatpush2.msra.mxu0 0.0
        %3711 = vmatprep.subr.mxu0 0.0
        %3712 = vmatpush2.msra.mxu0 0.0
        %3713 = vmatprep.subr.mxu0 0.0
        %3714 = vmatpush2.msra.mxu0 0.0
        %3715 = vmatprep.subr.mxu0 0.0
        %3716 = vmatpush2.msra.mxu0 0.0
        %3717 = vmatprep.subr.mxu0 0.0
        %3718 = vmatpush2.msra.mxu0 0.0
        %3719 = vmatprep.subr.mxu0 0.0
        %3720 = vmatpush2.msra.mxu0 0.0
        %3721 = vmatprep.subr.mxu0 0.0
        %3722 = vmatpush2.msra.mxu0 0.0
        %3723 = vmatprep.subr.mxu0 0.0
        %3724 = vmatpush2.msra.mxu0 0.0
        %3725 = vmatprep.subr.mxu0 0.0
        %3726 = vmatpush2.msra.mxu0 0.0
        %3727 = vmatprep.subr.mxu0 0.0
        %3728 = vmatpush2.msra.mxu0 0.0
        %3729 = vmatprep.subr.mxu0 0.0
        %3730 = vmatpush2.msra.mxu0 0.0
        %3731 = vmatprep.subr.mxu0 0.0
        %3732 = vmatpush2.msra.mxu0 0.0
        %3733 = vmatprep.subr.mxu0 0.0
        %3734 = vmatpush2.msra.mxu0 0.0
        %3735 = vmatprep.subr.mxu0 0.0
        %3736 = vmatpush2.msra.mxu0 0.0
        %3737 = vmatprep.subr.mxu0 0.0
        %3738 = vmatpush2.msra.mxu0 0.0
        %3739 = vmatprep.subr.mxu0 0.0
        %3740 = vmatpush2.msra.mxu0 0.0
        %3741 = vmatprep.mubr.f32.mxu0 0.0
        %3742 = vmatmul.mubr.f32.gmra.mxu0 %v3577
        %v3743 = vpop.f32.mrf.mxu0
        %v3744 = vadd.f32 %v3559, %v3743
        %v3745 = vpop.f32.mrf.mxu0
        %v3746 = vadd.f32 %v3559, %v3745
        %3747 = vmatprep.mubr.f32.mxu0 0.0
        %3748 = vmatmul.mubr.f32.gmra.mxu0 %v3580
        %v3749 = vpop.f32.mrf.mxu0
        %v3750 = vadd.f32 %v3564, %v3749
        %v3751 = vpop.f32.mrf.mxu0
        %v3752 = vadd.f32 %v3564, %v3751
        %3753 = vmatprep.mubr.f32.mxu0 0.0
        %3754 = vmatmul.mubr.f32.gmra.mxu0 %v3583
        %v3755 = vpop.f32.mrf.mxu0
        %v3756 = vadd.f32 %v3569, %v3755
        %v3757 = vpop.f32.mrf.mxu0
        %v3758 = vadd.f32 %v3569, %v3757
        %3759 = vmatprep.mubr.f32.mxu0 0.0
        %3760 = vmatmul.mubr.f32.gmra.mxu0 %v3586
        %v3761 = vpop.f32.mrf.mxu0
        %v3762 = vadd.f32 %v3574, %v3761
        %v3763 = vpop.f32.mrf.mxu0
        %v3764 = vadd.f32 %v3574, %v3763
        %3765 = vdwg.mxu0
        %3766 = vmatprep.subr.mxu0 0.0
        %3767 = vmatpush1.msra.mxu0 0.0
        %3768 = vmatprep.subr.mxu0 0.0
        %3769 = vmatpush1.msra.mxu0 0.0
        %3770 = vmatprep.subr.mxu0 0.0
        %3771 = vmatpush1.msra.mxu0 0.0
        %3772 = vmatprep.subr.mxu0 0.0
        %3773 = vmatpush1.msra.mxu0 0.0
        %3774 = vmatprep.subr.mxu0 0.0
        %3775 = vmatpush1.msra.mxu0 0.0
        %3776 = vmatprep.subr.mxu0 0.0
        %3777 = vmatpush1.msra.mxu0 0.0
        %3778 = vmatprep.subr.mxu0 0.0
        %3779 = vmatpush1.msra.mxu0 0.0
        %3780 = vmatprep.subr.mxu0 0.0
        %3781 = vmatpush1.msra.mxu0 0.0
        %3782 = vmatprep.subr.mxu0 0.0
        %3783 = vmatpush1.msra.mxu0 0.0
        %3784 = vmatprep.subr.mxu0 0.0
        %3785 = vmatpush1.msra.mxu0 0.0
        %3786 = vmatprep.subr.mxu0 0.0
        %3787 = vmatpush1.msra.mxu0 0.0
        %3788 = vmatprep.subr.mxu0 0.0
        %3789 = vmatpush1.msra.mxu0 0.0
        %3790 = vmatprep.subr.mxu0 %v1715
        %3791 = vmatpush1.msra.mxu0 %v1713
        %3792 = vmatprep.subr.mxu0 %v1709
        %3793 = vmatpush1.msra.mxu0 %v1707
        %3794 = vmatprep.subr.mxu0 %v1703
        %3795 = vmatpush1.msra.mxu0 %v1701
        %3796 = vmatprep.subr.mxu0 %v1697
        %3797 = vmatpush1.msra.mxu0 %v1695
        %3798 = vmatprep.subr.mxu0 0.0
        %3799 = vmatpush2.msra.mxu0 0.0
        %3800 = vmatprep.subr.mxu0 0.0
        %3801 = vmatpush2.msra.mxu0 0.0
        %3802 = vmatprep.subr.mxu0 0.0
        %3803 = vmatpush2.msra.mxu0 0.0
        %3804 = vmatprep.subr.mxu0 0.0
        %3805 = vmatpush2.msra.mxu0 0.0
        %3806 = vmatprep.subr.mxu0 0.0
        %3807 = vmatpush2.msra.mxu0 0.0
        %3808 = vmatprep.subr.mxu0 0.0
        %3809 = vmatpush2.msra.mxu0 0.0
        %3810 = vmatprep.subr.mxu0 0.0
        %3811 = vmatpush2.msra.mxu0 0.0
        %3812 = vmatprep.subr.mxu0 0.0
        %3813 = vmatpush2.msra.mxu0 0.0
        %3814 = vmatprep.subr.mxu0 0.0
        %3815 = vmatpush2.msra.mxu0 0.0
        %3816 = vmatprep.subr.mxu0 0.0
        %3817 = vmatpush2.msra.mxu0 0.0
        %3818 = vmatprep.subr.mxu0 0.0
        %3819 = vmatpush2.msra.mxu0 0.0
        %3820 = vmatprep.subr.mxu0 0.0
        %3821 = vmatpush2.msra.mxu0 0.0
        %3822 = vmatprep.subr.mxu0 0.0
        %3823 = vmatpush2.msra.mxu0 0.0
        %3824 = vmatprep.subr.mxu0 0.0
        %3825 = vmatpush2.msra.mxu0 0.0
        %3826 = vmatprep.subr.mxu0 0.0
        %3827 = vmatpush2.msra.mxu0 0.0
        %3828 = vmatprep.subr.mxu0 0.0
        %3829 = vmatpush2.msra.mxu0 0.0
        %3830 = vmatprep.mubr.f32.mxu0 0.0
        %3831 = vmatmul.mubr.f32.gmra.mxu0 %v3577
        %v3832 = vpop.f32.mrf.mxu0
        %v3833 = vadd.f32 %v3559, %v3832
        %v3834 = vpop.f32.mrf.mxu0
        %v3835 = vadd.f32 %v3559, %v3834
        %3836 = vmatprep.mubr.f32.mxu0 0.0
        %3837 = vmatmul.mubr.f32.gmra.mxu0 %v3580
        %v3838 = vpop.f32.mrf.mxu0
        %v3839 = vadd.f32 %v3564, %v3838
        %v3840 = vpop.f32.mrf.mxu0
        %v3841 = vadd.f32 %v3564, %v3840
        %3842 = vmatprep.mubr.f32.mxu0 0.0
        %3843 = vmatmul.mubr.f32.gmra.mxu0 %v3583
        %v3844 = vpop.f32.mrf.mxu0
        %v3845 = vadd.f32 %v3569, %v3844
        %v3846 = vpop.f32.mrf.mxu0
        %v3847 = vadd.f32 %v3569, %v3846
        %3848 = vmatprep.mubr.f32.mxu0 0.0
        %3849 = vmatmul.mubr.f32.gmra.mxu0 %v3586
        %v3850 = vpop.f32.mrf.mxu0
        %v3851 = vadd.f32 %v3574, %v3850
        %v3852 = vpop.f32.mrf.mxu0
        %v3853 = vadd.f32 %v3574, %v3852
        %3854 = vdwg.mxu0
        %3855 = vmatprep.subr.mxu0 0.0
        %3856 = vmatpush1.msra.mxu0 0.0
        %3857 = vmatprep.subr.mxu0 0.0
        %3858 = vmatpush1.msra.mxu0 0.0
        %3859 = vmatprep.subr.mxu0 0.0
        %3860 = vmatpush1.msra.mxu0 0.0
        %3861 = vmatprep.subr.mxu0 0.0
        %3862 = vmatpush1.msra.mxu0 0.0
        %3863 = vmatprep.subr.mxu0 0.0
        %3864 = vmatpush1.msra.mxu0 0.0
        %3865 = vmatprep.subr.mxu0 0.0
        %3866 = vmatpush1.msra.mxu0 0.0
        %3867 = vmatprep.subr.mxu0 0.0
        %3868 = vmatpush1.msra.mxu0 0.0
        %3869 = vmatprep.subr.mxu0 0.0
        %3870 = vmatpush1.msra.mxu0 0.0
        %3871 = vmatprep.subr.mxu0 0.0
        %3872 = vmatpush1.msra.mxu0 0.0
        %3873 = vmatprep.subr.mxu0 0.0
        %3874 = vmatpush1.msra.mxu0 0.0
        %3875 = vmatprep.subr.mxu0 0.0
        %3876 = vmatpush1.msra.mxu0 0.0
        %3877 = vmatprep.subr.mxu0 0.0
        %3878 = vmatpush1.msra.mxu0 0.0
        %3879 = vmatprep.subr.mxu0 %v1974
        %3880 = vmatpush1.msra.mxu0 %v1972
        %3881 = vmatprep.subr.mxu0 %v1968
        %3882 = vmatpush1.msra.mxu0 %v1966
        %3883 = vmatprep.subr.mxu0 %v1962
        %3884 = vmatpush1.msra.mxu0 %v1960
        %3885 = vmatprep.subr.mxu0 %v1956
        %3886 = vmatpush1.msra.mxu0 %v1954
        %3887 = vmatprep.subr.mxu0 0.0
        %3888 = vmatpush2.msra.mxu0 0.0
        %3889 = vmatprep.subr.mxu0 0.0
        %3890 = vmatpush2.msra.mxu0 0.0
        %3891 = vmatprep.subr.mxu0 0.0
        %3892 = vmatpush2.msra.mxu0 0.0
        %3893 = vmatprep.subr.mxu0 0.0
        %3894 = vmatpush2.msra.mxu0 0.0
        %3895 = vmatprep.subr.mxu0 0.0
        %3896 = vmatpush2.msra.mxu0 0.0
        %3897 = vmatprep.subr.mxu0 0.0
        %3898 = vmatpush2.msra.mxu0 0.0
        %3899 = vmatprep.subr.mxu0 0.0
        %3900 = vmatpush2.msra.mxu0 0.0
        %3901 = vmatprep.subr.mxu0 0.0
        %3902 = vmatpush2.msra.mxu0 0.0
        %3903 = vmatprep.subr.mxu0 0.0
        %3904 = vmatpush2.msra.mxu0 0.0
        %3905 = vmatprep.subr.mxu0 0.0
        %3906 = vmatpush2.msra.mxu0 0.0
        %3907 = vmatprep.subr.mxu0 0.0
        %3908 = vmatpush2.msra.mxu0 0.0
        %3909 = vmatprep.subr.mxu0 0.0
        %3910 = vmatpush2.msra.mxu0 0.0
        %3911 = vmatprep.subr.mxu0 0.0
        %3912 = vmatpush2.msra.mxu0 0.0
        %3913 = vmatprep.subr.mxu0 0.0
        %3914 = vmatpush2.msra.mxu0 0.0
        %3915 = vmatprep.subr.mxu0 0.0
        %3916 = vmatpush2.msra.mxu0 0.0
        %3917 = vmatprep.subr.mxu0 0.0
        %3918 = vmatpush2.msra.mxu0 0.0
        %3919 = vmatprep.mubr.f32.mxu0 0.0
        %3920 = vmatmul.mubr.f32.gmra.mxu0 %v3577
        %v3921 = vpop.f32.mrf.mxu0
        %v3922 = vadd.f32 %v3559, %v3921
        %v3923 = vpop.f32.mrf.mxu0
        %v3924 = vadd.f32 %v3559, %v3923
        %3925 = vmatprep.mubr.f32.mxu0 0.0
        %3926 = vmatmul.mubr.f32.gmra.mxu0 %v3580
        %v3927 = vpop.f32.mrf.mxu0
        %v3928 = vadd.f32 %v3564, %v3927
        %v3929 = vpop.f32.mrf.mxu0
        %v3930 = vadd.f32 %v3564, %v3929
        %3931 = vmatprep.mubr.f32.mxu0 0.0
        %3932 = vmatmul.mubr.f32.gmra.mxu0 %v3583
        %v3933 = vpop.f32.mrf.mxu0
        %v3934 = vadd.f32 %v3569, %v3933
        %v3935 = vpop.f32.mrf.mxu0
        %v3936 = vadd.f32 %v3569, %v3935
        %3937 = vmatprep.mubr.f32.mxu0 0.0
        %3938 = vmatmul.mubr.f32.gmra.mxu0 %v3586
        %v3939 = vpop.f32.mrf.mxu0
        %v3940 = vadd.f32 %v3574, %v3939
        %v3941 = vpop.f32.mrf.mxu0
        %v3942 = vadd.f32 %v3574, %v3941
        %3943 = vdwg.mxu0
        %3944 = vmatprep.subr.mxu0 0.0
        %3945 = vmatpush1.msra.mxu0 0.0
        %3946 = vmatprep.subr.mxu0 0.0
        %3947 = vmatpush1.msra.mxu0 0.0
        %3948 = vmatprep.subr.mxu0 0.0
        %3949 = vmatpush1.msra.mxu0 0.0
        %3950 = vmatprep.subr.mxu0 0.0
        %3951 = vmatpush1.msra.mxu0 0.0
        %3952 = vmatprep.subr.mxu0 0.0
        %3953 = vmatpush1.msra.mxu0 0.0
        %3954 = vmatprep.subr.mxu0 0.0
        %3955 = vmatpush1.msra.mxu0 0.0
        %3956 = vmatprep.subr.mxu0 0.0
        %3957 = vmatpush1.msra.mxu0 0.0
        %3958 = vmatprep.subr.mxu0 0.0
        %3959 = vmatpush1.msra.mxu0 0.0
        %3960 = vmatprep.subr.mxu0 0.0
        %3961 = vmatpush1.msra.mxu0 0.0
        %3962 = vmatprep.subr.mxu0 0.0
        %3963 = vmatpush1.msra.mxu0 0.0
        %3964 = vmatprep.subr.mxu0 0.0
        %3965 = vmatpush1.msra.mxu0 0.0
        %3966 = vmatprep.subr.mxu0 0.0
        %3967 = vmatpush1.msra.mxu0 0.0
        %3968 = vmatprep.subr.mxu0 %v2195
        %3969 = vmatpush1.msra.mxu0 %v2193
        %3970 = vmatprep.subr.mxu0 %v2189
        %3971 = vmatpush1.msra.mxu0 %v2187
        %3972 = vmatprep.subr.mxu0 %v2183
        %3973 = vmatpush1.msra.mxu0 %v2181
        %3974 = vmatprep.subr.mxu0 %v2177
        %3975 = vmatpush1.msra.mxu0 %v2175
        %3976 = vmatprep.subr.mxu0 0.0
        %3977 = vmatpush2.msra.mxu0 0.0
        %3978 = vmatprep.subr.mxu0 0.0
        %3979 = vmatpush2.msra.mxu0 0.0
        %3980 = vmatprep.subr.mxu0 0.0
        %3981 = vmatpush2.msra.mxu0 0.0
        %3982 = vmatprep.subr.mxu0 0.0
        %3983 = vmatpush2.msra.mxu0 0.0
        %3984 = vmatprep.subr.mxu0 0.0
        %3985 = vmatpush2.msra.mxu0 0.0
        %3986 = vmatprep.subr.mxu0 0.0
        %3987 = vmatpush2.msra.mxu0 0.0
        %3988 = vmatprep.subr.mxu0 0.0
        %3989 = vmatpush2.msra.mxu0 0.0
        %3990 = vmatprep.subr.mxu0 0.0
        %3991 = vmatpush2.msra.mxu0 0.0
        %3992 = vmatprep.subr.mxu0 0.0
        %3993 = vmatpush2.msra.mxu0 0.0
        %3994 = vmatprep.subr.mxu0 0.0
        %3995 = vmatpush2.msra.mxu0 0.0
        %3996 = vmatprep.subr.mxu0 0.0
        %3997 = vmatpush2.msra.mxu0 0.0
        %3998 = vmatprep.subr.mxu0 0.0
        %3999 = vmatpush2.msra.mxu0 0.0
        %4000 = vmatprep.subr.mxu0 0.0
        %4001 = vmatpush2.msra.mxu0 0.0
        %4002 = vmatprep.subr.mxu0 0.0
        %4003 = vmatpush2.msra.mxu0 0.0
        %4004 = vmatprep.subr.mxu0 0.0
        %4005 = vmatpush2.msra.mxu0 0.0
        %4006 = vmatprep.subr.mxu0 0.0
        %4007 = vmatpush2.msra.mxu0 0.0
        %4008 = vmatprep.mubr.f32.mxu0 0.0
        %4009 = vmatmul.mubr.f32.gmra.mxu0 %v3577
        %v4010 = vpop.f32.mrf.mxu0
        %v4011 = vadd.f32 %v3559, %v4010
        %v4012 = vpop.f32.mrf.mxu0
        %v4013 = vadd.f32 %v3559, %v4012
        %4014 = vmatprep.mubr.f32.mxu0 0.0
        %4015 = vmatmul.mubr.f32.gmra.mxu0 %v3580
        %v4016 = vpop.f32.mrf.mxu0
        %v4017 = vadd.f32 %v3564, %v4016
        %v4018 = vpop.f32.mrf.mxu0
        %v4019 = vadd.f32 %v3564, %v4018
        %4020 = vmatprep.mubr.f32.mxu0 0.0
        %4021 = vmatmul.mubr.f32.gmra.mxu0 %v3583
        %v4022 = vpop.f32.mrf.mxu0
        %v4023 = vadd.f32 %v3569, %v4022
        %v4024 = vpop.f32.mrf.mxu0
        %v4025 = vadd.f32 %v3569, %v4024
        %4026 = vmatprep.mubr.f32.mxu0 0.0
        %4027 = vmatmul.mubr.f32.gmra.mxu0 %v3586
        %v4028 = vpop.f32.mrf.mxu0
        %v4029 = vadd.f32 %v3574, %v4028
        %v4030 = vpop.f32.mrf.mxu0
        %v4031 = vadd.f32 %v3574, %v4030
        %4032 = vdwg.mxu0
        %4033 = vmatprep.subr.mxu0 0.0
        %4034 = vmatpush1.msra.mxu0 0.0
        %4035 = vmatprep.subr.mxu0 0.0
        %4036 = vmatpush1.msra.mxu0 0.0
        %4037 = vmatprep.subr.mxu0 0.0
        %4038 = vmatpush1.msra.mxu0 0.0
        %4039 = vmatprep.subr.mxu0 0.0
        %4040 = vmatpush1.msra.mxu0 0.0
        %4041 = vmatprep.subr.mxu0 0.0
        %4042 = vmatpush1.msra.mxu0 0.0
        %4043 = vmatprep.subr.mxu0 0.0
        %4044 = vmatpush1.msra.mxu0 0.0
        %4045 = vmatprep.subr.mxu0 0.0
        %4046 = vmatpush1.msra.mxu0 0.0
        %4047 = vmatprep.subr.mxu0 0.0
        %4048 = vmatpush1.msra.mxu0 0.0
        %4049 = vmatprep.subr.mxu0 0.0
        %4050 = vmatpush1.msra.mxu0 0.0
        %4051 = vmatprep.subr.mxu0 0.0
        %4052 = vmatpush1.msra.mxu0 0.0
        %4053 = vmatprep.subr.mxu0 0.0
        %4054 = vmatpush1.msra.mxu0 0.0
        %4055 = vmatprep.subr.mxu0 0.0
        %4056 = vmatpush1.msra.mxu0 0.0
        %4057 = vmatprep.subr.mxu0 %v2416
        %4058 = vmatpush1.msra.mxu0 %v2414
        %4059 = vmatprep.subr.mxu0 %v2410
        %4060 = vmatpush1.msra.mxu0 %v2408
        %4061 = vmatprep.subr.mxu0 %v2404
        %4062 = vmatpush1.msra.mxu0 %v2402
        %4063 = vmatprep.subr.mxu0 %v2398
        %4064 = vmatpush1.msra.mxu0 %v2396
        %4065 = vmatprep.subr.mxu0 0.0
        %4066 = vmatpush2.msra.mxu0 0.0
        %4067 = vmatprep.subr.mxu0 0.0
        %4068 = vmatpush2.msra.mxu0 0.0
        %4069 = vmatprep.subr.mxu0 0.0
        %4070 = vmatpush2.msra.mxu0 0.0
        %4071 = vmatprep.subr.mxu0 0.0
        %4072 = vmatpush2.msra.mxu0 0.0
        %4073 = vmatprep.subr.mxu0 0.0
        %4074 = vmatpush2.msra.mxu0 0.0
        %4075 = vmatprep.subr.mxu0 0.0
        %4076 = vmatpush2.msra.mxu0 0.0
        %4077 = vmatprep.subr.mxu0 0.0
        %4078 = vmatpush2.msra.mxu0 0.0
        %4079 = vmatprep.subr.mxu0 0.0
        %4080 = vmatpush2.msra.mxu0 0.0
        %4081 = vmatprep.subr.mxu0 0.0
        %4082 = vmatpush2.msra.mxu0 0.0
        %4083 = vmatprep.subr.mxu0 0.0
        %4084 = vmatpush2.msra.mxu0 0.0
        %4085 = vmatprep.subr.mxu0 0.0
        %4086 = vmatpush2.msra.mxu0 0.0
        %4087 = vmatprep.subr.mxu0 0.0
        %4088 = vmatpush2.msra.mxu0 0.0
        %4089 = vmatprep.subr.mxu0 0.0
        %4090 = vmatpush2.msra.mxu0 0.0
        %4091 = vmatprep.subr.mxu0 0.0
        %4092 = vmatpush2.msra.mxu0 0.0
        %4093 = vmatprep.subr.mxu0 0.0
        %4094 = vmatpush2.msra.mxu0 0.0
        %4095 = vmatprep.subr.mxu0 0.0
        %4096 = vmatpush2.msra.mxu0 0.0
        %4097 = vmatprep.mubr.f32.mxu0 0.0
        %4098 = vmatmul.mubr.f32.gmra.mxu0 %v3577
        %v4099 = vpop.f32.mrf.mxu0
        %v4100 = vadd.f32 %v3559, %v4099
        %v4101 = vpop.f32.mrf.mxu0
        %v4102 = vadd.f32 %v3559, %v4101
        %4103 = vmatprep.mubr.f32.mxu0 0.0
        %4104 = vmatmul.mubr.f32.gmra.mxu0 %v3580
        %v4105 = vpop.f32.mrf.mxu0
        %v4106 = vadd.f32 %v3564, %v4105
        %v4107 = vpop.f32.mrf.mxu0
        %v4108 = vadd.f32 %v3564, %v4107
        %4109 = vmatprep.mubr.f32.mxu0 0.0
        %4110 = vmatmul.mubr.f32.gmra.mxu0 %v3583
        %v4111 = vpop.f32.mrf.mxu0
        %v4112 = vadd.f32 %v3569, %v4111
        %v4113 = vpop.f32.mrf.mxu0
        %v4114 = vadd.f32 %v3569, %v4113
        %4115 = vmatprep.mubr.f32.mxu0 0.0
        %4116 = vmatmul.mubr.f32.gmra.mxu0 %v3586
        %v4117 = vpop.f32.mrf.mxu0
        %v4118 = vadd.f32 %v3574, %v4117
        %v4119 = vpop.f32.mrf.mxu0
        %v4120 = vadd.f32 %v3574, %v4119
        %4121 = vdwg.mxu0
        %4122 = vmatprep.subr.mxu0 0.0
        %4123 = vmatpush1.msra.mxu0 0.0
        %4124 = vmatprep.subr.mxu0 0.0
        %4125 = vmatpush1.msra.mxu0 0.0
        %4126 = vmatprep.subr.mxu0 0.0
        %4127 = vmatpush1.msra.mxu0 0.0
        %4128 = vmatprep.subr.mxu0 0.0
        %4129 = vmatpush1.msra.mxu0 0.0
        %4130 = vmatprep.subr.mxu0 0.0
        %4131 = vmatpush1.msra.mxu0 0.0
        %4132 = vmatprep.subr.mxu0 0.0
        %4133 = vmatpush1.msra.mxu0 0.0
        %4134 = vmatprep.subr.mxu0 0.0
        %4135 = vmatpush1.msra.mxu0 0.0
        %4136 = vmatprep.subr.mxu0 0.0
        %4137 = vmatpush1.msra.mxu0 0.0
        %4138 = vmatprep.subr.mxu0 0.0
        %4139 = vmatpush1.msra.mxu0 0.0
        %4140 = vmatprep.subr.mxu0 0.0
        %4141 = vmatpush1.msra.mxu0 0.0
        %4142 = vmatprep.subr.mxu0 0.0
        %4143 = vmatpush1.msra.mxu0 0.0
        %4144 = vmatprep.subr.mxu0 0.0
        %4145 = vmatpush1.msra.mxu0 0.0
        %4146 = vmatprep.subr.mxu0 %v2637
        %4147 = vmatpush1.msra.mxu0 %v2635
        %4148 = vmatprep.subr.mxu0 %v2631
        %4149 = vmatpush1.msra.mxu0 %v2629
        %4150 = vmatprep.subr.mxu0 %v2625
        %4151 = vmatpush1.msra.mxu0 %v2623
        %4152 = vmatprep.subr.mxu0 %v2619
        %4153 = vmatpush1.msra.mxu0 %v2617
        %4154 = vmatprep.subr.mxu0 0.0
        %4155 = vmatpush2.msra.mxu0 0.0
        %4156 = vmatprep.subr.mxu0 0.0
        %4157 = vmatpush2.msra.mxu0 0.0
        %4158 = vmatprep.subr.mxu0 0.0
        %4159 = vmatpush2.msra.mxu0 0.0
        %4160 = vmatprep.subr.mxu0 0.0
        %4161 = vmatpush2.msra.mxu0 0.0
        %4162 = vmatprep.subr.mxu0 0.0
        %4163 = vmatpush2.msra.mxu0 0.0
        %4164 = vmatprep.subr.mxu0 0.0
        %4165 = vmatpush2.msra.mxu0 0.0
        %4166 = vmatprep.subr.mxu0 0.0
        %4167 = vmatpush2.msra.mxu0 0.0
        %4168 = vmatprep.subr.mxu0 0.0
        %4169 = vmatpush2.msra.mxu0 0.0
        %4170 = vmatprep.subr.mxu0 0.0
        %4171 = vmatpush2.msra.mxu0 0.0
        %4172 = vmatprep.subr.mxu0 0.0
        %4173 = vmatpush2.msra.mxu0 0.0
        %4174 = vmatprep.subr.mxu0 0.0
        %4175 = vmatpush2.msra.mxu0 0.0
        %4176 = vmatprep.subr.mxu0 0.0
        %4177 = vmatpush2.msra.mxu0 0.0
        %4178 = vmatprep.subr.mxu0 0.0
        %4179 = vmatpush2.msra.mxu0 0.0
        %4180 = vmatprep.subr.mxu0 0.0
        %4181 = vmatpush2.msra.mxu0 0.0
        %4182 = vmatprep.subr.mxu0 0.0
        %4183 = vmatpush2.msra.mxu0 0.0
        %4184 = vmatprep.subr.mxu0 0.0
        %4185 = vmatpush2.msra.mxu0 0.0
        %4186 = vmatprep.mubr.f32.mxu0 0.0
        %4187 = vmatmul.mubr.f32.gmra.mxu0 %v3577
        %v4188 = vpop.f32.mrf.mxu0
        %v4189 = vadd.f32 %v3559, %v4188
        %v4190 = vpop.f32.mrf.mxu0
        %v4191 = vadd.f32 %v3559, %v4190
        %4192 = vmatprep.mubr.f32.mxu0 0.0
        %4193 = vmatmul.mubr.f32.gmra.mxu0 %v3580
        %v4194 = vpop.f32.mrf.mxu0
        %v4195 = vadd.f32 %v3564, %v4194
        %v4196 = vpop.f32.mrf.mxu0
        %v4197 = vadd.f32 %v3564, %v4196
        %4198 = vmatprep.mubr.f32.mxu0 0.0
        %4199 = vmatmul.mubr.f32.gmra.mxu0 %v3583
        %v4200 = vpop.f32.mrf.mxu0
        %v4201 = vadd.f32 %v3569, %v4200
        %v4202 = vpop.f32.mrf.mxu0
        %v4203 = vadd.f32 %v3569, %v4202
        %4204 = vmatprep.mubr.f32.mxu0 0.0
        %4205 = vmatmul.mubr.f32.gmra.mxu0 %v3586
        %v4206 = vpop.f32.mrf.mxu0
        %v4207 = vadd.f32 %v3574, %v4206
        %v4208 = vpop.f32.mrf.mxu0
        %v4209 = vadd.f32 %v3574, %v4208
        %4210 = vdwg.mxu0
        %4211 = vmatprep.subr.mxu0 0.0
        %4212 = vmatpush1.msra.mxu0 0.0
        %4213 = vmatprep.subr.mxu0 0.0
        %4214 = vmatpush1.msra.mxu0 0.0
        %4215 = vmatprep.subr.mxu0 0.0
        %4216 = vmatpush1.msra.mxu0 0.0
        %4217 = vmatprep.subr.mxu0 0.0
        %4218 = vmatpush1.msra.mxu0 0.0
        %4219 = vmatprep.subr.mxu0 0.0
        %4220 = vmatpush1.msra.mxu0 0.0
        %4221 = vmatprep.subr.mxu0 0.0
        %4222 = vmatpush1.msra.mxu0 0.0
        %4223 = vmatprep.subr.mxu0 0.0
        %4224 = vmatpush1.msra.mxu0 0.0
        %4225 = vmatprep.subr.mxu0 0.0
        %4226 = vmatpush1.msra.mxu0 0.0
        %4227 = vmatprep.subr.mxu0 0.0
        %4228 = vmatpush1.msra.mxu0 0.0
        %4229 = vmatprep.subr.mxu0 0.0
        %4230 = vmatpush1.msra.mxu0 0.0
        %4231 = vmatprep.subr.mxu0 0.0
        %4232 = vmatpush1.msra.mxu0 0.0
        %4233 = vmatprep.subr.mxu0 0.0
        %4234 = vmatpush1.msra.mxu0 0.0
        %4235 = vmatprep.subr.mxu0 %v2858
        %4236 = vmatpush1.msra.mxu0 %v2856
        %4237 = vmatprep.subr.mxu0 %v2852
        %4238 = vmatpush1.msra.mxu0 %v2850
        %4239 = vmatprep.subr.mxu0 %v2846
        %4240 = vmatpush1.msra.mxu0 %v2844
        %4241 = vmatprep.subr.mxu0 %v2840
        %4242 = vmatpush1.msra.mxu0 %v2838
        %4243 = vmatprep.subr.mxu0 0.0
        %4244 = vmatpush2.msra.mxu0 0.0
        %4245 = vmatprep.subr.mxu0 0.0
        %4246 = vmatpush2.msra.mxu0 0.0
        %4247 = vmatprep.subr.mxu0 0.0
        %4248 = vmatpush2.msra.mxu0 0.0
        %4249 = vmatprep.subr.mxu0 0.0
        %4250 = vmatpush2.msra.mxu0 0.0
        %4251 = vmatprep.subr.mxu0 0.0
        %4252 = vmatpush2.msra.mxu0 0.0
        %4253 = vmatprep.subr.mxu0 0.0
        %4254 = vmatpush2.msra.mxu0 0.0
        %4255 = vmatprep.subr.mxu0 0.0
        %4256 = vmatpush2.msra.mxu0 0.0
        %4257 = vmatprep.subr.mxu0 0.0
        %4258 = vmatpush2.msra.mxu0 0.0
        %4259 = vmatprep.subr.mxu0 0.0
        %4260 = vmatpush2.msra.mxu0 0.0
        %4261 = vmatprep.subr.mxu0 0.0
        %4262 = vmatpush2.msra.mxu0 0.0
        %4263 = vmatprep.subr.mxu0 0.0
        %4264 = vmatpush2.msra.mxu0 0.0
        %4265 = vmatprep.subr.mxu0 0.0
        %4266 = vmatpush2.msra.mxu0 0.0
        %4267 = vmatprep.subr.mxu0 0.0
        %4268 = vmatpush2.msra.mxu0 0.0
        %4269 = vmatprep.subr.mxu0 0.0
        %4270 = vmatpush2.msra.mxu0 0.0
        %4271 = vmatprep.subr.mxu0 0.0
        %4272 = vmatpush2.msra.mxu0 0.0
        %4273 = vmatprep.subr.mxu0 0.0
        %4274 = vmatpush2.msra.mxu0 0.0
        %4275 = vmatprep.mubr.f32.mxu0 0.0
        %4276 = vmatmul.mubr.f32.gmra.mxu0 %v3577
        %v4277 = vpop.f32.mrf.mxu0
        %v4278 = vadd.f32 %v3559, %v4277
        %v4279 = vpop.f32.mrf.mxu0
        %v4280 = vadd.f32 %v3559, %v4279
        %4281 = vmatprep.mubr.f32.mxu0 0.0
        %4282 = vmatmul.mubr.f32.gmra.mxu0 %v3580
        %v4283 = vpop.f32.mrf.mxu0
        %v4284 = vadd.f32 %v3564, %v4283
        %v4285 = vpop.f32.mrf.mxu0
        %v4286 = vadd.f32 %v3564, %v4285
        %4287 = vmatprep.mubr.f32.mxu0 0.0
        %4288 = vmatmul.mubr.f32.gmra.mxu0 %v3583
        %v4289 = vpop.f32.mrf.mxu0
        %v4290 = vadd.f32 %v3569, %v4289
        %v4291 = vpop.f32.mrf.mxu0
        %v4292 = vadd.f32 %v3569, %v4291
        %4293 = vmatprep.mubr.f32.mxu0 0.0
        %4294 = vmatmul.mubr.f32.gmra.mxu0 %v3586
        %v4295 = vpop.f32.mrf.mxu0
        %v4296 = vadd.f32 %v3574, %v4295
        %v4297 = vpop.f32.mrf.mxu0
        %v4298 = vadd.f32 %v3574, %v4297
        %4299 = vdwg.mxu0
        %v4300 = vmul.f32 %v3655, 0.05
        %v4301 = vmul.f32 %v3657, 0.05
        %v4302 = vmul.f32 %v3744, 0.05
        %v4303 = vmul.f32 %v3746, 0.05
        %v4304 = vmul.f32 %v3833, 0.05
        %v4305 = vmul.f32 %v3835, 0.05
        %v4306 = vmul.f32 %v3922, 0.05
        %v4307 = vmul.f32 %v3924, 0.05
        %v4308 = vmul.f32 %v4011, 0.05
        %v4309 = vmul.f32 %v4013, 0.05
        %v4310 = vmul.f32 %v4100, 0.05
        %v4311 = vmul.f32 %v4102, 0.05
        %v4312 = vmul.f32 %v4189, 0.05
        %v4313 = vmul.f32 %v4191, 0.05
        %v4314 = vmul.f32 %v4278, 0.05
        %v4315 = vmul.f32 %v4280, 0.05
        %v4316 = vmul.f32 %v3661, 0.05
        %v4317 = vmul.f32 %v3663, 0.05
        %v4318 = vmul.f32 %v3750, 0.05
        %v4319 = vmul.f32 %v3752, 0.05
        %v4320 = vmul.f32 %v3839, 0.05
        %v4321 = vmul.f32 %v3841, 0.05
        %v4322 = vmul.f32 %v3928, 0.05
        %v4323 = vmul.f32 %v3930, 0.05
        %v4324 = vmul.f32 %v4017, 0.05
        %v4325 = vmul.f32 %v4019, 0.05
        %v4326 = vmul.f32 %v4106, 0.05
        %v4327 = vmul.f32 %v4108, 0.05
        %v4328 = vmul.f32 %v4195, 0.05
        %v4329 = vmul.f32 %v4197, 0.05
        %v4330 = vmul.f32 %v4284, 0.05
        %v4331 = vmul.f32 %v4286, 0.05
        %v4332 = vmul.f32 %v3667, 0.05
        %v4333 = vmul.f32 %v3669, 0.05
        %v4334 = vmul.f32 %v3756, 0.05
        %v4335 = vmul.f32 %v3758, 0.05
        %v4336 = vmul.f32 %v3845, 0.05
        %v4337 = vmul.f32 %v3847, 0.05
        %v4338 = vmul.f32 %v3934, 0.05
        %v4339 = vmul.f32 %v3936, 0.05
        %v4340 = vmul.f32 %v4023, 0.05
        %v4341 = vmul.f32 %v4025, 0.05
        %v4342 = vmul.f32 %v4112, 0.05
        %v4343 = vmul.f32 %v4114, 0.05
        %v4344 = vmul.f32 %v4201, 0.05
        %v4345 = vmul.f32 %v4203, 0.05
        %v4346 = vmul.f32 %v4290, 0.05
        %v4347 = vmul.f32 %v4292, 0.05
        %v4348 = vmul.f32 %v3673, 0.05
        %v4349 = vmul.f32 %v3675, 0.05
        %v4350 = vmul.f32 %v3762, 0.05
        %v4351 = vmul.f32 %v3764, 0.05
        %v4352 = vmul.f32 %v3851, 0.05
        %v4353 = vmul.f32 %v3853, 0.05
        %v4354 = vmul.f32 %v3940, 0.05
        %v4355 = vmul.f32 %v3942, 0.05
        %v4356 = vmul.f32 %v4029, 0.05
        %v4357 = vmul.f32 %v4031, 0.05
        %v4358 = vmul.f32 %v4118, 0.05
        %v4359 = vmul.f32 %v4120, 0.05
        %v4360 = vmul.f32 %v4207, 0.05
        %v4361 = vmul.f32 %v4209, 0.05
        %v4362 = vmul.f32 %v4296, 0.05
        %v4363 = vmul.f32 %v4298, 0.05
        %v4364 = vmax.f32 %v3655, %v4300
        %v4365 = vmax.f32 %v3657, %v4301
        %v4366 = vmax.f32 %v3744, %v4302
        %v4367 = vmax.f32 %v3746, %v4303
        %v4368 = vmax.f32 %v3833, %v4304
        %v4369 = vmax.f32 %v3835, %v4305
        %v4370 = vmax.f32 %v3922, %v4306
        %v4371 = vmax.f32 %v3924, %v4307
        %v4372 = vmax.f32 %v4011, %v4308
        %v4373 = vmax.f32 %v4013, %v4309
        %v4374 = vmax.f32 %v4100, %v4310
        %v4375 = vmax.f32 %v4102, %v4311
        %v4376 = vmax.f32 %v4189, %v4312
        %v4377 = vmax.f32 %v4191, %v4313
        %v4378 = vmax.f32 %v4278, %v4314
        %v4379 = vmax.f32 %v4280, %v4315
        %v4380 = vmax.f32 %v3661, %v4316
        %v4381 = vmax.f32 %v3663, %v4317
        %v4382 = vmax.f32 %v3750, %v4318
        %v4383 = vmax.f32 %v3752, %v4319
        %v4384 = vmax.f32 %v3839, %v4320
        %v4385 = vmax.f32 %v3841, %v4321
        %v4386 = vmax.f32 %v3928, %v4322
        %v4387 = vmax.f32 %v3930, %v4323
        %v4388 = vmax.f32 %v4017, %v4324
        %v4389 = vmax.f32 %v4019, %v4325
        %v4390 = vmax.f32 %v4106, %v4326
        %v4391 = vmax.f32 %v4108, %v4327
        %v4392 = vmax.f32 %v4195, %v4328
        %v4393 = vmax.f32 %v4197, %v4329
        %v4394 = vmax.f32 %v4284, %v4330
        %v4395 = vmax.f32 %v4286, %v4331
        %v4396 = vmax.f32 %v3667, %v4332
        %v4397 = vmax.f32 %v3669, %v4333
        %v4398 = vmax.f32 %v3756, %v4334
        %v4399 = vmax.f32 %v3758, %v4335
        %v4400 = vmax.f32 %v3845, %v4336
        %v4401 = vmax.f32 %v3847, %v4337
        %v4402 = vmax.f32 %v3934, %v4338
        %v4403 = vmax.f32 %v3936, %v4339
        %v4404 = vmax.f32 %v4023, %v4340
        %v4405 = vmax.f32 %v4025, %v4341
        %v4406 = vmax.f32 %v4112, %v4342
        %v4407 = vmax.f32 %v4114, %v4343
        %v4408 = vmax.f32 %v4201, %v4344
        %v4409 = vmax.f32 %v4203, %v4345
        %v4410 = vmax.f32 %v4290, %v4346
        %v4411 = vmax.f32 %v4292, %v4347
        %v4412 = vmax.f32 %v3673, %v4348
        %v4413 = vmax.f32 %v3675, %v4349
        %v4414 = vmax.f32 %v3762, %v4350
        %v4415 = vmax.f32 %v3764, %v4351
        %v4416 = vmax.f32 %v3851, %v4352
        %v4417 = vmax.f32 %v3853, %v4353
        %v4418 = vmax.f32 %v3940, %v4354
        %v4419 = vmax.f32 %v3942, %v4355
        %v4420 = vmax.f32 %v4029, %v4356
        %v4421 = vmax.f32 %v4031, %v4357
        %v4422 = vmax.f32 %v4118, %v4358
        %v4423 = vmax.f32 %v4120, %v4359
        %v4424 = vmax.f32 %v4207, %v4360
        %v4425 = vmax.f32 %v4209, %v4361
        %v4426 = vmax.f32 %v4296, %v4362
        %v4427 = vmax.f32 %v4298, %v4363
        %v4428 = vld [vmem:[%s5] sm:$0xff]
        %v4429 = vld [vmem:[%s5 + $0x8] sm:$0xff]
        %v4430 = vld [vmem:[%s5 + $0x10] sm:$0xff]
        %v4431 = vld [vmem:[%s5 + $0x18] sm:$0xff]
        %v4432 = vld [vmem:[%s6] sm:$0xff]
        %v4433 = vld [vmem:[%s6 + $0x8] sm:$0xff]
        %v4434 = vld [vmem:[%s6 + $0x10] sm:$0xff]
        %v4435 = vld [vmem:[%s6 + $0x18] sm:$0xff]
        %4437 = vset.pattern.permute.xlu0 0
        %4438 = vperm.xlu0 %4437, %v4432
        %v4439 = vpop.permute.xlu0 %4438
        %4442 = vset.pattern.permute.xlu0 0
        %4443 = vperm.xlu0 %4442, %v4433
        %v4444 = vpop.permute.xlu0 %4443
        %4447 = vset.pattern.permute.xlu0 0
        %4448 = vperm.xlu0 %4447, %v4434
        %v4449 = vpop.permute.xlu0 %4448
        %4452 = vset.pattern.permute.xlu0 0
        %4453 = vperm.xlu0 %4452, %v4435
        %v4454 = vpop.permute.xlu0 %4453
        %v4457 = vsel %vm2900, %v4428, 0
        %v4460 = vsel %vm2900, %v4429, 0
        %v4463 = vsel %vm2900, %v4430, 0
        %v4466 = vsel %vm2900, %v4431, 0
        %4468 = vmatprep.subr.mxu0 0.0
        %4469 = vmatpush1.msra.mxu0 0.0
        %4470 = vmatprep.subr.mxu0 0.0
        %4471 = vmatpush1.msra.mxu0 0.0
        %4472 = vmatprep.subr.mxu0 0.0
        %4473 = vmatpush1.msra.mxu0 0.0
        %4474 = vmatprep.subr.mxu0 0.0
        %4475 = vmatpush1.msra.mxu0 0.0
        %4476 = vmatprep.subr.mxu0 0.0
        %4477 = vmatpush1.msra.mxu0 0.0
        %4478 = vmatprep.subr.mxu0 0.0
        %4479 = vmatpush1.msra.mxu0 0.0
        %4480 = vmatprep.subr.mxu0 0.0
        %4481 = vmatpush1.msra.mxu0 0.0
        %4482 = vmatprep.subr.mxu0 0.0
        %4483 = vmatpush1.msra.mxu0 0.0
        %4484 = vmatprep.subr.mxu0 0.0
        %4485 = vmatpush1.msra.mxu0 0.0
        %4486 = vmatprep.subr.mxu0 0.0
        %4487 = vmatpush1.msra.mxu0 0.0
        %4488 = vmatprep.subr.mxu0 0.0
        %4489 = vmatpush1.msra.mxu0 0.0
        %4490 = vmatprep.subr.mxu0 0.0
        %4491 = vmatpush1.msra.mxu0 0.0
        %4492 = vmatprep.subr.mxu0 %v4413
        %4493 = vmatpush1.msra.mxu0 %v4412
        %4494 = vmatprep.subr.mxu0 %v4397
        %4495 = vmatpush1.msra.mxu0 %v4396
        %4496 = vmatprep.subr.mxu0 %v4381
        %4497 = vmatpush1.msra.mxu0 %v4380
        %4498 = vmatprep.subr.mxu0 %v4365
        %4499 = vmatpush1.msra.mxu0 %v4364
        %4500 = vmatprep.subr.mxu0 0.0
        %4501 = vmatpush2.msra.mxu0 0.0
        %4502 = vmatprep.subr.mxu0 0.0
        %4503 = vmatpush2.msra.mxu0 0.0
        %4504 = vmatprep.subr.mxu0 0.0
        %4505 = vmatpush2.msra.mxu0 0.0
        %4506 = vmatprep.subr.mxu0 0.0
        %4507 = vmatpush2.msra.mxu0 0.0
        %4508 = vmatprep.subr.mxu0 0.0
        %4509 = vmatpush2.msra.mxu0 0.0
        %4510 = vmatprep.subr.mxu0 0.0
        %4511 = vmatpush2.msra.mxu0 0.0
        %4512 = vmatprep.subr.mxu0 0.0
        %4513 = vmatpush2.msra.mxu0 0.0
        %4514 = vmatprep.subr.mxu0 0.0
        %4515 = vmatpush2.msra.mxu0 0.0
        %4516 = vmatprep.subr.mxu0 0.0
        %4517 = vmatpush2.msra.mxu0 0.0
        %4518 = vmatprep.subr.mxu0 0.0
        %4519 = vmatpush2.msra.mxu0 0.0
        %4520 = vmatprep.subr.mxu0 0.0
        %4521 = vmatpush2.msra.mxu0 0.0
        %4522 = vmatprep.subr.mxu0 0.0
        %4523 = vmatpush2.msra.mxu0 0.0
        %4524 = vmatprep.subr.mxu0 0.0
        %4525 = vmatpush2.msra.mxu0 0.0
        %4526 = vmatprep.subr.mxu0 0.0
        %4527 = vmatpush2.msra.mxu0 0.0
        %4528 = vmatprep.subr.mxu0 0.0
        %4529 = vmatpush2.msra.mxu0 0.0
        %4530 = vmatprep.subr.mxu0 0.0
        %4531 = vmatpush2.msra.mxu0 0.0
        %4532 = vmatprep.mubr.f32.mxu0 0.0
        %4533 = vmatmul.mubr.f32.gmra.mxu0 %v4457
        %v4534 = vpop.f32.mrf.mxu0
        %v4535 = vadd.f32 %v4439, %v4534
        %v4536 = vpop.f32.mrf.mxu0
        %v4537 = vadd.f32 %v4439, %v4536
        %4538 = vmatprep.mubr.f32.mxu0 0.0
        %4539 = vmatmul.mubr.f32.gmra.mxu0 %v4460
        %v4540 = vpop.f32.mrf.mxu0
        %v4541 = vadd.f32 %v4444, %v4540
        %v4542 = vpop.f32.mrf.mxu0
        %v4543 = vadd.f32 %v4444, %v4542
        %4544 = vmatprep.mubr.f32.mxu0 0.0
        %4545 = vmatmul.mubr.f32.gmra.mxu0 %v4463
        %v4546 = vpop.f32.mrf.mxu0
        %v4547 = vadd.f32 %v4449, %v4546
        %v4548 = vpop.f32.mrf.mxu0
        %v4549 = vadd.f32 %v4449, %v4548
        %4550 = vmatprep.mubr.f32.mxu0 0.0
        %4551 = vmatmul.mubr.f32.gmra.mxu0 %v4466
        %v4552 = vpop.f32.mrf.mxu0
        %v4553 = vadd.f32 %v4454, %v4552
        %v4554 = vpop.f32.mrf.mxu0
        %v4555 = vadd.f32 %v4454, %v4554
        %4556 = vdwg.mxu0
        %4557 = vmatprep.subr.mxu0 0.0
        %4558 = vmatpush1.msra.mxu0 0.0
        %4559 = vmatprep.subr.mxu0 0.0
        %4560 = vmatpush1.msra.mxu0 0.0
        %4561 = vmatprep.subr.mxu0 0.0
        %4562 = vmatpush1.msra.mxu0 0.0
        %4563 = vmatprep.subr.mxu0 0.0
        %4564 = vmatpush1.msra.mxu0 0.0
        %4565 = vmatprep.subr.mxu0 0.0
        %4566 = vmatpush1.msra.mxu0 0.0
        %4567 = vmatprep.subr.mxu0 0.0
        %4568 = vmatpush1.msra.mxu0 0.0
        %4569 = vmatprep.subr.mxu0 0.0
        %4570 = vmatpush1.msra.mxu0 0.0
        %4571 = vmatprep.subr.mxu0 0.0
        %4572 = vmatpush1.msra.mxu0 0.0
        %4573 = vmatprep.subr.mxu0 0.0
        %4574 = vmatpush1.msra.mxu0 0.0
        %4575 = vmatprep.subr.mxu0 0.0
        %4576 = vmatpush1.msra.mxu0 0.0
        %4577 = vmatprep.subr.mxu0 0.0
        %4578 = vmatpush1.msra.mxu0 0.0
        %4579 = vmatprep.subr.mxu0 0.0
        %4580 = vmatpush1.msra.mxu0 0.0
        %4581 = vmatprep.subr.mxu0 %v4415
        %4582 = vmatpush1.msra.mxu0 %v4414
        %4583 = vmatprep.subr.mxu0 %v4399
        %4584 = vmatpush1.msra.mxu0 %v4398
        %4585 = vmatprep.subr.mxu0 %v4383
        %4586 = vmatpush1.msra.mxu0 %v4382
        %4587 = vmatprep.subr.mxu0 %v4367
        %4588 = vmatpush1.msra.mxu0 %v4366
        %4589 = vmatprep.subr.mxu0 0.0
        %4590 = vmatpush2.msra.mxu0 0.0
        %4591 = vmatprep.subr.mxu0 0.0
        %4592 = vmatpush2.msra.mxu0 0.0
        %4593 = vmatprep.subr.mxu0 0.0
        %4594 = vmatpush2.msra.mxu0 0.0
        %4595 = vmatprep.subr.mxu0 0.0
        %4596 = vmatpush2.msra.mxu0 0.0
        %4597 = vmatprep.subr.mxu0 0.0
        %4598 = vmatpush2.msra.mxu0 0.0
        %4599 = vmatprep.subr.mxu0 0.0
        %4600 = vmatpush2.msra.mxu0 0.0
        %4601 = vmatprep.subr.mxu0 0.0
        %4602 = vmatpush2.msra.mxu0 0.0
        %4603 = vmatprep.subr.mxu0 0.0
        %4604 = vmatpush2.msra.mxu0 0.0
        %4605 = vmatprep.subr.mxu0 0.0
        %4606 = vmatpush2.msra.mxu0 0.0
        %4607 = vmatprep.subr.mxu0 0.0
        %4608 = vmatpush2.msra.mxu0 0.0
        %4609 = vmatprep.subr.mxu0 0.0
        %4610 = vmatpush2.msra.mxu0 0.0
        %4611 = vmatprep.subr.mxu0 0.0
        %4612 = vmatpush2.msra.mxu0 0.0
        %4613 = vmatprep.subr.mxu0 0.0
        %4614 = vmatpush2.msra.mxu0 0.0
        %4615 = vmatprep.subr.mxu0 0.0
        %4616 = vmatpush2.msra.mxu0 0.0
        %4617 = vmatprep.subr.mxu0 0.0
        %4618 = vmatpush2.msra.mxu0 0.0
        %4619 = vmatprep.subr.mxu0 0.0
        %4620 = vmatpush2.msra.mxu0 0.0
        %4621 = vmatprep.mubr.f32.mxu0 0.0
        %4622 = vmatmul.mubr.f32.gmra.mxu0 %v4457
        %v4623 = vpop.f32.mrf.mxu0
        %v4624 = vadd.f32 %v4439, %v4623
        %v4625 = vpop.f32.mrf.mxu0
        %v4626 = vadd.f32 %v4439, %v4625
        %4627 = vmatprep.mubr.f32.mxu0 0.0
        %4628 = vmatmul.mubr.f32.gmra.mxu0 %v4460
        %v4629 = vpop.f32.mrf.mxu0
        %v4630 = vadd.f32 %v4444, %v4629
        %v4631 = vpop.f32.mrf.mxu0
        %v4632 = vadd.f32 %v4444, %v4631
        %4633 = vmatprep.mubr.f32.mxu0 0.0
        %4634 = vmatmul.mubr.f32.gmra.mxu0 %v4463
        %v4635 = vpop.f32.mrf.mxu0
        %v4636 = vadd.f32 %v4449, %v4635
        %v4637 = vpop.f32.mrf.mxu0
        %v4638 = vadd.f32 %v4449, %v4637
        %4639 = vmatprep.mubr.f32.mxu0 0.0
        %4640 = vmatmul.mubr.f32.gmra.mxu0 %v4466
        %v4641 = vpop.f32.mrf.mxu0
        %v4642 = vadd.f32 %v4454, %v4641
        %v4643 = vpop.f32.mrf.mxu0
        %v4644 = vadd.f32 %v4454, %v4643
        %4645 = vdwg.mxu0
        %4646 = vmatprep.subr.mxu0 0.0
        %4647 = vmatpush1.msra.mxu0 0.0
        %4648 = vmatprep.subr.mxu0 0.0
        %4649 = vmatpush1.msra.mxu0 0.0
        %4650 = vmatprep.subr.mxu0 0.0
        %4651 = vmatpush1.msra.mxu0 0.0
        %4652 = vmatprep.subr.mxu0 0.0
        %4653 = vmatpush1.msra.mxu0 0.0
        %4654 = vmatprep.subr.mxu0 0.0
        %4655 = vmatpush1.msra.mxu0 0.0
        %4656 = vmatprep.subr.mxu0 0.0
        %4657 = vmatpush1.msra.mxu0 0.0
        %4658 = vmatprep.subr.mxu0 0.0
        %4659 = vmatpush1.msra.mxu0 0.0
        %4660 = vmatprep.subr.mxu0 0.0
        %4661 = vmatpush1.msra.mxu0 0.0
        %4662 = vmatprep.subr.mxu0 0.0
        %4663 = vmatpush1.msra.mxu0 0.0
        %4664 = vmatprep.subr.mxu0 0.0
        %4665 = vmatpush1.msra.mxu0 0.0
        %4666 = vmatprep.subr.mxu0 0.0
        %4667 = vmatpush1.msra.mxu0 0.0
        %4668 = vmatprep.subr.mxu0 0.0
        %4669 = vmatpush1.msra.mxu0 0.0
        %4670 = vmatprep.subr.mxu0 %v4417
        %4671 = vmatpush1.msra.mxu0 %v4416
        %4672 = vmatprep.subr.mxu0 %v4401
        %4673 = vmatpush1.msra.mxu0 %v4400
        %4674 = vmatprep.subr.mxu0 %v4385
        %4675 = vmatpush1.msra.mxu0 %v4384
        %4676 = vmatprep.subr.mxu0 %v4369
        %4677 = vmatpush1.msra.mxu0 %v4368
        %4678 = vmatprep.subr.mxu0 0.0
        %4679 = vmatpush2.msra.mxu0 0.0
        %4680 = vmatprep.subr.mxu0 0.0
        %4681 = vmatpush2.msra.mxu0 0.0
        %4682 = vmatprep.subr.mxu0 0.0
        %4683 = vmatpush2.msra.mxu0 0.0
        %4684 = vmatprep.subr.mxu0 0.0
        %4685 = vmatpush2.msra.mxu0 0.0
        %4686 = vmatprep.subr.mxu0 0.0
        %4687 = vmatpush2.msra.mxu0 0.0
        %4688 = vmatprep.subr.mxu0 0.0
        %4689 = vmatpush2.msra.mxu0 0.0
        %4690 = vmatprep.subr.mxu0 0.0
        %4691 = vmatpush2.msra.mxu0 0.0
        %4692 = vmatprep.subr.mxu0 0.0
        %4693 = vmatpush2.msra.mxu0 0.0
        %4694 = vmatprep.subr.mxu0 0.0
        %4695 = vmatpush2.msra.mxu0 0.0
        %4696 = vmatprep.subr.mxu0 0.0
        %4697 = vmatpush2.msra.mxu0 0.0
        %4698 = vmatprep.subr.mxu0 0.0
        %4699 = vmatpush2.msra.mxu0 0.0
        %4700 = vmatprep.subr.mxu0 0.0
        %4701 = vmatpush2.msra.mxu0 0.0
        %4702 = vmatprep.subr.mxu0 0.0
        %4703 = vmatpush2.msra.mxu0 0.0
        %4704 = vmatprep.subr.mxu0 0.0
        %4705 = vmatpush2.msra.mxu0 0.0
        %4706 = vmatprep.subr.mxu0 0.0
        %4707 = vmatpush2.msra.mxu0 0.0
        %4708 = vmatprep.subr.mxu0 0.0
        %4709 = vmatpush2.msra.mxu0 0.0
        %4710 = vmatprep.mubr.f32.mxu0 0.0
        %4711 = vmatmul.mubr.f32.gmra.mxu0 %v4457
        %v4712 = vpop.f32.mrf.mxu0
        %v4713 = vadd.f32 %v4439, %v4712
        %v4714 = vpop.f32.mrf.mxu0
        %v4715 = vadd.f32 %v4439, %v4714
        %4716 = vmatprep.mubr.f32.mxu0 0.0
        %4717 = vmatmul.mubr.f32.gmra.mxu0 %v4460
        %v4718 = vpop.f32.mrf.mxu0
        %v4719 = vadd.f32 %v4444, %v4718
        %v4720 = vpop.f32.mrf.mxu0
        %v4721 = vadd.f32 %v4444, %v4720
        %4722 = vmatprep.mubr.f32.mxu0 0.0
        %4723 = vmatmul.mubr.f32.gmra.mxu0 %v4463
        %v4724 = vpop.f32.mrf.mxu0
        %v4725 = vadd.f32 %v4449, %v4724
        %v4726 = vpop.f32.mrf.mxu0
        %v4727 = vadd.f32 %v4449, %v4726
        %4728 = vmatprep.mubr.f32.mxu0 0.0
        %4729 = vmatmul.mubr.f32.gmra.mxu0 %v4466
        %v4730 = vpop.f32.mrf.mxu0
        %v4731 = vadd.f32 %v4454, %v4730
        %v4732 = vpop.f32.mrf.mxu0
        %v4733 = vadd.f32 %v4454, %v4732
        %4734 = vdwg.mxu0
        %4735 = vmatprep.subr.mxu0 0.0
        %4736 = vmatpush1.msra.mxu0 0.0
        %4737 = vmatprep.subr.mxu0 0.0
        %4738 = vmatpush1.msra.mxu0 0.0
        %4739 = vmatprep.subr.mxu0 0.0
        %4740 = vmatpush1.msra.mxu0 0.0
        %4741 = vmatprep.subr.mxu0 0.0
        %4742 = vmatpush1.msra.mxu0 0.0
        %4743 = vmatprep.subr.mxu0 0.0
        %4744 = vmatpush1.msra.mxu0 0.0
        %4745 = vmatprep.subr.mxu0 0.0
        %4746 = vmatpush1.msra.mxu0 0.0
        %4747 = vmatprep.subr.mxu0 0.0
        %4748 = vmatpush1.msra.mxu0 0.0
        %4749 = vmatprep.subr.mxu0 0.0
        %4750 = vmatpush1.msra.mxu0 0.0
        %4751 = vmatprep.subr.mxu0 0.0
        %4752 = vmatpush1.msra.mxu0 0.0
        %4753 = vmatprep.subr.mxu0 0.0
        %4754 = vmatpush1.msra.mxu0 0.0
        %4755 = vmatprep.subr.mxu0 0.0
        %4756 = vmatpush1.msra.mxu0 0.0
        %4757 = vmatprep.subr.mxu0 0.0
        %4758 = vmatpush1.msra.mxu0 0.0
        %4759 = vmatprep.subr.mxu0 %v4419
        %4760 = vmatpush1.msra.mxu0 %v4418
        %4761 = vmatprep.subr.mxu0 %v4403
        %4762 = vmatpush1.msra.mxu0 %v4402
        %4763 = vmatprep.subr.mxu0 %v4387
        %4764 = vmatpush1.msra.mxu0 %v4386
        %4765 = vmatprep.subr.mxu0 %v4371
        %4766 = vmatpush1.msra.mxu0 %v4370
        %4767 = vmatprep.subr.mxu0 0.0
        %4768 = vmatpush2.msra.mxu0 0.0
        %4769 = vmatprep.subr.mxu0 0.0
        %4770 = vmatpush2.msra.mxu0 0.0
        %4771 = vmatprep.subr.mxu0 0.0
        %4772 = vmatpush2.msra.mxu0 0.0
        %4773 = vmatprep.subr.mxu0 0.0
        %4774 = vmatpush2.msra.mxu0 0.0
        %4775 = vmatprep.subr.mxu0 0.0
        %4776 = vmatpush2.msra.mxu0 0.0
        %4777 = vmatprep.subr.mxu0 0.0
        %4778 = vmatpush2.msra.mxu0 0.0
        %4779 = vmatprep.subr.mxu0 0.0
        %4780 = vmatpush2.msra.mxu0 0.0
        %4781 = vmatprep.subr.mxu0 0.0
        %4782 = vmatpush2.msra.mxu0 0.0
        %4783 = vmatprep.subr.mxu0 0.0
        %4784 = vmatpush2.msra.mxu0 0.0
        %4785 = vmatprep.subr.mxu0 0.0
        %4786 = vmatpush2.msra.mxu0 0.0
        %4787 = vmatprep.subr.mxu0 0.0
        %4788 = vmatpush2.msra.mxu0 0.0
        %4789 = vmatprep.subr.mxu0 0.0
        %4790 = vmatpush2.msra.mxu0 0.0
        %4791 = vmatprep.subr.mxu0 0.0
        %4792 = vmatpush2.msra.mxu0 0.0
        %4793 = vmatprep.subr.mxu0 0.0
        %4794 = vmatpush2.msra.mxu0 0.0
        %4795 = vmatprep.subr.mxu0 0.0
        %4796 = vmatpush2.msra.mxu0 0.0
        %4797 = vmatprep.subr.mxu0 0.0
        %4798 = vmatpush2.msra.mxu0 0.0
        %4799 = vmatprep.mubr.f32.mxu0 0.0
        %4800 = vmatmul.mubr.f32.gmra.mxu0 %v4457
        %v4801 = vpop.f32.mrf.mxu0
        %v4802 = vadd.f32 %v4439, %v4801
        %v4803 = vpop.f32.mrf.mxu0
        %v4804 = vadd.f32 %v4439, %v4803
        %4805 = vmatprep.mubr.f32.mxu0 0.0
        %4806 = vmatmul.mubr.f32.gmra.mxu0 %v4460
        %v4807 = vpop.f32.mrf.mxu0
        %v4808 = vadd.f32 %v4444, %v4807
        %v4809 = vpop.f32.mrf.mxu0
        %v4810 = vadd.f32 %v4444, %v4809
        %4811 = vmatprep.mubr.f32.mxu0 0.0
        %4812 = vmatmul.mubr.f32.gmra.mxu0 %v4463
        %v4813 = vpop.f32.mrf.mxu0
        %v4814 = vadd.f32 %v4449, %v4813
        %v4815 = vpop.f32.mrf.mxu0
        %v4816 = vadd.f32 %v4449, %v4815
        %4817 = vmatprep.mubr.f32.mxu0 0.0
        %4818 = vmatmul.mubr.f32.gmra.mxu0 %v4466
        %v4819 = vpop.f32.mrf.mxu0
        %v4820 = vadd.f32 %v4454, %v4819
        %v4821 = vpop.f32.mrf.mxu0
        %v4822 = vadd.f32 %v4454, %v4821
        %4823 = vdwg.mxu0
        %4824 = vmatprep.subr.mxu0 0.0
        %4825 = vmatpush1.msra.mxu0 0.0
        %4826 = vmatprep.subr.mxu0 0.0
        %4827 = vmatpush1.msra.mxu0 0.0
        %4828 = vmatprep.subr.mxu0 0.0
        %4829 = vmatpush1.msra.mxu0 0.0
        %4830 = vmatprep.subr.mxu0 0.0
        %4831 = vmatpush1.msra.mxu0 0.0
        %4832 = vmatprep.subr.mxu0 0.0
        %4833 = vmatpush1.msra.mxu0 0.0
        %4834 = vmatprep.subr.mxu0 0.0
        %4835 = vmatpush1.msra.mxu0 0.0
        %4836 = vmatprep.subr.mxu0 0.0
        %4837 = vmatpush1.msra.mxu0 0.0
        %4838 = vmatprep.subr.mxu0 0.0
        %4839 = vmatpush1.msra.mxu0 0.0
        %4840 = vmatprep.subr.mxu0 0.0
        %4841 = vmatpush1.msra.mxu0 0.0
        %4842 = vmatprep.subr.mxu0 0.0
        %4843 = vmatpush1.msra.mxu0 0.0
        %4844 = vmatprep.subr.mxu0 0.0
        %4845 = vmatpush1.msra.mxu0 0.0
        %4846 = vmatprep.subr.mxu0 0.0
        %4847 = vmatpush1.msra.mxu0 0.0
        %4848 = vmatprep.subr.mxu0 %v4421
        %4849 = vmatpush1.msra.mxu0 %v4420
        %4850 = vmatprep.subr.mxu0 %v4405
        %4851 = vmatpush1.msra.mxu0 %v4404
        %4852 = vmatprep.subr.mxu0 %v4389
        %4853 = vmatpush1.msra.mxu0 %v4388
        %4854 = vmatprep.subr.mxu0 %v4373
        %4855 = vmatpush1.msra.mxu0 %v4372
        %4856 = vmatprep.subr.mxu0 0.0
        %4857 = vmatpush2.msra.mxu0 0.0
        %4858 = vmatprep.subr.mxu0 0.0
        %4859 = vmatpush2.msra.mxu0 0.0
        %4860 = vmatprep.subr.mxu0 0.0
        %4861 = vmatpush2.msra.mxu0 0.0
        %4862 = vmatprep.subr.mxu0 0.0
        %4863 = vmatpush2.msra.mxu0 0.0
        %4864 = vmatprep.subr.mxu0 0.0
        %4865 = vmatpush2.msra.mxu0 0.0
        %4866 = vmatprep.subr.mxu0 0.0
        %4867 = vmatpush2.msra.mxu0 0.0
        %4868 = vmatprep.subr.mxu0 0.0
        %4869 = vmatpush2.msra.mxu0 0.0
        %4870 = vmatprep.subr.mxu0 0.0
        %4871 = vmatpush2.msra.mxu0 0.0
        %4872 = vmatprep.subr.mxu0 0.0
        %4873 = vmatpush2.msra.mxu0 0.0
        %4874 = vmatprep.subr.mxu0 0.0
        %4875 = vmatpush2.msra.mxu0 0.0
        %4876 = vmatprep.subr.mxu0 0.0
        %4877 = vmatpush2.msra.mxu0 0.0
        %4878 = vmatprep.subr.mxu0 0.0
        %4879 = vmatpush2.msra.mxu0 0.0
        %4880 = vmatprep.subr.mxu0 0.0
        %4881 = vmatpush2.msra.mxu0 0.0
        %4882 = vmatprep.subr.mxu0 0.0
        %4883 = vmatpush2.msra.mxu0 0.0
        %4884 = vmatprep.subr.mxu0 0.0
        %4885 = vmatpush2.msra.mxu0 0.0
        %4886 = vmatprep.subr.mxu0 0.0
        %4887 = vmatpush2.msra.mxu0 0.0
        %4888 = vmatprep.mubr.f32.mxu0 0.0
        %4889 = vmatmul.mubr.f32.gmra.mxu0 %v4457
        %v4890 = vpop.f32.mrf.mxu0
        %v4891 = vadd.f32 %v4439, %v4890
        %v4892 = vpop.f32.mrf.mxu0
        %v4893 = vadd.f32 %v4439, %v4892
        %4894 = vmatprep.mubr.f32.mxu0 0.0
        %4895 = vmatmul.mubr.f32.gmra.mxu0 %v4460
        %v4896 = vpop.f32.mrf.mxu0
        %v4897 = vadd.f32 %v4444, %v4896
        %v4898 = vpop.f32.mrf.mxu0
        %v4899 = vadd.f32 %v4444, %v4898
        %4900 = vmatprep.mubr.f32.mxu0 0.0
        %4901 = vmatmul.mubr.f32.gmra.mxu0 %v4463
        %v4902 = vpop.f32.mrf.mxu0
        %v4903 = vadd.f32 %v4449, %v4902
        %v4904 = vpop.f32.mrf.mxu0
        %v4905 = vadd.f32 %v4449, %v4904
        %4906 = vmatprep.mubr.f32.mxu0 0.0
        %4907 = vmatmul.mubr.f32.gmra.mxu0 %v4466
        %v4908 = vpop.f32.mrf.mxu0
        %v4909 = vadd.f32 %v4454, %v4908
        %v4910 = vpop.f32.mrf.mxu0
        %v4911 = vadd.f32 %v4454, %v4910
        %4912 = vdwg.mxu0
        %4913 = vmatprep.subr.mxu0 0.0
        %4914 = vmatpush1.msra.mxu0 0.0
        %4915 = vmatprep.subr.mxu0 0.0
        %4916 = vmatpush1.msra.mxu0 0.0
        %4917 = vmatprep.subr.mxu0 0.0
        %4918 = vmatpush1.msra.mxu0 0.0
        %4919 = vmatprep.subr.mxu0 0.0
        %4920 = vmatpush1.msra.mxu0 0.0
        %4921 = vmatprep.subr.mxu0 0.0
        %4922 = vmatpush1.msra.mxu0 0.0
        %4923 = vmatprep.subr.mxu0 0.0
        %4924 = vmatpush1.msra.mxu0 0.0
        %4925 = vmatprep.subr.mxu0 0.0
        %4926 = vmatpush1.msra.mxu0 0.0
        %4927 = vmatprep.subr.mxu0 0.0
        %4928 = vmatpush1.msra.mxu0 0.0
        %4929 = vmatprep.subr.mxu0 0.0
        %4930 = vmatpush1.msra.mxu0 0.0
        %4931 = vmatprep.subr.mxu0 0.0
        %4932 = vmatpush1.msra.mxu0 0.0
        %4933 = vmatprep.subr.mxu0 0.0
        %4934 = vmatpush1.msra.mxu0 0.0
        %4935 = vmatprep.subr.mxu0 0.0
        %4936 = vmatpush1.msra.mxu0 0.0
        %4937 = vmatprep.subr.mxu0 %v4423
        %4938 = vmatpush1.msra.mxu0 %v4422
        %4939 = vmatprep.subr.mxu0 %v4407
        %4940 = vmatpush1.msra.mxu0 %v4406
        %4941 = vmatprep.subr.mxu0 %v4391
        %4942 = vmatpush1.msra.mxu0 %v4390
        %4943 = vmatprep.subr.mxu0 %v4375
        %4944 = vmatpush1.msra.mxu0 %v4374
        %4945 = vmatprep.subr.mxu0 0.0
        %4946 = vmatpush2.msra.mxu0 0.0
        %4947 = vmatprep.subr.mxu0 0.0
        %4948 = vmatpush2.msra.mxu0 0.0
        %4949 = vmatprep.subr.mxu0 0.0
        %4950 = vmatpush2.msra.mxu0 0.0
        %4951 = vmatprep.subr.mxu0 0.0
        %4952 = vmatpush2.msra.mxu0 0.0
        %4953 = vmatprep.subr.mxu0 0.0
        %4954 = vmatpush2.msra.mxu0 0.0
        %4955 = vmatprep.subr.mxu0 0.0
        %4956 = vmatpush2.msra.mxu0 0.0
        %4957 = vmatprep.subr.mxu0 0.0
        %4958 = vmatpush2.msra.mxu0 0.0
        %4959 = vmatprep.subr.mxu0 0.0
        %4960 = vmatpush2.msra.mxu0 0.0
        %4961 = vmatprep.subr.mxu0 0.0
        %4962 = vmatpush2.msra.mxu0 0.0
        %4963 = vmatprep.subr.mxu0 0.0
        %4964 = vmatpush2.msra.mxu0 0.0
        %4965 = vmatprep.subr.mxu0 0.0
        %4966 = vmatpush2.msra.mxu0 0.0
        %4967 = vmatprep.subr.mxu0 0.0
        %4968 = vmatpush2.msra.mxu0 0.0
        %4969 = vmatprep.subr.mxu0 0.0
        %4970 = vmatpush2.msra.mxu0 0.0
        %4971 = vmatprep.subr.mxu0 0.0
        %4972 = vmatpush2.msra.mxu0 0.0
        %4973 = vmatprep.subr.mxu0 0.0
        %4974 = vmatpush2.msra.mxu0 0.0
        %4975 = vmatprep.subr.mxu0 0.0
        %4976 = vmatpush2.msra.mxu0 0.0
        %4977 = vmatprep.mubr.f32.mxu0 0.0
        %4978 = vmatmul.mubr.f32.gmra.mxu0 %v4457
        %v4979 = vpop.f32.mrf.mxu0
        %v4980 = vadd.f32 %v4439, %v4979
        %v4981 = vpop.f32.mrf.mxu0
        %v4982 = vadd.f32 %v4439, %v4981
        %4983 = vmatprep.mubr.f32.mxu0 0.0
        %4984 = vmatmul.mubr.f32.gmra.mxu0 %v4460
        %v4985 = vpop.f32.mrf.mxu0
        %v4986 = vadd.f32 %v4444, %v4985
        %v4987 = vpop.f32.mrf.mxu0
        %v4988 = vadd.f32 %v4444, %v4987
        %4989 = vmatprep.mubr.f32.mxu0 0.0
        %4990 = vmatmul.mubr.f32.gmra.mxu0 %v4463
        %v4991 = vpop.f32.mrf.mxu0
        %v4992 = vadd.f32 %v4449, %v4991
        %v4993 = vpop.f32.mrf.mxu0
        %v4994 = vadd.f32 %v4449, %v4993
        %4995 = vmatprep.mubr.f32.mxu0 0.0
        %4996 = vmatmul.mubr.f32.gmra.mxu0 %v4466
        %v4997 = vpop.f32.mrf.mxu0
        %v4998 = vadd.f32 %v4454, %v4997
        %v4999 = vpop.f32.mrf.mxu0
        %v5000 = vadd.f32 %v4454, %v4999
        %5001 = vdwg.mxu0
        %5002 = vmatprep.subr.mxu0 0.0
        %5003 = vmatpush1.msra.mxu0 0.0
        %5004 = vmatprep.subr.mxu0 0.0
        %5005 = vmatpush1.msra.mxu0 0.0
        %5006 = vmatprep.subr.mxu0 0.0
        %5007 = vmatpush1.msra.mxu0 0.0
        %5008 = vmatprep.subr.mxu0 0.0
        %5009 = vmatpush1.msra.mxu0 0.0
        %5010 = vmatprep.subr.mxu0 0.0
        %5011 = vmatpush1.msra.mxu0 0.0
        %5012 = vmatprep.subr.mxu0 0.0
        %5013 = vmatpush1.msra.mxu0 0.0
        %5014 = vmatprep.subr.mxu0 0.0
        %5015 = vmatpush1.msra.mxu0 0.0
        %5016 = vmatprep.subr.mxu0 0.0
        %5017 = vmatpush1.msra.mxu0 0.0
        %5018 = vmatprep.subr.mxu0 0.0
        %5019 = vmatpush1.msra.mxu0 0.0
        %5020 = vmatprep.subr.mxu0 0.0
        %5021 = vmatpush1.msra.mxu0 0.0
        %5022 = vmatprep.subr.mxu0 0.0
        %5023 = vmatpush1.msra.mxu0 0.0
        %5024 = vmatprep.subr.mxu0 0.0
        %5025 = vmatpush1.msra.mxu0 0.0
        %5026 = vmatprep.subr.mxu0 %v4425
        %5027 = vmatpush1.msra.mxu0 %v4424
        %5028 = vmatprep.subr.mxu0 %v4409
        %5029 = vmatpush1.msra.mxu0 %v4408
        %5030 = vmatprep.subr.mxu0 %v4393
        %5031 = vmatpush1.msra.mxu0 %v4392
        %5032 = vmatprep.subr.mxu0 %v4377
        %5033 = vmatpush1.msra.mxu0 %v4376
        %5034 = vmatprep.subr.mxu0 0.0
        %5035 = vmatpush2.msra.mxu0 0.0
        %5036 = vmatprep.subr.mxu0 0.0
        %5037 = vmatpush2.msra.mxu0 0.0
        %5038 = vmatprep.subr.mxu0 0.0
        %5039 = vmatpush2.msra.mxu0 0.0
        %5040 = vmatprep.subr.mxu0 0.0
        %5041 = vmatpush2.msra.mxu0 0.0
        %5042 = vmatprep.subr.mxu0 0.0
        %5043 = vmatpush2.msra.mxu0 0.0
        %5044 = vmatprep.subr.mxu0 0.0
        %5045 = vmatpush2.msra.mxu0 0.0
        %5046 = vmatprep.subr.mxu0 0.0
        %5047 = vmatpush2.msra.mxu0 0.0
        %5048 = vmatprep.subr.mxu0 0.0
        %5049 = vmatpush2.msra.mxu0 0.0
        %5050 = vmatprep.subr.mxu0 0.0
        %5051 = vmatpush2.msra.mxu0 0.0
        %5052 = vmatprep.subr.mxu0 0.0
        %5053 = vmatpush2.msra.mxu0 0.0
        %5054 = vmatprep.subr.mxu0 0.0
        %5055 = vmatpush2.msra.mxu0 0.0
        %5056 = vmatprep.subr.mxu0 0.0
        %5057 = vmatpush2.msra.mxu0 0.0
        %5058 = vmatprep.subr.mxu0 0.0
        %5059 = vmatpush2.msra.mxu0 0.0
        %5060 = vmatprep.subr.mxu0 0.0
        %5061 = vmatpush2.msra.mxu0 0.0
        %5062 = vmatprep.subr.mxu0 0.0
        %5063 = vmatpush2.msra.mxu0 0.0
        %5064 = vmatprep.subr.mxu0 0.0
        %5065 = vmatpush2.msra.mxu0 0.0
        %5066 = vmatprep.mubr.f32.mxu0 0.0
        %5067 = vmatmul.mubr.f32.gmra.mxu0 %v4457
        %v5068 = vpop.f32.mrf.mxu0
        %v5069 = vadd.f32 %v4439, %v5068
        %v5070 = vpop.f32.mrf.mxu0
        %v5071 = vadd.f32 %v4439, %v5070
        %5072 = vmatprep.mubr.f32.mxu0 0.0
        %5073 = vmatmul.mubr.f32.gmra.mxu0 %v4460
        %v5074 = vpop.f32.mrf.mxu0
        %v5075 = vadd.f32 %v4444, %v5074
        %v5076 = vpop.f32.mrf.mxu0
        %v5077 = vadd.f32 %v4444, %v5076
        %5078 = vmatprep.mubr.f32.mxu0 0.0
        %5079 = vmatmul.mubr.f32.gmra.mxu0 %v4463
        %v5080 = vpop.f32.mrf.mxu0
        %v5081 = vadd.f32 %v4449, %v5080
        %v5082 = vpop.f32.mrf.mxu0
        %v5083 = vadd.f32 %v4449, %v5082
        %5084 = vmatprep.mubr.f32.mxu0 0.0
        %5085 = vmatmul.mubr.f32.gmra.mxu0 %v4466
        %v5086 = vpop.f32.mrf.mxu0
        %v5087 = vadd.f32 %v4454, %v5086
        %v5088 = vpop.f32.mrf.mxu0
        %v5089 = vadd.f32 %v4454, %v5088
        %5090 = vdwg.mxu0
        %5091 = vmatprep.subr.mxu0 0.0
        %5092 = vmatpush1.msra.mxu0 0.0
        %5093 = vmatprep.subr.mxu0 0.0
        %5094 = vmatpush1.msra.mxu0 0.0
        %5095 = vmatprep.subr.mxu0 0.0
        %5096 = vmatpush1.msra.mxu0 0.0
        %5097 = vmatprep.subr.mxu0 0.0
        %5098 = vmatpush1.msra.mxu0 0.0
        %5099 = vmatprep.subr.mxu0 0.0
        %5100 = vmatpush1.msra.mxu0 0.0
        %5101 = vmatprep.subr.mxu0 0.0
        %5102 = vmatpush1.msra.mxu0 0.0
        %5103 = vmatprep.subr.mxu0 0.0
        %5104 = vmatpush1.msra.mxu0 0.0
        %5105 = vmatprep.subr.mxu0 0.0
        %5106 = vmatpush1.msra.mxu0 0.0
        %5107 = vmatprep.subr.mxu0 0.0
        %5108 = vmatpush1.msra.mxu0 0.0
        %5109 = vmatprep.subr.mxu0 0.0
        %5110 = vmatpush1.msra.mxu0 0.0
        %5111 = vmatprep.subr.mxu0 0.0
        %5112 = vmatpush1.msra.mxu0 0.0
        %5113 = vmatprep.subr.mxu0 0.0
        %5114 = vmatpush1.msra.mxu0 0.0
        %5115 = vmatprep.subr.mxu0 %v4427
        %5116 = vmatpush1.msra.mxu0 %v4426
        %5117 = vmatprep.subr.mxu0 %v4411
        %5118 = vmatpush1.msra.mxu0 %v4410
        %5119 = vmatprep.subr.mxu0 %v4395
        %5120 = vmatpush1.msra.mxu0 %v4394
        %5121 = vmatprep.subr.mxu0 %v4379
        %5122 = vmatpush1.msra.mxu0 %v4378
        %5123 = vmatprep.subr.mxu0 0.0
        %5124 = vmatpush2.msra.mxu0 0.0
        %5125 = vmatprep.subr.mxu0 0.0
        %5126 = vmatpush2.msra.mxu0 0.0
        %5127 = vmatprep.subr.mxu0 0.0
        %5128 = vmatpush2.msra.mxu0 0.0
        %5129 = vmatprep.subr.mxu0 0.0
        %5130 = vmatpush2.msra.mxu0 0.0
        %5131 = vmatprep.subr.mxu0 0.0
        %5132 = vmatpush2.msra.mxu0 0.0
        %5133 = vmatprep.subr.mxu0 0.0
        %5134 = vmatpush2.msra.mxu0 0.0
        %5135 = vmatprep.subr.mxu0 0.0
        %5136 = vmatpush2.msra.mxu0 0.0
        %5137 = vmatprep.subr.mxu0 0.0
        %5138 = vmatpush2.msra.mxu0 0.0
        %5139 = vmatprep.subr.mxu0 0.0
        %5140 = vmatpush2.msra.mxu0 0.0
        %5141 = vmatprep.subr.mxu0 0.0
        %5142 = vmatpush2.msra.mxu0 0.0
        %5143 = vmatprep.subr.mxu0 0.0
        %5144 = vmatpush2.msra.mxu0 0.0
        %5145 = vmatprep.subr.mxu0 0.0
        %5146 = vmatpush2.msra.mxu0 0.0
        %5147 = vmatprep.subr.mxu0 0.0
        %5148 = vmatpush2.msra.mxu0 0.0
        %5149 = vmatprep.subr.mxu0 0.0
        %5150 = vmatpush2.msra.mxu0 0.0
        %5151 = vmatprep.subr.mxu0 0.0
        %5152 = vmatpush2.msra.mxu0 0.0
        %5153 = vmatprep.subr.mxu0 0.0
        %5154 = vmatpush2.msra.mxu0 0.0
        %5155 = vmatprep.mubr.f32.mxu0 0.0
        %5156 = vmatmul.mubr.f32.gmra.mxu0 %v4457
        %v5157 = vpop.f32.mrf.mxu0
        %v5158 = vadd.f32 %v4439, %v5157
        %v5159 = vpop.f32.mrf.mxu0
        %v5160 = vadd.f32 %v4439, %v5159
        %5161 = vmatprep.mubr.f32.mxu0 0.0
        %5162 = vmatmul.mubr.f32.gmra.mxu0 %v4460
        %v5163 = vpop.f32.mrf.mxu0
        %v5164 = vadd.f32 %v4444, %v5163
        %v5165 = vpop.f32.mrf.mxu0
        %v5166 = vadd.f32 %v4444, %v5165
        %5167 = vmatprep.mubr.f32.mxu0 0.0
        %5168 = vmatmul.mubr.f32.gmra.mxu0 %v4463
        %v5169 = vpop.f32.mrf.mxu0
        %v5170 = vadd.f32 %v4449, %v5169
        %v5171 = vpop.f32.mrf.mxu0
        %v5172 = vadd.f32 %v4449, %v5171
        %5173 = vmatprep.mubr.f32.mxu0 0.0
        %5174 = vmatmul.mubr.f32.gmra.mxu0 %v4466
        %v5175 = vpop.f32.mrf.mxu0
        %v5176 = vadd.f32 %v4454, %v5175
        %v5177 = vpop.f32.mrf.mxu0
        %v5178 = vadd.f32 %v4454, %v5177
        %5179 = vdwg.mxu0
        %v5180 = vmul.f32 %v4535, 0.05
        %v5181 = vmul.f32 %v4537, 0.05
        %v5182 = vmul.f32 %v4624, 0.05
        %v5183 = vmul.f32 %v4626, 0.05
        %v5184 = vmul.f32 %v4713, 0.05
        %v5185 = vmul.f32 %v4715, 0.05
        %v5186 = vmul.f32 %v4802, 0.05
        %v5187 = vmul.f32 %v4804, 0.05
        %v5188 = vmul.f32 %v4891, 0.05
        %v5189 = vmul.f32 %v4893, 0.05
        %v5190 = vmul.f32 %v4980, 0.05
        %v5191 = vmul.f32 %v4982, 0.05
        %v5192 = vmul.f32 %v5069, 0.05
        %v5193 = vmul.f32 %v5071, 0.05
        %v5194 = vmul.f32 %v5158, 0.05
        %v5195 = vmul.f32 %v5160, 0.05
        %v5196 = vmul.f32 %v4541, 0.05
        %v5197 = vmul.f32 %v4543, 0.05
        %v5198 = vmul.f32 %v4630, 0.05
        %v5199 = vmul.f32 %v4632, 0.05
        %v5200 = vmul.f32 %v4719, 0.05
        %v5201 = vmul.f32 %v4721, 0.05
        %v5202 = vmul.f32 %v4808, 0.05
        %v5203 = vmul.f32 %v4810, 0.05
        %v5204 = vmul.f32 %v4897, 0.05
        %v5205 = vmul.f32 %v4899, 0.05
        %v5206 = vmul.f32 %v4986, 0.05
        %v5207 = vmul.f32 %v4988, 0.05
        %v5208 = vmul.f32 %v5075, 0.05
        %v5209 = vmul.f32 %v5077, 0.05
        %v5210 = vmul.f32 %v5164, 0.05
        %v5211 = vmul.f32 %v5166, 0.05
        %v5212 = vmul.f32 %v4547, 0.05
        %v5213 = vmul.f32 %v4549, 0.05
        %v5214 = vmul.f32 %v4636, 0.05
        %v5215 = vmul.f32 %v4638, 0.05
        %v5216 = vmul.f32 %v4725, 0.05
        %v5217 = vmul.f32 %v4727, 0.05
        %v5218 = vmul.f32 %v4814, 0.05
        %v5219 = vmul.f32 %v4816, 0.05
        %v5220 = vmul.f32 %v4903, 0.05
        %v5221 = vmul.f32 %v4905, 0.05
        %v5222 = vmul.f32 %v4992, 0.05
        %v5223 = vmul.f32 %v4994, 0.05
        %v5224 = vmul.f32 %v5081, 0.05
        %v5225 = vmul.f32 %v5083, 0.05
        %v5226 = vmul.f32 %v5170, 0.05
        %v5227 = vmul.f32 %v5172, 0.05
        %v5228 = vmul.f32 %v4553, 0.05
        %v5229 = vmul.f32 %v4555, 0.05
        %v5230 = vmul.f32 %v4642, 0.05
        %v5231 = vmul.f32 %v4644, 0.05
        %v5232 = vmul.f32 %v4731, 0.05
        %v5233 = vmul.f32 %v4733, 0.05
        %v5234 = vmul.f32 %v4820, 0.05
        %v5235 = vmul.f32 %v4822, 0.05
        %v5236 = vmul.f32 %v4909, 0.05
        %v5237 = vmul.f32 %v4911, 0.05
        %v5238 = vmul.f32 %v4998, 0.05
        %v5239 = vmul.f32 %v5000, 0.05
        %v5240 = vmul.f32 %v5087, 0.05
        %v5241 = vmul.f32 %v5089, 0.05
        %v5242 = vmul.f32 %v5176, 0.05
        %v5243 = vmul.f32 %v5178, 0.05
        %v5244 = vmax.f32 %v4535, %v5180
        %v5245 = vmax.f32 %v4537, %v5181
        %v5246 = vmax.f32 %v4624, %v5182
        %v5247 = vmax.f32 %v4626, %v5183
        %v5248 = vmax.f32 %v4713, %v5184
        %v5249 = vmax.f32 %v4715, %v5185
        %v5250 = vmax.f32 %v4802, %v5186
        %v5251 = vmax.f32 %v4804, %v5187
        %v5252 = vmax.f32 %v4891, %v5188
        %v5253 = vmax.f32 %v4893, %v5189
        %v5254 = vmax.f32 %v4980, %v5190
        %v5255 = vmax.f32 %v4982, %v5191
        %v5256 = vmax.f32 %v5069, %v5192
        %v5257 = vmax.f32 %v5071, %v5193
        %v5258 = vmax.f32 %v5158, %v5194
        %v5259 = vmax.f32 %v5160, %v5195
        %v5260 = vmax.f32 %v4541, %v5196
        %v5261 = vmax.f32 %v4543, %v5197
        %v5262 = vmax.f32 %v4630, %v5198
        %v5263 = vmax.f32 %v4632, %v5199
        %v5264 = vmax.f32 %v4719, %v5200
        %v5265 = vmax.f32 %v4721, %v5201
        %v5266 = vmax.f32 %v4808, %v5202
        %v5267 = vmax.f32 %v4810, %v5203
        %v5268 = vmax.f32 %v4897, %v5204
        %v5269 = vmax.f32 %v4899, %v5205
        %v5270 = vmax.f32 %v4986, %v5206
        %v5271 = vmax.f32 %v4988, %v5207
        %v5272 = vmax.f32 %v5075, %v5208
        %v5273 = vmax.f32 %v5077, %v5209
        %v5274 = vmax.f32 %v5164, %v5210
        %v5275 = vmax.f32 %v5166, %v5211
        %v5276 = vmax.f32 %v4547, %v5212
        %v5277 = vmax.f32 %v4549, %v5213
        %v5278 = vmax.f32 %v4636, %v5214
        %v5279 = vmax.f32 %v4638, %v5215
        %v5280 = vmax.f32 %v4725, %v5216
        %v5281 = vmax.f32 %v4727, %v5217
        %v5282 = vmax.f32 %v4814, %v5218
        %v5283 = vmax.f32 %v4816, %v5219
        %v5284 = vmax.f32 %v4903, %v5220
        %v5285 = vmax.f32 %v4905, %v5221
        %v5286 = vmax.f32 %v4992, %v5222
        %v5287 = vmax.f32 %v4994, %v5223
        %v5288 = vmax.f32 %v5081, %v5224
        %v5289 = vmax.f32 %v5083, %v5225
        %v5290 = vmax.f32 %v5170, %v5226
        %v5291 = vmax.f32 %v5172, %v5227
        %v5292 = vmax.f32 %v4553, %v5228
        %v5293 = vmax.f32 %v4555, %v5229
        %v5294 = vmax.f32 %v4642, %v5230
        %v5295 = vmax.f32 %v4644, %v5231
        %v5296 = vmax.f32 %v4731, %v5232
        %v5297 = vmax.f32 %v4733, %v5233
        %v5298 = vmax.f32 %v4820, %v5234
        %v5299 = vmax.f32 %v4822, %v5235
        %v5300 = vmax.f32 %v4909, %v5236
        %v5301 = vmax.f32 %v4911, %v5237
        %v5302 = vmax.f32 %v4998, %v5238
        %v5303 = vmax.f32 %v5000, %v5239
        %v5304 = vmax.f32 %v5087, %v5240
        %v5305 = vmax.f32 %v5089, %v5241
        %v5306 = vmax.f32 %v5176, %v5242
        %v5307 = vmax.f32 %v5178, %v5243
        %v5308 = vld [vmem:[%s11] sm:$0xff]
        %v5309 = vld [vmem:[%s11 + $0x8] sm:$0xff]
        %v5310 = vld [vmem:[%s11 + $0x10] sm:$0xff]
        %v5311 = vld [vmem:[%s11 + $0x18] sm:$0xff]
        %v5312 = vld [vmem:[%s11 + $0x20] sm:$0xff]
        %v5313 = vld [vmem:[%s11 + $0x28] sm:$0xff]
        %v5314 = vld [vmem:[%s11 + $0x30] sm:$0xff]
        %v5315 = vld [vmem:[%s11 + $0x38] sm:$0xff]
        %v5316 = vld [vmem:[%s11 + $0x40] sm:$0xff]
        %v5317 = vld [vmem:[%s11 + $0x48] sm:$0xff]
        %v5318 = vld [vmem:[%s11 + $0x50] sm:$0xff]
        %v5319 = vld [vmem:[%s11 + $0x58] sm:$0xff]
        %v5320 = vld [vmem:[%s11 + $0x60] sm:$0xff]
        %v5321 = vld [vmem:[%s11 + $0x68] sm:$0xff]
        %v5322 = vld [vmem:[%s11 + $0x70] sm:$0xff]
        %v5323 = vld [vmem:[%s11 + $0x78] sm:$0xff]
        %v5324 = vld [vmem:[%s12] sm:$0xff]
        %v5325 = vld [vmem:[%s12 + $0x8] sm:$0xff]
        %v5326 = vld [vmem:[%s12 + $0x10] sm:$0xff]
        %v5327 = vld [vmem:[%s12 + $0x18] sm:$0xff]
        %v5328 = vld [vmem:[%s12 + $0x20] sm:$0xff]
        %v5329 = vld [vmem:[%s12 + $0x28] sm:$0xff]
        %v5330 = vld [vmem:[%s12 + $0x30] sm:$0xff]
        %v5331 = vld [vmem:[%s12 + $0x38] sm:$0xff]
        %v5332 = vld [vmem:[%s12 + $0x40] sm:$0xff]
        %v5333 = vld [vmem:[%s12 + $0x48] sm:$0xff]
        %v5334 = vld [vmem:[%s12 + $0x50] sm:$0xff]
        %v5335 = vld [vmem:[%s12 + $0x58] sm:$0xff]
        %v5336 = vld [vmem:[%s12 + $0x60] sm:$0xff]
        %v5337 = vld [vmem:[%s12 + $0x68] sm:$0xff]
        %v5338 = vld [vmem:[%s12 + $0x70] sm:$0xff]
        %v5339 = vld [vmem:[%s12 + $0x78] sm:$0xff]
        %5341 = vset.pattern.permute.xlu0 0
        %5342 = vperm.xlu0 %5341, %v5324
        %v5343 = vpop.permute.xlu0 %5342
        %5346 = vset.pattern.permute.xlu0 0
        %5347 = vperm.xlu0 %5346, %v5325
        %v5348 = vpop.permute.xlu0 %5347
        %5351 = vset.pattern.permute.xlu0 0
        %5352 = vperm.xlu0 %5351, %v5326
        %v5353 = vpop.permute.xlu0 %5352
        %5356 = vset.pattern.permute.xlu0 0
        %5357 = vperm.xlu0 %5356, %v5327
        %v5358 = vpop.permute.xlu0 %5357
        %5361 = vset.pattern.permute.xlu0 0
        %5362 = vperm.xlu0 %5361, %v5328
        %v5363 = vpop.permute.xlu0 %5362
        %5366 = vset.pattern.permute.xlu0 0
        %5367 = vperm.xlu0 %5366, %v5329
        %v5368 = vpop.permute.xlu0 %5367
        %5371 = vset.pattern.permute.xlu0 0
        %5372 = vperm.xlu0 %5371, %v5330
        %v5373 = vpop.permute.xlu0 %5372
        %5376 = vset.pattern.permute.xlu0 0
        %5377 = vperm.xlu0 %5376, %v5331
        %v5378 = vpop.permute.xlu0 %5377
        %5381 = vset.pattern.permute.xlu0 0
        %5382 = vperm.xlu0 %5381, %v5332
        %v5383 = vpop.permute.xlu0 %5382
        %5386 = vset.pattern.permute.xlu0 0
        %5387 = vperm.xlu0 %5386, %v5333
        %v5388 = vpop.permute.xlu0 %5387
        %5391 = vset.pattern.permute.xlu0 0
        %5392 = vperm.xlu0 %5391, %v5334
        %v5393 = vpop.permute.xlu0 %5392
        %5396 = vset.pattern.permute.xlu0 0
        %5397 = vperm.xlu0 %5396, %v5335
        %v5398 = vpop.permute.xlu0 %5397
        %5401 = vset.pattern.permute.xlu0 0
        %5402 = vperm.xlu0 %5401, %v5336
        %v5403 = vpop.permute.xlu0 %5402
        %5406 = vset.pattern.permute.xlu0 0
        %5407 = vperm.xlu0 %5406, %v5337
        %v5408 = vpop.permute.xlu0 %5407
        %5411 = vset.pattern.permute.xlu0 0
        %5412 = vperm.xlu0 %5411, %v5338
        %v5413 = vpop.permute.xlu0 %5412
        %5416 = vset.pattern.permute.xlu0 0
        %5417 = vperm.xlu0 %5416, %v5339
        %v5418 = vpop.permute.xlu0 %5417
        %v5421 = vsel %vm2900, %v5308, 0
        %v5424 = vsel %vm2900, %v5309, 0
        %v5427 = vsel %vm2900, %v5310, 0
        %v5430 = vsel %vm2900, %v5311, 0
        %v5433 = vsel %vm2900, %v5312, 0
        %v5436 = vsel %vm2900, %v5313, 0
        %v5439 = vsel %vm2900, %v5314, 0
        %v5442 = vsel %vm2900, %v5315, 0
        %v5445 = vsel %vm2900, %v5316, 0
        %v5448 = vsel %vm2900, %v5317, 0
        %v5451 = vsel %vm2900, %v5318, 0
        %v5454 = vsel %vm2900, %v5319, 0
        %v5457 = vsel %vm2900, %v5320, 0
        %v5460 = vsel %vm2900, %v5321, 0
        %v5463 = vsel %vm2900, %v5322, 0
        %v5466 = vsel %vm2900, %v5323, 0
        %5468 = vmatprep.subr.mxu0 0.0
        %5469 = vmatpush1.msra.mxu0 0.0
        %5470 = vmatprep.subr.mxu0 0.0
        %5471 = vmatpush1.msra.mxu0 0.0
        %5472 = vmatprep.subr.mxu0 0.0
        %5473 = vmatpush1.msra.mxu0 0.0
        %5474 = vmatprep.subr.mxu0 0.0
        %5475 = vmatpush1.msra.mxu0 0.0
        %5476 = vmatprep.subr.mxu0 0.0
        %5477 = vmatpush1.msra.mxu0 0.0
        %5478 = vmatprep.subr.mxu0 0.0
        %5479 = vmatpush1.msra.mxu0 0.0
        %5480 = vmatprep.subr.mxu0 0.0
        %5481 = vmatpush1.msra.mxu0 0.0
        %5482 = vmatprep.subr.mxu0 0.0
        %5483 = vmatpush1.msra.mxu0 0.0
        %5484 = vmatprep.subr.mxu0 0.0
        %5485 = vmatpush1.msra.mxu0 0.0
        %5486 = vmatprep.subr.mxu0 0.0
        %5487 = vmatpush1.msra.mxu0 0.0
        %5488 = vmatprep.subr.mxu0 0.0
        %5489 = vmatpush1.msra.mxu0 0.0
        %5490 = vmatprep.subr.mxu0 0.0
        %5491 = vmatpush1.msra.mxu0 0.0
        %5492 = vmatprep.subr.mxu0 %v5293
        %5493 = vmatpush1.msra.mxu0 %v5292
        %5494 = vmatprep.subr.mxu0 %v5277
        %5495 = vmatpush1.msra.mxu0 %v5276
        %5496 = vmatprep.subr.mxu0 %v5261
        %5497 = vmatpush1.msra.mxu0 %v5260
        %5498 = vmatprep.subr.mxu0 %v5245
        %5499 = vmatpush1.msra.mxu0 %v5244
        %5500 = vmatprep.subr.mxu0 0.0
        %5501 = vmatpush2.msra.mxu0 0.0
        %5502 = vmatprep.subr.mxu0 0.0
        %5503 = vmatpush2.msra.mxu0 0.0
        %5504 = vmatprep.subr.mxu0 0.0
        %5505 = vmatpush2.msra.mxu0 0.0
        %5506 = vmatprep.subr.mxu0 0.0
        %5507 = vmatpush2.msra.mxu0 0.0
        %5508 = vmatprep.subr.mxu0 0.0
        %5509 = vmatpush2.msra.mxu0 0.0
        %5510 = vmatprep.subr.mxu0 0.0
        %5511 = vmatpush2.msra.mxu0 0.0
        %5512 = vmatprep.subr.mxu0 0.0
        %5513 = vmatpush2.msra.mxu0 0.0
        %5514 = vmatprep.subr.mxu0 0.0
        %5515 = vmatpush2.msra.mxu0 0.0
        %5516 = vmatprep.subr.mxu0 0.0
        %5517 = vmatpush2.msra.mxu0 0.0
        %5518 = vmatprep.subr.mxu0 0.0
        %5519 = vmatpush2.msra.mxu0 0.0
        %5520 = vmatprep.subr.mxu0 0.0
        %5521 = vmatpush2.msra.mxu0 0.0
        %5522 = vmatprep.subr.mxu0 0.0
        %5523 = vmatpush2.msra.mxu0 0.0
        %5524 = vmatprep.subr.mxu0 0.0
        %5525 = vmatpush2.msra.mxu0 0.0
        %5526 = vmatprep.subr.mxu0 0.0
        %5527 = vmatpush2.msra.mxu0 0.0
        %5528 = vmatprep.subr.mxu0 0.0
        %5529 = vmatpush2.msra.mxu0 0.0
        %5530 = vmatprep.subr.mxu0 0.0
        %5531 = vmatpush2.msra.mxu0 0.0
        %5532 = vmatprep.mubr.f32.mxu0 0.0
        %5533 = vmatmul.mubr.f32.gmra.mxu0 %v5421
        %v5534 = vpop.f32.mrf.mxu0
        %v5535 = vadd.f32 %v5343, %v5534
        %v5536 = vpop.f32.mrf.mxu0
        %v5537 = vadd.f32 %v5343, %v5536
        %5538 = vmatprep.mubr.f32.mxu0 0.0
        %5539 = vmatmul.mubr.f32.gmra.mxu0 %v5424
        %v5540 = vpop.f32.mrf.mxu0
        %v5541 = vadd.f32 %v5348, %v5540
        %v5542 = vpop.f32.mrf.mxu0
        %v5543 = vadd.f32 %v5348, %v5542
        %5544 = vmatprep.mubr.f32.mxu0 0.0
        %5545 = vmatmul.mubr.f32.gmra.mxu0 %v5427
        %v5546 = vpop.f32.mrf.mxu0
        %v5547 = vadd.f32 %v5353, %v5546
        %v5548 = vpop.f32.mrf.mxu0
        %v5549 = vadd.f32 %v5353, %v5548
        %5550 = vmatprep.mubr.f32.mxu0 0.0
        %5551 = vmatmul.mubr.f32.gmra.mxu0 %v5430
        %v5552 = vpop.f32.mrf.mxu0
        %v5553 = vadd.f32 %v5358, %v5552
        %v5554 = vpop.f32.mrf.mxu0
        %v5555 = vadd.f32 %v5358, %v5554
        %5556 = vmatprep.mubr.f32.mxu0 0.0
        %5557 = vmatmul.mubr.f32.gmra.mxu0 %v5433
        %v5558 = vpop.f32.mrf.mxu0
        %v5559 = vadd.f32 %v5363, %v5558
        %v5560 = vpop.f32.mrf.mxu0
        %v5561 = vadd.f32 %v5363, %v5560
        %5562 = vmatprep.mubr.f32.mxu0 0.0
        %5563 = vmatmul.mubr.f32.gmra.mxu0 %v5436
        %v5564 = vpop.f32.mrf.mxu0
        %v5565 = vadd.f32 %v5368, %v5564
        %v5566 = vpop.f32.mrf.mxu0
        %v5567 = vadd.f32 %v5368, %v5566
        %5568 = vmatprep.mubr.f32.mxu0 0.0
        %5569 = vmatmul.mubr.f32.gmra.mxu0 %v5439
        %v5570 = vpop.f32.mrf.mxu0
        %v5571 = vadd.f32 %v5373, %v5570
        %v5572 = vpop.f32.mrf.mxu0
        %v5573 = vadd.f32 %v5373, %v5572
        %5574 = vmatprep.mubr.f32.mxu0 0.0
        %5575 = vmatmul.mubr.f32.gmra.mxu0 %v5442
        %v5576 = vpop.f32.mrf.mxu0
        %v5577 = vadd.f32 %v5378, %v5576
        %v5578 = vpop.f32.mrf.mxu0
        %v5579 = vadd.f32 %v5378, %v5578
        %5580 = vmatprep.mubr.f32.mxu0 0.0
        %5581 = vmatmul.mubr.f32.gmra.mxu0 %v5445
        %v5582 = vpop.f32.mrf.mxu0
        %v5583 = vadd.f32 %v5383, %v5582
        %v5584 = vpop.f32.mrf.mxu0
        %v5585 = vadd.f32 %v5383, %v5584
        %5586 = vmatprep.mubr.f32.mxu0 0.0
        %5587 = vmatmul.mubr.f32.gmra.mxu0 %v5448
        %v5588 = vpop.f32.mrf.mxu0
        %v5589 = vadd.f32 %v5388, %v5588
        %v5590 = vpop.f32.mrf.mxu0
        %v5591 = vadd.f32 %v5388, %v5590
        %5592 = vmatprep.mubr.f32.mxu0 0.0
        %5593 = vmatmul.mubr.f32.gmra.mxu0 %v5451
        %v5594 = vpop.f32.mrf.mxu0
        %v5595 = vadd.f32 %v5393, %v5594
        %v5596 = vpop.f32.mrf.mxu0
        %v5597 = vadd.f32 %v5393, %v5596
        %5598 = vmatprep.mubr.f32.mxu0 0.0
        %5599 = vmatmul.mubr.f32.gmra.mxu0 %v5454
        %v5600 = vpop.f32.mrf.mxu0
        %v5601 = vadd.f32 %v5398, %v5600
        %v5602 = vpop.f32.mrf.mxu0
        %v5603 = vadd.f32 %v5398, %v5602
        %5604 = vmatprep.mubr.f32.mxu0 0.0
        %5605 = vmatmul.mubr.f32.gmra.mxu0 %v5457
        %v5606 = vpop.f32.mrf.mxu0
        %v5607 = vadd.f32 %v5403, %v5606
        %v5608 = vpop.f32.mrf.mxu0
        %v5609 = vadd.f32 %v5403, %v5608
        %5610 = vmatprep.mubr.f32.mxu0 0.0
        %5611 = vmatmul.mubr.f32.gmra.mxu0 %v5460
        %v5612 = vpop.f32.mrf.mxu0
        %v5613 = vadd.f32 %v5408, %v5612
        %v5614 = vpop.f32.mrf.mxu0
        %v5615 = vadd.f32 %v5408, %v5614
        %5616 = vmatprep.mubr.f32.mxu0 0.0
        %5617 = vmatmul.mubr.f32.gmra.mxu0 %v5463
        %v5618 = vpop.f32.mrf.mxu0
        %v5619 = vadd.f32 %v5413, %v5618
        %v5620 = vpop.f32.mrf.mxu0
        %v5621 = vadd.f32 %v5413, %v5620
        %5622 = vmatprep.mubr.f32.mxu0 0.0
        %5623 = vmatmul.mubr.f32.gmra.mxu0 %v5466
        %v5624 = vpop.f32.mrf.mxu0
        %v5625 = vadd.f32 %v5418, %v5624
        %v5626 = vpop.f32.mrf.mxu0
        %v5627 = vadd.f32 %v5418, %v5626
        %5628 = vdwg.mxu0
        %5629 = vmatprep.subr.mxu0 0.0
        %5630 = vmatpush1.msra.mxu0 0.0
        %5631 = vmatprep.subr.mxu0 0.0
        %5632 = vmatpush1.msra.mxu0 0.0
        %5633 = vmatprep.subr.mxu0 0.0
        %5634 = vmatpush1.msra.mxu0 0.0
        %5635 = vmatprep.subr.mxu0 0.0
        %5636 = vmatpush1.msra.mxu0 0.0
        %5637 = vmatprep.subr.mxu0 0.0
        %5638 = vmatpush1.msra.mxu0 0.0
        %5639 = vmatprep.subr.mxu0 0.0
        %5640 = vmatpush1.msra.mxu0 0.0
        %5641 = vmatprep.subr.mxu0 0.0
        %5642 = vmatpush1.msra.mxu0 0.0
        %5643 = vmatprep.subr.mxu0 0.0
        %5644 = vmatpush1.msra.mxu0 0.0
        %5645 = vmatprep.subr.mxu0 0.0
        %5646 = vmatpush1.msra.mxu0 0.0
        %5647 = vmatprep.subr.mxu0 0.0
        %5648 = vmatpush1.msra.mxu0 0.0
        %5649 = vmatprep.subr.mxu0 0.0
        %5650 = vmatpush1.msra.mxu0 0.0
        %5651 = vmatprep.subr.mxu0 0.0
        %5652 = vmatpush1.msra.mxu0 0.0
        %5653 = vmatprep.subr.mxu0 %v5295
        %5654 = vmatpush1.msra.mxu0 %v5294
        %5655 = vmatprep.subr.mxu0 %v5279
        %5656 = vmatpush1.msra.mxu0 %v5278
        %5657 = vmatprep.subr.mxu0 %v5263
        %5658 = vmatpush1.msra.mxu0 %v5262
        %5659 = vmatprep.subr.mxu0 %v5247
        %5660 = vmatpush1.msra.mxu0 %v5246
        %5661 = vmatprep.subr.mxu0 0.0
        %5662 = vmatpush2.msra.mxu0 0.0
        %5663 = vmatprep.subr.mxu0 0.0
        %5664 = vmatpush2.msra.mxu0 0.0
        %5665 = vmatprep.subr.mxu0 0.0
        %5666 = vmatpush2.msra.mxu0 0.0
        %5667 = vmatprep.subr.mxu0 0.0
        %5668 = vmatpush2.msra.mxu0 0.0
        %5669 = vmatprep.subr.mxu0 0.0
        %5670 = vmatpush2.msra.mxu0 0.0
        %5671 = vmatprep.subr.mxu0 0.0
        %5672 = vmatpush2.msra.mxu0 0.0
        %5673 = vmatprep.subr.mxu0 0.0
        %5674 = vmatpush2.msra.mxu0 0.0
        %5675 = vmatprep.subr.mxu0 0.0
        %5676 = vmatpush2.msra.mxu0 0.0
        %5677 = vmatprep.subr.mxu0 0.0
        %5678 = vmatpush2.msra.mxu0 0.0
        %5679 = vmatprep.subr.mxu0 0.0
        %5680 = vmatpush2.msra.mxu0 0.0
        %5681 = vmatprep.subr.mxu0 0.0
        %5682 = vmatpush2.msra.mxu0 0.0
        %5683 = vmatprep.subr.mxu0 0.0
        %5684 = vmatpush2.msra.mxu0 0.0
        %5685 = vmatprep.subr.mxu0 0.0
        %5686 = vmatpush2.msra.mxu0 0.0
        %5687 = vmatprep.subr.mxu0 0.0
        %5688 = vmatpush2.msra.mxu0 0.0
        %5689 = vmatprep.subr.mxu0 0.0
        %5690 = vmatpush2.msra.mxu0 0.0
        %5691 = vmatprep.subr.mxu0 0.0
        %5692 = vmatpush2.msra.mxu0 0.0
        %5693 = vmatprep.mubr.f32.mxu0 0.0
        %5694 = vmatmul.mubr.f32.gmra.mxu0 %v5421
        %v5695 = vpop.f32.mrf.mxu0
        %v5696 = vadd.f32 %v5343, %v5695
        %v5697 = vpop.f32.mrf.mxu0
        %v5698 = vadd.f32 %v5343, %v5697
        %5699 = vmatprep.mubr.f32.mxu0 0.0
        %5700 = vmatmul.mubr.f32.gmra.mxu0 %v5424
        %v5701 = vpop.f32.mrf.mxu0
        %v5702 = vadd.f32 %v5348, %v5701
        %v5703 = vpop.f32.mrf.mxu0
        %v5704 = vadd.f32 %v5348, %v5703
        %5705 = vmatprep.mubr.f32.mxu0 0.0
        %5706 = vmatmul.mubr.f32.gmra.mxu0 %v5427
        %v5707 = vpop.f32.mrf.mxu0
        %v5708 = vadd.f32 %v5353, %v5707
        %v5709 = vpop.f32.mrf.mxu0
        %v5710 = vadd.f32 %v5353, %v5709
        %5711 = vmatprep.mubr.f32.mxu0 0.0
        %5712 = vmatmul.mubr.f32.gmra.mxu0 %v5430
        %v5713 = vpop.f32.mrf.mxu0
        %v5714 = vadd.f32 %v5358, %v5713
        %v5715 = vpop.f32.mrf.mxu0
        %v5716 = vadd.f32 %v5358, %v5715
        %5717 = vmatprep.mubr.f32.mxu0 0.0
        %5718 = vmatmul.mubr.f32.gmra.mxu0 %v5433
        %v5719 = vpop.f32.mrf.mxu0
        %v5720 = vadd.f32 %v5363, %v5719
        %v5721 = vpop.f32.mrf.mxu0
        %v5722 = vadd.f32 %v5363, %v5721
        %5723 = vmatprep.mubr.f32.mxu0 0.0
        %5724 = vmatmul.mubr.f32.gmra.mxu0 %v5436
        %v5725 = vpop.f32.mrf.mxu0
        %v5726 = vadd.f32 %v5368, %v5725
        %v5727 = vpop.f32.mrf.mxu0
        %v5728 = vadd.f32 %v5368, %v5727
        %5729 = vmatprep.mubr.f32.mxu0 0.0
        %5730 = vmatmul.mubr.f32.gmra.mxu0 %v5439
        %v5731 = vpop.f32.mrf.mxu0
        %v5732 = vadd.f32 %v5373, %v5731
        %v5733 = vpop.f32.mrf.mxu0
        %v5734 = vadd.f32 %v5373, %v5733
        %5735 = vmatprep.mubr.f32.mxu0 0.0
        %5736 = vmatmul.mubr.f32.gmra.mxu0 %v5442
        %v5737 = vpop.f32.mrf.mxu0
        %v5738 = vadd.f32 %v5378, %v5737
        %v5739 = vpop.f32.mrf.mxu0
        %v5740 = vadd.f32 %v5378, %v5739
        %5741 = vmatprep.mubr.f32.mxu0 0.0
        %5742 = vmatmul.mubr.f32.gmra.mxu0 %v5445
        %v5743 = vpop.f32.mrf.mxu0
        %v5744 = vadd.f32 %v5383, %v5743
        %v5745 = vpop.f32.mrf.mxu0
        %v5746 = vadd.f32 %v5383, %v5745
        %5747 = vmatprep.mubr.f32.mxu0 0.0
        %5748 = vmatmul.mubr.f32.gmra.mxu0 %v5448
        %v5749 = vpop.f32.mrf.mxu0
        %v5750 = vadd.f32 %v5388, %v5749
        %v5751 = vpop.f32.mrf.mxu0
        %v5752 = vadd.f32 %v5388, %v5751
        %5753 = vmatprep.mubr.f32.mxu0 0.0
        %5754 = vmatmul.mubr.f32.gmra.mxu0 %v5451
        %v5755 = vpop.f32.mrf.mxu0
        %v5756 = vadd.f32 %v5393, %v5755
        %v5757 = vpop.f32.mrf.mxu0
        %v5758 = vadd.f32 %v5393, %v5757
        %5759 = vmatprep.mubr.f32.mxu0 0.0
        %5760 = vmatmul.mubr.f32.gmra.mxu0 %v5454
        %v5761 = vpop.f32.mrf.mxu0
        %v5762 = vadd.f32 %v5398, %v5761
        %v5763 = vpop.f32.mrf.mxu0
        %v5764 = vadd.f32 %v5398, %v5763
        %5765 = vmatprep.mubr.f32.mxu0 0.0
        %5766 = vmatmul.mubr.f32.gmra.mxu0 %v5457
        %v5767 = vpop.f32.mrf.mxu0
        %v5768 = vadd.f32 %v5403, %v5767
        %v5769 = vpop.f32.mrf.mxu0
        %v5770 = vadd.f32 %v5403, %v5769
        %5771 = vmatprep.mubr.f32.mxu0 0.0
        %5772 = vmatmul.mubr.f32.gmra.mxu0 %v5460
        %v5773 = vpop.f32.mrf.mxu0
        %v5774 = vadd.f32 %v5408, %v5773
        %v5775 = vpop.f32.mrf.mxu0
        %v5776 = vadd.f32 %v5408, %v5775
        %5777 = vmatprep.mubr.f32.mxu0 0.0
        %5778 = vmatmul.mubr.f32.gmra.mxu0 %v5463
        %v5779 = vpop.f32.mrf.mxu0
        %v5780 = vadd.f32 %v5413, %v5779
        %v5781 = vpop.f32.mrf.mxu0
        %v5782 = vadd.f32 %v5413, %v5781
        %5783 = vmatprep.mubr.f32.mxu0 0.0
        %5784 = vmatmul.mubr.f32.gmra.mxu0 %v5466
        %v5785 = vpop.f32.mrf.mxu0
        %v5786 = vadd.f32 %v5418, %v5785
        %v5787 = vpop.f32.mrf.mxu0
        %v5788 = vadd.f32 %v5418, %v5787
        %5789 = vdwg.mxu0
        %5790 = vmatprep.subr.mxu0 0.0
        %5791 = vmatpush1.msra.mxu0 0.0
        %5792 = vmatprep.subr.mxu0 0.0
        %5793 = vmatpush1.msra.mxu0 0.0
        %5794 = vmatprep.subr.mxu0 0.0
        %5795 = vmatpush1.msra.mxu0 0.0
        %5796 = vmatprep.subr.mxu0 0.0
        %5797 = vmatpush1.msra.mxu0 0.0
        %5798 = vmatprep.subr.mxu0 0.0
        %5799 = vmatpush1.msra.mxu0 0.0
        %5800 = vmatprep.subr.mxu0 0.0
        %5801 = vmatpush1.msra.mxu0 0.0
        %5802 = vmatprep.subr.mxu0 0.0
        %5803 = vmatpush1.msra.mxu0 0.0
        %5804 = vmatprep.subr.mxu0 0.0
        %5805 = vmatpush1.msra.mxu0 0.0
        %5806 = vmatprep.subr.mxu0 0.0
        %5807 = vmatpush1.msra.mxu0 0.0
        %5808 = vmatprep.subr.mxu0 0.0
        %5809 = vmatpush1.msra.mxu0 0.0
        %5810 = vmatprep.subr.mxu0 0.0
        %5811 = vmatpush1.msra.mxu0 0.0
        %5812 = vmatprep.subr.mxu0 0.0
        %5813 = vmatpush1.msra.mxu0 0.0
        %5814 = vmatprep.subr.mxu0 %v5297
        %5815 = vmatpush1.msra.mxu0 %v5296
        %5816 = vmatprep.subr.mxu0 %v5281
        %5817 = vmatpush1.msra.mxu0 %v5280
        %5818 = vmatprep.subr.mxu0 %v5265
        %5819 = vmatpush1.msra.mxu0 %v5264
        %5820 = vmatprep.subr.mxu0 %v5249
        %5821 = vmatpush1.msra.mxu0 %v5248
        %5822 = vmatprep.subr.mxu0 0.0
        %5823 = vmatpush2.msra.mxu0 0.0
        %5824 = vmatprep.subr.mxu0 0.0
        %5825 = vmatpush2.msra.mxu0 0.0
        %5826 = vmatprep.subr.mxu0 0.0
        %5827 = vmatpush2.msra.mxu0 0.0
        %5828 = vmatprep.subr.mxu0 0.0
        %5829 = vmatpush2.msra.mxu0 0.0
        %5830 = vmatprep.subr.mxu0 0.0
        %5831 = vmatpush2.msra.mxu0 0.0
        %5832 = vmatprep.subr.mxu0 0.0
        %5833 = vmatpush2.msra.mxu0 0.0
        %5834 = vmatprep.subr.mxu0 0.0
        %5835 = vmatpush2.msra.mxu0 0.0
        %5836 = vmatprep.subr.mxu0 0.0
        %5837 = vmatpush2.msra.mxu0 0.0
        %5838 = vmatprep.subr.mxu0 0.0
        %5839 = vmatpush2.msra.mxu0 0.0
        %5840 = vmatprep.subr.mxu0 0.0
        %5841 = vmatpush2.msra.mxu0 0.0
        %5842 = vmatprep.subr.mxu0 0.0
        %5843 = vmatpush2.msra.mxu0 0.0
        %5844 = vmatprep.subr.mxu0 0.0
        %5845 = vmatpush2.msra.mxu0 0.0
        %5846 = vmatprep.subr.mxu0 0.0
        %5847 = vmatpush2.msra.mxu0 0.0
        %5848 = vmatprep.subr.mxu0 0.0
        %5849 = vmatpush2.msra.mxu0 0.0
        %5850 = vmatprep.subr.mxu0 0.0
        %5851 = vmatpush2.msra.mxu0 0.0
        %5852 = vmatprep.subr.mxu0 0.0
        %5853 = vmatpush2.msra.mxu0 0.0
        %5854 = vmatprep.mubr.f32.mxu0 0.0
        %5855 = vmatmul.mubr.f32.gmra.mxu0 %v5421
        %v5856 = vpop.f32.mrf.mxu0
        %v5857 = vadd.f32 %v5343, %v5856
        %v5858 = vpop.f32.mrf.mxu0
        %v5859 = vadd.f32 %v5343, %v5858
        %5860 = vmatprep.mubr.f32.mxu0 0.0
        %5861 = vmatmul.mubr.f32.gmra.mxu0 %v5424
        %v5862 = vpop.f32.mrf.mxu0
        %v5863 = vadd.f32 %v5348, %v5862
        %v5864 = vpop.f32.mrf.mxu0
        %v5865 = vadd.f32 %v5348, %v5864
        %5866 = vmatprep.mubr.f32.mxu0 0.0
        %5867 = vmatmul.mubr.f32.gmra.mxu0 %v5427
        %v5868 = vpop.f32.mrf.mxu0
        %v5869 = vadd.f32 %v5353, %v5868
        %v5870 = vpop.f32.mrf.mxu0
        %v5871 = vadd.f32 %v5353, %v5870
        %5872 = vmatprep.mubr.f32.mxu0 0.0
        %5873 = vmatmul.mubr.f32.gmra.mxu0 %v5430
        %v5874 = vpop.f32.mrf.mxu0
        %v5875 = vadd.f32 %v5358, %v5874
        %v5876 = vpop.f32.mrf.mxu0
        %v5877 = vadd.f32 %v5358, %v5876
        %5878 = vmatprep.mubr.f32.mxu0 0.0
        %5879 = vmatmul.mubr.f32.gmra.mxu0 %v5433
        %v5880 = vpop.f32.mrf.mxu0
        %v5881 = vadd.f32 %v5363, %v5880
        %v5882 = vpop.f32.mrf.mxu0
        %v5883 = vadd.f32 %v5363, %v5882
        %5884 = vmatprep.mubr.f32.mxu0 0.0
        %5885 = vmatmul.mubr.f32.gmra.mxu0 %v5436
        %v5886 = vpop.f32.mrf.mxu0
        %v5887 = vadd.f32 %v5368, %v5886
        %v5888 = vpop.f32.mrf.mxu0
        %v5889 = vadd.f32 %v5368, %v5888
        %5890 = vmatprep.mubr.f32.mxu0 0.0
        %5891 = vmatmul.mubr.f32.gmra.mxu0 %v5439
        %v5892 = vpop.f32.mrf.mxu0
        %v5893 = vadd.f32 %v5373, %v5892
        %v5894 = vpop.f32.mrf.mxu0
        %v5895 = vadd.f32 %v5373, %v5894
        %5896 = vmatprep.mubr.f32.mxu0 0.0
        %5897 = vmatmul.mubr.f32.gmra.mxu0 %v5442
        %v5898 = vpop.f32.mrf.mxu0
        %v5899 = vadd.f32 %v5378, %v5898
        %v5900 = vpop.f32.mrf.mxu0
        %v5901 = vadd.f32 %v5378, %v5900
        %5902 = vmatprep.mubr.f32.mxu0 0.0
        %5903 = vmatmul.mubr.f32.gmra.mxu0 %v5445
        %v5904 = vpop.f32.mrf.mxu0
        %v5905 = vadd.f32 %v5383, %v5904
        %v5906 = vpop.f32.mrf.mxu0
        %v5907 = vadd.f32 %v5383, %v5906
        %5908 = vmatprep.mubr.f32.mxu0 0.0
        %5909 = vmatmul.mubr.f32.gmra.mxu0 %v5448
        %v5910 = vpop.f32.mrf.mxu0
        %v5911 = vadd.f32 %v5388, %v5910
        %v5912 = vpop.f32.mrf.mxu0
        %v5913 = vadd.f32 %v5388, %v5912
        %5914 = vmatprep.mubr.f32.mxu0 0.0
        %5915 = vmatmul.mubr.f32.gmra.mxu0 %v5451
        %v5916 = vpop.f32.mrf.mxu0
        %v5917 = vadd.f32 %v5393, %v5916
        %v5918 = vpop.f32.mrf.mxu0
        %v5919 = vadd.f32 %v5393, %v5918
        %5920 = vmatprep.mubr.f32.mxu0 0.0
        %5921 = vmatmul.mubr.f32.gmra.mxu0 %v5454
        %v5922 = vpop.f32.mrf.mxu0
        %v5923 = vadd.f32 %v5398, %v5922
        %v5924 = vpop.f32.mrf.mxu0
        %v5925 = vadd.f32 %v5398, %v5924
        %5926 = vmatprep.mubr.f32.mxu0 0.0
        %5927 = vmatmul.mubr.f32.gmra.mxu0 %v5457
        %v5928 = vpop.f32.mrf.mxu0
        %v5929 = vadd.f32 %v5403, %v5928
        %v5930 = vpop.f32.mrf.mxu0
        %v5931 = vadd.f32 %v5403, %v5930
        %5932 = vmatprep.mubr.f32.mxu0 0.0
        %5933 = vmatmul.mubr.f32.gmra.mxu0 %v5460
        %v5934 = vpop.f32.mrf.mxu0
        %v5935 = vadd.f32 %v5408, %v5934
        %v5936 = vpop.f32.mrf.mxu0
        %v5937 = vadd.f32 %v5408, %v5936
        %5938 = vmatprep.mubr.f32.mxu0 0.0
        %5939 = vmatmul.mubr.f32.gmra.mxu0 %v5463
        %v5940 = vpop.f32.mrf.mxu0
        %v5941 = vadd.f32 %v5413, %v5940
        %v5942 = vpop.f32.mrf.mxu0
        %v5943 = vadd.f32 %v5413, %v5942
        %5944 = vmatprep.mubr.f32.mxu0 0.0
        %5945 = vmatmul.mubr.f32.gmra.mxu0 %v5466
        %v5946 = vpop.f32.mrf.mxu0
        %v5947 = vadd.f32 %v5418, %v5946
        %v5948 = vpop.f32.mrf.mxu0
        %v5949 = vadd.f32 %v5418, %v5948
        %5950 = vdwg.mxu0
        %5951 = vmatprep.subr.mxu0 0.0
        %5952 = vmatpush1.msra.mxu0 0.0
        %5953 = vmatprep.subr.mxu0 0.0
        %5954 = vmatpush1.msra.mxu0 0.0
        %5955 = vmatprep.subr.mxu0 0.0
        %5956 = vmatpush1.msra.mxu0 0.0
        %5957 = vmatprep.subr.mxu0 0.0
        %5958 = vmatpush1.msra.mxu0 0.0
        %5959 = vmatprep.subr.mxu0 0.0
        %5960 = vmatpush1.msra.mxu0 0.0
        %5961 = vmatprep.subr.mxu0 0.0
        %5962 = vmatpush1.msra.mxu0 0.0
        %5963 = vmatprep.subr.mxu0 0.0
        %5964 = vmatpush1.msra.mxu0 0.0
        %5965 = vmatprep.subr.mxu0 0.0
        %5966 = vmatpush1.msra.mxu0 0.0
        %5967 = vmatprep.subr.mxu0 0.0
        %5968 = vmatpush1.msra.mxu0 0.0
        %5969 = vmatprep.subr.mxu0 0.0
        %5970 = vmatpush1.msra.mxu0 0.0
        %5971 = vmatprep.subr.mxu0 0.0
        %5972 = vmatpush1.msra.mxu0 0.0
        %5973 = vmatprep.subr.mxu0 0.0
        %5974 = vmatpush1.msra.mxu0 0.0
        %5975 = vmatprep.subr.mxu0 %v5299
        %5976 = vmatpush1.msra.mxu0 %v5298
        %5977 = vmatprep.subr.mxu0 %v5283
        %5978 = vmatpush1.msra.mxu0 %v5282
        %5979 = vmatprep.subr.mxu0 %v5267
        %5980 = vmatpush1.msra.mxu0 %v5266
        %5981 = vmatprep.subr.mxu0 %v5251
        %5982 = vmatpush1.msra.mxu0 %v5250
        %5983 = vmatprep.subr.mxu0 0.0
        %5984 = vmatpush2.msra.mxu0 0.0
        %5985 = vmatprep.subr.mxu0 0.0
        %5986 = vmatpush2.msra.mxu0 0.0
        %5987 = vmatprep.subr.mxu0 0.0
        %5988 = vmatpush2.msra.mxu0 0.0
        %5989 = vmatprep.subr.mxu0 0.0
        %5990 = vmatpush2.msra.mxu0 0.0
        %5991 = vmatprep.subr.mxu0 0.0
        %5992 = vmatpush2.msra.mxu0 0.0
        %5993 = vmatprep.subr.mxu0 0.0
        %5994 = vmatpush2.msra.mxu0 0.0
        %5995 = vmatprep.subr.mxu0 0.0
        %5996 = vmatpush2.msra.mxu0 0.0
        %5997 = vmatprep.subr.mxu0 0.0
        %5998 = vmatpush2.msra.mxu0 0.0
        %5999 = vmatprep.subr.mxu0 0.0
        %6000 = vmatpush2.msra.mxu0 0.0
        %6001 = vmatprep.subr.mxu0 0.0
        %6002 = vmatpush2.msra.mxu0 0.0
        %6003 = vmatprep.subr.mxu0 0.0
        %6004 = vmatpush2.msra.mxu0 0.0
        %6005 = vmatprep.subr.mxu0 0.0
        %6006 = vmatpush2.msra.mxu0 0.0
        %6007 = vmatprep.subr.mxu0 0.0
        %6008 = vmatpush2.msra.mxu0 0.0
        %6009 = vmatprep.subr.mxu0 0.0
        %6010 = vmatpush2.msra.mxu0 0.0
        %6011 = vmatprep.subr.mxu0 0.0
        %6012 = vmatpush2.msra.mxu0 0.0
        %6013 = vmatprep.subr.mxu0 0.0
        %6014 = vmatpush2.msra.mxu0 0.0
        %6015 = vmatprep.mubr.f32.mxu0 0.0
        %6016 = vmatmul.mubr.f32.gmra.mxu0 %v5421
        %v6017 = vpop.f32.mrf.mxu0
        %v6018 = vadd.f32 %v5343, %v6017
        %v6019 = vpop.f32.mrf.mxu0
        %v6020 = vadd.f32 %v5343, %v6019
        %6021 = vmatprep.mubr.f32.mxu0 0.0
        %6022 = vmatmul.mubr.f32.gmra.mxu0 %v5424
        %v6023 = vpop.f32.mrf.mxu0
        %v6024 = vadd.f32 %v5348, %v6023
        %v6025 = vpop.f32.mrf.mxu0
        %v6026 = vadd.f32 %v5348, %v6025
        %6027 = vmatprep.mubr.f32.mxu0 0.0
        %6028 = vmatmul.mubr.f32.gmra.mxu0 %v5427
        %v6029 = vpop.f32.mrf.mxu0
        %v6030 = vadd.f32 %v5353, %v6029
        %v6031 = vpop.f32.mrf.mxu0
        %v6032 = vadd.f32 %v5353, %v6031
        %6033 = vmatprep.mubr.f32.mxu0 0.0
        %6034 = vmatmul.mubr.f32.gmra.mxu0 %v5430
        %v6035 = vpop.f32.mrf.mxu0
        %v6036 = vadd.f32 %v5358, %v6035
        %v6037 = vpop.f32.mrf.mxu0
        %v6038 = vadd.f32 %v5358, %v6037
        %6039 = vmatprep.mubr.f32.mxu0 0.0
        %6040 = vmatmul.mubr.f32.gmra.mxu0 %v5433
        %v6041 = vpop.f32.mrf.mxu0
        %v6042 = vadd.f32 %v5363, %v6041
        %v6043 = vpop.f32.mrf.mxu0
        %v6044 = vadd.f32 %v5363, %v6043
        %6045 = vmatprep.mubr.f32.mxu0 0.0
        %6046 = vmatmul.mubr.f32.gmra.mxu0 %v5436
        %v6047 = vpop.f32.mrf.mxu0
        %v6048 = vadd.f32 %v5368, %v6047
        %v6049 = vpop.f32.mrf.mxu0
        %v6050 = vadd.f32 %v5368, %v6049
        %6051 = vmatprep.mubr.f32.mxu0 0.0
        %6052 = vmatmul.mubr.f32.gmra.mxu0 %v5439
        %v6053 = vpop.f32.mrf.mxu0
        %v6054 = vadd.f32 %v5373, %v6053
        %v6055 = vpop.f32.mrf.mxu0
        %v6056 = vadd.f32 %v5373, %v6055
        %6057 = vmatprep.mubr.f32.mxu0 0.0
        %6058 = vmatmul.mubr.f32.gmra.mxu0 %v5442
        %v6059 = vpop.f32.mrf.mxu0
        %v6060 = vadd.f32 %v5378, %v6059
        %v6061 = vpop.f32.mrf.mxu0
        %v6062 = vadd.f32 %v5378, %v6061
        %6063 = vmatprep.mubr.f32.mxu0 0.0
        %6064 = vmatmul.mubr.f32.gmra.mxu0 %v5445
        %v6065 = vpop.f32.mrf.mxu0
        %v6066 = vadd.f32 %v5383, %v6065
        %v6067 = vpop.f32.mrf.mxu0
        %v6068 = vadd.f32 %v5383, %v6067
        %6069 = vmatprep.mubr.f32.mxu0 0.0
        %6070 = vmatmul.mubr.f32.gmra.mxu0 %v5448
        %v6071 = vpop.f32.mrf.mxu0
        %v6072 = vadd.f32 %v5388, %v6071
        %v6073 = vpop.f32.mrf.mxu0
        %v6074 = vadd.f32 %v5388, %v6073
        %6075 = vmatprep.mubr.f32.mxu0 0.0
        %6076 = vmatmul.mubr.f32.gmra.mxu0 %v5451
        %v6077 = vpop.f32.mrf.mxu0
        %v6078 = vadd.f32 %v5393, %v6077
        %v6079 = vpop.f32.mrf.mxu0
        %v6080 = vadd.f32 %v5393, %v6079
        %6081 = vmatprep.mubr.f32.mxu0 0.0
        %6082 = vmatmul.mubr.f32.gmra.mxu0 %v5454
        %v6083 = vpop.f32.mrf.mxu0
        %v6084 = vadd.f32 %v5398, %v6083
        %v6085 = vpop.f32.mrf.mxu0
        %v6086 = vadd.f32 %v5398, %v6085
        %6087 = vmatprep.mubr.f32.mxu0 0.0
        %6088 = vmatmul.mubr.f32.gmra.mxu0 %v5457
        %v6089 = vpop.f32.mrf.mxu0
        %v6090 = vadd.f32 %v5403, %v6089
        %v6091 = vpop.f32.mrf.mxu0
        %v6092 = vadd.f32 %v5403, %v6091
        %6093 = vmatprep.mubr.f32.mxu0 0.0
        %6094 = vmatmul.mubr.f32.gmra.mxu0 %v5460
        %v6095 = vpop.f32.mrf.mxu0
        %v6096 = vadd.f32 %v5408, %v6095
        %v6097 = vpop.f32.mrf.mxu0
        %v6098 = vadd.f32 %v5408, %v6097
        %6099 = vmatprep.mubr.f32.mxu0 0.0
        %6100 = vmatmul.mubr.f32.gmra.mxu0 %v5463
        %v6101 = vpop.f32.mrf.mxu0
        %v6102 = vadd.f32 %v5413, %v6101
        %v6103 = vpop.f32.mrf.mxu0
        %v6104 = vadd.f32 %v5413, %v6103
        %6105 = vmatprep.mubr.f32.mxu0 0.0
        %6106 = vmatmul.mubr.f32.gmra.mxu0 %v5466
        %v6107 = vpop.f32.mrf.mxu0
        %v6108 = vadd.f32 %v5418, %v6107
        %v6109 = vpop.f32.mrf.mxu0
        %v6110 = vadd.f32 %v5418, %v6109
        %6111 = vdwg.mxu0
        %6112 = vmatprep.subr.mxu0 0.0
        %6113 = vmatpush1.msra.mxu0 0.0
        %6114 = vmatprep.subr.mxu0 0.0
        %6115 = vmatpush1.msra.mxu0 0.0
        %6116 = vmatprep.subr.mxu0 0.0
        %6117 = vmatpush1.msra.mxu0 0.0
        %6118 = vmatprep.subr.mxu0 0.0
        %6119 = vmatpush1.msra.mxu0 0.0
        %6120 = vmatprep.subr.mxu0 0.0
        %6121 = vmatpush1.msra.mxu0 0.0
        %6122 = vmatprep.subr.mxu0 0.0
        %6123 = vmatpush1.msra.mxu0 0.0
        %6124 = vmatprep.subr.mxu0 0.0
        %6125 = vmatpush1.msra.mxu0 0.0
        %6126 = vmatprep.subr.mxu0 0.0
        %6127 = vmatpush1.msra.mxu0 0.0
        %6128 = vmatprep.subr.mxu0 0.0
        %6129 = vmatpush1.msra.mxu0 0.0
        %6130 = vmatprep.subr.mxu0 0.0
        %6131 = vmatpush1.msra.mxu0 0.0
        %6132 = vmatprep.subr.mxu0 0.0
        %6133 = vmatpush1.msra.mxu0 0.0
        %6134 = vmatprep.subr.mxu0 0.0
        %6135 = vmatpush1.msra.mxu0 0.0
        %6136 = vmatprep.subr.mxu0 %v5301
        %6137 = vmatpush1.msra.mxu0 %v5300
        %6138 = vmatprep.subr.mxu0 %v5285
        %6139 = vmatpush1.msra.mxu0 %v5284
        %6140 = vmatprep.subr.mxu0 %v5269
        %6141 = vmatpush1.msra.mxu0 %v5268
        %6142 = vmatprep.subr.mxu0 %v5253
        %6143 = vmatpush1.msra.mxu0 %v5252
        %6144 = vmatprep.subr.mxu0 0.0
        %6145 = vmatpush2.msra.mxu0 0.0
        %6146 = vmatprep.subr.mxu0 0.0
        %6147 = vmatpush2.msra.mxu0 0.0
        %6148 = vmatprep.subr.mxu0 0.0
        %6149 = vmatpush2.msra.mxu0 0.0
        %6150 = vmatprep.subr.mxu0 0.0
        %6151 = vmatpush2.msra.mxu0 0.0
        %6152 = vmatprep.subr.mxu0 0.0
        %6153 = vmatpush2.msra.mxu0 0.0
        %6154 = vmatprep.subr.mxu0 0.0
        %6155 = vmatpush2.msra.mxu0 0.0
        %6156 = vmatprep.subr.mxu0 0.0
        %6157 = vmatpush2.msra.mxu0 0.0
        %6158 = vmatprep.subr.mxu0 0.0
        %6159 = vmatpush2.msra.mxu0 0.0
        %6160 = vmatprep.subr.mxu0 0.0
        %6161 = vmatpush2.msra.mxu0 0.0
        %6162 = vmatprep.subr.mxu0 0.0
        %6163 = vmatpush2.msra.mxu0 0.0
        %6164 = vmatprep.subr.mxu0 0.0
        %6165 = vmatpush2.msra.mxu0 0.0
        %6166 = vmatprep.subr.mxu0 0.0
        %6167 = vmatpush2.msra.mxu0 0.0
        %6168 = vmatprep.subr.mxu0 0.0
        %6169 = vmatpush2.msra.mxu0 0.0
        %6170 = vmatprep.subr.mxu0 0.0
        %6171 = vmatpush2.msra.mxu0 0.0
        %6172 = vmatprep.subr.mxu0 0.0
        %6173 = vmatpush2.msra.mxu0 0.0
        %6174 = vmatprep.subr.mxu0 0.0
        %6175 = vmatpush2.msra.mxu0 0.0
        %6176 = vmatprep.mubr.f32.mxu0 0.0
        %6177 = vmatmul.mubr.f32.gmra.mxu0 %v5421
        %v6178 = vpop.f32.mrf.mxu0
        %v6179 = vadd.f32 %v5343, %v6178
        %v6180 = vpop.f32.mrf.mxu0
        %v6181 = vadd.f32 %v5343, %v6180
        %6182 = vmatprep.mubr.f32.mxu0 0.0
        %6183 = vmatmul.mubr.f32.gmra.mxu0 %v5424
        %v6184 = vpop.f32.mrf.mxu0
        %v6185 = vadd.f32 %v5348, %v6184
        %v6186 = vpop.f32.mrf.mxu0
        %v6187 = vadd.f32 %v5348, %v6186
        %6188 = vmatprep.mubr.f32.mxu0 0.0
        %6189 = vmatmul.mubr.f32.gmra.mxu0 %v5427
        %v6190 = vpop.f32.mrf.mxu0
        %v6191 = vadd.f32 %v5353, %v6190
        %v6192 = vpop.f32.mrf.mxu0
        %v6193 = vadd.f32 %v5353, %v6192
        %6194 = vmatprep.mubr.f32.mxu0 0.0
        %6195 = vmatmul.mubr.f32.gmra.mxu0 %v5430
        %v6196 = vpop.f32.mrf.mxu0
        %v6197 = vadd.f32 %v5358, %v6196
        %v6198 = vpop.f32.mrf.mxu0
        %v6199 = vadd.f32 %v5358, %v6198
        %6200 = vmatprep.mubr.f32.mxu0 0.0
        %6201 = vmatmul.mubr.f32.gmra.mxu0 %v5433
        %v6202 = vpop.f32.mrf.mxu0
        %v6203 = vadd.f32 %v5363, %v6202
        %v6204 = vpop.f32.mrf.mxu0
        %v6205 = vadd.f32 %v5363, %v6204
        %6206 = vmatprep.mubr.f32.mxu0 0.0
        %6207 = vmatmul.mubr.f32.gmra.mxu0 %v5436
        %v6208 = vpop.f32.mrf.mxu0
        %v6209 = vadd.f32 %v5368, %v6208
        %v6210 = vpop.f32.mrf.mxu0
        %v6211 = vadd.f32 %v5368, %v6210
        %6212 = vmatprep.mubr.f32.mxu0 0.0
        %6213 = vmatmul.mubr.f32.gmra.mxu0 %v5439
        %v6214 = vpop.f32.mrf.mxu0
        %v6215 = vadd.f32 %v5373, %v6214
        %v6216 = vpop.f32.mrf.mxu0
        %v6217 = vadd.f32 %v5373, %v6216
        %6218 = vmatprep.mubr.f32.mxu0 0.0
        %6219 = vmatmul.mubr.f32.gmra.mxu0 %v5442
        %v6220 = vpop.f32.mrf.mxu0
        %v6221 = vadd.f32 %v5378, %v6220
        %v6222 = vpop.f32.mrf.mxu0
        %v6223 = vadd.f32 %v5378, %v6222
        %6224 = vmatprep.mubr.f32.mxu0 0.0
        %6225 = vmatmul.mubr.f32.gmra.mxu0 %v5445
        %v6226 = vpop.f32.mrf.mxu0
        %v6227 = vadd.f32 %v5383, %v6226
        %v6228 = vpop.f32.mrf.mxu0
        %v6229 = vadd.f32 %v5383, %v6228
        %6230 = vmatprep.mubr.f32.mxu0 0.0
        %6231 = vmatmul.mubr.f32.gmra.mxu0 %v5448
        %v6232 = vpop.f32.mrf.mxu0
        %v6233 = vadd.f32 %v5388, %v6232
        %v6234 = vpop.f32.mrf.mxu0
        %v6235 = vadd.f32 %v5388, %v6234
        %6236 = vmatprep.mubr.f32.mxu0 0.0
        %6237 = vmatmul.mubr.f32.gmra.mxu0 %v5451
        %v6238 = vpop.f32.mrf.mxu0
        %v6239 = vadd.f32 %v5393, %v6238
        %v6240 = vpop.f32.mrf.mxu0
        %v6241 = vadd.f32 %v5393, %v6240
        %6242 = vmatprep.mubr.f32.mxu0 0.0
        %6243 = vmatmul.mubr.f32.gmra.mxu0 %v5454
        %v6244 = vpop.f32.mrf.mxu0
        %v6245 = vadd.f32 %v5398, %v6244
        %v6246 = vpop.f32.mrf.mxu0
        %v6247 = vadd.f32 %v5398, %v6246
        %6248 = vmatprep.mubr.f32.mxu0 0.0
        %6249 = vmatmul.mubr.f32.gmra.mxu0 %v5457
        %v6250 = vpop.f32.mrf.mxu0
        %v6251 = vadd.f32 %v5403, %v6250
        %v6252 = vpop.f32.mrf.mxu0
        %v6253 = vadd.f32 %v5403, %v6252
        %6254 = vmatprep.mubr.f32.mxu0 0.0
        %6255 = vmatmul.mubr.f32.gmra.mxu0 %v5460
        %v6256 = vpop.f32.mrf.mxu0
        %v6257 = vadd.f32 %v5408, %v6256
        %v6258 = vpop.f32.mrf.mxu0
        %v6259 = vadd.f32 %v5408, %v6258
        %6260 = vmatprep.mubr.f32.mxu0 0.0
        %6261 = vmatmul.mubr.f32.gmra.mxu0 %v5463
        %v6262 = vpop.f32.mrf.mxu0
        %v6263 = vadd.f32 %v5413, %v6262
        %v6264 = vpop.f32.mrf.mxu0
        %v6265 = vadd.f32 %v5413, %v6264
        %6266 = vmatprep.mubr.f32.mxu0 0.0
        %6267 = vmatmul.mubr.f32.gmra.mxu0 %v5466
        %v6268 = vpop.f32.mrf.mxu0
        %v6269 = vadd.f32 %v5418, %v6268
        %v6270 = vpop.f32.mrf.mxu0
        %v6271 = vadd.f32 %v5418, %v6270
        %6272 = vdwg.mxu0
        %6273 = vmatprep.subr.mxu0 0.0
        %6274 = vmatpush1.msra.mxu0 0.0
        %6275 = vmatprep.subr.mxu0 0.0
        %6276 = vmatpush1.msra.mxu0 0.0
        %6277 = vmatprep.subr.mxu0 0.0
        %6278 = vmatpush1.msra.mxu0 0.0
        %6279 = vmatprep.subr.mxu0 0.0
        %6280 = vmatpush1.msra.mxu0 0.0
        %6281 = vmatprep.subr.mxu0 0.0
        %6282 = vmatpush1.msra.mxu0 0.0
        %6283 = vmatprep.subr.mxu0 0.0
        %6284 = vmatpush1.msra.mxu0 0.0
        %6285 = vmatprep.subr.mxu0 0.0
        %6286 = vmatpush1.msra.mxu0 0.0
        %6287 = vmatprep.subr.mxu0 0.0
        %6288 = vmatpush1.msra.mxu0 0.0
        %6289 = vmatprep.subr.mxu0 0.0
        %6290 = vmatpush1.msra.mxu0 0.0
        %6291 = vmatprep.subr.mxu0 0.0
        %6292 = vmatpush1.msra.mxu0 0.0
        %6293 = vmatprep.subr.mxu0 0.0
        %6294 = vmatpush1.msra.mxu0 0.0
        %6295 = vmatprep.subr.mxu0 0.0
        %6296 = vmatpush1.msra.mxu0 0.0
        %6297 = vmatprep.subr.mxu0 %v5303
        %6298 = vmatpush1.msra.mxu0 %v5302
        %6299 = vmatprep.subr.mxu0 %v5287
        %6300 = vmatpush1.msra.mxu0 %v5286
        %6301 = vmatprep.subr.mxu0 %v5271
        %6302 = vmatpush1.msra.mxu0 %v5270
        %6303 = vmatprep.subr.mxu0 %v5255
        %6304 = vmatpush1.msra.mxu0 %v5254
        %6305 = vmatprep.subr.mxu0 0.0
        %6306 = vmatpush2.msra.mxu0 0.0
        %6307 = vmatprep.subr.mxu0 0.0
        %6308 = vmatpush2.msra.mxu0 0.0
        %6309 = vmatprep.subr.mxu0 0.0
        %6310 = vmatpush2.msra.mxu0 0.0
        %6311 = vmatprep.subr.mxu0 0.0
        %6312 = vmatpush2.msra.mxu0 0.0
        %6313 = vmatprep.subr.mxu0 0.0
        %6314 = vmatpush2.msra.mxu0 0.0
        %6315 = vmatprep.subr.mxu0 0.0
        %6316 = vmatpush2.msra.mxu0 0.0
        %6317 = vmatprep.subr.mxu0 0.0
        %6318 = vmatpush2.msra.mxu0 0.0
        %6319 = vmatprep.subr.mxu0 0.0
        %6320 = vmatpush2.msra.mxu0 0.0
        %6321 = vmatprep.subr.mxu0 0.0
        %6322 = vmatpush2.msra.mxu0 0.0
        %6323 = vmatprep.subr.mxu0 0.0
        %6324 = vmatpush2.msra.mxu0 0.0
        %6325 = vmatprep.subr.mxu0 0.0
        %6326 = vmatpush2.msra.mxu0 0.0
        %6327 = vmatprep.subr.mxu0 0.0
        %6328 = vmatpush2.msra.mxu0 0.0
        %6329 = vmatprep.subr.mxu0 0.0
        %6330 = vmatpush2.msra.mxu0 0.0
        %6331 = vmatprep.subr.mxu0 0.0
        %6332 = vmatpush2.msra.mxu0 0.0
        %6333 = vmatprep.subr.mxu0 0.0
        %6334 = vmatpush2.msra.mxu0 0.0
        %6335 = vmatprep.subr.mxu0 0.0
        %6336 = vmatpush2.msra.mxu0 0.0
        %6337 = vmatprep.mubr.f32.mxu0 0.0
        %6338 = vmatmul.mubr.f32.gmra.mxu0 %v5421
        %v6339 = vpop.f32.mrf.mxu0
        %v6340 = vadd.f32 %v5343, %v6339
        %v6341 = vpop.f32.mrf.mxu0
        %v6342 = vadd.f32 %v5343, %v6341
        %6343 = vmatprep.mubr.f32.mxu0 0.0
        %6344 = vmatmul.mubr.f32.gmra.mxu0 %v5424
        %v6345 = vpop.f32.mrf.mxu0
        %v6346 = vadd.f32 %v5348, %v6345
        %v6347 = vpop.f32.mrf.mxu0
        %v6348 = vadd.f32 %v5348, %v6347
        %6349 = vmatprep.mubr.f32.mxu0 0.0
        %6350 = vmatmul.mubr.f32.gmra.mxu0 %v5427
        %v6351 = vpop.f32.mrf.mxu0
        %v6352 = vadd.f32 %v5353, %v6351
        %v6353 = vpop.f32.mrf.mxu0
        %v6354 = vadd.f32 %v5353, %v6353
        %6355 = vmatprep.mubr.f32.mxu0 0.0
        %6356 = vmatmul.mubr.f32.gmra.mxu0 %v5430
        %v6357 = vpop.f32.mrf.mxu0
        %v6358 = vadd.f32 %v5358, %v6357
        %v6359 = vpop.f32.mrf.mxu0
        %v6360 = vadd.f32 %v5358, %v6359
        %6361 = vmatprep.mubr.f32.mxu0 0.0
        %6362 = vmatmul.mubr.f32.gmra.mxu0 %v5433
        %v6363 = vpop.f32.mrf.mxu0
        %v6364 = vadd.f32 %v5363, %v6363
        %v6365 = vpop.f32.mrf.mxu0
        %v6366 = vadd.f32 %v5363, %v6365
        %6367 = vmatprep.mubr.f32.mxu0 0.0
        %6368 = vmatmul.mubr.f32.gmra.mxu0 %v5436
        %v6369 = vpop.f32.mrf.mxu0
        %v6370 = vadd.f32 %v5368, %v6369
        %v6371 = vpop.f32.mrf.mxu0
        %v6372 = vadd.f32 %v5368, %v6371
        %6373 = vmatprep.mubr.f32.mxu0 0.0
        %6374 = vmatmul.mubr.f32.gmra.mxu0 %v5439
        %v6375 = vpop.f32.mrf.mxu0
        %v6376 = vadd.f32 %v5373, %v6375
        %v6377 = vpop.f32.mrf.mxu0
        %v6378 = vadd.f32 %v5373, %v6377
        %6379 = vmatprep.mubr.f32.mxu0 0.0
        %6380 = vmatmul.mubr.f32.gmra.mxu0 %v5442
        %v6381 = vpop.f32.mrf.mxu0
        %v6382 = vadd.f32 %v5378, %v6381
        %v6383 = vpop.f32.mrf.mxu0
        %v6384 = vadd.f32 %v5378, %v6383
        %6385 = vmatprep.mubr.f32.mxu0 0.0
        %6386 = vmatmul.mubr.f32.gmra.mxu0 %v5445
        %v6387 = vpop.f32.mrf.mxu0
        %v6388 = vadd.f32 %v5383, %v6387
        %v6389 = vpop.f32.mrf.mxu0
        %v6390 = vadd.f32 %v5383, %v6389
        %6391 = vmatprep.mubr.f32.mxu0 0.0
        %6392 = vmatmul.mubr.f32.gmra.mxu0 %v5448
        %v6393 = vpop.f32.mrf.mxu0
        %v6394 = vadd.f32 %v5388, %v6393
        %v6395 = vpop.f32.mrf.mxu0
        %v6396 = vadd.f32 %v5388, %v6395
        %6397 = vmatprep.mubr.f32.mxu0 0.0
        %6398 = vmatmul.mubr.f32.gmra.mxu0 %v5451
        %v6399 = vpop.f32.mrf.mxu0
        %v6400 = vadd.f32 %v5393, %v6399
        %v6401 = vpop.f32.mrf.mxu0
        %v6402 = vadd.f32 %v5393, %v6401
        %6403 = vmatprep.mubr.f32.mxu0 0.0
        %6404 = vmatmul.mubr.f32.gmra.mxu0 %v5454
        %v6405 = vpop.f32.mrf.mxu0
        %v6406 = vadd.f32 %v5398, %v6405
        %v6407 = vpop.f32.mrf.mxu0
        %v6408 = vadd.f32 %v5398, %v6407
        %6409 = vmatprep.mubr.f32.mxu0 0.0
        %6410 = vmatmul.mubr.f32.gmra.mxu0 %v5457
        %v6411 = vpop.f32.mrf.mxu0
        %v6412 = vadd.f32 %v5403, %v6411
        %v6413 = vpop.f32.mrf.mxu0
        %v6414 = vadd.f32 %v5403, %v6413
        %6415 = vmatprep.mubr.f32.mxu0 0.0
        %6416 = vmatmul.mubr.f32.gmra.mxu0 %v5460
        %v6417 = vpop.f32.mrf.mxu0
        %v6418 = vadd.f32 %v5408, %v6417
        %v6419 = vpop.f32.mrf.mxu0
        %v6420 = vadd.f32 %v5408, %v6419
        %6421 = vmatprep.mubr.f32.mxu0 0.0
        %6422 = vmatmul.mubr.f32.gmra.mxu0 %v5463
        %v6423 = vpop.f32.mrf.mxu0
        %v6424 = vadd.f32 %v5413, %v6423
        %v6425 = vpop.f32.mrf.mxu0
        %v6426 = vadd.f32 %v5413, %v6425
        %6427 = vmatprep.mubr.f32.mxu0 0.0
        %6428 = vmatmul.mubr.f32.gmra.mxu0 %v5466
        %v6429 = vpop.f32.mrf.mxu0
        %v6430 = vadd.f32 %v5418, %v6429
        %v6431 = vpop.f32.mrf.mxu0
        %v6432 = vadd.f32 %v5418, %v6431
        %6433 = vdwg.mxu0
        %6434 = vmatprep.subr.mxu0 0.0
        %6435 = vmatpush1.msra.mxu0 0.0
        %6436 = vmatprep.subr.mxu0 0.0
        %6437 = vmatpush1.msra.mxu0 0.0
        %6438 = vmatprep.subr.mxu0 0.0
        %6439 = vmatpush1.msra.mxu0 0.0
        %6440 = vmatprep.subr.mxu0 0.0
        %6441 = vmatpush1.msra.mxu0 0.0
        %6442 = vmatprep.subr.mxu0 0.0
        %6443 = vmatpush1.msra.mxu0 0.0
        %6444 = vmatprep.subr.mxu0 0.0
        %6445 = vmatpush1.msra.mxu0 0.0
        %6446 = vmatprep.subr.mxu0 0.0
        %6447 = vmatpush1.msra.mxu0 0.0
        %6448 = vmatprep.subr.mxu0 0.0
        %6449 = vmatpush1.msra.mxu0 0.0
        %6450 = vmatprep.subr.mxu0 0.0
        %6451 = vmatpush1.msra.mxu0 0.0
        %6452 = vmatprep.subr.mxu0 0.0
        %6453 = vmatpush1.msra.mxu0 0.0
        %6454 = vmatprep.subr.mxu0 0.0
        %6455 = vmatpush1.msra.mxu0 0.0
        %6456 = vmatprep.subr.mxu0 0.0
        %6457 = vmatpush1.msra.mxu0 0.0
        %6458 = vmatprep.subr.mxu0 %v5305
        %6459 = vmatpush1.msra.mxu0 %v5304
        %6460 = vmatprep.subr.mxu0 %v5289
        %6461 = vmatpush1.msra.mxu0 %v5288
        %6462 = vmatprep.subr.mxu0 %v5273
        %6463 = vmatpush1.msra.mxu0 %v5272
        %6464 = vmatprep.subr.mxu0 %v5257
        %6465 = vmatpush1.msra.mxu0 %v5256
        %6466 = vmatprep.subr.mxu0 0.0
        %6467 = vmatpush2.msra.mxu0 0.0
        %6468 = vmatprep.subr.mxu0 0.0
        %6469 = vmatpush2.msra.mxu0 0.0
        %6470 = vmatprep.subr.mxu0 0.0
        %6471 = vmatpush2.msra.mxu0 0.0
        %6472 = vmatprep.subr.mxu0 0.0
        %6473 = vmatpush2.msra.mxu0 0.0
        %6474 = vmatprep.subr.mxu0 0.0
        %6475 = vmatpush2.msra.mxu0 0.0
        %6476 = vmatprep.subr.mxu0 0.0
        %6477 = vmatpush2.msra.mxu0 0.0
        %6478 = vmatprep.subr.mxu0 0.0
        %6479 = vmatpush2.msra.mxu0 0.0
        %6480 = vmatprep.subr.mxu0 0.0
        %6481 = vmatpush2.msra.mxu0 0.0
        %6482 = vmatprep.subr.mxu0 0.0
        %6483 = vmatpush2.msra.mxu0 0.0
        %6484 = vmatprep.subr.mxu0 0.0
        %6485 = vmatpush2.msra.mxu0 0.0
        %6486 = vmatprep.subr.mxu0 0.0
        %6487 = vmatpush2.msra.mxu0 0.0
        %6488 = vmatprep.subr.mxu0 0.0
        %6489 = vmatpush2.msra.mxu0 0.0
        %6490 = vmatprep.subr.mxu0 0.0
        %6491 = vmatpush2.msra.mxu0 0.0
        %6492 = vmatprep.subr.mxu0 0.0
        %6493 = vmatpush2.msra.mxu0 0.0
        %6494 = vmatprep.subr.mxu0 0.0
        %6495 = vmatpush2.msra.mxu0 0.0
        %6496 = vmatprep.subr.mxu0 0.0
        %6497 = vmatpush2.msra.mxu0 0.0
        %6498 = vmatprep.mubr.f32.mxu0 0.0
        %6499 = vmatmul.mubr.f32.gmra.mxu0 %v5421
        %v6500 = vpop.f32.mrf.mxu0
        %v6501 = vadd.f32 %v5343, %v6500
        %v6502 = vpop.f32.mrf.mxu0
        %v6503 = vadd.f32 %v5343, %v6502
        %6504 = vmatprep.mubr.f32.mxu0 0.0
        %6505 = vmatmul.mubr.f32.gmra.mxu0 %v5424
        %v6506 = vpop.f32.mrf.mxu0
        %v6507 = vadd.f32 %v5348, %v6506
        %v6508 = vpop.f32.mrf.mxu0
        %v6509 = vadd.f32 %v5348, %v6508
        %6510 = vmatprep.mubr.f32.mxu0 0.0
        %6511 = vmatmul.mubr.f32.gmra.mxu0 %v5427
        %v6512 = vpop.f32.mrf.mxu0
        %v6513 = vadd.f32 %v5353, %v6512
        %v6514 = vpop.f32.mrf.mxu0
        %v6515 = vadd.f32 %v5353, %v6514
        %6516 = vmatprep.mubr.f32.mxu0 0.0
        %6517 = vmatmul.mubr.f32.gmra.mxu0 %v5430
        %v6518 = vpop.f32.mrf.mxu0
        %v6519 = vadd.f32 %v5358, %v6518
        %v6520 = vpop.f32.mrf.mxu0
        %v6521 = vadd.f32 %v5358, %v6520
        %6522 = vmatprep.mubr.f32.mxu0 0.0
        %6523 = vmatmul.mubr.f32.gmra.mxu0 %v5433
        %v6524 = vpop.f32.mrf.mxu0
        %v6525 = vadd.f32 %v5363, %v6524
        %v6526 = vpop.f32.mrf.mxu0
        %v6527 = vadd.f32 %v5363, %v6526
        %6528 = vmatprep.mubr.f32.mxu0 0.0
        %6529 = vmatmul.mubr.f32.gmra.mxu0 %v5436
        %v6530 = vpop.f32.mrf.mxu0
        %v6531 = vadd.f32 %v5368, %v6530
        %v6532 = vpop.f32.mrf.mxu0
        %v6533 = vadd.f32 %v5368, %v6532
        %6534 = vmatprep.mubr.f32.mxu0 0.0
        %6535 = vmatmul.mubr.f32.gmra.mxu0 %v5439
        %v6536 = vpop.f32.mrf.mxu0
        %v6537 = vadd.f32 %v5373, %v6536
        %v6538 = vpop.f32.mrf.mxu0
        %v6539 = vadd.f32 %v5373, %v6538
        %6540 = vmatprep.mubr.f32.mxu0 0.0
        %6541 = vmatmul.mubr.f32.gmra.mxu0 %v5442
        %v6542 = vpop.f32.mrf.mxu0
        %v6543 = vadd.f32 %v5378, %v6542
        %v6544 = vpop.f32.mrf.mxu0
        %v6545 = vadd.f32 %v5378, %v6544
        %6546 = vmatprep.mubr.f32.mxu0 0.0
        %6547 = vmatmul.mubr.f32.gmra.mxu0 %v5445
        %v6548 = vpop.f32.mrf.mxu0
        %v6549 = vadd.f32 %v5383, %v6548
        %v6550 = vpop.f32.mrf.mxu0
        %v6551 = vadd.f32 %v5383, %v6550
        %6552 = vmatprep.mubr.f32.mxu0 0.0
        %6553 = vmatmul.mubr.f32.gmra.mxu0 %v5448
        %v6554 = vpop.f32.mrf.mxu0
        %v6555 = vadd.f32 %v5388, %v6554
        %v6556 = vpop.f32.mrf.mxu0
        %v6557 = vadd.f32 %v5388, %v6556
        %6558 = vmatprep.mubr.f32.mxu0 0.0
        %6559 = vmatmul.mubr.f32.gmra.mxu0 %v5451
        %v6560 = vpop.f32.mrf.mxu0
        %v6561 = vadd.f32 %v5393, %v6560
        %v6562 = vpop.f32.mrf.mxu0
        %v6563 = vadd.f32 %v5393, %v6562
        %6564 = vmatprep.mubr.f32.mxu0 0.0
        %6565 = vmatmul.mubr.f32.gmra.mxu0 %v5454
        %v6566 = vpop.f32.mrf.mxu0
        %v6567 = vadd.f32 %v5398, %v6566
        %v6568 = vpop.f32.mrf.mxu0
        %v6569 = vadd.f32 %v5398, %v6568
        %6570 = vmatprep.mubr.f32.mxu0 0.0
        %6571 = vmatmul.mubr.f32.gmra.mxu0 %v5457
        %v6572 = vpop.f32.mrf.mxu0
        %v6573 = vadd.f32 %v5403, %v6572
        %v6574 = vpop.f32.mrf.mxu0
        %v6575 = vadd.f32 %v5403, %v6574
        %6576 = vmatprep.mubr.f32.mxu0 0.0
        %6577 = vmatmul.mubr.f32.gmra.mxu0 %v5460
        %v6578 = vpop.f32.mrf.mxu0
        %v6579 = vadd.f32 %v5408, %v6578
        %v6580 = vpop.f32.mrf.mxu0
        %v6581 = vadd.f32 %v5408, %v6580
        %6582 = vmatprep.mubr.f32.mxu0 0.0
        %6583 = vmatmul.mubr.f32.gmra.mxu0 %v5463
        %v6584 = vpop.f32.mrf.mxu0
        %v6585 = vadd.f32 %v5413, %v6584
        %v6586 = vpop.f32.mrf.mxu0
        %v6587 = vadd.f32 %v5413, %v6586
        %6588 = vmatprep.mubr.f32.mxu0 0.0
        %6589 = vmatmul.mubr.f32.gmra.mxu0 %v5466
        %v6590 = vpop.f32.mrf.mxu0
        %v6591 = vadd.f32 %v5418, %v6590
        %v6592 = vpop.f32.mrf.mxu0
        %v6593 = vadd.f32 %v5418, %v6592
        %6594 = vdwg.mxu0
        %6595 = vmatprep.subr.mxu0 0.0
        %6596 = vmatpush1.msra.mxu0 0.0
        %6597 = vmatprep.subr.mxu0 0.0
        %6598 = vmatpush1.msra.mxu0 0.0
        %6599 = vmatprep.subr.mxu0 0.0
        %6600 = vmatpush1.msra.mxu0 0.0
        %6601 = vmatprep.subr.mxu0 0.0
        %6602 = vmatpush1.msra.mxu0 0.0
        %6603 = vmatprep.subr.mxu0 0.0
        %6604 = vmatpush1.msra.mxu0 0.0
        %6605 = vmatprep.subr.mxu0 0.0
        %6606 = vmatpush1.msra.mxu0 0.0
        %6607 = vmatprep.subr.mxu0 0.0
        %6608 = vmatpush1.msra.mxu0 0.0
        %6609 = vmatprep.subr.mxu0 0.0
        %6610 = vmatpush1.msra.mxu0 0.0
        %6611 = vmatprep.subr.mxu0 0.0
        %6612 = vmatpush1.msra.mxu0 0.0
        %6613 = vmatprep.subr.mxu0 0.0
        %6614 = vmatpush1.msra.mxu0 0.0
        %6615 = vmatprep.subr.mxu0 0.0
        %6616 = vmatpush1.msra.mxu0 0.0
        %6617 = vmatprep.subr.mxu0 0.0
        %6618 = vmatpush1.msra.mxu0 0.0
        %6619 = vmatprep.subr.mxu0 %v5307
        %6620 = vmatpush1.msra.mxu0 %v5306
        %6621 = vmatprep.subr.mxu0 %v5291
        %6622 = vmatpush1.msra.mxu0 %v5290
        %6623 = vmatprep.subr.mxu0 %v5275
        %6624 = vmatpush1.msra.mxu0 %v5274
        %6625 = vmatprep.subr.mxu0 %v5259
        %6626 = vmatpush1.msra.mxu0 %v5258
        %6627 = vmatprep.subr.mxu0 0.0
        %6628 = vmatpush2.msra.mxu0 0.0
        %6629 = vmatprep.subr.mxu0 0.0
        %6630 = vmatpush2.msra.mxu0 0.0
        %6631 = vmatprep.subr.mxu0 0.0
        %6632 = vmatpush2.msra.mxu0 0.0
        %6633 = vmatprep.subr.mxu0 0.0
        %6634 = vmatpush2.msra.mxu0 0.0
        %6635 = vmatprep.subr.mxu0 0.0
        %6636 = vmatpush2.msra.mxu0 0.0
        %6637 = vmatprep.subr.mxu0 0.0
        %6638 = vmatpush2.msra.mxu0 0.0
        %6639 = vmatprep.subr.mxu0 0.0
        %6640 = vmatpush2.msra.mxu0 0.0
        %6641 = vmatprep.subr.mxu0 0.0
        %6642 = vmatpush2.msra.mxu0 0.0
        %6643 = vmatprep.subr.mxu0 0.0
        %6644 = vmatpush2.msra.mxu0 0.0
        %6645 = vmatprep.subr.mxu0 0.0
        %6646 = vmatpush2.msra.mxu0 0.0
        %6647 = vmatprep.subr.mxu0 0.0
        %6648 = vmatpush2.msra.mxu0 0.0
        %6649 = vmatprep.subr.mxu0 0.0
        %6650 = vmatpush2.msra.mxu0 0.0
        %6651 = vmatprep.subr.mxu0 0.0
        %6652 = vmatpush2.msra.mxu0 0.0
        %6653 = vmatprep.subr.mxu0 0.0
        %6654 = vmatpush2.msra.mxu0 0.0
        %6655 = vmatprep.subr.mxu0 0.0
        %6656 = vmatpush2.msra.mxu0 0.0
        %6657 = vmatprep.subr.mxu0 0.0
        %6658 = vmatpush2.msra.mxu0 0.0
        %6659 = vmatprep.mubr.f32.mxu0 0.0
        %6660 = vmatmul.mubr.f32.gmra.mxu0 %v5421
        %v6661 = vpop.f32.mrf.mxu0
        %v6662 = vadd.f32 %v5343, %v6661
        %v6663 = vpop.f32.mrf.mxu0
        %v6664 = vadd.f32 %v5343, %v6663
        %6665 = vmatprep.mubr.f32.mxu0 0.0
        %6666 = vmatmul.mubr.f32.gmra.mxu0 %v5424
        %v6667 = vpop.f32.mrf.mxu0
        %v6668 = vadd.f32 %v5348, %v6667
        %v6669 = vpop.f32.mrf.mxu0
        %v6670 = vadd.f32 %v5348, %v6669
        %6671 = vmatprep.mubr.f32.mxu0 0.0
        %6672 = vmatmul.mubr.f32.gmra.mxu0 %v5427
        %v6673 = vpop.f32.mrf.mxu0
        %v6674 = vadd.f32 %v5353, %v6673
        %v6675 = vpop.f32.mrf.mxu0
        %v6676 = vadd.f32 %v5353, %v6675
        %6677 = vmatprep.mubr.f32.mxu0 0.0
        %6678 = vmatmul.mubr.f32.gmra.mxu0 %v5430
        %v6679 = vpop.f32.mrf.mxu0
        %v6680 = vadd.f32 %v5358, %v6679
        %v6681 = vpop.f32.mrf.mxu0
        %v6682 = vadd.f32 %v5358, %v6681
        %6683 = vmatprep.mubr.f32.mxu0 0.0
        %6684 = vmatmul.mubr.f32.gmra.mxu0 %v5433
        %v6685 = vpop.f32.mrf.mxu0
        %v6686 = vadd.f32 %v5363, %v6685
        %v6687 = vpop.f32.mrf.mxu0
        %v6688 = vadd.f32 %v5363, %v6687
        %6689 = vmatprep.mubr.f32.mxu0 0.0
        %6690 = vmatmul.mubr.f32.gmra.mxu0 %v5436
        %v6691 = vpop.f32.mrf.mxu0
        %v6692 = vadd.f32 %v5368, %v6691
        %v6693 = vpop.f32.mrf.mxu0
        %v6694 = vadd.f32 %v5368, %v6693
        %6695 = vmatprep.mubr.f32.mxu0 0.0
        %6696 = vmatmul.mubr.f32.gmra.mxu0 %v5439
        %v6697 = vpop.f32.mrf.mxu0
        %v6698 = vadd.f32 %v5373, %v6697
        %v6699 = vpop.f32.mrf.mxu0
        %v6700 = vadd.f32 %v5373, %v6699
        %6701 = vmatprep.mubr.f32.mxu0 0.0
        %6702 = vmatmul.mubr.f32.gmra.mxu0 %v5442
        %v6703 = vpop.f32.mrf.mxu0
        %v6704 = vadd.f32 %v5378, %v6703
        %v6705 = vpop.f32.mrf.mxu0
        %v6706 = vadd.f32 %v5378, %v6705
        %6707 = vmatprep.mubr.f32.mxu0 0.0
        %6708 = vmatmul.mubr.f32.gmra.mxu0 %v5445
        %v6709 = vpop.f32.mrf.mxu0
        %v6710 = vadd.f32 %v5383, %v6709
        %v6711 = vpop.f32.mrf.mxu0
        %v6712 = vadd.f32 %v5383, %v6711
        %6713 = vmatprep.mubr.f32.mxu0 0.0
        %6714 = vmatmul.mubr.f32.gmra.mxu0 %v5448
        %v6715 = vpop.f32.mrf.mxu0
        %v6716 = vadd.f32 %v5388, %v6715
        %v6717 = vpop.f32.mrf.mxu0
        %v6718 = vadd.f32 %v5388, %v6717
        %6719 = vmatprep.mubr.f32.mxu0 0.0
        %6720 = vmatmul.mubr.f32.gmra.mxu0 %v5451
        %v6721 = vpop.f32.mrf.mxu0
        %v6722 = vadd.f32 %v5393, %v6721
        %v6723 = vpop.f32.mrf.mxu0
        %v6724 = vadd.f32 %v5393, %v6723
        %6725 = vmatprep.mubr.f32.mxu0 0.0
        %6726 = vmatmul.mubr.f32.gmra.mxu0 %v5454
        %v6727 = vpop.f32.mrf.mxu0
        %v6728 = vadd.f32 %v5398, %v6727
        %v6729 = vpop.f32.mrf.mxu0
        %v6730 = vadd.f32 %v5398, %v6729
        %6731 = vmatprep.mubr.f32.mxu0 0.0
        %6732 = vmatmul.mubr.f32.gmra.mxu0 %v5457
        %v6733 = vpop.f32.mrf.mxu0
        %v6734 = vadd.f32 %v5403, %v6733
        %v6735 = vpop.f32.mrf.mxu0
        %v6736 = vadd.f32 %v5403, %v6735
        %6737 = vmatprep.mubr.f32.mxu0 0.0
        %6738 = vmatmul.mubr.f32.gmra.mxu0 %v5460
        %v6739 = vpop.f32.mrf.mxu0
        %v6740 = vadd.f32 %v5408, %v6739
        %v6741 = vpop.f32.mrf.mxu0
        %v6742 = vadd.f32 %v5408, %v6741
        %6743 = vmatprep.mubr.f32.mxu0 0.0
        %6744 = vmatmul.mubr.f32.gmra.mxu0 %v5463
        %v6745 = vpop.f32.mrf.mxu0
        %v6746 = vadd.f32 %v5413, %v6745
        %v6747 = vpop.f32.mrf.mxu0
        %v6748 = vadd.f32 %v5413, %v6747
        %6749 = vmatprep.mubr.f32.mxu0 0.0
        %6750 = vmatmul.mubr.f32.gmra.mxu0 %v5466
        %v6751 = vpop.f32.mrf.mxu0
        %v6752 = vadd.f32 %v5418, %v6751
        %v6753 = vpop.f32.mrf.mxu0
        %v6754 = vadd.f32 %v5418, %v6753
        %6755 = vdwg.mxu0
        %v6756 = vmul.f32 %v5535, 0.05
        %v6757 = vmul.f32 %v5537, 0.05
        %v6758 = vmul.f32 %v5696, 0.05
        %v6759 = vmul.f32 %v5698, 0.05
        %v6760 = vmul.f32 %v5857, 0.05
        %v6761 = vmul.f32 %v5859, 0.05
        %v6762 = vmul.f32 %v6018, 0.05
        %v6763 = vmul.f32 %v6020, 0.05
        %v6764 = vmul.f32 %v6179, 0.05
        %v6765 = vmul.f32 %v6181, 0.05
        %v6766 = vmul.f32 %v6340, 0.05
        %v6767 = vmul.f32 %v6342, 0.05
        %v6768 = vmul.f32 %v6501, 0.05
        %v6769 = vmul.f32 %v6503, 0.05
        %v6770 = vmul.f32 %v6662, 0.05
        %v6771 = vmul.f32 %v6664, 0.05
        %v6772 = vmul.f32 %v5541, 0.05
        %v6773 = vmul.f32 %v5543, 0.05
        %v6774 = vmul.f32 %v5702, 0.05
        %v6775 = vmul.f32 %v5704, 0.05
        %v6776 = vmul.f32 %v5863, 0.05
        %v6777 = vmul.f32 %v5865, 0.05
        %v6778 = vmul.f32 %v6024, 0.05
        %v6779 = vmul.f32 %v6026, 0.05
        %v6780 = vmul.f32 %v6185, 0.05
        %v6781 = vmul.f32 %v6187, 0.05
        %v6782 = vmul.f32 %v6346, 0.05
        %v6783 = vmul.f32 %v6348, 0.05
        %v6784 = vmul.f32 %v6507, 0.05
        %v6785 = vmul.f32 %v6509, 0.05
        %v6786 = vmul.f32 %v6668, 0.05
        %v6787 = vmul.f32 %v6670, 0.05
        %v6788 = vmul.f32 %v5547, 0.05
        %v6789 = vmul.f32 %v5549, 0.05
        %v6790 = vmul.f32 %v5708, 0.05
        %v6791 = vmul.f32 %v5710, 0.05
        %v6792 = vmul.f32 %v5869, 0.05
        %v6793 = vmul.f32 %v5871, 0.05
        %v6794 = vmul.f32 %v6030, 0.05
        %v6795 = vmul.f32 %v6032, 0.05
        %v6796 = vmul.f32 %v6191, 0.05
        %v6797 = vmul.f32 %v6193, 0.05
        %v6798 = vmul.f32 %v6352, 0.05
        %v6799 = vmul.f32 %v6354, 0.05
        %v6800 = vmul.f32 %v6513, 0.05
        %v6801 = vmul.f32 %v6515, 0.05
        %v6802 = vmul.f32 %v6674, 0.05
        %v6803 = vmul.f32 %v6676, 0.05
        %v6804 = vmul.f32 %v5553, 0.05
        %v6805 = vmul.f32 %v5555, 0.05
        %v6806 = vmul.f32 %v5714, 0.05
        %v6807 = vmul.f32 %v5716, 0.05
        %v6808 = vmul.f32 %v5875, 0.05
        %v6809 = vmul.f32 %v5877, 0.05
        %v6810 = vmul.f32 %v6036, 0.05
        %v6811 = vmul.f32 %v6038, 0.05
        %v6812 = vmul.f32 %v6197, 0.05
        %v6813 = vmul.f32 %v6199, 0.05
        %v6814 = vmul.f32 %v6358, 0.05
        %v6815 = vmul.f32 %v6360, 0.05
        %v6816 = vmul.f32 %v6519, 0.05
        %v6817 = vmul.f32 %v6521, 0.05
        %v6818 = vmul.f32 %v6680, 0.05
        %v6819 = vmul.f32 %v6682, 0.05
        %v6820 = vmul.f32 %v5559, 0.05
        %v6821 = vmul.f32 %v5561, 0.05
        %v6822 = vmul.f32 %v5720, 0.05
        %v6823 = vmul.f32 %v5722, 0.05
        %v6824 = vmul.f32 %v5881, 0.05
        %v6825 = vmul.f32 %v5883, 0.05
        %v6826 = vmul.f32 %v6042, 0.05
        %v6827 = vmul.f32 %v6044, 0.05
        %v6828 = vmul.f32 %v6203, 0.05
        %v6829 = vmul.f32 %v6205, 0.05
        %v6830 = vmul.f32 %v6364, 0.05
        %v6831 = vmul.f32 %v6366, 0.05
        %v6832 = vmul.f32 %v6525, 0.05
        %v6833 = vmul.f32 %v6527, 0.05
        %v6834 = vmul.f32 %v6686, 0.05
        %v6835 = vmul.f32 %v6688, 0.05
        %v6836 = vmul.f32 %v5565, 0.05
        %v6837 = vmul.f32 %v5567, 0.05
        %v6838 = vmul.f32 %v5726, 0.05
        %v6839 = vmul.f32 %v5728, 0.05
        %v6840 = vmul.f32 %v5887, 0.05
        %v6841 = vmul.f32 %v5889, 0.05
        %v6842 = vmul.f32 %v6048, 0.05
        %v6843 = vmul.f32 %v6050, 0.05
        %v6844 = vmul.f32 %v6209, 0.05
        %v6845 = vmul.f32 %v6211, 0.05
        %v6846 = vmul.f32 %v6370, 0.05
        %v6847 = vmul.f32 %v6372, 0.05
        %v6848 = vmul.f32 %v6531, 0.05
        %v6849 = vmul.f32 %v6533, 0.05
        %v6850 = vmul.f32 %v6692, 0.05
        %v6851 = vmul.f32 %v6694, 0.05
        %v6852 = vmul.f32 %v5571, 0.05
        %v6853 = vmul.f32 %v5573, 0.05
        %v6854 = vmul.f32 %v5732, 0.05
        %v6855 = vmul.f32 %v5734, 0.05
        %v6856 = vmul.f32 %v5893, 0.05
        %v6857 = vmul.f32 %v5895, 0.05
        %v6858 = vmul.f32 %v6054, 0.05
        %v6859 = vmul.f32 %v6056, 0.05
        %v6860 = vmul.f32 %v6215, 0.05
        %v6861 = vmul.f32 %v6217, 0.05
        %v6862 = vmul.f32 %v6376, 0.05
        %v6863 = vmul.f32 %v6378, 0.05
        %v6864 = vmul.f32 %v6537, 0.05
        %v6865 = vmul.f32 %v6539, 0.05
        %v6866 = vmul.f32 %v6698, 0.05
        %v6867 = vmul.f32 %v6700, 0.05
        %v6868 = vmul.f32 %v5577, 0.05
        %v6869 = vmul.f32 %v5579, 0.05
        %v6870 = vmul.f32 %v5738, 0.05
        %v6871 = vmul.f32 %v5740, 0.05
        %v6872 = vmul.f32 %v5899, 0.05
        %v6873 = vmul.f32 %v5901, 0.05
        %v6874 = vmul.f32 %v6060, 0.05
        %v6875 = vmul.f32 %v6062, 0.05
        %v6876 = vmul.f32 %v6221, 0.05
        %v6877 = vmul.f32 %v6223, 0.05
        %v6878 = vmul.f32 %v6382, 0.05
        %v6879 = vmul.f32 %v6384, 0.05
        %v6880 = vmul.f32 %v6543, 0.05
        %v6881 = vmul.f32 %v6545, 0.05
        %v6882 = vmul.f32 %v6704, 0.05
        %v6883 = vmul.f32 %v6706, 0.05
        %v6884 = vmul.f32 %v5583, 0.05
        %v6885 = vmul.f32 %v5585, 0.05
        %v6886 = vmul.f32 %v5744, 0.05
        %v6887 = vmul.f32 %v5746, 0.05
        %v6888 = vmul.f32 %v5905, 0.05
        %v6889 = vmul.f32 %v5907, 0.05
        %v6890 = vmul.f32 %v6066, 0.05
        %v6891 = vmul.f32 %v6068, 0.05
        %v6892 = vmul.f32 %v6227, 0.05
        %v6893 = vmul.f32 %v6229, 0.05
        %v6894 = vmul.f32 %v6388, 0.05
        %v6895 = vmul.f32 %v6390, 0.05
        %v6896 = vmul.f32 %v6549, 0.05
        %v6897 = vmul.f32 %v6551, 0.05
        %v6898 = vmul.f32 %v6710, 0.05
        %v6899 = vmul.f32 %v6712, 0.05
        %v6900 = vmul.f32 %v5589, 0.05
        %v6901 = vmul.f32 %v5591, 0.05
        %v6902 = vmul.f32 %v5750, 0.05
        %v6903 = vmul.f32 %v5752, 0.05
        %v6904 = vmul.f32 %v5911, 0.05
        %v6905 = vmul.f32 %v5913, 0.05
        %v6906 = vmul.f32 %v6072, 0.05
        %v6907 = vmul.f32 %v6074, 0.05
        %v6908 = vmul.f32 %v6233, 0.05
        %v6909 = vmul.f32 %v6235, 0.05
        %v6910 = vmul.f32 %v6394, 0.05
        %v6911 = vmul.f32 %v6396, 0.05
        %v6912 = vmul.f32 %v6555, 0.05
        %v6913 = vmul.f32 %v6557, 0.05
        %v6914 = vmul.f32 %v6716, 0.05
        %v6915 = vmul.f32 %v6718, 0.05
        %v6916 = vmul.f32 %v5595, 0.05
        %v6917 = vmul.f32 %v5597, 0.05
        %v6918 = vmul.f32 %v5756, 0.05
        %v6919 = vmul.f32 %v5758, 0.05
        %v6920 = vmul.f32 %v5917, 0.05
        %v6921 = vmul.f32 %v5919, 0.05
        %v6922 = vmul.f32 %v6078, 0.05
        %v6923 = vmul.f32 %v6080, 0.05
        %v6924 = vmul.f32 %v6239, 0.05
        %v6925 = vmul.f32 %v6241, 0.05
        %v6926 = vmul.f32 %v6400, 0.05
        %v6927 = vmul.f32 %v6402, 0.05
        %v6928 = vmul.f32 %v6561, 0.05
        %v6929 = vmul.f32 %v6563, 0.05
        %v6930 = vmul.f32 %v6722, 0.05
        %v6931 = vmul.f32 %v6724, 0.05
        %v6932 = vmul.f32 %v5601, 0.05
        %v6933 = vmul.f32 %v5603, 0.05
        %v6934 = vmul.f32 %v5762, 0.05
        %v6935 = vmul.f32 %v5764, 0.05
        %v6936 = vmul.f32 %v5923, 0.05
        %v6937 = vmul.f32 %v5925, 0.05
        %v6938 = vmul.f32 %v6084, 0.05
        %v6939 = vmul.f32 %v6086, 0.05
        %v6940 = vmul.f32 %v6245, 0.05
        %v6941 = vmul.f32 %v6247, 0.05
        %v6942 = vmul.f32 %v6406, 0.05
        %v6943 = vmul.f32 %v6408, 0.05
        %v6944 = vmul.f32 %v6567, 0.05
        %v6945 = vmul.f32 %v6569, 0.05
        %v6946 = vmul.f32 %v6728, 0.05
        %v6947 = vmul.f32 %v6730, 0.05
        %v6948 = vmul.f32 %v5607, 0.05
        %v6949 = vmul.f32 %v5609, 0.05
        %v6950 = vmul.f32 %v5768, 0.05
        %v6951 = vmul.f32 %v5770, 0.05
        %v6952 = vmul.f32 %v5929, 0.05
        %v6953 = vmul.f32 %v5931, 0.05
        %v6954 = vmul.f32 %v6090, 0.05
        %v6955 = vmul.f32 %v6092, 0.05
        %v6956 = vmul.f32 %v6251, 0.05
        %v6957 = vmul.f32 %v6253, 0.05
        %v6958 = vmul.f32 %v6412, 0.05
        %v6959 = vmul.f32 %v6414, 0.05
        %v6960 = vmul.f32 %v6573, 0.05
        %v6961 = vmul.f32 %v6575, 0.05
        %v6962 = vmul.f32 %v6734, 0.05
        %v6963 = vmul.f32 %v6736, 0.05
        %v6964 = vmul.f32 %v5613, 0.05
        %v6965 = vmul.f32 %v5615, 0.05
        %v6966 = vmul.f32 %v5774, 0.05
        %v6967 = vmul.f32 %v5776, 0.05
        %v6968 = vmul.f32 %v5935, 0.05
        %v6969 = vmul.f32 %v5937, 0.05
        %v6970 = vmul.f32 %v6096, 0.05
        %v6971 = vmul.f32 %v6098, 0.05
        %v6972 = vmul.f32 %v6257, 0.05
        %v6973 = vmul.f32 %v6259, 0.05
        %v6974 = vmul.f32 %v6418, 0.05
        %v6975 = vmul.f32 %v6420, 0.05
        %v6976 = vmul.f32 %v6579, 0.05
        %v6977 = vmul.f32 %v6581, 0.05
        %v6978 = vmul.f32 %v6740, 0.05
        %v6979 = vmul.f32 %v6742, 0.05
        %v6980 = vmul.f32 %v5619, 0.05
        %v6981 = vmul.f32 %v5621, 0.05
        %v6982 = vmul.f32 %v5780, 0.05
        %v6983 = vmul.f32 %v5782, 0.05
        %v6984 = vmul.f32 %v5941, 0.05
        %v6985 = vmul.f32 %v5943, 0.05
        %v6986 = vmul.f32 %v6102, 0.05
        %v6987 = vmul.f32 %v6104, 0.05
        %v6988 = vmul.f32 %v6263, 0.05
        %v6989 = vmul.f32 %v6265, 0.05
        %v6990 = vmul.f32 %v6424, 0.05
        %v6991 = vmul.f32 %v6426, 0.05
        %v6992 = vmul.f32 %v6585, 0.05
        %v6993 = vmul.f32 %v6587, 0.05
        %v6994 = vmul.f32 %v6746, 0.05
        %v6995 = vmul.f32 %v6748, 0.05
        %v6996 = vmul.f32 %v5625, 0.05
        %v6997 = vmul.f32 %v5627, 0.05
        %v6998 = vmul.f32 %v5786, 0.05
        %v6999 = vmul.f32 %v5788, 0.05
        %v7000 = vmul.f32 %v5947, 0.05
        %v7001 = vmul.f32 %v5949, 0.05
        %v7002 = vmul.f32 %v6108, 0.05
        %v7003 = vmul.f32 %v6110, 0.05
        %v7004 = vmul.f32 %v6269, 0.05
        %v7005 = vmul.f32 %v6271, 0.05
        %v7006 = vmul.f32 %v6430, 0.05
        %v7007 = vmul.f32 %v6432, 0.05
        %v7008 = vmul.f32 %v6591, 0.05
        %v7009 = vmul.f32 %v6593, 0.05
        %v7010 = vmul.f32 %v6752, 0.05
        %v7011 = vmul.f32 %v6754, 0.05
        %v7012 = vmax.f32 %v5535, %v6756
        %v7013 = vmax.f32 %v5537, %v6757
        %v7014 = vmax.f32 %v5696, %v6758
        %v7015 = vmax.f32 %v5698, %v6759
        %v7016 = vmax.f32 %v5857, %v6760
        %v7017 = vmax.f32 %v5859, %v6761
        %v7018 = vmax.f32 %v6018, %v6762
        %v7019 = vmax.f32 %v6020, %v6763
        %v7020 = vmax.f32 %v6179, %v6764
        %v7021 = vmax.f32 %v6181, %v6765
        %v7022 = vmax.f32 %v6340, %v6766
        %v7023 = vmax.f32 %v6342, %v6767
        %v7024 = vmax.f32 %v6501, %v6768
        %v7025 = vmax.f32 %v6503, %v6769
        %v7026 = vmax.f32 %v6662, %v6770
        %v7027 = vmax.f32 %v6664, %v6771
        %v7028 = vmax.f32 %v5541, %v6772
        %v7029 = vmax.f32 %v5543, %v6773
        %v7030 = vmax.f32 %v5702, %v6774
        %v7031 = vmax.f32 %v5704, %v6775
        %v7032 = vmax.f32 %v5863, %v6776
        %v7033 = vmax.f32 %v5865, %v6777
        %v7034 = vmax.f32 %v6024, %v6778
        %v7035 = vmax.f32 %v6026, %v6779
        %v7036 = vmax.f32 %v6185, %v6780
        %v7037 = vmax.f32 %v6187, %v6781
        %v7038 = vmax.f32 %v6346, %v6782
        %v7039 = vmax.f32 %v6348, %v6783
        %v7040 = vmax.f32 %v6507, %v6784
        %v7041 = vmax.f32 %v6509, %v6785
        %v7042 = vmax.f32 %v6668, %v6786
        %v7043 = vmax.f32 %v6670, %v6787
        %v7044 = vmax.f32 %v5547, %v6788
        %v7045 = vmax.f32 %v5549, %v6789
        %v7046 = vmax.f32 %v5708, %v6790
        %v7047 = vmax.f32 %v5710, %v6791
        %v7048 = vmax.f32 %v5869, %v6792
        %v7049 = vmax.f32 %v5871, %v6793
        %v7050 = vmax.f32 %v6030, %v6794
        %v7051 = vmax.f32 %v6032, %v6795
        %v7052 = vmax.f32 %v6191, %v6796
        %v7053 = vmax.f32 %v6193, %v6797
        %v7054 = vmax.f32 %v6352, %v6798
        %v7055 = vmax.f32 %v6354, %v6799
        %v7056 = vmax.f32 %v6513, %v6800
        %v7057 = vmax.f32 %v6515, %v6801
        %v7058 = vmax.f32 %v6674, %v6802
        %v7059 = vmax.f32 %v6676, %v6803
        %v7060 = vmax.f32 %v5553, %v6804
        %v7061 = vmax.f32 %v5555, %v6805
        %v7062 = vmax.f32 %v5714, %v6806
        %v7063 = vmax.f32 %v5716, %v6807
        %v7064 = vmax.f32 %v5875, %v6808
        %v7065 = vmax.f32 %v5877, %v6809
        %v7066 = vmax.f32 %v6036, %v6810
        %v7067 = vmax.f32 %v6038, %v6811
        %v7068 = vmax.f32 %v6197, %v6812
        %v7069 = vmax.f32 %v6199, %v6813
        %v7070 = vmax.f32 %v6358, %v6814
        %v7071 = vmax.f32 %v6360, %v6815
        %v7072 = vmax.f32 %v6519, %v6816
        %v7073 = vmax.f32 %v6521, %v6817
        %v7074 = vmax.f32 %v6680, %v6818
        %v7075 = vmax.f32 %v6682, %v6819
        %v7076 = vmax.f32 %v5559, %v6820
        %v7077 = vmax.f32 %v5561, %v6821
        %v7078 = vmax.f32 %v5720, %v6822
        %v7079 = vmax.f32 %v5722, %v6823
        %v7080 = vmax.f32 %v5881, %v6824
        %v7081 = vmax.f32 %v5883, %v6825
        %v7082 = vmax.f32 %v6042, %v6826
        %v7083 = vmax.f32 %v6044, %v6827
        %v7084 = vmax.f32 %v6203, %v6828
        %v7085 = vmax.f32 %v6205, %v6829
        %v7086 = vmax.f32 %v6364, %v6830
        %v7087 = vmax.f32 %v6366, %v6831
        %v7088 = vmax.f32 %v6525, %v6832
        %v7089 = vmax.f32 %v6527, %v6833
        %v7090 = vmax.f32 %v6686, %v6834
        %v7091 = vmax.f32 %v6688, %v6835
        %v7092 = vmax.f32 %v5565, %v6836
        %v7093 = vmax.f32 %v5567, %v6837
        %v7094 = vmax.f32 %v5726, %v6838
        %v7095 = vmax.f32 %v5728, %v6839
        %v7096 = vmax.f32 %v5887, %v6840
        %v7097 = vmax.f32 %v5889, %v6841
        %v7098 = vmax.f32 %v6048, %v6842
        %v7099 = vmax.f32 %v6050, %v6843
        %v7100 = vmax.f32 %v6209, %v6844
        %v7101 = vmax.f32 %v6211, %v6845
        %v7102 = vmax.f32 %v6370, %v6846
        %v7103 = vmax.f32 %v6372, %v6847
        %v7104 = vmax.f32 %v6531, %v6848
        %v7105 = vmax.f32 %v6533, %v6849
        %v7106 = vmax.f32 %v6692, %v6850
        %v7107 = vmax.f32 %v6694, %v6851
        %v7108 = vmax.f32 %v5571, %v6852
        %v7109 = vmax.f32 %v5573, %v6853
        %v7110 = vmax.f32 %v5732, %v6854
        %v7111 = vmax.f32 %v5734, %v6855
        %v7112 = vmax.f32 %v5893, %v6856
        %v7113 = vmax.f32 %v5895, %v6857
        %v7114 = vmax.f32 %v6054, %v6858
        %v7115 = vmax.f32 %v6056, %v6859
        %v7116 = vmax.f32 %v6215, %v6860
        %v7117 = vmax.f32 %v6217, %v6861
        %v7118 = vmax.f32 %v6376, %v6862
        %v7119 = vmax.f32 %v6378, %v6863
        %v7120 = vmax.f32 %v6537, %v6864
        %v7121 = vmax.f32 %v6539, %v6865
        %v7122 = vmax.f32 %v6698, %v6866
        %v7123 = vmax.f32 %v6700, %v6867
        %v7124 = vmax.f32 %v5577, %v6868
        %v7125 = vmax.f32 %v5579, %v6869
        %v7126 = vmax.f32 %v5738, %v6870
        %v7127 = vmax.f32 %v5740, %v6871
        %v7128 = vmax.f32 %v5899, %v6872
        %v7129 = vmax.f32 %v5901, %v6873
        %v7130 = vmax.f32 %v6060, %v6874
        %v7131 = vmax.f32 %v6062, %v6875
        %v7132 = vmax.f32 %v6221, %v6876
        %v7133 = vmax.f32 %v6223, %v6877
        %v7134 = vmax.f32 %v6382, %v6878
        %v7135 = vmax.f32 %v6384, %v6879
        %v7136 = vmax.f32 %v6543, %v6880
        %v7137 = vmax.f32 %v6545, %v6881
        %v7138 = vmax.f32 %v6704, %v6882
        %v7139 = vmax.f32 %v6706, %v6883
        %v7140 = vmax.f32 %v5583, %v6884
        %v7141 = vmax.f32 %v5585, %v6885
        %v7142 = vmax.f32 %v5744, %v6886
        %v7143 = vmax.f32 %v5746, %v6887
        %v7144 = vmax.f32 %v5905, %v6888
        %v7145 = vmax.f32 %v5907, %v6889
        %v7146 = vmax.f32 %v6066, %v6890
        %v7147 = vmax.f32 %v6068, %v6891
        %v7148 = vmax.f32 %v6227, %v6892
        %v7149 = vmax.f32 %v6229, %v6893
        %v7150 = vmax.f32 %v6388, %v6894
        %v7151 = vmax.f32 %v6390, %v6895
        %v7152 = vmax.f32 %v6549, %v6896
        %v7153 = vmax.f32 %v6551, %v6897
        %v7154 = vmax.f32 %v6710, %v6898
        %v7155 = vmax.f32 %v6712, %v6899
        %v7156 = vmax.f32 %v5589, %v6900
        %v7157 = vmax.f32 %v5591, %v6901
        %v7158 = vmax.f32 %v5750, %v6902
        %v7159 = vmax.f32 %v5752, %v6903
        %v7160 = vmax.f32 %v5911, %v6904
        %v7161 = vmax.f32 %v5913, %v6905
        %v7162 = vmax.f32 %v6072, %v6906
        %v7163 = vmax.f32 %v6074, %v6907
        %v7164 = vmax.f32 %v6233, %v6908
        %v7165 = vmax.f32 %v6235, %v6909
        %v7166 = vmax.f32 %v6394, %v6910
        %v7167 = vmax.f32 %v6396, %v6911
        %v7168 = vmax.f32 %v6555, %v6912
        %v7169 = vmax.f32 %v6557, %v6913
        %v7170 = vmax.f32 %v6716, %v6914
        %v7171 = vmax.f32 %v6718, %v6915
        %v7172 = vmax.f32 %v5595, %v6916
        %v7173 = vmax.f32 %v5597, %v6917
        %v7174 = vmax.f32 %v5756, %v6918
        %v7175 = vmax.f32 %v5758, %v6919
        %v7176 = vmax.f32 %v5917, %v6920
        %v7177 = vmax.f32 %v5919, %v6921
        %v7178 = vmax.f32 %v6078, %v6922
        %v7179 = vmax.f32 %v6080, %v6923
        %v7180 = vmax.f32 %v6239, %v6924
        %v7181 = vmax.f32 %v6241, %v6925
        %v7182 = vmax.f32 %v6400, %v6926
        %v7183 = vmax.f32 %v6402, %v6927
        %v7184 = vmax.f32 %v6561, %v6928
        %v7185 = vmax.f32 %v6563, %v6929
        %v7186 = vmax.f32 %v6722, %v6930
        %v7187 = vmax.f32 %v6724, %v6931
        %v7188 = vmax.f32 %v5601, %v6932
        %v7189 = vmax.f32 %v5603, %v6933
        %v7190 = vmax.f32 %v5762, %v6934
        %v7191 = vmax.f32 %v5764, %v6935
        %v7192 = vmax.f32 %v5923, %v6936
        %v7193 = vmax.f32 %v5925, %v6937
        %v7194 = vmax.f32 %v6084, %v6938
        %v7195 = vmax.f32 %v6086, %v6939
        %v7196 = vmax.f32 %v6245, %v6940
        %v7197 = vmax.f32 %v6247, %v6941
        %v7198 = vmax.f32 %v6406, %v6942
        %v7199 = vmax.f32 %v6408, %v6943
        %v7200 = vmax.f32 %v6567, %v6944
        %v7201 = vmax.f32 %v6569, %v6945
        %v7202 = vmax.f32 %v6728, %v6946
        %v7203 = vmax.f32 %v6730, %v6947
        %v7204 = vmax.f32 %v5607, %v6948
        %v7205 = vmax.f32 %v5609, %v6949
        %v7206 = vmax.f32 %v5768, %v6950
        %v7207 = vmax.f32 %v5770, %v6951
        %v7208 = vmax.f32 %v5929, %v6952
        %v7209 = vmax.f32 %v5931, %v6953
        %v7210 = vmax.f32 %v6090, %v6954
        %v7211 = vmax.f32 %v6092, %v6955
        %v7212 = vmax.f32 %v6251, %v6956
        %v7213 = vmax.f32 %v6253, %v6957
        %v7214 = vmax.f32 %v6412, %v6958
        %v7215 = vmax.f32 %v6414, %v6959
        %v7216 = vmax.f32 %v6573, %v6960
        %v7217 = vmax.f32 %v6575, %v6961
        %v7218 = vmax.f32 %v6734, %v6962
        %v7219 = vmax.f32 %v6736, %v6963
        %v7220 = vmax.f32 %v5613, %v6964
        %v7221 = vmax.f32 %v5615, %v6965
        %v7222 = vmax.f32 %v5774, %v6966
        %v7223 = vmax.f32 %v5776, %v6967
        %v7224 = vmax.f32 %v5935, %v6968
        %v7225 = vmax.f32 %v5937, %v6969
        %v7226 = vmax.f32 %v6096, %v6970
        %v7227 = vmax.f32 %v6098, %v6971
        %v7228 = vmax.f32 %v6257, %v6972
        %v7229 = vmax.f32 %v6259, %v6973
        %v7230 = vmax.f32 %v6418, %v6974
        %v7231 = vmax.f32 %v6420, %v6975
        %v7232 = vmax.f32 %v6579, %v6976
        %v7233 = vmax.f32 %v6581, %v6977
        %v7234 = vmax.f32 %v6740, %v6978
        %v7235 = vmax.f32 %v6742, %v6979
        %v7236 = vmax.f32 %v5619, %v6980
        %v7237 = vmax.f32 %v5621, %v6981
        %v7238 = vmax.f32 %v5780, %v6982
        %v7239 = vmax.f32 %v5782, %v6983
        %v7240 = vmax.f32 %v5941, %v6984
        %v7241 = vmax.f32 %v5943, %v6985
        %v7242 = vmax.f32 %v6102, %v6986
        %v7243 = vmax.f32 %v6104, %v6987
        %v7244 = vmax.f32 %v6263, %v6988
        %v7245 = vmax.f32 %v6265, %v6989
        %v7246 = vmax.f32 %v6424, %v6990
        %v7247 = vmax.f32 %v6426, %v6991
        %v7248 = vmax.f32 %v6585, %v6992
        %v7249 = vmax.f32 %v6587, %v6993
        %v7250 = vmax.f32 %v6746, %v6994
        %v7251 = vmax.f32 %v6748, %v6995
        %v7252 = vmax.f32 %v5625, %v6996
        %v7253 = vmax.f32 %v5627, %v6997
        %v7254 = vmax.f32 %v5786, %v6998
        %v7255 = vmax.f32 %v5788, %v6999
        %v7256 = vmax.f32 %v5947, %v7000
        %v7257 = vmax.f32 %v5949, %v7001
        %v7258 = vmax.f32 %v6108, %v7002
        %v7259 = vmax.f32 %v6110, %v7003
        %v7260 = vmax.f32 %v6269, %v7004
        %v7261 = vmax.f32 %v6271, %v7005
        %v7262 = vmax.f32 %v6430, %v7006
        %v7263 = vmax.f32 %v6432, %v7007
        %v7264 = vmax.f32 %v6591, %v7008
        %v7265 = vmax.f32 %v6593, %v7009
        %v7266 = vmax.f32 %v6752, %v7010
        %v7267 = vmax.f32 %v6754, %v7011
        %v7268 = vmul.f32 %v7012, %v3516
        %v7269 = vmul.f32 %v7013, %v3517
        %v7270 = vmul.f32 %v7028, %v3518
        %v7271 = vmul.f32 %v7029, %v3519
        %v7272 = vmul.f32 %v7044, %v3520
        %v7273 = vmul.f32 %v7045, %v3521
        %v7274 = vmul.f32 %v7060, %v3522
        %v7275 = vmul.f32 %v7061, %v3523
        %v7276 = vmul.f32 %v7076, %v3524
        %v7277 = vmul.f32 %v7077, %v3525
        %v7278 = vmul.f32 %v7092, %v3526
        %v7279 = vmul.f32 %v7093, %v3527
        %v7280 = vmul.f32 %v7108, %v3528
        %v7281 = vmul.f32 %v7109, %v3529
        %v7282 = vmul.f32 %v7124, %v3530
        %v7283 = vmul.f32 %v7125, %v3531
        %v7284 = vmul.f32 %v7140, %v3532
        %v7285 = vmul.f32 %v7141, %v3533
        %v7286 = vmul.f32 %v7156, %v3534
        %v7287 = vmul.f32 %v7157, %v3535
        %v7288 = vmul.f32 %v7172, %v3536
        %v7289 = vmul.f32 %v7173, %v3537
        %v7290 = vmul.f32 %v7188, %v3538
        %v7291 = vmul.f32 %v7189, %v3539
        %v7292 = vmul.f32 %v7204, %v3540
        %v7293 = vmul.f32 %v7205, %v3541
        %v7294 = vmul.f32 %v7220, %v3542
        %v7295 = vmul.f32 %v7221, %v3543
        %v7296 = vmul.f32 %v7236, %v3544
        %v7297 = vmul.f32 %v7237, %v3545
        %v7298 = vmul.f32 %v7252, %v3546
        %v7299 = vmul.f32 %v7253, %v3547
        %v7300 = vadd.f32 %v7268, %v7270
        %v7301 = vadd.f32 %v7300, %v7272
        %v7302 = vadd.f32 %v7301, %v7274
        %v7303 = vadd.f32 %v7302, %v7276
        %v7304 = vadd.f32 %v7303, %v7278
        %v7305 = vadd.f32 %v7304, %v7280
        %v7306 = vadd.f32 %v7305, %v7282
        %v7307 = vadd.f32 %v7306, %v7284
        %v7308 = vadd.f32 %v7307, %v7286
        %v7309 = vadd.f32 %v7308, %v7288
        %v7310 = vadd.f32 %v7309, %v7290
        %v7311 = vadd.f32 %v7310, %v7292
        %v7312 = vadd.f32 %v7311, %v7294
        %v7313 = vadd.f32 %v7312, %v7296
        %v7314 = vadd.f32 %v7313, %v7298
        %v7315 = vrot.slane %v7314, 4
        %v7316 = vadd.f32 %v7314, %v7315
        %v7317 = vrot.slane %v7316, 2
        %v7318 = vadd.f32 %v7316, %v7317
        %v7319 = vrot.slane %v7318, 1
        %v7320 = vadd.f32 %v7318, %v7319
        %v7321 = vadd.f32 %v7269, %v7271
        %v7322 = vadd.f32 %v7321, %v7273
        %v7323 = vadd.f32 %v7322, %v7275
        %v7324 = vadd.f32 %v7323, %v7277
        %v7325 = vadd.f32 %v7324, %v7279
        %v7326 = vadd.f32 %v7325, %v7281
        %v7327 = vadd.f32 %v7326, %v7283
        %v7328 = vadd.f32 %v7327, %v7285
        %v7329 = vadd.f32 %v7328, %v7287
        %v7330 = vadd.f32 %v7329, %v7289
        %v7331 = vadd.f32 %v7330, %v7291
        %v7332 = vadd.f32 %v7331, %v7293
        %v7333 = vadd.f32 %v7332, %v7295
        %v7334 = vadd.f32 %v7333, %v7297
        %v7335 = vadd.f32 %v7334, %v7299
        %v7336 = vrot.slane %v7335, 4
        %v7337 = vadd.f32 %v7335, %v7336
        %v7338 = vrot.slane %v7337, 2
        %v7339 = vadd.f32 %v7337, %v7338
        %v7340 = vrot.slane %v7339, 1
        %v7341 = vadd.f32 %v7339, %v7340
        %v7342 = vmul.f32 %v7320, 0.088388346
        %v7343 = vmul.f32 %v7341, 0.088388346
        %v7344 = vmul.f32 %v7014, %v3516
        %v7345 = vmul.f32 %v7015, %v3517
        %v7346 = vmul.f32 %v7030, %v3518
        %v7347 = vmul.f32 %v7031, %v3519
        %v7348 = vmul.f32 %v7046, %v3520
        %v7349 = vmul.f32 %v7047, %v3521
        %v7350 = vmul.f32 %v7062, %v3522
        %v7351 = vmul.f32 %v7063, %v3523
        %v7352 = vmul.f32 %v7078, %v3524
        %v7353 = vmul.f32 %v7079, %v3525
        %v7354 = vmul.f32 %v7094, %v3526
        %v7355 = vmul.f32 %v7095, %v3527
        %v7356 = vmul.f32 %v7110, %v3528
        %v7357 = vmul.f32 %v7111, %v3529
        %v7358 = vmul.f32 %v7126, %v3530
        %v7359 = vmul.f32 %v7127, %v3531
        %v7360 = vmul.f32 %v7142, %v3532
        %v7361 = vmul.f32 %v7143, %v3533
        %v7362 = vmul.f32 %v7158, %v3534
        %v7363 = vmul.f32 %v7159, %v3535
        %v7364 = vmul.f32 %v7174, %v3536
        %v7365 = vmul.f32 %v7175, %v3537
        %v7366 = vmul.f32 %v7190, %v3538
        %v7367 = vmul.f32 %v7191, %v3539
        %v7368 = vmul.f32 %v7206, %v3540
        %v7369 = vmul.f32 %v7207, %v3541
        %v7370 = vmul.f32 %v7222, %v3542
        %v7371 = vmul.f32 %v7223, %v3543
        %v7372 = vmul.f32 %v7238, %v3544
        %v7373 = vmul.f32 %v7239, %v3545
        %v7374 = vmul.f32 %v7254, %v3546
        %v7375 = vmul.f32 %v7255, %v3547
        %v7376 = vadd.f32 %v7344, %v7346
        %v7377 = vadd.f32 %v7376, %v7348
        %v7378 = vadd.f32 %v7377, %v7350
        %v7379 = vadd.f32 %v7378, %v7352
        %v7380 = vadd.f32 %v7379, %v7354
        %v7381 = vadd.f32 %v7380, %v7356
        %v7382 = vadd.f32 %v7381, %v7358
        %v7383 = vadd.f32 %v7382, %v7360
        %v7384 = vadd.f32 %v7383, %v7362
        %v7385 = vadd.f32 %v7384, %v7364
        %v7386 = vadd.f32 %v7385, %v7366
        %v7387 = vadd.f32 %v7386, %v7368
        %v7388 = vadd.f32 %v7387, %v7370
        %v7389 = vadd.f32 %v7388, %v7372
        %v7390 = vadd.f32 %v7389, %v7374
        %v7391 = vrot.slane %v7390, 4
        %v7392 = vadd.f32 %v7390, %v7391
        %v7393 = vrot.slane %v7392, 2
        %v7394 = vadd.f32 %v7392, %v7393
        %v7395 = vrot.slane %v7394, 1
        %v7396 = vadd.f32 %v7394, %v7395
        %v7397 = vadd.f32 %v7345, %v7347
        %v7398 = vadd.f32 %v7397, %v7349
        %v7399 = vadd.f32 %v7398, %v7351
        %v7400 = vadd.f32 %v7399, %v7353
        %v7401 = vadd.f32 %v7400, %v7355
        %v7402 = vadd.f32 %v7401, %v7357
        %v7403 = vadd.f32 %v7402, %v7359
        %v7404 = vadd.f32 %v7403, %v7361
        %v7405 = vadd.f32 %v7404, %v7363
        %v7406 = vadd.f32 %v7405, %v7365
        %v7407 = vadd.f32 %v7406, %v7367
        %v7408 = vadd.f32 %v7407, %v7369
        %v7409 = vadd.f32 %v7408, %v7371
        %v7410 = vadd.f32 %v7409, %v7373
        %v7411 = vadd.f32 %v7410, %v7375
        %v7412 = vrot.slane %v7411, 4
        %v7413 = vadd.f32 %v7411, %v7412
        %v7414 = vrot.slane %v7413, 2
        %v7415 = vadd.f32 %v7413, %v7414
        %v7416 = vrot.slane %v7415, 1
        %v7417 = vadd.f32 %v7415, %v7416
        %v7418 = vmul.f32 %v7396, 0.088388346
        %v7419 = vmul.f32 %v7417, 0.088388346
        %v7420 = vmul.f32 %v7016, %v3516
        %v7421 = vmul.f32 %v7017, %v3517
        %v7422 = vmul.f32 %v7032, %v3518
        %v7423 = vmul.f32 %v7033, %v3519
        %v7424 = vmul.f32 %v7048, %v3520
        %v7425 = vmul.f32 %v7049, %v3521
        %v7426 = vmul.f32 %v7064, %v3522
        %v7427 = vmul.f32 %v7065, %v3523
        %v7428 = vmul.f32 %v7080, %v3524
        %v7429 = vmul.f32 %v7081, %v3525
        %v7430 = vmul.f32 %v7096, %v3526
        %v7431 = vmul.f32 %v7097, %v3527
        %v7432 = vmul.f32 %v7112, %v3528
        %v7433 = vmul.f32 %v7113, %v3529
        %v7434 = vmul.f32 %v7128, %v3530
        %v7435 = vmul.f32 %v7129, %v3531
        %v7436 = vmul.f32 %v7144, %v3532
        %v7437 = vmul.f32 %v7145, %v3533
        %v7438 = vmul.f32 %v7160, %v3534
        %v7439 = vmul.f32 %v7161, %v3535
        %v7440 = vmul.f32 %v7176, %v3536
        %v7441 = vmul.f32 %v7177, %v3537
        %v7442 = vmul.f32 %v7192, %v3538
        %v7443 = vmul.f32 %v7193, %v3539
        %v7444 = vmul.f32 %v7208, %v3540
        %v7445 = vmul.f32 %v7209, %v3541
        %v7446 = vmul.f32 %v7224, %v3542
        %v7447 = vmul.f32 %v7225, %v3543
        %v7448 = vmul.f32 %v7240, %v3544
        %v7449 = vmul.f32 %v7241, %v3545
        %v7450 = vmul.f32 %v7256, %v3546
        %v7451 = vmul.f32 %v7257, %v3547
        %v7452 = vadd.f32 %v7420, %v7422
        %v7453 = vadd.f32 %v7452, %v7424
        %v7454 = vadd.f32 %v7453, %v7426
        %v7455 = vadd.f32 %v7454, %v7428
        %v7456 = vadd.f32 %v7455, %v7430
        %v7457 = vadd.f32 %v7456, %v7432
        %v7458 = vadd.f32 %v7457, %v7434
        %v7459 = vadd.f32 %v7458, %v7436
        %v7460 = vadd.f32 %v7459, %v7438
        %v7461 = vadd.f32 %v7460, %v7440
        %v7462 = vadd.f32 %v7461, %v7442
        %v7463 = vadd.f32 %v7462, %v7444
        %v7464 = vadd.f32 %v7463, %v7446
        %v7465 = vadd.f32 %v7464, %v7448
        %v7466 = vadd.f32 %v7465, %v7450
        %v7467 = vrot.slane %v7466, 4
        %v7468 = vadd.f32 %v7466, %v7467
        %v7469 = vrot.slane %v7468, 2
        %v7470 = vadd.f32 %v7468, %v7469
        %v7471 = vrot.slane %v7470, 1
        %v7472 = vadd.f32 %v7470, %v7471
        %v7473 = vadd.f32 %v7421, %v7423
        %v7474 = vadd.f32 %v7473, %v7425
        %v7475 = vadd.f32 %v7474, %v7427
        %v7476 = vadd.f32 %v7475, %v7429
        %v7477 = vadd.f32 %v7476, %v7431
        %v7478 = vadd.f32 %v7477, %v7433
        %v7479 = vadd.f32 %v7478, %v7435
        %v7480 = vadd.f32 %v7479, %v7437
        %v7481 = vadd.f32 %v7480, %v7439
        %v7482 = vadd.f32 %v7481, %v7441
        %v7483 = vadd.f32 %v7482, %v7443
        %v7484 = vadd.f32 %v7483, %v7445
        %v7485 = vadd.f32 %v7484, %v7447
        %v7486 = vadd.f32 %v7485, %v7449
        %v7487 = vadd.f32 %v7486, %v7451
        %v7488 = vrot.slane %v7487, 4
        %v7489 = vadd.f32 %v7487, %v7488
        %v7490 = vrot.slane %v7489, 2
        %v7491 = vadd.f32 %v7489, %v7490
        %v7492 = vrot.slane %v7491, 1
        %v7493 = vadd.f32 %v7491, %v7492
        %v7494 = vmul.f32 %v7472, 0.088388346
        %v7495 = vmul.f32 %v7493, 0.088388346
        %v7496 = vmul.f32 %v7018, %v3516
        %v7497 = vmul.f32 %v7019, %v3517
        %v7498 = vmul.f32 %v7034, %v3518
        %v7499 = vmul.f32 %v7035, %v3519
        %v7500 = vmul.f32 %v7050, %v3520
        %v7501 = vmul.f32 %v7051, %v3521
        %v7502 = vmul.f32 %v7066, %v3522
        %v7503 = vmul.f32 %v7067, %v3523
        %v7504 = vmul.f32 %v7082, %v3524
        %v7505 = vmul.f32 %v7083, %v3525
        %v7506 = vmul.f32 %v7098, %v3526
        %v7507 = vmul.f32 %v7099, %v3527
        %v7508 = vmul.f32 %v7114, %v3528
        %v7509 = vmul.f32 %v7115, %v3529
        %v7510 = vmul.f32 %v7130, %v3530
        %v7511 = vmul.f32 %v7131, %v3531
        %v7512 = vmul.f32 %v7146, %v3532
        %v7513 = vmul.f32 %v7147, %v3533
        %v7514 = vmul.f32 %v7162, %v3534
        %v7515 = vmul.f32 %v7163, %v3535
        %v7516 = vmul.f32 %v7178, %v3536
        %v7517 = vmul.f32 %v7179, %v3537
        %v7518 = vmul.f32 %v7194, %v3538
        %v7519 = vmul.f32 %v7195, %v3539
        %v7520 = vmul.f32 %v7210, %v3540
        %v7521 = vmul.f32 %v7211, %v3541
        %v7522 = vmul.f32 %v7226, %v3542
        %v7523 = vmul.f32 %v7227, %v3543
        %v7524 = vmul.f32 %v7242, %v3544
        %v7525 = vmul.f32 %v7243, %v3545
        %v7526 = vmul.f32 %v7258, %v3546
        %v7527 = vmul.f32 %v7259, %v3547
        %v7528 = vadd.f32 %v7496, %v7498
        %v7529 = vadd.f32 %v7528, %v7500
        %v7530 = vadd.f32 %v7529, %v7502
        %v7531 = vadd.f32 %v7530, %v7504
        %v7532 = vadd.f32 %v7531, %v7506
        %v7533 = vadd.f32 %v7532, %v7508
        %v7534 = vadd.f32 %v7533, %v7510
        %v7535 = vadd.f32 %v7534, %v7512
        %v7536 = vadd.f32 %v7535, %v7514
        %v7537 = vadd.f32 %v7536, %v7516
        %v7538 = vadd.f32 %v7537, %v7518
        %v7539 = vadd.f32 %v7538, %v7520
        %v7540 = vadd.f32 %v7539, %v7522
        %v7541 = vadd.f32 %v7540, %v7524
        %v7542 = vadd.f32 %v7541, %v7526
        %v7543 = vrot.slane %v7542, 4
        %v7544 = vadd.f32 %v7542, %v7543
        %v7545 = vrot.slane %v7544, 2
        %v7546 = vadd.f32 %v7544, %v7545
        %v7547 = vrot.slane %v7546, 1
        %v7548 = vadd.f32 %v7546, %v7547
        %v7549 = vadd.f32 %v7497, %v7499
        %v7550 = vadd.f32 %v7549, %v7501
        %v7551 = vadd.f32 %v7550, %v7503
        %v7552 = vadd.f32 %v7551, %v7505
        %v7553 = vadd.f32 %v7552, %v7507
        %v7554 = vadd.f32 %v7553, %v7509
        %v7555 = vadd.f32 %v7554, %v7511
        %v7556 = vadd.f32 %v7555, %v7513
        %v7557 = vadd.f32 %v7556, %v7515
        %v7558 = vadd.f32 %v7557, %v7517
        %v7559 = vadd.f32 %v7558, %v7519
        %v7560 = vadd.f32 %v7559, %v7521
        %v7561 = vadd.f32 %v7560, %v7523
        %v7562 = vadd.f32 %v7561, %v7525
        %v7563 = vadd.f32 %v7562, %v7527
        %v7564 = vrot.slane %v7563, 4
        %v7565 = vadd.f32 %v7563, %v7564
        %v7566 = vrot.slane %v7565, 2
        %v7567 = vadd.f32 %v7565, %v7566
        %v7568 = vrot.slane %v7567, 1
        %v7569 = vadd.f32 %v7567, %v7568
        %v7570 = vmul.f32 %v7548, 0.088388346
        %v7571 = vmul.f32 %v7569, 0.088388346
        %v7572 = vmul.f32 %v7020, %v3516
        %v7573 = vmul.f32 %v7021, %v3517
        %v7574 = vmul.f32 %v7036, %v3518
        %v7575 = vmul.f32 %v7037, %v3519
        %v7576 = vmul.f32 %v7052, %v3520
        %v7577 = vmul.f32 %v7053, %v3521
        %v7578 = vmul.f32 %v7068, %v3522
        %v7579 = vmul.f32 %v7069, %v3523
        %v7580 = vmul.f32 %v7084, %v3524
        %v7581 = vmul.f32 %v7085, %v3525
        %v7582 = vmul.f32 %v7100, %v3526
        %v7583 = vmul.f32 %v7101, %v3527
        %v7584 = vmul.f32 %v7116, %v3528
        %v7585 = vmul.f32 %v7117, %v3529
        %v7586 = vmul.f32 %v7132, %v3530
        %v7587 = vmul.f32 %v7133, %v3531
        %v7588 = vmul.f32 %v7148, %v3532
        %v7589 = vmul.f32 %v7149, %v3533
        %v7590 = vmul.f32 %v7164, %v3534
        %v7591 = vmul.f32 %v7165, %v3535
        %v7592 = vmul.f32 %v7180, %v3536
        %v7593 = vmul.f32 %v7181, %v3537
        %v7594 = vmul.f32 %v7196, %v3538
        %v7595 = vmul.f32 %v7197, %v3539
        %v7596 = vmul.f32 %v7212, %v3540
        %v7597 = vmul.f32 %v7213, %v3541
        %v7598 = vmul.f32 %v7228, %v3542
        %v7599 = vmul.f32 %v7229, %v3543
        %v7600 = vmul.f32 %v7244, %v3544
        %v7601 = vmul.f32 %v7245, %v3545
        %v7602 = vmul.f32 %v7260, %v3546
        %v7603 = vmul.f32 %v7261, %v3547
        %v7604 = vadd.f32 %v7572, %v7574
        %v7605 = vadd.f32 %v7604, %v7576
        %v7606 = vadd.f32 %v7605, %v7578
        %v7607 = vadd.f32 %v7606, %v7580
        %v7608 = vadd.f32 %v7607, %v7582
        %v7609 = vadd.f32 %v7608, %v7584
        %v7610 = vadd.f32 %v7609, %v7586
        %v7611 = vadd.f32 %v7610, %v7588
        %v7612 = vadd.f32 %v7611, %v7590
        %v7613 = vadd.f32 %v7612, %v7592
        %v7614 = vadd.f32 %v7613, %v7594
        %v7615 = vadd.f32 %v7614, %v7596
        %v7616 = vadd.f32 %v7615, %v7598
        %v7617 = vadd.f32 %v7616, %v7600
        %v7618 = vadd.f32 %v7617, %v7602
        %v7619 = vrot.slane %v7618, 4
        %v7620 = vadd.f32 %v7618, %v7619
        %v7621 = vrot.slane %v7620, 2
        %v7622 = vadd.f32 %v7620, %v7621
        %v7623 = vrot.slane %v7622, 1
        %v7624 = vadd.f32 %v7622, %v7623
        %v7625 = vadd.f32 %v7573, %v7575
        %v7626 = vadd.f32 %v7625, %v7577
        %v7627 = vadd.f32 %v7626, %v7579
        %v7628 = vadd.f32 %v7627, %v7581
        %v7629 = vadd.f32 %v7628, %v7583
        %v7630 = vadd.f32 %v7629, %v7585
        %v7631 = vadd.f32 %v7630, %v7587
        %v7632 = vadd.f32 %v7631, %v7589
        %v7633 = vadd.f32 %v7632, %v7591
        %v7634 = vadd.f32 %v7633, %v7593
        %v7635 = vadd.f32 %v7634, %v7595
        %v7636 = vadd.f32 %v7635, %v7597
        %v7637 = vadd.f32 %v7636, %v7599
        %v7638 = vadd.f32 %v7637, %v7601
        %v7639 = vadd.f32 %v7638, %v7603
        %v7640 = vrot.slane %v7639, 4
        %v7641 = vadd.f32 %v7639, %v7640
        %v7642 = vrot.slane %v7641, 2
        %v7643 = vadd.f32 %v7641, %v7642
        %v7644 = vrot.slane %v7643, 1
        %v7645 = vadd.f32 %v7643, %v7644
        %v7646 = vmul.f32 %v7624, 0.088388346
        %v7647 = vmul.f32 %v7645, 0.088388346
        %v7648 = vmul.f32 %v7022, %v3516
        %v7649 = vmul.f32 %v7023, %v3517
        %v7650 = vmul.f32 %v7038, %v3518
        %v7651 = vmul.f32 %v7039, %v3519
        %v7652 = vmul.f32 %v7054, %v3520
        %v7653 = vmul.f32 %v7055, %v3521
        %v7654 = vmul.f32 %v7070, %v3522
        %v7655 = vmul.f32 %v7071, %v3523
        %v7656 = vmul.f32 %v7086, %v3524
        %v7657 = vmul.f32 %v7087, %v3525
        %v7658 = vmul.f32 %v7102, %v3526
        %v7659 = vmul.f32 %v7103, %v3527
        %v7660 = vmul.f32 %v7118, %v3528
        %v7661 = vmul.f32 %v7119, %v3529
        %v7662 = vmul.f32 %v7134, %v3530
        %v7663 = vmul.f32 %v7135, %v3531
        %v7664 = vmul.f32 %v7150, %v3532
        %v7665 = vmul.f32 %v7151, %v3533
        %v7666 = vmul.f32 %v7166, %v3534
        %v7667 = vmul.f32 %v7167, %v3535
        %v7668 = vmul.f32 %v7182, %v3536
        %v7669 = vmul.f32 %v7183, %v3537
        %v7670 = vmul.f32 %v7198, %v3538
        %v7671 = vmul.f32 %v7199, %v3539
        %v7672 = vmul.f32 %v7214, %v3540
        %v7673 = vmul.f32 %v7215, %v3541
        %v7674 = vmul.f32 %v7230, %v3542
        %v7675 = vmul.f32 %v7231, %v3543
        %v7676 = vmul.f32 %v7246, %v3544
        %v7677 = vmul.f32 %v7247, %v3545
        %v7678 = vmul.f32 %v7262, %v3546
        %v7679 = vmul.f32 %v7263, %v3547
        %v7680 = vadd.f32 %v7648, %v7650
        %v7681 = vadd.f32 %v7680, %v7652
        %v7682 = vadd.f32 %v7681, %v7654
        %v7683 = vadd.f32 %v7682, %v7656
        %v7684 = vadd.f32 %v7683, %v7658
        %v7685 = vadd.f32 %v7684, %v7660
        %v7686 = vadd.f32 %v7685, %v7662
        %v7687 = vadd.f32 %v7686, %v7664
        %v7688 = vadd.f32 %v7687, %v7666
        %v7689 = vadd.f32 %v7688, %v7668
        %v7690 = vadd.f32 %v7689, %v7670
        %v7691 = vadd.f32 %v7690, %v7672
        %v7692 = vadd.f32 %v7691, %v7674
        %v7693 = vadd.f32 %v7692, %v7676
        %v7694 = vadd.f32 %v7693, %v7678
        %v7695 = vrot.slane %v7694, 4
        %v7696 = vadd.f32 %v7694, %v7695
        %v7697 = vrot.slane %v7696, 2
        %v7698 = vadd.f32 %v7696, %v7697
        %v7699 = vrot.slane %v7698, 1
        %v7700 = vadd.f32 %v7698, %v7699
        %v7701 = vadd.f32 %v7649, %v7651
        %v7702 = vadd.f32 %v7701, %v7653
        %v7703 = vadd.f32 %v7702, %v7655
        %v7704 = vadd.f32 %v7703, %v7657
        %v7705 = vadd.f32 %v7704, %v7659
        %v7706 = vadd.f32 %v7705, %v7661
        %v7707 = vadd.f32 %v7706, %v7663
        %v7708 = vadd.f32 %v7707, %v7665
        %v7709 = vadd.f32 %v7708, %v7667
        %v7710 = vadd.f32 %v7709, %v7669
        %v7711 = vadd.f32 %v7710, %v7671
        %v7712 = vadd.f32 %v7711, %v7673
        %v7713 = vadd.f32 %v7712, %v7675
        %v7714 = vadd.f32 %v7713, %v7677
        %v7715 = vadd.f32 %v7714, %v7679
        %v7716 = vrot.slane %v7715, 4
        %v7717 = vadd.f32 %v7715, %v7716
        %v7718 = vrot.slane %v7717, 2
        %v7719 = vadd.f32 %v7717, %v7718
        %v7720 = vrot.slane %v7719, 1
        %v7721 = vadd.f32 %v7719, %v7720
        %v7722 = vmul.f32 %v7700, 0.088388346
        %v7723 = vmul.f32 %v7721, 0.088388346
        %v7724 = vmul.f32 %v7024, %v3516
        %v7725 = vmul.f32 %v7025, %v3517
        %v7726 = vmul.f32 %v7040, %v3518
        %v7727 = vmul.f32 %v7041, %v3519
        %v7728 = vmul.f32 %v7056, %v3520
        %v7729 = vmul.f32 %v7057, %v3521
        %v7730 = vmul.f32 %v7072, %v3522
        %v7731 = vmul.f32 %v7073, %v3523
        %v7732 = vmul.f32 %v7088, %v3524
        %v7733 = vmul.f32 %v7089, %v3525
        %v7734 = vmul.f32 %v7104, %v3526
        %v7735 = vmul.f32 %v7105, %v3527
        %v7736 = vmul.f32 %v7120, %v3528
        %v7737 = vmul.f32 %v7121, %v3529
        %v7738 = vmul.f32 %v7136, %v3530
        %v7739 = vmul.f32 %v7137, %v3531
        %v7740 = vmul.f32 %v7152, %v3532
        %v7741 = vmul.f32 %v7153, %v3533
        %v7742 = vmul.f32 %v7168, %v3534
        %v7743 = vmul.f32 %v7169, %v3535
        %v7744 = vmul.f32 %v7184, %v3536
        %v7745 = vmul.f32 %v7185, %v3537
        %v7746 = vmul.f32 %v7200, %v3538
        %v7747 = vmul.f32 %v7201, %v3539
        %v7748 = vmul.f32 %v7216, %v3540
        %v7749 = vmul.f32 %v7217, %v3541
        %v7750 = vmul.f32 %v7232, %v3542
        %v7751 = vmul.f32 %v7233, %v3543
        %v7752 = vmul.f32 %v7248, %v3544
        %v7753 = vmul.f32 %v7249, %v3545
        %v7754 = vmul.f32 %v7264, %v3546
        %v7755 = vmul.f32 %v7265, %v3547
        %v7756 = vadd.f32 %v7724, %v7726
        %v7757 = vadd.f32 %v7756, %v7728
        %v7758 = vadd.f32 %v7757, %v7730
        %v7759 = vadd.f32 %v7758, %v7732
        %v7760 = vadd.f32 %v7759, %v7734
        %v7761 = vadd.f32 %v7760, %v7736
        %v7762 = vadd.f32 %v7761, %v7738
        %v7763 = vadd.f32 %v7762, %v7740
        %v7764 = vadd.f32 %v7763, %v7742
        %v7765 = vadd.f32 %v7764, %v7744
        %v7766 = vadd.f32 %v7765, %v7746
        %v7767 = vadd.f32 %v7766, %v7748
        %v7768 = vadd.f32 %v7767, %v7750
        %v7769 = vadd.f32 %v7768, %v7752
        %v7770 = vadd.f32 %v7769, %v7754
        %v7771 = vrot.slane %v7770, 4
        %v7772 = vadd.f32 %v7770, %v7771
        %v7773 = vrot.slane %v7772, 2
        %v7774 = vadd.f32 %v7772, %v7773
        %v7775 = vrot.slane %v7774, 1
        %v7776 = vadd.f32 %v7774, %v7775
        %v7777 = vadd.f32 %v7725, %v7727
        %v7778 = vadd.f32 %v7777, %v7729
        %v7779 = vadd.f32 %v7778, %v7731
        %v7780 = vadd.f32 %v7779, %v7733
        %v7781 = vadd.f32 %v7780, %v7735
        %v7782 = vadd.f32 %v7781, %v7737
        %v7783 = vadd.f32 %v7782, %v7739
        %v7784 = vadd.f32 %v7783, %v7741
        %v7785 = vadd.f32 %v7784, %v7743
        %v7786 = vadd.f32 %v7785, %v7745
        %v7787 = vadd.f32 %v7786, %v7747
        %v7788 = vadd.f32 %v7787, %v7749
        %v7789 = vadd.f32 %v7788, %v7751
        %v7790 = vadd.f32 %v7789, %v7753
        %v7791 = vadd.f32 %v7790, %v7755
        %v7792 = vrot.slane %v7791, 4
        %v7793 = vadd.f32 %v7791, %v7792
        %v7794 = vrot.slane %v7793, 2
        %v7795 = vadd.f32 %v7793, %v7794
        %v7796 = vrot.slane %v7795, 1
        %v7797 = vadd.f32 %v7795, %v7796
        %v7798 = vmul.f32 %v7776, 0.088388346
        %v7799 = vmul.f32 %v7797, 0.088388346
        %v7800 = vmul.f32 %v7026, %v3516
        %v7801 = vmul.f32 %v7027, %v3517
        %v7802 = vmul.f32 %v7042, %v3518
        %v7803 = vmul.f32 %v7043, %v3519
        %v7804 = vmul.f32 %v7058, %v3520
        %v7805 = vmul.f32 %v7059, %v3521
        %v7806 = vmul.f32 %v7074, %v3522
        %v7807 = vmul.f32 %v7075, %v3523
        %v7808 = vmul.f32 %v7090, %v3524
        %v7809 = vmul.f32 %v7091, %v3525
        %v7810 = vmul.f32 %v7106, %v3526
        %v7811 = vmul.f32 %v7107, %v3527
        %v7812 = vmul.f32 %v7122, %v3528
        %v7813 = vmul.f32 %v7123, %v3529
        %v7814 = vmul.f32 %v7138, %v3530
        %v7815 = vmul.f32 %v7139, %v3531
        %v7816 = vmul.f32 %v7154, %v3532
        %v7817 = vmul.f32 %v7155, %v3533
        %v7818 = vmul.f32 %v7170, %v3534
        %v7819 = vmul.f32 %v7171, %v3535
        %v7820 = vmul.f32 %v7186, %v3536
        %v7821 = vmul.f32 %v7187, %v3537
        %v7822 = vmul.f32 %v7202, %v3538
        %v7823 = vmul.f32 %v7203, %v3539
        %v7824 = vmul.f32 %v7218, %v3540
        %v7825 = vmul.f32 %v7219, %v3541
        %v7826 = vmul.f32 %v7234, %v3542
        %v7827 = vmul.f32 %v7235, %v3543
        %v7828 = vmul.f32 %v7250, %v3544
        %v7829 = vmul.f32 %v7251, %v3545
        %v7830 = vmul.f32 %v7266, %v3546
        %v7831 = vmul.f32 %v7267, %v3547
        %v7832 = vadd.f32 %v7800, %v7802
        %v7833 = vadd.f32 %v7832, %v7804
        %v7834 = vadd.f32 %v7833, %v7806
        %v7835 = vadd.f32 %v7834, %v7808
        %v7836 = vadd.f32 %v7835, %v7810
        %v7837 = vadd.f32 %v7836, %v7812
        %v7838 = vadd.f32 %v7837, %v7814
        %v7839 = vadd.f32 %v7838, %v7816
        %v7840 = vadd.f32 %v7839, %v7818
        %v7841 = vadd.f32 %v7840, %v7820
        %v7842 = vadd.f32 %v7841, %v7822
        %v7843 = vadd.f32 %v7842, %v7824
        %v7844 = vadd.f32 %v7843, %v7826
        %v7845 = vadd.f32 %v7844, %v7828
        %v7846 = vadd.f32 %v7845, %v7830
        %v7847 = vrot.slane %v7846, 4
        %v7848 = vadd.f32 %v7846, %v7847
        %v7849 = vrot.slane %v7848, 2
        %v7850 = vadd.f32 %v7848, %v7849
        %v7851 = vrot.slane %v7850, 1
        %v7852 = vadd.f32 %v7850, %v7851
        %v7853 = vadd.f32 %v7801, %v7803
        %v7854 = vadd.f32 %v7853, %v7805
        %v7855 = vadd.f32 %v7854, %v7807
        %v7856 = vadd.f32 %v7855, %v7809
        %v7857 = vadd.f32 %v7856, %v7811
        %v7858 = vadd.f32 %v7857, %v7813
        %v7859 = vadd.f32 %v7858, %v7815
        %v7860 = vadd.f32 %v7859, %v7817
        %v7861 = vadd.f32 %v7860, %v7819
        %v7862 = vadd.f32 %v7861, %v7821
        %v7863 = vadd.f32 %v7862, %v7823
        %v7864 = vadd.f32 %v7863, %v7825
        %v7865 = vadd.f32 %v7864, %v7827
        %v7866 = vadd.f32 %v7865, %v7829
        %v7867 = vadd.f32 %v7866, %v7831
        %v7868 = vrot.slane %v7867, 4
        %v7869 = vadd.f32 %v7867, %v7868
        %v7870 = vrot.slane %v7869, 2
        %v7871 = vadd.f32 %v7869, %v7870
        %v7872 = vrot.slane %v7871, 1
        %v7873 = vadd.f32 %v7871, %v7872
        %v7874 = vmul.f32 %v7852, 0.088388346
        %v7875 = vmul.f32 %v7873, 0.088388346
        %v7876 = vmax.f32 %v7342, %v7418
        %v7877 = vmax.f32 %v7343, %v7419
        %v7878 = vmax.f32 %v7876, %v7494
        %v7879 = vmax.f32 %v7877, %v7495
        %v7880 = vmax.f32 %v7878, %v7570
        %v7881 = vmax.f32 %v7879, %v7571
        %v7882 = vmax.f32 %v7880, %v7646
        %v7883 = vmax.f32 %v7881, %v7647
        %v7884 = vmax.f32 %v7882, %v7722
        %v7885 = vmax.f32 %v7883, %v7723
        %v7886 = vmax.f32 %v7884, %v7798
        %v7887 = vmax.f32 %v7885, %v7799
        %v7888 = vmax.f32 %v7886, %v7874
        %v7889 = vmax.f32 %v7887, %v7875
        %v7890 = vsub.f32 %v7342, %v7888
        %v7891 = vsub.f32 %v7343, %v7889
        %v7892 = vmul.f32 %v7890, 1.442695
        %v7893 = vpow.pop %v7892
        %v7894 = vmul.f32 %v7891, 1.442695
        %v7895 = vpow.pop %v7894
        %v7896 = vsub.f32 %v7418, %v7888
        %v7897 = vsub.f32 %v7419, %v7889
        %v7898 = vmul.f32 %v7896, 1.442695
        %v7899 = vpow.pop %v7898
        %v7900 = vmul.f32 %v7897, 1.442695
        %v7901 = vpow.pop %v7900
        %v7902 = vsub.f32 %v7494, %v7888
        %v7903 = vsub.f32 %v7495, %v7889
        %v7904 = vmul.f32 %v7902, 1.442695
        %v7905 = vpow.pop %v7904
        %v7906 = vmul.f32 %v7903, 1.442695
        %v7907 = vpow.pop %v7906
        %v7908 = vsub.f32 %v7570, %v7888
        %v7909 = vsub.f32 %v7571, %v7889
        %v7910 = vmul.f32 %v7908, 1.442695
        %v7911 = vpow.pop %v7910
        %v7912 = vmul.f32 %v7909, 1.442695
        %v7913 = vpow.pop %v7912
        %v7914 = vsub.f32 %v7646, %v7888
        %v7915 = vsub.f32 %v7647, %v7889
        %v7916 = vmul.f32 %v7914, 1.442695
        %v7917 = vpow.pop %v7916
        %v7918 = vmul.f32 %v7915, 1.442695
        %v7919 = vpow.pop %v7918
        %v7920 = vsub.f32 %v7722, %v7888
        %v7921 = vsub.f32 %v7723, %v7889
        %v7922 = vmul.f32 %v7920, 1.442695
        %v7923 = vpow.pop %v7922
        %v7924 = vmul.f32 %v7921, 1.442695
        %v7925 = vpow.pop %v7924
        %v7926 = vsub.f32 %v7798, %v7888
        %v7927 = vsub.f32 %v7799, %v7889
        %v7928 = vmul.f32 %v7926, 1.442695
        %v7929 = vpow.pop %v7928
        %v7930 = vmul.f32 %v7927, 1.442695
        %v7931 = vpow.pop %v7930
        %v7932 = vsub.f32 %v7874, %v7888
        %v7933 = vsub.f32 %v7875, %v7889
        %v7934 = vmul.f32 %v7932, 1.442695
        %v7935 = vpow.pop %v7934
        %v7936 = vmul.f32 %v7933, 1.442695
        %v7937 = vpow.pop %v7936
        %v7938 = vadd.f32 %v7893, %v7899
        %v7939 = vadd.f32 %v7895, %v7901
        %v7940 = vadd.f32 %v7938, %v7905
        %v7941 = vadd.f32 %v7939, %v7907
        %v7942 = vadd.f32 %v7940, %v7911
        %v7943 = vadd.f32 %v7941, %v7913
        %v7944 = vadd.f32 %v7942, %v7917
        %v7945 = vadd.f32 %v7943, %v7919
        %v7946 = vadd.f32 %v7944, %v7923
        %v7947 = vadd.f32 %v7945, %v7925
        %v7948 = vadd.f32 %v7946, %v7929
        %v7949 = vadd.f32 %v7947, %v7931
        %v7950 = vadd.f32 %v7948, %v7935
        %v7951 = vadd.f32 %v7949, %v7937
        %v7952 = vrcp.pop %v7950
        %v7953 = vmul.f32 1.0, %v7952
        %v7954 = vrcp.pop %v7951
        %v7955 = vmul.f32 1.0, %v7954
        %v7956 = vmul.f32 %v7893, %v7953
        %v7957 = vmul.f32 %v7895, %v7955
        %v7958 = vmul.f32 %v7956, %v5244
        %v7959 = vmul.f32 %v7957, %v5245
        %v7960 = vmul.f32 %v7956, %v5260
        %v7961 = vmul.f32 %v7957, %v5261
        %v7962 = vmul.f32 %v7956, %v5276
        %v7963 = vmul.f32 %v7957, %v5277
        %v7964 = vmul.f32 %v7956, %v5292
        %v7965 = vmul.f32 %v7957, %v5293
        %v7966 = vmul.f32 %v7899, %v7953
        %v7967 = vmul.f32 %v7901, %v7955
        %v7968 = vmul.f32 %v7966, %v5246
        %v7969 = vmul.f32 %v7967, %v5247
        %v7970 = vmul.f32 %v7966, %v5262
        %v7971 = vmul.f32 %v7967, %v5263
        %v7972 = vmul.f32 %v7966, %v5278
        %v7973 = vmul.f32 %v7967, %v5279
        %v7974 = vmul.f32 %v7966, %v5294
        %v7975 = vmul.f32 %v7967, %v5295
        %v7976 = vadd.f32 %v7958, %v7968
        %v7977 = vadd.f32 %v7959, %v7969
        %v7978 = vadd.f32 %v7960, %v7970
        %v7979 = vadd.f32 %v7961, %v7971
        %v7980 = vadd.f32 %v7962, %v7972
        %v7981 = vadd.f32 %v7963, %v7973
        %v7982 = vadd.f32 %v7964, %v7974
        %v7983 = vadd.f32 %v7965, %v7975
        %v7984 = vmul.f32 %v7905, %v7953
        %v7985 = vmul.f32 %v7907, %v7955
        %v7986 = vmul.f32 %v7984, %v5248
        %v7987 = vmul.f32 %v7985, %v5249
        %v7988 = vmul.f32 %v7984, %v5264
        %v7989 = vmul.f32 %v7985, %v5265
        %v7990 = vmul.f32 %v7984, %v5280
        %v7991 = vmul.f32 %v7985, %v5281
        %v7992 = vmul.f32 %v7984, %v5296
        %v7993 = vmul.f32 %v7985, %v5297
        %v7994 = vadd.f32 %v7976, %v7986
        %v7995 = vadd.f32 %v7977, %v7987
        %v7996 = vadd.f32 %v7978, %v7988
        %v7997 = vadd.f32 %v7979, %v7989
        %v7998 = vadd.f32 %v7980, %v7990
        %v7999 = vadd.f32 %v7981, %v7991
        %v8000 = vadd.f32 %v7982, %v7992
        %v8001 = vadd.f32 %v7983, %v7993
        %v8002 = vmul.f32 %v7911, %v7953
        %v8003 = vmul.f32 %v7913, %v7955
        %v8004 = vmul.f32 %v8002, %v5250
        %v8005 = vmul.f32 %v8003, %v5251
        %v8006 = vmul.f32 %v8002, %v5266
        %v8007 = vmul.f32 %v8003, %v5267
        %v8008 = vmul.f32 %v8002, %v5282
        %v8009 = vmul.f32 %v8003, %v5283
        %v8010 = vmul.f32 %v8002, %v5298
        %v8011 = vmul.f32 %v8003, %v5299
        %v8012 = vadd.f32 %v7994, %v8004
        %v8013 = vadd.f32 %v7995, %v8005
        %v8014 = vadd.f32 %v7996, %v8006
        %v8015 = vadd.f32 %v7997, %v8007
        %v8016 = vadd.f32 %v7998, %v8008
        %v8017 = vadd.f32 %v7999, %v8009
        %v8018 = vadd.f32 %v8000, %v8010
        %v8019 = vadd.f32 %v8001, %v8011
        %v8020 = vmul.f32 %v7917, %v7953
        %v8021 = vmul.f32 %v7919, %v7955
        %v8022 = vmul.f32 %v8020, %v5252
        %v8023 = vmul.f32 %v8021, %v5253
        %v8024 = vmul.f32 %v8020, %v5268
        %v8025 = vmul.f32 %v8021, %v5269
        %v8026 = vmul.f32 %v8020, %v5284
        %v8027 = vmul.f32 %v8021, %v5285
        %v8028 = vmul.f32 %v8020, %v5300
        %v8029 = vmul.f32 %v8021, %v5301
        %v8030 = vadd.f32 %v8012, %v8022
        %v8031 = vadd.f32 %v8013, %v8023
        %v8032 = vadd.f32 %v8014, %v8024
        %v8033 = vadd.f32 %v8015, %v8025
        %v8034 = vadd.f32 %v8016, %v8026
        %v8035 = vadd.f32 %v8017, %v8027
        %v8036 = vadd.f32 %v8018, %v8028
        %v8037 = vadd.f32 %v8019, %v8029
        %v8038 = vmul.f32 %v7923, %v7953
        %v8039 = vmul.f32 %v7925, %v7955
        %v8040 = vmul.f32 %v8038, %v5254
        %v8041 = vmul.f32 %v8039, %v5255
        %v8042 = vmul.f32 %v8038, %v5270
        %v8043 = vmul.f32 %v8039, %v5271
        %v8044 = vmul.f32 %v8038, %v5286
        %v8045 = vmul.f32 %v8039, %v5287
        %v8046 = vmul.f32 %v8038, %v5302
        %v8047 = vmul.f32 %v8039, %v5303
        %v8048 = vadd.f32 %v8030, %v8040
        %v8049 = vadd.f32 %v8031, %v8041
        %v8050 = vadd.f32 %v8032, %v8042
        %v8051 = vadd.f32 %v8033, %v8043
        %v8052 = vadd.f32 %v8034, %v8044
        %v8053 = vadd.f32 %v8035, %v8045
        %v8054 = vadd.f32 %v8036, %v8046
        %v8055 = vadd.f32 %v8037, %v8047
        %v8056 = vmul.f32 %v7929, %v7953
        %v8057 = vmul.f32 %v7931, %v7955
        %v8058 = vmul.f32 %v8056, %v5256
        %v8059 = vmul.f32 %v8057, %v5257
        %v8060 = vmul.f32 %v8056, %v5272
        %v8061 = vmul.f32 %v8057, %v5273
        %v8062 = vmul.f32 %v8056, %v5288
        %v8063 = vmul.f32 %v8057, %v5289
        %v8064 = vmul.f32 %v8056, %v5304
        %v8065 = vmul.f32 %v8057, %v5305
        %v8066 = vadd.f32 %v8048, %v8058
        %v8067 = vadd.f32 %v8049, %v8059
        %v8068 = vadd.f32 %v8050, %v8060
        %v8069 = vadd.f32 %v8051, %v8061
        %v8070 = vadd.f32 %v8052, %v8062
        %v8071 = vadd.f32 %v8053, %v8063
        %v8072 = vadd.f32 %v8054, %v8064
        %v8073 = vadd.f32 %v8055, %v8065
        %v8074 = vmul.f32 %v7935, %v7953
        %v8075 = vmul.f32 %v7937, %v7955
        %v8076 = vmul.f32 %v8074, %v5258
        %v8077 = vmul.f32 %v8075, %v5259
        %v8078 = vmul.f32 %v8074, %v5274
        %v8079 = vmul.f32 %v8075, %v5275
        %v8080 = vmul.f32 %v8074, %v5290
        %v8081 = vmul.f32 %v8075, %v5291
        %v8082 = vmul.f32 %v8074, %v5306
        %v8083 = vmul.f32 %v8075, %v5307
        %v8084 = vadd.f32 %v8066, %v8076
        %v8085 = vadd.f32 %v8067, %v8077
        %v8086 = vadd.f32 %v8068, %v8078
        %v8087 = vadd.f32 %v8069, %v8079
        %v8088 = vadd.f32 %v8070, %v8080
        %v8089 = vadd.f32 %v8071, %v8081
        %v8090 = vadd.f32 %v8072, %v8082
        %v8091 = vadd.f32 %v8073, %v8083
        %v8092 = vld [vmem:[%s15] sm:$0xff]
        %v8093 = vld [vmem:[%s15 + $0x8] sm:$0xff]
        %v8094 = vld [vmem:[%s15 + $0x10] sm:$0xff]
        %v8095 = vld [vmem:[%s15 + $0x18] sm:$0xff]
        %v8096 = vld [vmem:[%s16] sm:$0xff]
        %v8097 = vld [vmem:[%s16 + $0x8] sm:$0xff]
        %v8098 = vld [vmem:[%s16 + $0x10] sm:$0xff]
        %v8099 = vld [vmem:[%s16 + $0x18] sm:$0xff]
        %8101 = vset.pattern.permute.xlu0 0
        %8102 = vperm.xlu0 %8101, %v8096
        %v8103 = vpop.permute.xlu0 %8102
        %8106 = vset.pattern.permute.xlu0 0
        %8107 = vperm.xlu0 %8106, %v8097
        %v8108 = vpop.permute.xlu0 %8107
        %8111 = vset.pattern.permute.xlu0 0
        %8112 = vperm.xlu0 %8111, %v8098
        %v8113 = vpop.permute.xlu0 %8112
        %8116 = vset.pattern.permute.xlu0 0
        %8117 = vperm.xlu0 %8116, %v8099
        %v8118 = vpop.permute.xlu0 %8117
        %v8121 = vsel %vm1107, %v8092, 0
        %v8124 = vsel %vm1107, %v8093, 0
        %v8127 = vsel %vm1107, %v8094, 0
        %v8130 = vsel %vm1107, %v8095, 0
        %8132 = vmatprep.subr.mxu0 0.0
        %8133 = vmatpush1.msra.mxu0 0.0
        %8134 = vmatprep.subr.mxu0 0.0
        %8135 = vmatpush1.msra.mxu0 0.0
        %8136 = vmatprep.subr.mxu0 0.0
        %8137 = vmatpush1.msra.mxu0 0.0
        %8138 = vmatprep.subr.mxu0 0.0
        %8139 = vmatpush1.msra.mxu0 0.0
        %8140 = vmatprep.subr.mxu0 0.0
        %8141 = vmatpush1.msra.mxu0 0.0
        %8142 = vmatprep.subr.mxu0 0.0
        %8143 = vmatpush1.msra.mxu0 0.0
        %8144 = vmatprep.subr.mxu0 0.0
        %8145 = vmatpush1.msra.mxu0 0.0
        %8146 = vmatprep.subr.mxu0 0.0
        %8147 = vmatpush1.msra.mxu0 0.0
        %8148 = vmatprep.subr.mxu0 %v3162
        %8149 = vmatpush1.msra.mxu0 %v3161
        %8150 = vmatprep.subr.mxu0 %v3160
        %8151 = vmatpush1.msra.mxu0 %v3159
        %8152 = vmatprep.subr.mxu0 %v3158
        %8153 = vmatpush1.msra.mxu0 %v3157
        %8154 = vmatprep.subr.mxu0 %v3156
        %8155 = vmatpush1.msra.mxu0 %v3155
        %8156 = vmatprep.subr.mxu0 %v8091
        %8157 = vmatpush1.msra.mxu0 %v8090
        %8158 = vmatprep.subr.mxu0 %v8089
        %8159 = vmatpush1.msra.mxu0 %v8088
        %8160 = vmatprep.subr.mxu0 %v8087
        %8161 = vmatpush1.msra.mxu0 %v8086
        %8162 = vmatprep.subr.mxu0 %v8085
        %8163 = vmatpush1.msra.mxu0 %v8084
        %8164 = vmatprep.subr.mxu0 0.0
        %8165 = vmatpush2.msra.mxu0 0.0
        %8166 = vmatprep.subr.mxu0 0.0
        %8167 = vmatpush2.msra.mxu0 0.0
        %8168 = vmatprep.subr.mxu0 0.0
        %8169 = vmatpush2.msra.mxu0 0.0
        %8170 = vmatprep.subr.mxu0 0.0
        %8171 = vmatpush2.msra.mxu0 0.0
        %8172 = vmatprep.subr.mxu0 0.0
        %8173 = vmatpush2.msra.mxu0 0.0
        %8174 = vmatprep.subr.mxu0 0.0
        %8175 = vmatpush2.msra.mxu0 0.0
        %8176 = vmatprep.subr.mxu0 0.0
        %8177 = vmatpush2.msra.mxu0 0.0
        %8178 = vmatprep.subr.mxu0 0.0
        %8179 = vmatpush2.msra.mxu0 0.0
        %8180 = vmatprep.subr.mxu0 0.0
        %8181 = vmatpush2.msra.mxu0 0.0
        %8182 = vmatprep.subr.mxu0 0.0
        %8183 = vmatpush2.msra.mxu0 0.0
        %8184 = vmatprep.subr.mxu0 0.0
        %8185 = vmatpush2.msra.mxu0 0.0
        %8186 = vmatprep.subr.mxu0 0.0
        %8187 = vmatpush2.msra.mxu0 0.0
        %8188 = vmatprep.subr.mxu0 0.0
        %8189 = vmatpush2.msra.mxu0 0.0
        %8190 = vmatprep.subr.mxu0 0.0
        %8191 = vmatpush2.msra.mxu0 0.0
        %8192 = vmatprep.subr.mxu0 0.0
        %8193 = vmatpush2.msra.mxu0 0.0
        %8194 = vmatprep.subr.mxu0 0.0
        %8195 = vmatpush2.msra.mxu0 0.0
        %8196 = vmatprep.mubr.f32.mxu0 0.0
        %8197 = vmatmul.mubr.f32.gmra.mxu0 %v8121
        %v8198 = vpop.f32.mrf.mxu0
        %v8199 = vadd.f32 %v8103, %v8198
        %v8200 = vpop.f32.mrf.mxu0
        %v8201 = vadd.f32 %v8103, %v8200
        %8202 = vmatprep.mubr.f32.mxu0 0.0
        %8203 = vmatmul.mubr.f32.gmra.mxu0 %v8124
        %v8204 = vpop.f32.mrf.mxu0
        %v8205 = vadd.f32 %v8108, %v8204
        %v8206 = vpop.f32.mrf.mxu0
        %v8207 = vadd.f32 %v8108, %v8206
        %8208 = vmatprep.mubr.f32.mxu0 0.0
        %8209 = vmatmul.mubr.f32.gmra.mxu0 %v8127
        %v8210 = vpop.f32.mrf.mxu0
        %v8211 = vadd.f32 %v8113, %v8210
        %v8212 = vpop.f32.mrf.mxu0
        %v8213 = vadd.f32 %v8113, %v8212
        %8214 = vmatprep.mubr.f32.mxu0 0.0
        %8215 = vmatmul.mubr.f32.gmra.mxu0 %v8130
        %v8216 = vpop.f32.mrf.mxu0
        %v8217 = vadd.f32 %v8118, %v8216
        %v8218 = vpop.f32.mrf.mxu0
        %v8219 = vadd.f32 %v8118, %v8218
        %8220 = vdwg.mxu0
        %v8221 = vmul.f32 %v8199, 0.05
        %v8222 = vmul.f32 %v8201, 0.05
        %v8223 = vmul.f32 %v8205, 0.05
        %v8224 = vmul.f32 %v8207, 0.05
        %v8225 = vmul.f32 %v8211, 0.05
        %v8226 = vmul.f32 %v8213, 0.05
        %v8227 = vmul.f32 %v8217, 0.05
        %v8228 = vmul.f32 %v8219, 0.05
        %v8229 = vmax.f32 %v8199, %v8221
        %v8230 = vmax.f32 %v8201, %v8222
        %v8231 = vmax.f32 %v8205, %v8223
        %v8232 = vmax.f32 %v8207, %v8224
        %v8233 = vmax.f32 %v8211, %v8225
        %v8234 = vmax.f32 %v8213, %v8226
        %v8235 = vmax.f32 %v8217, %v8227
        %v8236 = vmax.f32 %v8219, %v8228
        %v8237 = vld [vmem:[%s17] sm:$0x1]
        %v8238 = vld [vmem:[#allocation2] sm:$0x1]
        %8240 = vset.pattern.permute.xlu0 0
        %8241 = vperm.xlu0 %8240, %v8238
        %v8242 = vpop.permute.xlu0 %8241
        %v8244 = vlaneseq
        %v8245 = vshrl.u32 %v8244, 7
        %v8246 = vsub.s32 0, %v8245
        %v8247 = vrot.slane %v8242, %v8246
        %v8249 = vsel %vm2900, %v8237, 0
        %8251 = vmatprep.subr.mxu0 0.0
        %8252 = vmatpush1.msra.mxu0 0.0
        %8253 = vmatprep.subr.mxu0 0.0
        %8254 = vmatpush1.msra.mxu0 0.0
        %8255 = vmatprep.subr.mxu0 0.0
        %8256 = vmatpush1.msra.mxu0 0.0
        %8257 = vmatprep.subr.mxu0 0.0
        %8258 = vmatpush1.msra.mxu0 0.0
        %8259 = vmatprep.subr.mxu0 0.0
        %8260 = vmatpush1.msra.mxu0 0.0
        %8261 = vmatprep.subr.mxu0 0.0
        %8262 = vmatpush1.msra.mxu0 0.0
        %8263 = vmatprep.subr.mxu0 0.0
        %8264 = vmatpush1.msra.mxu0 0.0
        %8265 = vmatprep.subr.mxu0 0.0
        %8266 = vmatpush1.msra.mxu0 0.0
        %8267 = vmatprep.subr.mxu0 0.0
        %8268 = vmatpush1.msra.mxu0 0.0
        %8269 = vmatprep.subr.mxu0 0.0
        %8270 = vmatpush1.msra.mxu0 0.0
        %8271 = vmatprep.subr.mxu0 0.0
        %8272 = vmatpush1.msra.mxu0 0.0
        %8273 = vmatprep.subr.mxu0 0.0
        %8274 = vmatpush1.msra.mxu0 0.0
        %8275 = vmatprep.subr.mxu0 %v8236
        %8276 = vmatpush1.msra.mxu0 %v8235
        %8277 = vmatprep.subr.mxu0 %v8234
        %8278 = vmatpush1.msra.mxu0 %v8233
        %8279 = vmatprep.subr.mxu0 %v8232
        %8280 = vmatpush1.msra.mxu0 %v8231
        %8281 = vmatprep.subr.mxu0 %v8230
        %8282 = vmatpush1.msra.mxu0 %v8229
        %8283 = vmatprep.subr.mxu0 0.0
        %8284 = vmatpush2.msra.mxu0 0.0
        %8285 = vmatprep.subr.mxu0 0.0
        %8286 = vmatpush2.msra.mxu0 0.0
        %8287 = vmatprep.subr.mxu0 0.0
        %8288 = vmatpush2.msra.mxu0 0.0
        %8289 = vmatprep.subr.mxu0 0.0
        %8290 = vmatpush2.msra.mxu0 0.0
        %8291 = vmatprep.subr.mxu0 0.0
        %8292 = vmatpush2.msra.mxu0 0.0
        %8293 = vmatprep.subr.mxu0 0.0
        %8294 = vmatpush2.msra.mxu0 0.0
        %8295 = vmatprep.subr.mxu0 0.0
        %8296 = vmatpush2.msra.mxu0 0.0
        %8297 = vmatprep.subr.mxu0 0.0
        %8298 = vmatpush2.msra.mxu0 0.0
        %8299 = vmatprep.subr.mxu0 0.0
        %8300 = vmatpush2.msra.mxu0 0.0
        %8301 = vmatprep.subr.mxu0 0.0
        %8302 = vmatpush2.msra.mxu0 0.0
        %8303 = vmatprep.subr.mxu0 0.0
        %8304 = vmatpush2.msra.mxu0 0.0
        %8305 = vmatprep.subr.mxu0 0.0
        %8306 = vmatpush2.msra.mxu0 0.0
        %8307 = vmatprep.subr.mxu0 0.0
        %8308 = vmatpush2.msra.mxu0 0.0
        %8309 = vmatprep.subr.mxu0 0.0
        %8310 = vmatpush2.msra.mxu0 0.0
        %8311 = vmatprep.subr.mxu0 0.0
        %8312 = vmatpush2.msra.mxu0 0.0
        %8313 = vmatprep.subr.mxu0 0.0
        %8314 = vmatpush2.msra.mxu0 0.0
        %8315 = vmatprep.mubr.f32.mxu0 0.0
        %8316 = vmatmul.mubr.f32.gmra.mxu0 %v8249
        %v8317 = vpop.f32.mrf.mxu0
        %v8318 = vadd.f32 %v8247, %v8317
        %v8319 = vpop.f32.mrf.mxu0
        %v8320 = vadd.f32 %v8247, %v8319
        %8321 = vdwg.mxu0
        %v8324 = vcombine.low %v8318, %v8320
        %v8326 = vunpack.c.l.s4 1966171168
        %v8327 = vunpack.c.0.s8 %v8326
        %v8328 = vlaneseq
        %v8329 = vshrl.u32 %v8328, 7
        %v8330 = vsub.s32 %v8327, %v8329
        %v8331 = vrot.slane %v8324, %v8330
        %v8333 = vunpack.c.l.s4 1966171168
        %v8334 = vunpack.c.0.s8 %v8333
        %v8335 = vlaneseq
        %v8336 = vshrl.u32 %v8335, 7
        %v8337 = vsub.s32 %v8334, %v8336
        %v8338 = vrot.slane %v8331, %v8337
        %v8340 = vlaneseq
        %vm8341 = vcmp.ge.s32.totalorder %v8340, 0
        %vm8342 = vcmp.lt.s32.totalorder %v8340, 256
        %vm8343 = vmand %vm8341, %vm8342
        %8344 = vst.msk [vmem:[%s652] sm:$0x3] %vm8343, %v8338
        %s8345 = sand.u32 %s473, 1
        %s8346 = scalar_lea.sflag [#allocation4], %s8345
        %s8347 = sand.u32 %s473, 1
        %s8348 = smul.addr %s8347, 2
        %s8349 = scalar_lea.vmem [#allocation3], %s8348
        // Predicated region
        $region97: #{tpu_custom_call.1} parent=95 // pred_check
          %p8350 = pneg %p483
        $region98: #{tpu_custom_call.1} parent=95 // pred_check_branch
          %8352 = sbr.rel (%p8350) target = $region100
        $region99: #{tpu_custom_call.1} parent=95 // pred_region
          %s8353 = smul.u32 2, %s40
          %s8355 = ssub.s32 32, 32
          %8356 = vsyncadd %s8346, %s8355
          %s8357 = smul.addr %s39, 2
          %s8358 = sadd.s32 %s8353, %s8357
          %s8359 = smul.addr %s8358, 16
          %s8360 = scalar_lea.hbm %s19, %s8359
          %s8362 = sshll.u32 %s8349, 4
          %s8363 = int_to_ptr.vmem [resolvable:$true] %s8362
          %8365 = dma.vmem_to_hbm [thread:$0]  %s8363, 32, %s8360, %s8346
        $region100: #{tpu_custom_call.1} parent=95 // pred_fallthru
          _
      $region96: #{tpu_custom_call.1} parent=5 // pred_fallthru
        _
      %p8366 = scmp.le.s32.totalorder 2, %s30
      // Predicated region
      $region101: #{tpu_custom_call.1} parent=5 // pred_check
        %p8367 = pneg %p8366
      $region102: #{tpu_custom_call.1} parent=5 // pred_check_branch
        %8369 = sbr.rel (%p8367) target = $region104
      $region103: #{tpu_custom_call.1} parent=5 // pred_region
        %s8370 = ssub.s32 %s30, 2
        // Predicated region
        $region105: #{tpu_custom_call.1} parent=103 // pred_check
          %p8371 = pneg %p489
        $region106: #{tpu_custom_call.1} parent=103 // pred_check_branch
          %8373 = sbr.rel (%p8371) target = $region108
        $region107: #{tpu_custom_call.1} parent=103 // pred_region
          %s8374 = sand.u32 %s474, 1
          %s8375 = scalar_lea.sflag [#allocation4], %s8374
          %s8376 = sand.u32 %s474, 1
          %s8377 = smul.addr %s8376, 2
          %s8378 = scalar_lea.vmem [#allocation3], %s8377
          %8379 = dma.done %s8375, 32
        $region108: #{tpu_custom_call.1} parent=103 // pred_fallthru
          _
      $region104: #{tpu_custom_call.1} parent=5 // pred_fallthru
        _
    $region6: #{tpu_custom_call.1} parent=1 // loop_footer
      %s34 = sadd.s32 1, %s30
    $region7: #{tpu_custom_call.1} parent=1 // loop_footer_branch
      %29 = sbr.rel target = $region3
    $region8: #{tpu_custom_call.1} parent=1 // loop_exit
      _
    %8380 = vsyncpa [#allocation4], 1
    %s8381 = scalar_lea.sflag [#allocation4], 1
    %8382 = vsyncpa %s8381, 1

</llo_original>
